<compile_context>
chip_gen: v7x
topology: tpu7x:2x2x1
jax: 0.10.0
libtpu: 0.0.40
codegen_flags: <defaults>
</compile_context>

<pallas_src>
import functools

import numpy as np
import jax
import jax.numpy as jnp
from jax.experimental import pallas as pl
from jax.experimental.pallas import tpu as pltpu


# ----------------------------------------------------------------------------
# trace-time helpers (constants / layout glue)
# ----------------------------------------------------------------------------
def _pick_rows(H, W, target_lanes=2048):
    """Rows per spatial tile: whole rows, sublane-aligned, ~target_lanes wide."""
    if H * W <= target_lanes:
        return H
    target = max(1, target_lanes // W)
    cands = [r for r in range(8, H, 8)
             if H % r == 0 and r <= target and (r * W) % 128 == 0]
    return max(cands) if cands else H


def bilinear_matrix(out_size, in_size):
    # F.interpolate(..., mode='bilinear', align_corners=False) 1-D weights.
    i = jnp.arange(out_size, dtype=jnp.float32)
    src = (i + 0.5) * (in_size / out_size) - 0.5
    src = jnp.maximum(src, 0.0)
    i0 = jnp.minimum(jnp.floor(src).astype(jnp.int32), in_size - 1)
    i1 = jnp.minimum(i0 + 1, in_size - 1)
    frac = src - i0.astype(jnp.float32)
    A = jnp.zeros((out_size, in_size), jnp.float32)
    rows = jnp.arange(out_size)
    A = A.at[rows, i0].add(1.0 - frac)
    A = A.at[rows, i1].add(frac)
    return A


def stride3_select(w2i, w3):
    # 0/1 matrix (W2-6, W3) picking every 3rd column (max-pool W stride).
    m = np.zeros((w2i, w3), np.float32)
    for ow in range(w3):
        m[3 * ow, ow] = 1.0
    return jnp.asarray(m)


def stack9(w):
    # (O, I, 3, 3) -> (O, 9I) with column index (kh*3 + kw)*I + i.
    O, I = w.shape[0], w.shape[1]
    return w.transpose(2, 3, 1, 0).reshape(9 * I, O).T


# ----------------------------------------------------------------------------
# Kernel A: conv1 (1x1) + conv_f (1x1) fused, lane-dense tiles
# ----------------------------------------------------------------------------
def _head_kernel(w1_ref, b1_ref, wf_ref, bf_ref, x_ref, c1_ref, cf_ref):
    c1 = jnp.dot(w1_ref[...], x_ref[0],
                 preferred_element_type=jnp.float32) + b1_ref[...]
    c1_ref[0] = c1
    cf_ref[0] = jnp.dot(wf_ref[...], c1,
                        preferred_element_type=jnp.float32) + bf_ref[...]


def conv1_convf(p, x_flat, TM):
    N, C, HW = x_flat.shape
    f = C // 4
    return pl.pallas_call(
        _head_kernel,
        out_shape=(jax.ShapeDtypeStruct((N, f, HW), jnp.float32),
                   jax.ShapeDtypeStruct((N, f, HW), jnp.float32)),
        grid=(N, HW // TM),
        in_specs=[
            pl.BlockSpec((f, C), lambda n, m: (0, 0)),
            pl.BlockSpec((f, 1), lambda n, m: (0, 0)),
            pl.BlockSpec((f, f), lambda n, m: (0, 0)),
            pl.BlockSpec((f, 1), lambda n, m: (0, 0)),
            pl.BlockSpec((1, C, TM), lambda n, m: (n, 0, m)),
        ],
        out_specs=(pl.BlockSpec((1, f, TM), lambda n, m: (n, 0, m)),
                   pl.BlockSpec((1, f, TM), lambda n, m: (n, 0, m))),
        compiler_params=pltpu.CompilerParams(
            dimension_semantics=("parallel", "parallel")),
    )(p["w1"].reshape(f, C), p["b1"], p["wf"].reshape(f, f), p["bf"], x_flat)


# ----------------------------------------------------------------------------
# Kernel B: fused low-resolution chain
#   conv2 (s2) -> maxpool 7/3 -> conv_max -> conv3 -> conv3_ -> W-pass upsample
# ----------------------------------------------------------------------------
def _lowres_kernel(ph_ref, w2_ref, b2_ref, wm_ref, bm_ref, w3_ref, b3_ref,
                   w3b_ref, b3b_ref, sel_ref, awT_ref, u_ref,
                   x9_ref, canvas_ref, x93_ref,
                   *, f, H2, W2, H3, W3, W2i):
    nine_f = 9 * f

    # ---- conv2: 3x3 stride 2 -- the 9 taps are stacked along the contraction
    #      dim (K = 9f) and consumed by one batched matmul over output rows. --
    for kh in range(3):
        for kw in range(3):
            a, b = kh % 2, kw % 2
            dh, dw = kh // 2, kw // 2
            t = kh * 3 + kw
            x9_ref[:, t * f:(t + 1) * f, :] = \
                ph_ref[0, a, b, dh:dh + H2, :, dw:dw + W2]        # (H2, f, W2)
    w2b = jnp.broadcast_to(w2_ref[...][None], (H2, f, nine_f))
    out2 = jnp.einsum("hok,hkw->how", w2b, x9_ref[...],
                      preferred_element_type=jnp.float32)
    out2 = out2 + b2_ref[...][None]                               # (H2, f, W2)

    # ---- max_pool2d k=7 s=3: lane-dense shifted maxima on the VPU, then one
    #      tiny 0/1 selection matmul for the stride-3 column pick. -------------
    canvas_ref[...] = jnp.zeros(canvas_ref.shape, jnp.float32)
    for oh in range(H3):
        rmax = out2[3 * oh]
        for kh in range(1, 7):
            rmax = jnp.maximum(rmax, out2[3 * oh + kh])           # (f, W2)
        sw = rmax[:, 0:W2i]
        for kw in range(1, 7):
            sw = jnp.maximum(sw, rmax[:, kw:kw + W2i])            # (f, W2i)
        canvas_ref[oh + 1, :, 1:1 + W3] = jnp.dot(
            sw, sel_ref[...], preferred_element_type=jnp.float32)  # (f, W3)

    # ---- three 3x3 pad-1 convs via shifted slices of the zero-padded canvas
    #      (no O(S3^2) tap-selection matrices), taps folded into K = 9f. -------
    def conv3x3_p1(w9_ref, b_ref, relu):
        for kh in range(3):
            for kw in range(3):
                t = kh * 3 + kw
                x93_ref[:, t * f:(t + 1) * f, :] = \
                    canvas_ref[kh:kh + H3, :, kw:kw + W3]          # (H3, f, W3)
        wb = jnp.broadcast_to(w9_ref[...][None], (H3, f, nine_f))
        y = jnp.einsum("hok,hkw->how", wb, x93_ref[...],
                       preferred_element_type=jnp.float32)
        y = y + b_ref[...][None]
        if relu:
            y = jnp.maximum(y, 0.0)
        canvas_ref[1:1 + H3, :, 1:1 + W3] = y                      # border stays 0

    conv3x3_p1(wm_ref, bm_ref, True)      # conv_max + relu
    conv3x3_p1(w3_ref, b3_ref, True)      # conv3    + relu
    conv3x3_p1(w3b_ref, b3b_ref, False)   # conv3_

    # ---- W-pass of the separable bilinear upsample; the H-pass is fused into
    #      the gate kernel so the full-res c3_up never touches HBM. ------------
    for h3 in range(H3):
        row = canvas_ref[1 + h3, :, 1:1 + W3]                      # (f, W3)
        u_ref[0, :, h3, :] = jnp.dot(row, awT_ref[...],
                                     preferred_element_type=jnp.float32)


def lowres_chain(phases, w2s, b2, wms, bm, w3s, b3, w3bs, b3b, sel, awT,
                 *, N, f, Hh, Wh, H2, W2, H3, W3, W):
    W2i = W2 - 6
    kernel = functools.partial(_lowres_kernel, f=f, H2=H2, W2=W2,
                               H3=H3, W3=W3, W2i=W2i)
    return pl.pallas_call(
        kernel,
        out_shape=jax.ShapeDtypeStruct((N, f, H3, W), jnp.float32),
        grid=(N,),
        in_specs=[
            pl.BlockSpec((1, 2, 2, Hh, f, Wh), lambda n: (n, 0, 0, 0, 0, 0)),
            pl.BlockSpec((f, 9 * f), lambda n: (0, 0)),
            pl.BlockSpec((f, 1), lambda n: (0, 0)),
            pl.BlockSpec((f, 9 * f), lambda n: (0, 0)),
            pl.BlockSpec((f, 1), lambda n: (0, 0)),
            pl.BlockSpec((f, 9 * f), lambda n: (0, 0)),
            pl.BlockSpec((f, 1), lambda n: (0, 0)),
            pl.BlockSpec((f, 9 * f), lambda n: (0, 0)),
            pl.BlockSpec((f, 1), lambda n: (0, 0)),
            pl.BlockSpec((W2i, W3), lambda n: (0, 0)),
            pl.BlockSpec((W3, W), lambda n: (0, 0)),
        ],
        out_specs=pl.BlockSpec((1, f, H3, W), lambda n: (n, 0, 0, 0)),
        scratch_shapes=[pltpu.VMEM((H2, 9 * f, W2), jnp.float32),
                        pltpu.VMEM((H3 + 2, f, W3 + 2), jnp.float32),
                        pltpu.VMEM((H3, 9 * f, W3), jnp.float32)],
        compiler_params=pltpu.CompilerParams(
            dimension_semantics=("parallel",),
            vmem_limit_bytes=64 * 1024 * 1024),
    )(phases, w2s, b2, wms, bm, w3s, b3, w3bs, b3b, sel, awT)


# ----------------------------------------------------------------------------
# Kernel C: gate = x * sigmoid(conv4(upsample_H(u) + cf)), lane-dense row tiles
# ----------------------------------------------------------------------------
def _gate_kernel(w4_ref, b4_ref, ah_ref, u_ref, cf_ref, x_ref, o_ref, s_ref,
                 *, f, TR, W):
    H3 = ah_ref.shape[1]
    # H-pass of the bilinear upsample for this row tile (batched over f).
    ah_b = jnp.broadcast_to(ah_ref[...][None], (f, TR, H3))
    up = jnp.einsum("fth,fhw->ftw", ah_b, u_ref[0],
                    preferred_element_type=jnp.float32)            # (f, TR, W)
    # s = c3_up + cf, assembled row-by-row into a flat (f, TR*W) scratch.
    for r in range(TR):
        s_ref[:, r * W:(r + 1) * W] = (up[:, r, :]
                                       + cf_ref[0, :, r * W:(r + 1) * W])
    c4 = jnp.dot(w4_ref[...], s_ref[...],
                 preferred_element_type=jnp.float32) + b4_ref[...]
    o_ref[0] = (x_ref[0] * jax.nn.sigmoid(c4)).astype(o_ref.dtype)


def gate_upsample(w4, b4, A_h, u, cf, x_flat, TR):
    N, C, HW = x_flat.shape
    f, H3, W = u.shape[1], u.shape[2], u.shape[3]
    TM = TR * W
    kernel = functools.partial(_gate_kernel, f=f, TR=TR, W=W)
    return pl.pallas_call(
        kernel,
        out_shape=jax.ShapeDtypeStruct((N, C, HW), jnp.float32),
        grid=(N, HW // TM),
        in_specs=[
            pl.BlockSpec((C, f), lambda n, m: (0, 0)),
            pl.BlockSpec((C, 1), lambda n, m: (0, 0)),
            pl.BlockSpec((TR, H3), lambda n, m: (m, 0)),
            pl.BlockSpec((1, f, H3, W), lambda n, m: (n, 0, 0, 0)),
            pl.BlockSpec((1, f, TM), lambda n, m: (n, 0, m)),
            pl.BlockSpec((1, C, TM), lambda n, m: (n, 0, m)),
        ],
        out_specs=pl.BlockSpec((1, C, TM), lambda n, m: (n, 0, m)),
        scratch_shapes=[pltpu.VMEM((f, TM), jnp.float32)],
        compiler_params=pltpu.CompilerParams(
            dimension_semantics=("parallel", "parallel")),
    )(w4, b4, A_h, u, cf, x_flat)


# ----------------------------------------------------------------------------
# ESA forward
# ----------------------------------------------------------------------------
def esa_forward(x, p):
    N, C, H, W = x.shape
    f = C // 4
    HW = H * W

    H2, W2 = (H - 3) // 2 + 1, (W - 3) // 2 + 1
    H3, W3 = (H2 - 7) // 3 + 1, (W2 - 7) // 3 + 1
    assert H3 >= 1 and W3 >= 1, "input spatial size too small for ESA"

    TR = _pick_rows(H, W)          # rows per tile (whole rows, lane-dense)
    TM = TR * W

    x_flat = x.reshape(N, C, HW)

    # Kernel A: conv1 (1x1) + conv_f (1x1), fused, lane-dense row tiles.
    c1_, cf = conv1_convf(p, x_flat, TM)                          # (N, f, HW) x2

    # Phase decomposition of c1_ for the stride-2 conv taps (no im2col in HBM).
    # TODO(synk): fold this XLA transpose into Kernel A/B (needs lane-strided
    # in-kernel slicing) to save one c1_-sized HBM round trip.
    c1_img = c1_.reshape(N, f, H, W)
    Hp, Wp = H + (H % 2), W + (W % 2)
    if (Hp, Wp) != (H, W):
        c1_img = jnp.pad(c1_img, ((0, 0), (0, 0), (0, Hp - H), (0, Wp - W)))
    Hh, Wh = Hp // 2, Wp // 2
    phases = c1_img.reshape(N, f, Hh, 2, Wh, 2).transpose(0, 3, 5, 2, 1, 4)
    # phases[n, a, b, hh, c, ww] = c1_[n, c, 2*hh + a, 2*ww + b]

    sel = stride3_select(W2 - 6, W3)                              # (W2-6, W3)
    A_h = bilinear_matrix(H, H3)                                  # (H, H3)
    A_wT = bilinear_matrix(W, W3).T                               # (W3, W)

    # Kernel B: low-res chain, emits only the W-upsampled low-res c3.
    u = lowres_chain(phases, stack9(p["w2"]), p["b2"],
                     stack9(p["wm"]), p["bm"],
                     stack9(p["w3"]), p["b3"],
                     stack9(p["w3_"]), p["b3_"], sel, A_wT,
                     N=N, f=f, Hh=Hh, Wh=Wh, H2=H2, W2=W2,
                     H3=H3, W3=W3, W=W)                           # (N, f, H3, W)

    # Kernel C: H-pass upsample + conv4 + sigmoid gate.
    out = gate_upsample(p["w4"].reshape(C, f), p["b4"], A_h, u, cf, x_flat, TR)
    return out.reshape(N, C, H, W)


# ----------------------------------------------------------------------------
# Parameters (deterministic synthetic init) and pure-JAX reference
# ----------------------------------------------------------------------------
def init_params(key, n_feats):
    f = n_feats // 4
    shapes = {
        "w1": (f, n_feats, 1, 1), "b1": (f,),
        "wf": (f, f, 1, 1), "bf": (f,),
        "wm": (f, f, 3, 3), "bm": (f,),
        "w2": (f, f, 3, 3), "b2": (f,),
        "w3": (f, f, 3, 3), "b3": (f,),
        "w3_": (f, f, 3, 3), "b3_": (f,),
        "w4": (n_feats, f, 1, 1), "b4": (n_feats,),
    }
    names = sorted(shapes)
    keys = jax.random.split(key, len(names))
    params = {}
    for k_, name in zip(keys, names):
        v = 0.1 * jax.random.normal(k_, shapes[name], jnp.float32)
        if name.startswith("b"):
            v = v.reshape(-1, 1)
        params[name] = v
    return params


def ref_forward(x, p):
    # Pure-JAX reference (lax convs / reduce_window) for validation.
    N, C, H, W = x.shape
    dn = ("NCHW", "OIHW", "NCHW")

    def conv(z, w, b, stride=1, pad=0):
        y = jax.lax.conv_general_dilated(
            z, w, (stride, stride), [(pad, pad), (pad, pad)],
            dimension_numbers=dn)
        return y + b.reshape(1, -1, 1, 1)

    c1_ = conv(x, p["w1"], p["b1"])
    c1 = conv(c1_, p["w2"], p["b2"], stride=2)
    v_max = jax.lax.reduce_window(c1, -jnp.inf, jax.lax.max,
                                  (1, 1, 7, 7), (1, 1, 3, 3), "VALID")
    v_range = jax.nn.relu(conv(v_max, p["wm"], p["bm"], pad=1))
    c3 = jax.nn.relu(conv(v_range, p["w3"], p["b3"], pad=1))
    c3 = conv(c3, p["w3_"], p["b3_"], pad=1)
    h3, w3 = c3.shape[2], c3.shape[3]
    A_h = bilinear_matrix(H, h3)
    A_w = bilinear_matrix(W, w3)
    c3_up = jnp.einsum("Hh,nchw,Ww->ncHW", A_h, c3, A_w)
    cf = conv(c1_, p["wf"], p["bf"])
    c4 = conv(c3_up + cf, p["w4"], p["b4"])
    return x * jax.nn.sigmoid(c4)


if __name__ == "__main__":
    key = jax.random.PRNGKey(0)
    kx, kp = jax.random.split(key)

    N, C, H, W = 2, 16, 32, 32        # n_feats=16 -> f=4
    x = jax.random.normal(kx, (N, C, H, W), jnp.float32)
    params = init_params(kp, C)

    out = jax.jit(esa_forward)(x, params)
    out = jax.block_until_ready(out)

    ref = ref_forward(x, params)
    assert out.shape == x.shape and out.dtype == x.dtype
    max_err = float(jnp.max(jnp.abs(out - ref)))
    assert max_err < 2e-3, f"mismatch vs reference: {max_err}"

    print("KERNEL_OK")
</pallas_src>

<mosaic_0001>
module attributes {stable_mosaic.version = 11 : i64} {
  func.func private @main(%arg0: i32) attributes {dimension_semantics = [#tpu.dimension_semantics<core_parallel>], iteration_bounds = array<i64: 2>, tpu.core_type = #tpu.core_type<sc_scalar_subcore>, window_params = []} {
    return
  }
}

module attributes {stable_mosaic.version = 11 : i64} {
  func.func private @main(%arg0: i32) attributes {dimension_semantics = [#tpu.dimension_semantics<core_parallel>], iteration_bounds = array<i64: 2>, tpu.core_type = #tpu.core_type<sc_scalar_subcore>, window_params = []} {
    return
  }
}

module attributes {stable_mosaic.version = 11 : i64} {
  func.func @_head_kernel(%arg0: i32, %arg1: i32, %arg2: memref<4x16xf32, #tpu.memory_space<vmem>>, %arg3: memref<4x1xf32, #tpu.memory_space<vmem>>, %arg4: memref<4x4xf32, #tpu.memory_space<vmem>>, %arg5: memref<4x1xf32, #tpu.memory_space<vmem>>, %arg6: memref<1x16x1024xf32, #tpu.memory_space<vmem>>, %arg7: memref<1x4x1024xf32, #tpu.memory_space<vmem>>, %arg8: memref<1x4x1024xf32, #tpu.memory_space<vmem>>) attributes {dimension_semantics = [#tpu.dimension_semantics<parallel>, #tpu.dimension_semantics<parallel>], iteration_bounds = array<i64: 2, 1>, scalar_prefetch = 0 : i64, scratch_operands = 0 : i64, tpu.core_type = #tpu.core_type<tc>, window_params = [{pipeline_mode = #tpu.pipeline_mode<synchronous>, transform_indices = @transform_0, window_bounds = array<i64: 4, 16>}, {pipeline_mode = #tpu.pipeline_mode<synchronous>, transform_indices = @transform_1, window_bounds = array<i64: 4, 1>}, {pipeline_mode = #tpu.pipeline_mode<synchronous>, transform_indices = @transform_2, window_bounds = array<i64: 4, 4>}, {pipeline_mode = #tpu.pipeline_mode<synchronous>, transform_indices = @transform_3, window_bounds = array<i64: 4, 1>}, {transform_indices = @transform_4, window_bounds = array<i64: 1, 16, 1024>}, {transform_indices = @transform_5, window_bounds = array<i64: 1, 4, 1024>}, {transform_indices = @transform_6, window_bounds = array<i64: 1, 4, 1024>}]} {
    %c0 = arith.constant 0 : index
    %c0_0 = arith.constant 0 : index
    %0 = vector.load %arg2[%c0, %c0_0] : memref<4x16xf32, #tpu.memory_space<vmem>>, vector<4x16xf32>
    %c0_1 = arith.constant 0 : index
    %c0_2 = arith.constant 0 : index
    %c0_3 = arith.constant 0 : index
    %1 = vector.load %arg6[%c0_1, %c0_2, %c0_3] : memref<1x16x1024xf32, #tpu.memory_space<vmem>>, vector<1x16x1024xf32>
    %2 = vector.shape_cast %1 : vector<1x16x1024xf32> to vector<16x1024xf32>
    %cst = arith.constant dense<0.000000e+00> : vector<4x1024xf32>
    %3 = tpu.matmul %0, %2, %cst {dimension_numbers = #tpu.dot_dimension_numbers<[1], [0], [0], [1], [0, 0, 1, 1], [], []>} : vector<4x16xf32>, vector<16x1024xf32>, vector<4x1024xf32> -> vector<4x1024xf32>
    %c0_4 = arith.constant 0 : index
    %c0_5 = arith.constant 0 : index
    %4 = vector.load %arg3[%c0_4, %c0_5] : memref<4x1xf32, #tpu.memory_space<vmem>>, vector<4x1xf32>
    %5 = vector.broadcast %4 : vector<4x1xf32> to vector<4x1024xf32>
    %6 = arith.addf %3, %5 : vector<4x1024xf32>
    %c0_6 = arith.constant 0 : index
    %c0_7 = arith.constant 0 : index
    %c0_8 = arith.constant 0 : index
    %7 = vector.load %arg7[%c0_6, %c0_7, %c0_8] : memref<1x4x1024xf32, #tpu.memory_space<vmem>>, vector<1x4x1024xf32>
    %8 = vector.shape_cast %7 : vector<1x4x1024xf32> to vector<4x1024xf32>
    %9 = vector.shape_cast %6 : vector<4x1024xf32> to vector<1x4x1024xf32>
    tpu.vector_store %arg7[%c0_6, %c0_7, %c0_8], %9 {strides = array<i32>} : memref<1x4x1024xf32, #tpu.memory_space<vmem>>, vector<1x4x1024xf32>,
    %c0_9 = arith.constant 0 : index
    %c0_10 = arith.constant 0 : index
    %10 = vector.load %arg4[%c0_9, %c0_10] : memref<4x4xf32, #tpu.memory_space<vmem>>, vector<4x4xf32>
    %cst_11 = arith.constant dense<0.000000e+00> : vector<4x1024xf32>
    %11 = tpu.matmul %10, %6, %cst_11 {dimension_numbers = #tpu.dot_dimension_numbers<[1], [0], [0], [1], [0, 0, 1, 1], [], []>} : vector<4x4xf32>, vector<4x1024xf32>, vector<4x1024xf32> -> vector<4x1024xf32>
    %c0_12 = arith.constant 0 : index
    %c0_13 = arith.constant 0 : index
    %12 = vector.load %arg5[%c0_12, %c0_13] : memref<4x1xf32, #tpu.memory_space<vmem>>, vector<4x1xf32>
    %13 = vector.broadcast %12 : vector<4x1xf32> to vector<4x1024xf32>
    %14 = arith.addf %11, %13 : vector<4x1024xf32>
    %c0_14 = arith.constant 0 : index
    %c0_15 = arith.constant 0 : index
    %c0_16 = arith.constant 0 : index
    %15 = vector.load %arg8[%c0_14, %c0_15, %c0_16] : memref<1x4x1024xf32, #tpu.memory_space<vmem>>, vector<1x4x1024xf32>
    %16 = vector.shape_cast %15 : vector<1x4x1024xf32> to vector<4x1024xf32>
    %17 = vector.shape_cast %14 : vector<4x1024xf32> to vector<1x4x1024xf32>
    tpu.vector_store %arg8[%c0_14, %c0_15, %c0_16], %17 {strides = array<i32>} : memref<1x4x1024xf32, #tpu.memory_space<vmem>>, vector<1x4x1024xf32>,
    return
  }
  func.func @transform_0(%arg0: i32, %arg1: i32) -> (i32, i32) {
    %c0_i32 = arith.constant 0 : i32
    %c0_i32_0 = arith.constant 0 : i32
    %c0_i32_1 = arith.constant 0 : i32
    return %c0_i32, %c0_i32_0 : i32, i32
  }
  func.func @transform_1(%arg0: i32, %arg1: i32) -> (i32, i32) {
    %c0_i32 = arith.constant 0 : i32
    %c0_i32_0 = arith.constant 0 : i32
    %c0_i32_1 = arith.constant 0 : i32
    return %c0_i32, %c0_i32_0 : i32, i32
  }
  func.func @transform_2(%arg0: i32, %arg1: i32) -> (i32, i32) {
    %c0_i32 = arith.constant 0 : i32
    %c0_i32_0 = arith.constant 0 : i32
    %c0_i32_1 = arith.constant 0 : i32
    return %c0_i32, %c0_i32_0 : i32, i32
  }
  func.func @transform_3(%arg0: i32, %arg1: i32) -> (i32, i32) {
    %c0_i32 = arith.constant 0 : i32
    %c0_i32_0 = arith.constant 0 : i32
    %c0_i32_1 = arith.constant 0 : i32
    return %c0_i32, %c0_i32_0 : i32, i32
  }
  func.func @transform_4(%arg0: i32, %arg1: i32) -> (i32, i32, i32) {
    %c0_i32 = arith.constant 0 : i32
    %c0_i32_0 = arith.constant 0 : i32
    return %arg0, %c0_i32, %arg1 : i32, i32, i32
  }
  func.func @transform_5(%arg0: i32, %arg1: i32) -> (i32, i32, i32) {
    %c0_i32 = arith.constant 0 : i32
    %c0_i32_0 = arith.constant 0 : i32
    return %arg0, %c0_i32, %arg1 : i32, i32, i32
  }
  func.func @transform_6(%arg0: i32, %arg1: i32) -> (i32, i32, i32) {
    %c0_i32 = arith.constant 0 : i32
    %c0_i32_0 = arith.constant 0 : i32
    return %arg0, %c0_i32, %arg1 : i32, i32, i32
  }
}

module attributes {stable_mosaic.version = 11 : i64} {
  func.func @_gate_kernel(%arg0: i32, %arg1: i32, %arg2: memref<16x4xf32, #tpu.memory_space<vmem>>, %arg3: memref<16x1xf32, #tpu.memory_space<vmem>>, %arg4: memref<32x3xf32, #tpu.memory_space<vmem>>, %arg5: memref<1x4x3x32xf32, #tpu.memory_space<vmem>>, %arg6: memref<1x4x1024xf32, #tpu.memory_space<vmem>>, %arg7: memref<1x16x1024xf32, #tpu.memory_space<vmem>>, %arg8: memref<1x16x1024xf32, #tpu.memory_space<vmem>>, %arg9: memref<4x1024xf32, #tpu.memory_space<vmem>>) attributes {dimension_semantics = [#tpu.dimension_semantics<parallel>, #tpu.dimension_semantics<parallel>], iteration_bounds = array<i64: 2, 1>, scalar_prefetch = 0 : i64, scratch_operands = 1 : i64, tpu.core_type = #tpu.core_type<tc>, window_params = [{pipeline_mode = #tpu.pipeline_mode<synchronous>, transform_indices = @transform_0, window_bounds = array<i64: 16, 4>}, {pipeline_mode = #tpu.pipeline_mode<synchronous>, transform_indices = @transform_1, window_bounds = array<i64: 16, 1>}, {transform_indices = @transform_2, window_bounds = array<i64: 32, 3>}, {transform_indices = @transform_3, window_bounds = array<i64: 1, 4, 3, 32>}, {transform_indices = @transform_4, window_bounds = array<i64: 1, 4, 1024>}, {transform_indices = @transform_5, window_bounds = array<i64: 1, 16, 1024>}, {transform_indices = @transform_6, window_bounds = array<i64: 1, 16, 1024>}]} {
    %c0 = arith.constant 0 : index
    %c0_0 = arith.constant 0 : index
    %0 = vector.load %arg4[%c0, %c0_0] : memref<32x3xf32, #tpu.memory_space<vmem>>, vector<32x3xf32>
    %1 = vector.shape_cast %0 : vector<32x3xf32> to vector<1x32x3xf32>
    %2 = vector.shape_cast %1 : vector<1x32x3xf32> to vector<1x32x3xf32>
    %3 = vector.broadcast %2 : vector<1x32x3xf32> to vector<4x32x3xf32>
    %c0_1 = arith.constant 0 : index
    %c0_2 = arith.constant 0 : index
    %c0_3 = arith.constant 0 : index
    %c0_4 = arith.constant 0 : index
    %4 = vector.load %arg5[%c0_1, %c0_2, %c0_3, %c0_4] : memref<1x4x3x32xf32, #tpu.memory_space<vmem>>, vector<1x4x3x32xf32>
    %5 = vector.shape_cast %4 : vector<1x4x3x32xf32> to vector<4x3x32xf32>
    "tpu.trace_start"() <{level = 10 : i32, message = "fth,fhw->ftw"}> : () -> ()
    %cst = arith.constant dense<0.000000e+00> : vector<4x32x32xf32>
    %6 = tpu.matmul %3, %5, %cst {dimension_numbers = #tpu.dot_dimension_numbers<[2], [1], [1], [2], [0, 0, 0, 1, 1, 2], [0], [0]>} : vector<4x32x3xf32>, vector<4x3x32xf32>, vector<4x32x32xf32> -> vector<4x32x32xf32>
    "tpu.trace_stop"() : () -> ()
    %7 = vector.extract_strided_slice %6 {offsets = [0, 0, 0], sizes = [4, 1, 32], strides = [1, 1, 1]} : vector<4x32x32xf32> to vector<4x1x32xf32>
    %8 = vector.shape_cast %7 : vector<4x1x32xf32> to vector<4x32xf32>
    %c0_5 = arith.constant 0 : index
    %c0_6 = arith.constant 0 : index
    %c0_7 = arith.constant 0 : index
    %9 = vector.load %arg6[%c0_5, %c0_6, %c0_7] : memref<1x4x1024xf32, #tpu.memory_space<vmem>>, vector<1x4x32xf32>
    %10 = vector.shape_cast %9 : vector<1x4x32xf32> to vector<4x32xf32>
    %11 = arith.addf %8, %10 : vector<4x32xf32>
    %c0_8 = arith.constant 0 : index
    %c0_9 = arith.constant 0 : index
    %12 = vector.load %arg9[%c0_8, %c0_9] : memref<4x1024xf32, #tpu.memory_space<vmem>>, vector<4x32xf32>
    tpu.vector_store %arg9[%c0_8, %c0_9], %11 {strides = array<i32>} : memref<4x1024xf32, #tpu.memory_space<vmem>>, vector<4x32xf32>,
    %13 = vector.extract_strided_slice %6 {offsets = [0, 1, 0], sizes = [4, 1, 32], strides = [1, 1, 1]} : vector<4x32x32xf32> to vector<4x1x32xf32>
    %14 = vector.shape_cast %13 : vector<4x1x32xf32> to vector<4x32xf32>
    %c0_10 = arith.constant 0 : index
    %c0_11 = arith.constant 0 : index
    %c32 = arith.constant 32 : index
    %15 = vector.load %arg6[%c0_10, %c0_11, %c32] : memref<1x4x1024xf32, #tpu.memory_space<vmem>>, vector<1x4x32xf32>
    %16 = vector.shape_cast %15 : vector<1x4x32xf32> to vector<4x32xf32>
    %17 = arith.addf %14, %16 : vector<4x32xf32>
    %c0_12 = arith.constant 0 : index
    %c32_13 = arith.constant 32 : index
    %18 = vector.load %arg9[%c0_12, %c32_13] : memref<4x1024xf32, #tpu.memory_space<vmem>>, vector<4x32xf32>
    tpu.vector_store %arg9[%c0_12, %c32_13], %17 {strides = array<i32>} : memref<4x1024xf32, #tpu.memory_space<vmem>>, vector<4x32xf32>,
    %19 = vector.extract_strided_slice %6 {offsets = [0, 2, 0], sizes = [4, 1, 32], strides = [1, 1, 1]} : vector<4x32x32xf32> to vector<4x1x32xf32>
    %20 = vector.shape_cast %19 : vector<4x1x32xf32> to vector<4x32xf32>
    %c0_14 = arith.constant 0 : index
    %c0_15 = arith.constant 0 : index
    %c64 = arith.constant 64 : index
    %21 = vector.load %arg6[%c0_14, %c0_15, %c64] : memref<1x4x1024xf32, #tpu.memory_space<vmem>>, vector<1x4x32xf32>
    %22 = vector.shape_cast %21 : vector<1x4x32xf32> to vector<4x32xf32>
    %23 = arith.addf %20, %22 : vector<4x32xf32>
    %c0_16 = arith.constant 0 : index
    %c64_17 = arith.constant 64 : index
    %24 = vector.load %arg9[%c0_16, %c64_17] : memref<4x1024xf32, #tpu.memory_space<vmem>>, vector<4x32xf32>
    tpu.vector_store %arg9[%c0_16, %c64_17], %23 {strides = array<i32>} : memref<4x1024xf32, #tpu.memory_space<vmem>>, vector<4x32xf32>,
    %25 = vector.extract_strided_slice %6 {offsets = [0, 3, 0], sizes = [4, 1, 32], strides = [1, 1, 1]} : vector<4x32x32xf32> to vector<4x1x32xf32>
    %26 = vector.shape_cast %25 : vector<4x1x32xf32> to vector<4x32xf32>
    %c0_18 = arith.constant 0 : index
    %c0_19 = arith.constant 0 : index
    %c96 = arith.constant 96 : index
    %27 = vector.load %arg6[%c0_18, %c0_19, %c96] : memref<1x4x1024xf32, #tpu.memory_space<vmem>>, vector<1x4x32xf32>
    %28 = vector.shape_cast %27 : vector<1x4x32xf32> to vector<4x32xf32>
    %29 = arith.addf %26, %28 : vector<4x32xf32>
    %c0_20 = arith.constant 0 : index
    %c96_21 = arith.constant 96 : index
    %30 = vector.load %arg9[%c0_20, %c96_21] : memref<4x1024xf32, #tpu.memory_space<vmem>>, vector<4x32xf32>
    tpu.vector_store %arg9[%c0_20, %c96_21], %29 {strides = array<i32>} : memref<4x1024xf32, #tpu.memory_space<vmem>>, vector<4x32xf32>,
    %31 = vector.extract_strided_slice %6 {offsets = [0, 4, 0], sizes = [4, 1, 32], strides = [1, 1, 1]} : vector<4x32x32xf32> to vector<4x1x32xf32>
    %32 = vector.shape_cast %31 : vector<4x1x32xf32> to vector<4x32xf32>
    %c0_22 = arith.constant 0 : index
    %c0_23 = arith.constant 0 : index
    %c128 = arith.constant 128 : index
    %33 = vector.load %arg6[%c0_22, %c0_23, %c128] : memref<1x4x1024xf32, #tpu.memory_space<vmem>>, vector<1x4x32xf32>
    %34 = vector.shape_cast %33 : vector<1x4x32xf32> to vector<4x32xf32>
    %35 = arith.addf %32, %34 : vector<4x32xf32>
    %c0_24 = arith.constant 0 : index
    %c128_25 = arith.constant 128 : index
    %36 = vector.load %arg9[%c0_24, %c128_25] : memref<4x1024xf32, #tpu.memory_space<vmem>>, vector<4x32xf32>
    tpu.vector_store %arg9[%c0_24, %c128_25], %35 {strides = array<i32>} : memref<4x1024xf32, #tpu.memory_space<vmem>>, vector<4x32xf32>,
    %37 = vector.extract_strided_slice %6 {offsets = [0, 5, 0], sizes = [4, 1, 32], strides = [1, 1, 1]} : vector<4x32x32xf32> to vector<4x1x32xf32>
    %38 = vector.shape_cast %37 : vector<4x1x32xf32> to vector<4x32xf32>
    %c0_26 = arith.constant 0 : index
    %c0_27 = arith.constant 0 : index
    %c160 = arith.constant 160 : index
    %39 = vector.load %arg6[%c0_26, %c0_27, %c160] : memref<1x4x1024xf32, #tpu.memory_space<vmem>>, vector<1x4x32xf32>
    %40 = vector.shape_cast %39 : vector<1x4x32xf32> to vector<4x32xf32>
    %41 = arith.addf %38, %40 : vector<4x32xf32>
    %c0_28 = arith.constant 0 : index
    %c160_29 = arith.constant 160 : index
    %42 = vector.load %arg9[%c0_28, %c160_29] : memref<4x1024xf32, #tpu.memory_space<vmem>>, vector<4x32xf32>
    tpu.vector_store %arg9[%c0_28, %c160_29], %41 {strides = array<i32>} : memref<4x1024xf32, #tpu.memory_space<vmem>>, vector<4x32xf32>,
    %43 = vector.extract_strided_slice %6 {offsets = [0, 6, 0], sizes = [4, 1, 32], strides = [1, 1, 1]} : vector<4x32x32xf32> to vector<4x1x32xf32>
    %44 = vector.shape_cast %43 : vector<4x1x32xf32> to vector<4x32xf32>
    %c0_30 = arith.constant 0 : index
    %c0_31 = arith.constant 0 : index
    %c192 = arith.constant 192 : index
    %45 = vector.load %arg6[%c0_30, %c0_31, %c192] : memref<1x4x1024xf32, #tpu.memory_space<vmem>>, vector<1x4x32xf32>
    %46 = vector.shape_cast %45 : vector<1x4x32xf32> to vector<4x32xf32>
    %47 = arith.addf %44, %46 : vector<4x32xf32>
    %c0_32 = arith.constant 0 : index
    %c192_33 = arith.constant 192 : index
    %48 = vector.load %arg9[%c0_32, %c192_33] : memref<4x1024xf32, #tpu.memory_space<vmem>>, vector<4x32xf32>
    tpu.vector_store %arg9[%c0_32, %c192_33], %47 {strides = array<i32>} : memref<4x1024xf32, #tpu.memory_space<vmem>>, vector<4x32xf32>,
    %49 = vector.extract_strided_slice %6 {offsets = [0, 7, 0], sizes = [4, 1, 32], strides = [1, 1, 1]} : vector<4x32x32xf32> to vector<4x1x32xf32>
    %50 = vector.shape_cast %49 : vector<4x1x32xf32> to vector<4x32xf32>
    %c0_34 = arith.constant 0 : index
    %c0_35 = arith.constant 0 : index
    %c224 = arith.constant 224 : index
    %51 = vector.load %arg6[%c0_34, %c0_35, %c224] : memref<1x4x1024xf32, #tpu.memory_space<vmem>>, vector<1x4x32xf32>
    %52 = vector.shape_cast %51 : vector<1x4x32xf32> to vector<4x32xf32>
    %53 = arith.addf %50, %52 : vector<4x32xf32>
    %c0_36 = arith.constant 0 : index
    %c224_37 = arith.constant 224 : index
    %54 = vector.load %arg9[%c0_36, %c224_37] : memref<4x1024xf32, #tpu.memory_space<vmem>>, vector<4x32xf32>
    tpu.vector_store %arg9[%c0_36, %c224_37], %53 {strides = array<i32>} : memref<4x1024xf32, #tpu.memory_space<vmem>>, vector<4x32xf32>,
    %55 = vector.extract_strided_slice %6 {offsets = [0, 8, 0], sizes = [4, 1, 32], strides = [1, 1, 1]} : vector<4x32x32xf32> to vector<4x1x32xf32>
    %56 = vector.shape_cast %55 : vector<4x1x32xf32> to vector<4x32xf32>
    %c0_38 = arith.constant 0 : index
    %c0_39 = arith.constant 0 : index
    %c256 = arith.constant 256 : index
    %57 = vector.load %arg6[%c0_38, %c0_39, %c256] : memref<1x4x1024xf32, #tpu.memory_space<vmem>>, vector<1x4x32xf32>
    %58 = vector.shape_cast %57 : vector<1x4x32xf32> to vector<4x32xf32>
    %59 = arith.addf %56, %58 : vector<4x32xf32>
    %c0_40 = arith.constant 0 : index
    %c256_41 = arith.constant 256 : index
    %60 = vector.load %arg9[%c0_40, %c256_41] : memref<4x1024xf32, #tpu.memory_space<vmem>>, vector<4x32xf32>
    tpu.vector_store %arg9[%c0_40, %c256_41], %59 {strides = array<i32>} : memref<4x1024xf32, #tpu.memory_space<vmem>>, vector<4x32xf32>,
    %61 = vector.extract_strided_slice %6 {offsets = [0, 9, 0], sizes = [4, 1, 32], strides = [1, 1, 1]} : vector<4x32x32xf32> to vector<4x1x32xf32>
    %62 = vector.shape_cast %61 : vector<4x1x32xf32> to vector<4x32xf32>
    %c0_42 = arith.constant 0 : index
    %c0_43 = arith.constant 0 : index
    %c288 = arith.constant 288 : index
    %63 = vector.load %arg6[%c0_42, %c0_43, %c288] : memref<1x4x1024xf32, #tpu.memory_space<vmem>>, vector<1x4x32xf32>
    %64 = vector.shape_cast %63 : vector<1x4x32xf32> to vector<4x32xf32>
    %65 = arith.addf %62, %64 : vector<4x32xf32>
    %c0_44 = arith.constant 0 : index
    %c288_45 = arith.constant 288 : index
    %66 = vector.load %arg9[%c0_44, %c288_45] : memref<4x1024xf32, #tpu.memory_space<vmem>>, vector<4x32xf32>
    tpu.vector_store %arg9[%c0_44, %c288_45], %65 {strides = array<i32>} : memref<4x1024xf32, #tpu.memory_space<vmem>>, vector<4x32xf32>,
    %67 = vector.extract_strided_slice %6 {offsets = [0, 10, 0], sizes = [4, 1, 32], strides = [1, 1, 1]} : vector<4x32x32xf32> to vector<4x1x32xf32>
    %68 = vector.shape_cast %67 : vector<4x1x32xf32> to vector<4x32xf32>
    %c0_46 = arith.constant 0 : index
    %c0_47 = arith.constant 0 : index
    %c320 = arith.constant 320 : index
    %69 = vector.load %arg6[%c0_46, %c0_47, %c320] : memref<1x4x1024xf32, #tpu.memory_space<vmem>>, vector<1x4x32xf32>
    %70 = vector.shape_cast %69 : vector<1x4x32xf32> to vector<4x32xf32>
    %71 = arith.addf %68, %70 : vector<4x32xf32>
    %c0_48 = arith.constant 0 : index
    %c320_49 = arith.constant 320 : index
    %72 = vector.load %arg9[%c0_48, %c320_49] : memref<4x1024xf32, #tpu.memory_space<vmem>>, vector<4x32xf32>
    tpu.vector_store %arg9[%c0_48, %c320_49], %71 {strides = array<i32>} : memref<4x1024xf32, #tpu.memory_space<vmem>>, vector<4x32xf32>,
    %73 = vector.extract_strided_slice %6 {offsets = [0, 11, 0], sizes = [4, 1, 32], strides = [1, 1, 1]} : vector<4x32x32xf32> to vector<4x1x32xf32>
    %74 = vector.shape_cast %73 : vector<4x1x32xf32> to vector<4x32xf32>
    %c0_50 = arith.constant 0 : index
    %c0_51 = arith.constant 0 : index
    %c352 = arith.constant 352 : index
    %75 = vector.load %arg6[%c0_50, %c0_51, %c352] : memref<1x4x1024xf32, #tpu.memory_space<vmem>>, vector<1x4x32xf32>
    %76 = vector.shape_cast %75 : vector<1x4x32xf32> to vector<4x32xf32>
    %77 = arith.addf %74, %76 : vector<4x32xf32>
    %c0_52 = arith.constant 0 : index
    %c352_53 = arith.constant 352 : index
    %78 = vector.load %arg9[%c0_52, %c352_53] : memref<4x1024xf32, #tpu.memory_space<vmem>>, vector<4x32xf32>
    tpu.vector_store %arg9[%c0_52, %c352_53], %77 {strides = array<i32>} : memref<4x1024xf32, #tpu.memory_space<vmem>>, vector<4x32xf32>,
    %79 = vector.extract_strided_slice %6 {offsets = [0, 12, 0], sizes = [4, 1, 32], strides = [1, 1, 1]} : vector<4x32x32xf32> to vector<4x1x32xf32>
    %80 = vector.shape_cast %79 : vector<4x1x32xf32> to vector<4x32xf32>
    %c0_54 = arith.constant 0 : index
    %c0_55 = arith.constant 0 : index
    %c384 = arith.constant 384 : index
    %81 = vector.load %arg6[%c0_54, %c0_55, %c384] : memref<1x4x1024xf32, #tpu.memory_space<vmem>>, vector<1x4x32xf32>
    %82 = vector.shape_cast %81 : vector<1x4x32xf32> to vector<4x32xf32>
    %83 = arith.addf %80, %82 : vector<4x32xf32>
    %c0_56 = arith.constant 0 : index
    %c384_57 = arith.constant 384 : index
    %84 = vector.load %arg9[%c0_56, %c384_57] : memref<4x1024xf32, #tpu.memory_space<vmem>>, vector<4x32xf32>
    tpu.vector_store %arg9[%c0_56, %c384_57], %83 {strides = array<i32>} : memref<4x1024xf32, #tpu.memory_space<vmem>>, vector<4x32xf32>,
    %85 = vector.extract_strided_slice %6 {offsets = [0, 13, 0], sizes = [4, 1, 32], strides = [1, 1, 1]} : vector<4x32x32xf32> to vector<4x1x32xf32>
    %86 = vector.shape_cast %85 : vector<4x1x32xf32> to vector<4x32xf32>
    %c0_58 = arith.constant 0 : index
    %c0_59 = arith.constant 0 : index
    %c416 = arith.constant 416 : index
    %87 = vector.load %arg6[%c0_58, %c0_59, %c416] : memref<1x4x1024xf32, #tpu.memory_space<vmem>>, vector<1x4x32xf32>
    %88 = vector.shape_cast %87 : vector<1x4x32xf32> to vector<4x32xf32>
    %89 = arith.addf %86, %88 : vector<4x32xf32>
    %c0_60 = arith.constant 0 : index
    %c416_61 = arith.constant 416 : index
    %90 = vector.load %arg9[%c0_60, %c416_61] : memref<4x1024xf32, #tpu.memory_space<vmem>>, vector<4x32xf32>
    tpu.vector_store %arg9[%c0_60, %c416_61], %89 {strides = array<i32>} : memref<4x1024xf32, #tpu.memory_space<vmem>>, vector<4x32xf32>,
    %91 = vector.extract_strided_slice %6 {offsets = [0, 14, 0], sizes = [4, 1, 32], strides = [1, 1, 1]} : vector<4x32x32xf32> to vector<4x1x32xf32>
    %92 = vector.shape_cast %91 : vector<4x1x32xf32> to vector<4x32xf32>
    %c0_62 = arith.constant 0 : index
    %c0_63 = arith.constant 0 : index
    %c448 = arith.constant 448 : index
    %93 = vector.load %arg6[%c0_62, %c0_63, %c448] : memref<1x4x1024xf32, #tpu.memory_space<vmem>>, vector<1x4x32xf32>
    %94 = vector.shape_cast %93 : vector<1x4x32xf32> to vector<4x32xf32>
    %95 = arith.addf %92, %94 : vector<4x32xf32>
    %c0_64 = arith.constant 0 : index
    %c448_65 = arith.constant 448 : index
    %96 = vector.load %arg9[%c0_64, %c448_65] : memref<4x1024xf32, #tpu.memory_space<vmem>>, vector<4x32xf32>
    tpu.vector_store %arg9[%c0_64, %c448_65], %95 {strides = array<i32>} : memref<4x1024xf32, #tpu.memory_space<vmem>>, vector<4x32xf32>,
    %97 = vector.extract_strided_slice %6 {offsets = [0, 15, 0], sizes = [4, 1, 32], strides = [1, 1, 1]} : vector<4x32x32xf32> to vector<4x1x32xf32>
    %98 = vector.shape_cast %97 : vector<4x1x32xf32> to vector<4x32xf32>
    %c0_66 = arith.constant 0 : index
    %c0_67 = arith.constant 0 : index
    %c480 = arith.constant 480 : index
    %99 = vector.load %arg6[%c0_66, %c0_67, %c480] : memref<1x4x1024xf32, #tpu.memory_space<vmem>>, vector<1x4x32xf32>
    %100 = vector.shape_cast %99 : vector<1x4x32xf32> to vector<4x32xf32>
    %101 = arith.addf %98, %100 : vector<4x32xf32>
    %c0_68 = arith.constant 0 : index
    %c480_69 = arith.constant 480 : index
    %102 = vector.load %arg9[%c0_68, %c480_69] : memref<4x1024xf32, #tpu.memory_space<vmem>>, vector<4x32xf32>
    tpu.vector_store %arg9[%c0_68, %c480_69], %101 {strides = array<i32>} : memref<4x1024xf32, #tpu.memory_space<vmem>>, vector<4x32xf32>,
    %103 = vector.extract_strided_slice %6 {offsets = [0, 16, 0], sizes = [4, 1, 32], strides = [1, 1, 1]} : vector<4x32x32xf32> to vector<4x1x32xf32>
    %104 = vector.shape_cast %103 : vector<4x1x32xf32> to vector<4x32xf32>
    %c0_70 = arith.constant 0 : index
    %c0_71 = arith.constant 0 : index
    %c512 = arith.constant 512 : index
    %105 = vector.load %arg6[%c0_70, %c0_71, %c512] : memref<1x4x1024xf32, #tpu.memory_space<vmem>>, vector<1x4x32xf32>
    %106 = vector.shape_cast %105 : vector<1x4x32xf32> to vector<4x32xf32>
    %107 = arith.addf %104, %106 : vector<4x32xf32>
    %c0_72 = arith.constant 0 : index
    %c512_73 = arith.constant 512 : index
    %108 = vector.load %arg9[%c0_72, %c512_73] : memref<4x1024xf32, #tpu.memory_space<vmem>>, vector<4x32xf32>
    tpu.vector_store %arg9[%c0_72, %c512_73], %107 {strides = array<i32>} : memref<4x1024xf32, #tpu.memory_space<vmem>>, vector<4x32xf32>,
    %109 = vector.extract_strided_slice %6 {offsets = [0, 17, 0], sizes = [4, 1, 32], strides = [1, 1, 1]} : vector<4x32x32xf32> to vector<4x1x32xf32>
    %110 = vector.shape_cast %109 : vector<4x1x32xf32> to vector<4x32xf32>
    %c0_74 = arith.constant 0 : index
    %c0_75 = arith.constant 0 : index
    %c544 = arith.constant 544 : index
    %111 = vector.load %arg6[%c0_74, %c0_75, %c544] : memref<1x4x1024xf32, #tpu.memory_space<vmem>>, vector<1x4x32xf32>
    %112 = vector.shape_cast %111 : vector<1x4x32xf32> to vector<4x32xf32>
    %113 = arith.addf %110, %112 : vector<4x32xf32>
    %c0_76 = arith.constant 0 : index
    %c544_77 = arith.constant 544 : index
    %114 = vector.load %arg9[%c0_76, %c544_77] : memref<4x1024xf32, #tpu.memory_space<vmem>>, vector<4x32xf32>
    tpu.vector_store %arg9[%c0_76, %c544_77], %113 {strides = array<i32>} : memref<4x1024xf32, #tpu.memory_space<vmem>>, vector<4x32xf32>,
    %115 = vector.extract_strided_slice %6 {offsets = [0, 18, 0], sizes = [4, 1, 32], strides = [1, 1, 1]} : vector<4x32x32xf32> to vector<4x1x32xf32>
    %116 = vector.shape_cast %115 : vector<4x1x32xf32> to vector<4x32xf32>
    %c0_78 = arith.constant 0 : index
    %c0_79 = arith.constant 0 : index
    %c576 = arith.constant 576 : index
    %117 = vector.load %arg6[%c0_78, %c0_79, %c576] : memref<1x4x1024xf32, #tpu.memory_space<vmem>>, vector<1x4x32xf32>
    %118 = vector.shape_cast %117 : vector<1x4x32xf32> to vector<4x32xf32>
    %119 = arith.addf %116, %118 : vector<4x32xf32>
    %c0_80 = arith.constant 0 : index
    %c576_81 = arith.constant 576 : index
    %120 = vector.load %arg9[%c0_80, %c576_81] : memref<4x1024xf32, #tpu.memory_space<vmem>>, vector<4x32xf32>
    tpu.vector_store %arg9[%c0_80, %c576_81], %119 {strides = array<i32>} : memref<4x1024xf32, #tpu.memory_space<vmem>>, vector<4x32xf32>,
    %121 = vector.extract_strided_slice %6 {offsets = [0, 19, 0], sizes = [4, 1, 32], strides = [1, 1, 1]} : vector<4x32x32xf32> to vector<4x1x32xf32>
    %122 = vector.shape_cast %121 : vector<4x1x32xf32> to vector<4x32xf32>
    %c0_82 = arith.constant 0 : index
    %c0_83 = arith.constant 0 : index
    %c608 = arith.constant 608 : index
    %123 = vector.load %arg6[%c0_82, %c0_83, %c608] : memref<1x4x1024xf32, #tpu.memory_space<vmem>>, vector<1x4x32xf32>
    %124 = vector.shape_cast %123 : vector<1x4x32xf32> to vector<4x32xf32>
    %125 = arith.addf %122, %124 : vector<4x32xf32>
    %c0_84 = arith.constant 0 : index
    %c608_85 = arith.constant 608 : index
    %126 = vector.load %arg9[%c0_84, %c608_85] : memref<4x1024xf32, #tpu.memory_space<vmem>>, vector<4x32xf32>
    tpu.vector_store %arg9[%c0_84, %c608_85], %125 {strides = array<i32>} : memref<4x1024xf32, #tpu.memory_space<vmem>>, vector<4x32xf32>,
    %127 = vector.extract_strided_slice %6 {offsets = [0, 20, 0], sizes = [4, 1, 32], strides = [1, 1, 1]} : vector<4x32x32xf32> to vector<4x1x32xf32>
    %128 = vector.shape_cast %127 : vector<4x1x32xf32> to vector<4x32xf32>
    %c0_86 = arith.constant 0 : index
    %c0_87 = arith.constant 0 : index
    %c640 = arith.constant 640 : index
    %129 = vector.load %arg6[%c0_86, %c0_87, %c640] : memref<1x4x1024xf32, #tpu.memory_space<vmem>>, vector<1x4x32xf32>
    %130 = vector.shape_cast %129 : vector<1x4x32xf32> to vector<4x32xf32>
    %131 = arith.addf %128, %130 : vector<4x32xf32>
    %c0_88 = arith.constant 0 : index
    %c640_89 = arith.constant 640 : index
    %132 = vector.load %arg9[%c0_88, %c640_89] : memref<4x1024xf32, #tpu.memory_space<vmem>>, vector<4x32xf32>
    tpu.vector_store %arg9[%c0_88, %c640_89], %131 {strides = array<i32>} : memref<4x1024xf32, #tpu.memory_space<vmem>>, vector<4x32xf32>,
    %133 = vector.extract_strided_slice %6 {offsets = [0, 21, 0], sizes = [4, 1, 32], strides = [1, 1, 1]} : vector<4x32x32xf32> to vector<4x1x32xf32>
    %134 = vector.shape_cast %133 : vector<4x1x32xf32> to vector<4x32xf32>
    %c0_90 = arith.constant 0 : index
    %c0_91 = arith.constant 0 : index
    %c672 = arith.constant 672 : index
    %135 = vector.load %arg6[%c0_90, %c0_91, %c672] : memref<1x4x1024xf32, #tpu.memory_space<vmem>>, vector<1x4x32xf32>
    %136 = vector.shape_cast %135 : vector<1x4x32xf32> to vector<4x32xf32>
    %137 = arith.addf %134, %136 : vector<4x32xf32>
    %c0_92 = arith.constant 0 : index
    %c672_93 = arith.constant 672 : index
    %138 = vector.load %arg9[%c0_92, %c672_93] : memref<4x1024xf32, #tpu.memory_space<vmem>>, vector<4x32xf32>
    tpu.vector_store %arg9[%c0_92, %c672_93], %137 {strides = array<i32>} : memref<4x1024xf32, #tpu.memory_space<vmem>>, vector<4x32xf32>,
    %139 = vector.extract_strided_slice %6 {offsets = [0, 22, 0], sizes = [4, 1, 32], strides = [1, 1, 1]} : vector<4x32x32xf32> to vector<4x1x32xf32>
    %140 = vector.shape_cast %139 : vector<4x1x32xf32> to vector<4x32xf32>
    %c0_94 = arith.constant 0 : index
    %c0_95 = arith.constant 0 : index
    %c704 = arith.constant 704 : index
    %141 = vector.load %arg6[%c0_94, %c0_95, %c704] : memref<1x4x1024xf32, #tpu.memory_space<vmem>>, vector<1x4x32xf32>
    %142 = vector.shape_cast %141 : vector<1x4x32xf32> to vector<4x32xf32>
    %143 = arith.addf %140, %142 : vector<4x32xf32>
    %c0_96 = arith.constant 0 : index
    %c704_97 = arith.constant 704 : index
    %144 = vector.load %arg9[%c0_96, %c704_97] : memref<4x1024xf32, #tpu.memory_space<vmem>>, vector<4x32xf32>
    tpu.vector_store %arg9[%c0_96, %c704_97], %143 {strides = array<i32>} : memref<4x1024xf32, #tpu.memory_space<vmem>>, vector<4x32xf32>,
    %145 = vector.extract_strided_slice %6 {offsets = [0, 23, 0], sizes = [4, 1, 32], strides = [1, 1, 1]} : vector<4x32x32xf32> to vector<4x1x32xf32>
    %146 = vector.shape_cast %145 : vector<4x1x32xf32> to vector<4x32xf32>
    %c0_98 = arith.constant 0 : index
    %c0_99 = arith.constant 0 : index
    %c736 = arith.constant 736 : index
    %147 = vector.load %arg6[%c0_98, %c0_99, %c736] : memref<1x4x1024xf32, #tpu.memory_space<vmem>>, vector<1x4x32xf32>
    %148 = vector.shape_cast %147 : vector<1x4x32xf32> to vector<4x32xf32>
    %149 = arith.addf %146, %148 : vector<4x32xf32>
    %c0_100 = arith.constant 0 : index
    %c736_101 = arith.constant 736 : index
    %150 = vector.load %arg9[%c0_100, %c736_101] : memref<4x1024xf32, #tpu.memory_space<vmem>>, vector<4x32xf32>
    tpu.vector_store %arg9[%c0_100, %c736_101], %149 {strides = array<i32>} : memref<4x1024xf32, #tpu.memory_space<vmem>>, vector<4x32xf32>,
    %151 = vector.extract_strided_slice %6 {offsets = [0, 24, 0], sizes = [4, 1, 32], strides = [1, 1, 1]} : vector<4x32x32xf32> to vector<4x1x32xf32>
    %152 = vector.shape_cast %151 : vector<4x1x32xf32> to vector<4x32xf32>
    %c0_102 = arith.constant 0 : index
    %c0_103 = arith.constant 0 : index
    %c768 = arith.constant 768 : index
    %153 = vector.load %arg6[%c0_102, %c0_103, %c768] : memref<1x4x1024xf32, #tpu.memory_space<vmem>>, vector<1x4x32xf32>
    %154 = vector.shape_cast %153 : vector<1x4x32xf32> to vector<4x32xf32>
    %155 = arith.addf %152, %154 : vector<4x32xf32>
    %c0_104 = arith.constant 0 : index
    %c768_105 = arith.constant 768 : index
    %156 = vector.load %arg9[%c0_104, %c768_105] : memref<4x1024xf32, #tpu.memory_space<vmem>>, vector<4x32xf32>
    tpu.vector_store %arg9[%c0_104, %c768_105], %155 {strides = array<i32>} : memref<4x1024xf32, #tpu.memory_space<vmem>>, vector<4x32xf32>,
    %157 = vector.extract_strided_slice %6 {offsets = [0, 25, 0], sizes = [4, 1, 32], strides = [1, 1, 1]} : vector<4x32x32xf32> to vector<4x1x32xf32>
    %158 = vector.shape_cast %157 : vector<4x1x32xf32> to vector<4x32xf32>
    %c0_106 = arith.constant 0 : index
    %c0_107 = arith.constant 0 : index
    %c800 = arith.constant 800 : index
    %159 = vector.load %arg6[%c0_106, %c0_107, %c800] : memref<1x4x1024xf32, #tpu.memory_space<vmem>>, vector<1x4x32xf32>
    %160 = vector.shape_cast %159 : vector<1x4x32xf32> to vector<4x32xf32>
    %161 = arith.addf %158, %160 : vector<4x32xf32>
    %c0_108 = arith.constant 0 : index
    %c800_109 = arith.constant 800 : index
    %162 = vector.load %arg9[%c0_108, %c800_109] : memref<4x1024xf32, #tpu.memory_space<vmem>>, vector<4x32xf32>
    tpu.vector_store %arg9[%c0_108, %c800_109], %161 {strides = array<i32>} : memref<4x1024xf32, #tpu.memory_space<vmem>>, vector<4x32xf32>,
    %163 = vector.extract_strided_slice %6 {offsets = [0, 26, 0], sizes = [4, 1, 32], strides = [1, 1, 1]} : vector<4x32x32xf32> to vector<4x1x32xf32>
    %164 = vector.shape_cast %163 : vector<4x1x32xf32> to vector<4x32xf32>
    %c0_110 = arith.constant 0 : index
    %c0_111 = arith.constant 0 : index
    %c832 = arith.constant 832 : index
    %165 = vector.load %arg6[%c0_110, %c0_111, %c832] : memref<1x4x1024xf32, #tpu.memory_space<vmem>>, vector<1x4x32xf32>
    %166 = vector.shape_cast %165 : vector<1x4x32xf32> to vector<4x32xf32>
    %167 = arith.addf %164, %166 : vector<4x32xf32>
    %c0_112 = arith.constant 0 : index
    %c832_113 = arith.constant 832 : index
    %168 = vector.load %arg9[%c0_112, %c832_113] : memref<4x1024xf32, #tpu.memory_space<vmem>>, vector<4x32xf32>
    tpu.vector_store %arg9[%c0_112, %c832_113], %167 {strides = array<i32>} : memref<4x1024xf32, #tpu.memory_space<vmem>>, vector<4x32xf32>,
    %169 = vector.extract_strided_slice %6 {offsets = [0, 27, 0], sizes = [4, 1, 32], strides = [1, 1, 1]} : vector<4x32x32xf32> to vector<4x1x32xf32>
    %170 = vector.shape_cast %169 : vector<4x1x32xf32> to vector<4x32xf32>
    %c0_114 = arith.constant 0 : index
    %c0_115 = arith.constant 0 : index
    %c864 = arith.constant 864 : index
    %171 = vector.load %arg6[%c0_114, %c0_115, %c864] : memref<1x4x1024xf32, #tpu.memory_space<vmem>>, vector<1x4x32xf32>
    %172 = vector.shape_cast %171 : vector<1x4x32xf32> to vector<4x32xf32>
    %173 = arith.addf %170, %172 : vector<4x32xf32>
    %c0_116 = arith.constant 0 : index
    %c864_117 = arith.constant 864 : index
    %174 = vector.load %arg9[%c0_116, %c864_117] : memref<4x1024xf32, #tpu.memory_space<vmem>>, vector<4x32xf32>
    tpu.vector_store %arg9[%c0_116, %c864_117], %173 {strides = array<i32>} : memref<4x1024xf32, #tpu.memory_space<vmem>>, vector<4x32xf32>,
    %175 = vector.extract_strided_slice %6 {offsets = [0, 28, 0], sizes = [4, 1, 32], strides = [1, 1, 1]} : vector<4x32x32xf32> to vector<4x1x32xf32>
    %176 = vector.shape_cast %175 : vector<4x1x32xf32> to vector<4x32xf32>
    %c0_118 = arith.constant 0 : index
    %c0_119 = arith.constant 0 : index
    %c896 = arith.constant 896 : index
    %177 = vector.load %arg6[%c0_118, %c0_119, %c896] : memref<1x4x1024xf32, #tpu.memory_space<vmem>>, vector<1x4x32xf32>
    %178 = vector.shape_cast %177 : vector<1x4x32xf32> to vector<4x32xf32>
    %179 = arith.addf %176, %178 : vector<4x32xf32>
    %c0_120 = arith.constant 0 : index
    %c896_121 = arith.constant 896 : index
    %180 = vector.load %arg9[%c0_120, %c896_121] : memref<4x1024xf32, #tpu.memory_space<vmem>>, vector<4x32xf32>
    tpu.vector_store %arg9[%c0_120, %c896_121], %179 {strides = array<i32>} : memref<4x1024xf32, #tpu.memory_space<vmem>>, vector<4x32xf32>,
    %181 = vector.extract_strided_slice %6 {offsets = [0, 29, 0], sizes = [4, 1, 32], strides = [1, 1, 1]} : vector<4x32x32xf32> to vector<4x1x32xf32>
    %182 = vector.shape_cast %181 : vector<4x1x32xf32> to vector<4x32xf32>
    %c0_122 = arith.constant 0 : index
    %c0_123 = arith.constant 0 : index
    %c928 = arith.constant 928 : index
    %183 = vector.load %arg6[%c0_122, %c0_123, %c928] : memref<1x4x1024xf32, #tpu.memory_space<vmem>>, vector<1x4x32xf32>
    %184 = vector.shape_cast %183 : vector<1x4x32xf32> to vector<4x32xf32>
    %185 = arith.addf %182, %184 : vector<4x32xf32>
    %c0_124 = arith.constant 0 : index
    %c928_125 = arith.constant 928 : index
    %186 = vector.load %arg9[%c0_124, %c928_125] : memref<4x1024xf32, #tpu.memory_space<vmem>>, vector<4x32xf32>
    tpu.vector_store %arg9[%c0_124, %c928_125], %185 {strides = array<i32>} : memref<4x1024xf32, #tpu.memory_space<vmem>>, vector<4x32xf32>,
    %187 = vector.extract_strided_slice %6 {offsets = [0, 30, 0], sizes = [4, 1, 32], strides = [1, 1, 1]} : vector<4x32x32xf32> to vector<4x1x32xf32>
    %188 = vector.shape_cast %187 : vector<4x1x32xf32> to vector<4x32xf32>
    %c0_126 = arith.constant 0 : index
    %c0_127 = arith.constant 0 : index
    %c960 = arith.constant 960 : index
    %189 = vector.load %arg6[%c0_126, %c0_127, %c960] : memref<1x4x1024xf32, #tpu.memory_space<vmem>>, vector<1x4x32xf32>
    %190 = vector.shape_cast %189 : vector<1x4x32xf32> to vector<4x32xf32>
    %191 = arith.addf %188, %190 : vector<4x32xf32>
    %c0_128 = arith.constant 0 : index
    %c960_129 = arith.constant 960 : index
    %192 = vector.load %arg9[%c0_128, %c960_129] : memref<4x1024xf32, #tpu.memory_space<vmem>>, vector<4x32xf32>
    tpu.vector_store %arg9[%c0_128, %c960_129], %191 {strides = array<i32>} : memref<4x1024xf32, #tpu.memory_space<vmem>>, vector<4x32xf32>,
    %193 = vector.extract_strided_slice %6 {offsets = [0, 31, 0], sizes = [4, 1, 32], strides = [1, 1, 1]} : vector<4x32x32xf32> to vector<4x1x32xf32>
    %194 = vector.shape_cast %193 : vector<4x1x32xf32> to vector<4x32xf32>
    %c0_130 = arith.constant 0 : index
    %c0_131 = arith.constant 0 : index
    %c992 = arith.constant 992 : index
    %195 = vector.load %arg6[%c0_130, %c0_131, %c992] : memref<1x4x1024xf32, #tpu.memory_space<vmem>>, vector<1x4x32xf32>
    %196 = vector.shape_cast %195 : vector<1x4x32xf32> to vector<4x32xf32>
    %197 = arith.addf %194, %196 : vector<4x32xf32>
    %c0_132 = arith.constant 0 : index
    %c992_133 = arith.constant 992 : index
    %198 = vector.load %arg9[%c0_132, %c992_133] : memref<4x1024xf32, #tpu.memory_space<vmem>>, vector<4x32xf32>
    tpu.vector_store %arg9[%c0_132, %c992_133], %197 {strides = array<i32>} : memref<4x1024xf32, #tpu.memory_space<vmem>>, vector<4x32xf32>,
    %c0_134 = arith.constant 0 : index
    %c0_135 = arith.constant 0 : index
    %199 = vector.load %arg2[%c0_134, %c0_135] : memref<16x4xf32, #tpu.memory_space<vmem>>, vector<16x4xf32>
    %c0_136 = arith.constant 0 : index
    %c0_137 = arith.constant 0 : index
    %200 = vector.load %arg9[%c0_136, %c0_137] : memref<4x1024xf32, #tpu.memory_space<vmem>>, vector<4x1024xf32>
    %cst_138 = arith.constant dense<0.000000e+00> : vector<16x1024xf32>
    %201 = tpu.matmul %199, %200, %cst_138 {dimension_numbers = #tpu.dot_dimension_numbers<[1], [0], [0], [1], [0, 0, 1, 1], [], []>} : vector<16x4xf32>, vector<4x1024xf32>, vector<16x1024xf32> -> vector<16x1024xf32>
    %c0_139 = arith.constant 0 : index
    %c0_140 = arith.constant 0 : index
    %202 = vector.load %arg3[%c0_139, %c0_140] : memref<16x1xf32, #tpu.memory_space<vmem>>, vector<16x1xf32>
    %203 = vector.broadcast %202 : vector<16x1xf32> to vector<16x1024xf32>
    %204 = arith.addf %201, %203 : vector<16x1024xf32>
    %c0_141 = arith.constant 0 : index
    %c0_142 = arith.constant 0 : index
    %c0_143 = arith.constant 0 : index
    %205 = vector.load %arg7[%c0_141, %c0_142, %c0_143] : memref<1x16x1024xf32, #tpu.memory_space<vmem>>, vector<1x16x1024xf32>
    %206 = vector.shape_cast %205 : vector<1x16x1024xf32> to vector<16x1024xf32>
    %207 = arith.negf %204 : vector<16x1024xf32>
    %208 = math.exp %207 : vector<16x1024xf32>
    %cst_144 = arith.constant 1.000000e+00 : f32
    %209 = vector.broadcast %cst_144 : f32 to vector<16x1024xf32>
    %210 = arith.addf %209, %208 : vector<16x1024xf32>
    %211 = arith.divf %209, %210 : vector<16x1024xf32>
    %212 = arith.mulf %206, %211 : vector<16x1024xf32>
    %c0_145 = arith.constant 0 : index
    %c0_146 = arith.constant 0 : index
    %c0_147 = arith.constant 0 : index
    %213 = vector.load %arg8[%c0_145, %c0_146, %c0_147] : memref<1x16x1024xf32, #tpu.memory_space<vmem>>, vector<1x16x1024xf32>
    %214 = vector.shape_cast %213 : vector<1x16x1024xf32> to vector<16x1024xf32>
    %215 = vector.shape_cast %212 : vector<16x1024xf32> to vector<1x16x1024xf32>
    tpu.vector_store %arg8[%c0_145, %c0_146, %c0_147], %215 {strides = array<i32>} : memref<1x16x1024xf32, #tpu.memory_space<vmem>>, vector<1x16x1024xf32>,
    return
  }
  func.func @transform_0(%arg0: i32, %arg1: i32) -> (i32, i32) {
    %c0_i32 = arith.constant 0 : i32
    %c0_i32_0 = arith.constant 0 : i32
    %c0_i32_1 = arith.constant 0 : i32
    return %c0_i32, %c0_i32_0 : i32, i32
  }
  func.func @transform_1(%arg0: i32, %arg1: i32) -> (i32, i32) {
    %c0_i32 = arith.constant 0 : i32
    %c0_i32_0 = arith.constant 0 : i32
    %c0_i32_1 = arith.constant 0 : i32
    return %c0_i32, %c0_i32_0 : i32, i32
  }
  func.func @transform_2(%arg0: i32, %arg1: i32) -> (i32, i32) {
    %c0_i32 = arith.constant 0 : i32
    %c0_i32_0 = arith.constant 0 : i32
    return %arg1, %c0_i32 : i32, i32
  }
  func.func @transform_3(%arg0: i32, %arg1: i32) -> (i32, i32, i32, i32) {
    %c0_i32 = arith.constant 0 : i32
    %c0_i32_0 = arith.constant 0 : i32
    %c0_i32_1 = arith.constant 0 : i32
    %c0_i32_2 = arith.constant 0 : i32
    return %arg0, %c0_i32, %c0_i32_0, %c0_i32_1 : i32, i32, i32, i32
  }
  func.func @transform_4(%arg0: i32, %arg1: i32) -> (i32, i32, i32) {
    %c0_i32 = arith.constant 0 : i32
    %c0_i32_0 = arith.constant 0 : i32
    return %arg0, %c0_i32, %arg1 : i32, i32, i32
  }
  func.func @transform_5(%arg0: i32, %arg1: i32) -> (i32, i32, i32) {
    %c0_i32 = arith.constant 0 : i32
    %c0_i32_0 = arith.constant 0 : i32
    return %arg0, %c0_i32, %arg1 : i32, i32, i32
  }
  func.func @transform_6(%arg0: i32, %arg1: i32) -> (i32, i32, i32) {
    %c0_i32 = arith.constant 0 : i32
    %c0_i32_0 = arith.constant 0 : i32
    return %arg0, %c0_i32, %arg1 : i32, i32, i32
  }
}

module attributes {stable_mosaic.version = 11 : i64} {
  func.func @_lowres_kernel(%arg0: i32, %arg1: memref<1x2x2x16x4x16xf32, #tpu.memory_space<vmem>>, %arg2: memref<4x36xf32, #tpu.memory_space<vmem>>, %arg3: memref<4x1xf32, #tpu.memory_space<vmem>>, %arg4: memref<4x36xf32, #tpu.memory_space<vmem>>, %arg5: memref<4x1xf32, #tpu.memory_space<vmem>>, %arg6: memref<4x36xf32, #tpu.memory_space<vmem>>, %arg7: memref<4x1xf32, #tpu.memory_space<vmem>>, %arg8: memref<4x36xf32, #tpu.memory_space<vmem>>, %arg9: memref<4x1xf32, #tpu.memory_space<vmem>>, %arg10: memref<9x3xf32, #tpu.memory_space<vmem>>, %arg11: memref<3x32xf32, #tpu.memory_space<vmem>>, %arg12: memref<1x4x3x32xf32, #tpu.memory_space<vmem>>, %arg13: memref<15x36x15xf32, #tpu.memory_space<vmem>>, %arg14: memref<5x4x5xf32, #tpu.memory_space<vmem>>, %arg15: memref<3x36x3xf32, #tpu.memory_space<vmem>>) attributes {dimension_semantics = [#tpu.dimension_semantics<parallel>], iteration_bounds = array<i64: 2>, scalar_prefetch = 0 : i64, scratch_operands = 3 : i64, tpu.core_type = #tpu.core_type<tc>, window_params = [{transform_indices = @transform_0, window_bounds = array<i64: 1, 2, 2, 16, 4, 16>}, {pipeline_mode = #tpu.pipeline_mode<synchronous>, transform_indices = @transform_1, window_bounds = array<i64: 4, 36>}, {pipeline_mode = #tpu.pipeline_mode<synchronous>, transform_indices = @transform_2, window_bounds = array<i64: 4, 1>}, {pipeline_mode = #tpu.pipeline_mode<synchronous>, transform_indices = @transform_3, window_bounds = array<i64: 4, 36>}, {pipeline_mode = #tpu.pipeline_mode<synchronous>, transform_indices = @transform_4, window_bounds = array<i64: 4, 1>}, {pipeline_mode = #tpu.pipeline_mode<synchronous>, transform_indices = @transform_5, window_bounds = array<i64: 4, 36>}, {pipeline_mode = #tpu.pipeline_mode<synchronous>, transform_indices = @transform_6, window_bounds = array<i64: 4, 1>}, {pipeline_mode = #tpu.pipeline_mode<synchronous>, transform_indices = @transform_7, window_bounds = array<i64: 4, 36>}, {pipeline_mode = #tpu.pipeline_mode<synchronous>, transform_indices = @transform_8, window_bounds = array<i64: 4, 1>}, {pipeline_mode = #tpu.pipeline_mode<synchronous>, transform_indices = @transform_9, window_bounds = array<i64: 9, 3>}, {pipeline_mode = #tpu.pipeline_mode<synchronous>, transform_indices = @transform_10, window_bounds = array<i64: 3, 32>}, {transform_indices = @transform_11, window_bounds = array<i64: 1, 4, 3, 32>}]} {
    %c0 = arith.constant 0 : index
    %c0_0 = arith.constant 0 : index
    %c0_1 = arith.constant 0 : index
    %c0_2 = arith.constant 0 : index
    %c0_3 = arith.constant 0 : index
    %c0_4 = arith.constant 0 : index
    %0 = vector.load %arg1[%c0, %c0_0, %c0_1, %c0_2, %c0_3, %c0_4] : memref<1x2x2x16x4x16xf32, #tpu.memory_space<vmem>>, vector<1x1x1x15x4x15xf32>
    %1 = vector.shape_cast %0 : vector<1x1x1x15x4x15xf32> to vector<15x4x15xf32>
    %c0_5 = arith.constant 0 : index
    %c0_6 = arith.constant 0 : index
    %c0_7 = arith.constant 0 : index
    %2 = vector.load %arg13[%c0_5, %c0_6, %c0_7] : memref<15x36x15xf32, #tpu.memory_space<vmem>>, vector<15x4x15xf32>
    tpu.vector_store %arg13[%c0_5, %c0_6, %c0_7], %1 {strides = array<i32>} : memref<15x36x15xf32, #tpu.memory_space<vmem>>, vector<15x4x15xf32>,
    %c0_8 = arith.constant 0 : index
    %c0_9 = arith.constant 0 : index
    %c1 = arith.constant 1 : index
    %c0_10 = arith.constant 0 : index
    %c0_11 = arith.constant 0 : index
    %c0_12 = arith.constant 0 : index
    %3 = vector.load %arg1[%c0_8, %c0_9, %c1, %c0_10, %c0_11, %c0_12] : memref<1x2x2x16x4x16xf32, #tpu.memory_space<vmem>>, vector<1x1x1x15x4x15xf32>
    %4 = vector.shape_cast %3 : vector<1x1x1x15x4x15xf32> to vector<15x4x15xf32>
    %c0_13 = arith.constant 0 : index
    %c4 = arith.constant 4 : index
    %c0_14 = arith.constant 0 : index
    %5 = vector.load %arg13[%c0_13, %c4, %c0_14] : memref<15x36x15xf32, #tpu.memory_space<vmem>>, vector<15x4x15xf32>
    tpu.vector_store %arg13[%c0_13, %c4, %c0_14], %4 {strides = array<i32>} : memref<15x36x15xf32, #tpu.memory_space<vmem>>, vector<15x4x15xf32>,
    %c0_15 = arith.constant 0 : index
    %c0_16 = arith.constant 0 : index
    %c0_17 = arith.constant 0 : index
    %c0_18 = arith.constant 0 : index
    %c0_19 = arith.constant 0 : index
    %c1_20 = arith.constant 1 : index
    %6 = vector.load %arg1[%c0_15, %c0_16, %c0_17, %c0_18, %c0_19, %c1_20] : memref<1x2x2x16x4x16xf32, #tpu.memory_space<vmem>>, vector<1x1x1x15x4x15xf32>
    %7 = vector.shape_cast %6 : vector<1x1x1x15x4x15xf32> to vector<15x4x15xf32>
    %c0_21 = arith.constant 0 : index
    %c8 = arith.constant 8 : index
    %c0_22 = arith.constant 0 : index
    %8 = vector.load %arg13[%c0_21, %c8, %c0_22] : memref<15x36x15xf32, #tpu.memory_space<vmem>>, vector<15x4x15xf32>
    tpu.vector_store %arg13[%c0_21, %c8, %c0_22], %7 {strides = array<i32>} : memref<15x36x15xf32, #tpu.memory_space<vmem>>, vector<15x4x15xf32>,
    %c0_23 = arith.constant 0 : index
    %c1_24 = arith.constant 1 : index
    %c0_25 = arith.constant 0 : index
    %c0_26 = arith.constant 0 : index
    %c0_27 = arith.constant 0 : index
    %c0_28 = arith.constant 0 : index
    %9 = vector.load %arg1[%c0_23, %c1_24, %c0_25, %c0_26, %c0_27, %c0_28] : memref<1x2x2x16x4x16xf32, #tpu.memory_space<vmem>>, vector<1x1x1x15x4x15xf32>
    %10 = vector.shape_cast %9 : vector<1x1x1x15x4x15xf32> to vector<15x4x15xf32>
    %c0_29 = arith.constant 0 : index
    %c12 = arith.constant 12 : index
    %c0_30 = arith.constant 0 : index
    %11 = vector.load %arg13[%c0_29, %c12, %c0_30] : memref<15x36x15xf32, #tpu.memory_space<vmem>>, vector<15x4x15xf32>
    tpu.vector_store %arg13[%c0_29, %c12, %c0_30], %10 {strides = array<i32>} : memref<15x36x15xf32, #tpu.memory_space<vmem>>, vector<15x4x15xf32>,
    %c0_31 = arith.constant 0 : index
    %c1_32 = arith.constant 1 : index
    %c1_33 = arith.constant 1 : index
    %c0_34 = arith.constant 0 : index
    %c0_35 = arith.constant 0 : index
    %c0_36 = arith.constant 0 : index
    %12 = vector.load %arg1[%c0_31, %c1_32, %c1_33, %c0_34, %c0_35, %c0_36] : memref<1x2x2x16x4x16xf32, #tpu.memory_space<vmem>>, vector<1x1x1x15x4x15xf32>
    %13 = vector.shape_cast %12 : vector<1x1x1x15x4x15xf32> to vector<15x4x15xf32>
    %c0_37 = arith.constant 0 : index
    %c16 = arith.constant 16 : index
    %c0_38 = arith.constant 0 : index
    %14 = vector.load %arg13[%c0_37, %c16, %c0_38] : memref<15x36x15xf32, #tpu.memory_space<vmem>>, vector<15x4x15xf32>
    tpu.vector_store %arg13[%c0_37, %c16, %c0_38], %13 {strides = array<i32>} : memref<15x36x15xf32, #tpu.memory_space<vmem>>, vector<15x4x15xf32>,
    %c0_39 = arith.constant 0 : index
    %c1_40 = arith.constant 1 : index
    %c0_41 = arith.constant 0 : index
    %c0_42 = arith.constant 0 : index
    %c0_43 = arith.constant 0 : index
    %c1_44 = arith.constant 1 : index
    %15 = vector.load %arg1[%c0_39, %c1_40, %c0_41, %c0_42, %c0_43, %c1_44] : memref<1x2x2x16x4x16xf32, #tpu.memory_space<vmem>>, vector<1x1x1x15x4x15xf32>
    %16 = vector.shape_cast %15 : vector<1x1x1x15x4x15xf32> to vector<15x4x15xf32>
    %c0_45 = arith.constant 0 : index
    %c20 = arith.constant 20 : index
    %c0_46 = arith.constant 0 : index
    %17 = vector.load %arg13[%c0_45, %c20, %c0_46] : memref<15x36x15xf32, #tpu.memory_space<vmem>>, vector<15x4x15xf32>
    tpu.vector_store %arg13[%c0_45, %c20, %c0_46], %16 {strides = array<i32>} : memref<15x36x15xf32, #tpu.memory_space<vmem>>, vector<15x4x15xf32>,
    %c0_47 = arith.constant 0 : index
    %c0_48 = arith.constant 0 : index
    %c0_49 = arith.constant 0 : index
    %c1_50 = arith.constant 1 : index
    %c0_51 = arith.constant 0 : index
    %c0_52 = arith.constant 0 : index
    %18 = vector.load %arg1[%c0_47, %c0_48, %c0_49, %c1_50, %c0_51, %c0_52] : memref<1x2x2x16x4x16xf32, #tpu.memory_space<vmem>>, vector<1x1x1x15x4x15xf32>
    %19 = vector.shape_cast %18 : vector<1x1x1x15x4x15xf32> to vector<15x4x15xf32>
    %c0_53 = arith.constant 0 : index
    %c24 = arith.constant 24 : index
    %c0_54 = arith.constant 0 : index
    %20 = vector.load %arg13[%c0_53, %c24, %c0_54] : memref<15x36x15xf32, #tpu.memory_space<vmem>>, vector<15x4x15xf32>
    tpu.vector_store %arg13[%c0_53, %c24, %c0_54], %19 {strides = array<i32>} : memref<15x36x15xf32, #tpu.memory_space<vmem>>, vector<15x4x15xf32>,
    %c0_55 = arith.constant 0 : index
    %c0_56 = arith.constant 0 : index
    %c1_57 = arith.constant 1 : index
    %c1_58 = arith.constant 1 : index
    %c0_59 = arith.constant 0 : index
    %c0_60 = arith.constant 0 : index
    %21 = vector.load %arg1[%c0_55, %c0_56, %c1_57, %c1_58, %c0_59, %c0_60] : memref<1x2x2x16x4x16xf32, #tpu.memory_space<vmem>>, vector<1x1x1x15x4x15xf32>
    %22 = vector.shape_cast %21 : vector<1x1x1x15x4x15xf32> to vector<15x4x15xf32>
    %c0_61 = arith.constant 0 : index
    %c28 = arith.constant 28 : index
    %c0_62 = arith.constant 0 : index
    %23 = vector.load %arg13[%c0_61, %c28, %c0_62] : memref<15x36x15xf32, #tpu.memory_space<vmem>>, vector<15x4x15xf32>
    tpu.vector_store %arg13[%c0_61, %c28, %c0_62], %22 {strides = array<i32>} : memref<15x36x15xf32, #tpu.memory_space<vmem>>, vector<15x4x15xf32>,
    %c0_63 = arith.constant 0 : index
    %c0_64 = arith.constant 0 : index
    %c0_65 = arith.constant 0 : index
    %c1_66 = arith.constant 1 : index
    %c0_67 = arith.constant 0 : index
    %c1_68 = arith.constant 1 : index
    %24 = vector.load %arg1[%c0_63, %c0_64, %c0_65, %c1_66, %c0_67, %c1_68] : memref<1x2x2x16x4x16xf32, #tpu.memory_space<vmem>>, vector<1x1x1x15x4x15xf32>
    %25 = vector.shape_cast %24 : vector<1x1x1x15x4x15xf32> to vector<15x4x15xf32>
    %c0_69 = arith.constant 0 : index
    %c32 = arith.constant 32 : index
    %c0_70 = arith.constant 0 : index
    %26 = vector.load %arg13[%c0_69, %c32, %c0_70] : memref<15x36x15xf32, #tpu.memory_space<vmem>>, vector<15x4x15xf32>
    tpu.vector_store %arg13[%c0_69, %c32, %c0_70], %25 {strides = array<i32>} : memref<15x36x15xf32, #tpu.memory_space<vmem>>, vector<15x4x15xf32>,
    %c0_71 = arith.constant 0 : index
    %c0_72 = arith.constant 0 : index
    %27 = vector.load %arg2[%c0_71, %c0_72] : memref<4x36xf32, #tpu.memory_space<vmem>>, vector<4x36xf32>
    %28 = vector.shape_cast %27 : vector<4x36xf32> to vector<1x4x36xf32>
    %29 = vector.shape_cast %28 : vector<1x4x36xf32> to vector<1x4x36xf32>
    %30 = vector.broadcast %29 : vector<1x4x36xf32> to vector<15x4x36xf32>
    %c0_73 = arith.constant 0 : index
    %c0_74 = arith.constant 0 : index
    %c0_75 = arith.constant 0 : index
    %31 = vector.load %arg13[%c0_73, %c0_74, %c0_75] : memref<15x36x15xf32, #tpu.memory_space<vmem>>, vector<15x36x15xf32>
    "tpu.trace_start"() <{level = 10 : i32, message = "hok,hkw->how"}> : () -> ()
    %cst = arith.constant dense<0.000000e+00> : vector<15x4x15xf32>
    %32 = tpu.matmul %30, %31, %cst {dimension_numbers = #tpu.dot_dimension_numbers<[2], [1], [1], [2], [0, 0, 0, 1, 1, 2], [0], [0]>} : vector<15x4x36xf32>, vector<15x36x15xf32>, vector<15x4x15xf32> -> vector<15x4x15xf32>
    "tpu.trace_stop"() : () -> ()
    %c0_76 = arith.constant 0 : index
    %c0_77 = arith.constant 0 : index
    %33 = vector.load %arg3[%c0_76, %c0_77] : memref<4x1xf32, #tpu.memory_space<vmem>>, vector<4x1xf32>
    %34 = vector.shape_cast %33 : vector<4x1xf32> to vector<1x4x1xf32>
    %35 = vector.broadcast %34 : vector<1x4x1xf32> to vector<15x4x15xf32>
    %36 = arith.addf %32, %35 : vector<15x4x15xf32>
    %cst_78 = arith.constant 0.000000e+00 : f32
    %37 = vector.broadcast %cst_78 : f32 to vector<5x4x5xf32>
    %c0_79 = arith.constant 0 : index
    %c0_80 = arith.constant 0 : index
    %c0_81 = arith.constant 0 : index
    %38 = vector.load %arg14[%c0_79, %c0_80, %c0_81] : memref<5x4x5xf32, #tpu.memory_space<vmem>>, vector<5x4x5xf32>
    tpu.vector_store %arg14[%c0_79, %c0_80, %c0_81], %37 {strides = array<i32>} : memref<5x4x5xf32, #tpu.memory_space<vmem>>, vector<5x4x5xf32>,
    %39 = vector.extract_strided_slice %36 {offsets = [0, 0, 0], sizes = [1, 4, 15], strides = [1, 1, 1]} : vector<15x4x15xf32> to vector<1x4x15xf32>
    %40 = vector.shape_cast %39 : vector<1x4x15xf32> to vector<4x15xf32>
    %41 = vector.extract_strided_slice %36 {offsets = [1, 0, 0], sizes = [1, 4, 15], strides = [1, 1, 1]} : vector<15x4x15xf32> to vector<1x4x15xf32>
    %42 = vector.shape_cast %41 : vector<1x4x15xf32> to vector<4x15xf32>
    %43 = arith.maximumf %40, %42 : vector<4x15xf32>
    %44 = vector.extract_strided_slice %36 {offsets = [2, 0, 0], sizes = [1, 4, 15], strides = [1, 1, 1]} : vector<15x4x15xf32> to vector<1x4x15xf32>
    %45 = vector.shape_cast %44 : vector<1x4x15xf32> to vector<4x15xf32>
    %46 = arith.maximumf %43, %45 : vector<4x15xf32>
    %47 = vector.extract_strided_slice %36 {offsets = [3, 0, 0], sizes = [1, 4, 15], strides = [1, 1, 1]} : vector<15x4x15xf32> to vector<1x4x15xf32>
    %48 = vector.shape_cast %47 : vector<1x4x15xf32> to vector<4x15xf32>
    %49 = arith.maximumf %46, %48 : vector<4x15xf32>
    %50 = vector.extract_strided_slice %36 {offsets = [4, 0, 0], sizes = [1, 4, 15], strides = [1, 1, 1]} : vector<15x4x15xf32> to vector<1x4x15xf32>
    %51 = vector.shape_cast %50 : vector<1x4x15xf32> to vector<4x15xf32>
    %52 = arith.maximumf %49, %51 : vector<4x15xf32>
    %53 = vector.extract_strided_slice %36 {offsets = [5, 0, 0], sizes = [1, 4, 15], strides = [1, 1, 1]} : vector<15x4x15xf32> to vector<1x4x15xf32>
    %54 = vector.shape_cast %53 : vector<1x4x15xf32> to vector<4x15xf32>
    %55 = arith.maximumf %52, %54 : vector<4x15xf32>
    %56 = vector.extract_strided_slice %36 {offsets = [6, 0, 0], sizes = [1, 4, 15], strides = [1, 1, 1]} : vector<15x4x15xf32> to vector<1x4x15xf32>
    %57 = vector.shape_cast %56 : vector<1x4x15xf32> to vector<4x15xf32>
    %58 = arith.maximumf %55, %57 : vector<4x15xf32>
    %59 = vector.extract_strided_slice %58 {offsets = [0, 0], sizes = [4, 9], strides = [1, 1]} : vector<4x15xf32> to vector<4x9xf32>
    %60 = vector.extract_strided_slice %58 {offsets = [0, 1], sizes = [4, 9], strides = [1, 1]} : vector<4x15xf32> to vector<4x9xf32>
    %61 = arith.maximumf %59, %60 : vector<4x9xf32>
    %62 = vector.extract_strided_slice %58 {offsets = [0, 2], sizes = [4, 9], strides = [1, 1]} : vector<4x15xf32> to vector<4x9xf32>
    %63 = arith.maximumf %61, %62 : vector<4x9xf32>
    %64 = vector.extract_strided_slice %58 {offsets = [0, 3], sizes = [4, 9], strides = [1, 1]} : vector<4x15xf32> to vector<4x9xf32>
    %65 = arith.maximumf %63, %64 : vector<4x9xf32>
    %66 = vector.extract_strided_slice %58 {offsets = [0, 4], sizes = [4, 9], strides = [1, 1]} : vector<4x15xf32> to vector<4x9xf32>
    %67 = arith.maximumf %65, %66 : vector<4x9xf32>
    %68 = vector.extract_strided_slice %58 {offsets = [0, 5], sizes = [4, 9], strides = [1, 1]} : vector<4x15xf32> to vector<4x9xf32>
    %69 = arith.maximumf %67, %68 : vector<4x9xf32>
    %70 = vector.extract_strided_slice %58 {offsets = [0, 6], sizes = [4, 9], strides = [1, 1]} : vector<4x15xf32> to vector<4x9xf32>
    %71 = arith.maximumf %69, %70 : vector<4x9xf32>
    %c0_82 = arith.constant 0 : index
    %c0_83 = arith.constant 0 : index
    %72 = vector.load %arg10[%c0_82, %c0_83] : memref<9x3xf32, #tpu.memory_space<vmem>>, vector<9x3xf32>
    %cst_84 = arith.constant dense<0.000000e+00> : vector<4x3xf32>
    %73 = tpu.matmul %71, %72, %cst_84 {dimension_numbers = #tpu.dot_dimension_numbers<[1], [0], [0], [1], [0, 0, 1, 1], [], []>} : vector<4x9xf32>, vector<9x3xf32>, vector<4x3xf32> -> vector<4x3xf32>
    %c1_85 = arith.constant 1 : index
    %c0_86 = arith.constant 0 : index
    %c1_87 = arith.constant 1 : index
    %74 = vector.load %arg14[%c1_85, %c0_86, %c1_87] : memref<5x4x5xf32, #tpu.memory_space<vmem>>, vector<1x4x3xf32>
    %75 = vector.shape_cast %74 : vector<1x4x3xf32> to vector<4x3xf32>
    %76 = vector.shape_cast %73 : vector<4x3xf32> to vector<1x4x3xf32>
    tpu.vector_store %arg14[%c1_85, %c0_86, %c1_87], %76 {strides = array<i32>} : memref<5x4x5xf32, #tpu.memory_space<vmem>>, vector<1x4x3xf32>,
    %77 = vector.extract_strided_slice %36 {offsets = [3, 0, 0], sizes = [1, 4, 15], strides = [1, 1, 1]} : vector<15x4x15xf32> to vector<1x4x15xf32>
    %78 = vector.shape_cast %77 : vector<1x4x15xf32> to vector<4x15xf32>
    %79 = vector.extract_strided_slice %36 {offsets = [4, 0, 0], sizes = [1, 4, 15], strides = [1, 1, 1]} : vector<15x4x15xf32> to vector<1x4x15xf32>
    %80 = vector.shape_cast %79 : vector<1x4x15xf32> to vector<4x15xf32>
    %81 = arith.maximumf %78, %80 : vector<4x15xf32>
    %82 = vector.extract_strided_slice %36 {offsets = [5, 0, 0], sizes = [1, 4, 15], strides = [1, 1, 1]} : vector<15x4x15xf32> to vector<1x4x15xf32>
    %83 = vector.shape_cast %82 : vector<1x4x15xf32> to vector<4x15xf32>
    %84 = arith.maximumf %81, %83 : vector<4x15xf32>
    %85 = vector.extract_strided_slice %36 {offsets = [6, 0, 0], sizes = [1, 4, 15], strides = [1, 1, 1]} : vector<15x4x15xf32> to vector<1x4x15xf32>
    %86 = vector.shape_cast %85 : vector<1x4x15xf32> to vector<4x15xf32>
    %87 = arith.maximumf %84, %86 : vector<4x15xf32>
    %88 = vector.extract_strided_slice %36 {offsets = [7, 0, 0], sizes = [1, 4, 15], strides = [1, 1, 1]} : vector<15x4x15xf32> to vector<1x4x15xf32>
    %89 = vector.shape_cast %88 : vector<1x4x15xf32> to vector<4x15xf32>
    %90 = arith.maximumf %87, %89 : vector<4x15xf32>
    %91 = vector.extract_strided_slice %36 {offsets = [8, 0, 0], sizes = [1, 4, 15], strides = [1, 1, 1]} : vector<15x4x15xf32> to vector<1x4x15xf32>
    %92 = vector.shape_cast %91 : vector<1x4x15xf32> to vector<4x15xf32>
    %93 = arith.maximumf %90, %92 : vector<4x15xf32>
    %94 = vector.extract_strided_slice %36 {offsets = [9, 0, 0], sizes = [1, 4, 15], strides = [1, 1, 1]} : vector<15x4x15xf32> to vector<1x4x15xf32>
    %95 = vector.shape_cast %94 : vector<1x4x15xf32> to vector<4x15xf32>
    %96 = arith.maximumf %93, %95 : vector<4x15xf32>
    %97 = vector.extract_strided_slice %96 {offsets = [0, 0], sizes = [4, 9], strides = [1, 1]} : vector<4x15xf32> to vector<4x9xf32>
    %98 = vector.extract_strided_slice %96 {offsets = [0, 1], sizes = [4, 9], strides = [1, 1]} : vector<4x15xf32> to vector<4x9xf32>
    %99 = arith.maximumf %97, %98 : vector<4x9xf32>
    %100 = vector.extract_strided_slice %96 {offsets = [0, 2], sizes = [4, 9], strides = [1, 1]} : vector<4x15xf32> to vector<4x9xf32>
    %101 = arith.maximumf %99, %100 : vector<4x9xf32>
    %102 = vector.extract_strided_slice %96 {offsets = [0, 3], sizes = [4, 9], strides = [1, 1]} : vector<4x15xf32> to vector<4x9xf32>
    %103 = arith.maximumf %101, %102 : vector<4x9xf32>
    %104 = vector.extract_strided_slice %96 {offsets = [0, 4], sizes = [4, 9], strides = [1, 1]} : vector<4x15xf32> to vector<4x9xf32>
    %105 = arith.maximumf %103, %104 : vector<4x9xf32>
    %106 = vector.extract_strided_slice %96 {offsets = [0, 5], sizes = [4, 9], strides = [1, 1]} : vector<4x15xf32> to vector<4x9xf32>
    %107 = arith.maximumf %105, %106 : vector<4x9xf32>
    %108 = vector.extract_strided_slice %96 {offsets = [0, 6], sizes = [4, 9], strides = [1, 1]} : vector<4x15xf32> to vector<4x9xf32>
    %109 = arith.maximumf %107, %108 : vector<4x9xf32>
    %c0_88 = arith.constant 0 : index
    %c0_89 = arith.constant 0 : index
    %110 = vector.load %arg10[%c0_88, %c0_89] : memref<9x3xf32, #tpu.memory_space<vmem>>, vector<9x3xf32>
    %cst_90 = arith.constant dense<0.000000e+00> : vector<4x3xf32>
    %111 = tpu.matmul %109, %110, %cst_90 {dimension_numbers = #tpu.dot_dimension_numbers<[1], [0], [0], [1], [0, 0, 1, 1], [], []>} : vector<4x9xf32>, vector<9x3xf32>, vector<4x3xf32> -> vector<4x3xf32>
    %c2 = arith.constant 2 : index
    %c0_91 = arith.constant 0 : index
    %c1_92 = arith.constant 1 : index
    %112 = vector.load %arg14[%c2, %c0_91, %c1_92] : memref<5x4x5xf32, #tpu.memory_space<vmem>>, vector<1x4x3xf32>
    %113 = vector.shape_cast %112 : vector<1x4x3xf32> to vector<4x3xf32>
    %114 = vector.shape_cast %111 : vector<4x3xf32> to vector<1x4x3xf32>
    tpu.vector_store %arg14[%c2, %c0_91, %c1_92], %114 {strides = array<i32>} : memref<5x4x5xf32, #tpu.memory_space<vmem>>, vector<1x4x3xf32>,
    %115 = vector.extract_strided_slice %36 {offsets = [6, 0, 0], sizes = [1, 4, 15], strides = [1, 1, 1]} : vector<15x4x15xf32> to vector<1x4x15xf32>
    %116 = vector.shape_cast %115 : vector<1x4x15xf32> to vector<4x15xf32>
    %117 = vector.extract_strided_slice %36 {offsets = [7, 0, 0], sizes = [1, 4, 15], strides = [1, 1, 1]} : vector<15x4x15xf32> to vector<1x4x15xf32>
    %118 = vector.shape_cast %117 : vector<1x4x15xf32> to vector<4x15xf32>
    %119 = arith.maximumf %116, %118 : vector<4x15xf32>
    %120 = vector.extract_strided_slice %36 {offsets = [8, 0, 0], sizes = [1, 4, 15], strides = [1, 1, 1]} : vector<15x4x15xf32> to vector<1x4x15xf32>
    %121 = vector.shape_cast %120 : vector<1x4x15xf32> to vector<4x15xf32>
    %122 = arith.maximumf %119, %121 : vector<4x15xf32>
    %123 = vector.extract_strided_slice %36 {offsets = [9, 0, 0], sizes = [1, 4, 15], strides = [1, 1, 1]} : vector<15x4x15xf32> to vector<1x4x15xf32>
    %124 = vector.shape_cast %123 : vector<1x4x15xf32> to vector<4x15xf32>
    %125 = arith.maximumf %122, %124 : vector<4x15xf32>
    %126 = vector.extract_strided_slice %36 {offsets = [10, 0, 0], sizes = [1, 4, 15], strides = [1, 1, 1]} : vector<15x4x15xf32> to vector<1x4x15xf32>
    %127 = vector.shape_cast %126 : vector<1x4x15xf32> to vector<4x15xf32>
    %128 = arith.maximumf %125, %127 : vector<4x15xf32>
    %129 = vector.extract_strided_slice %36 {offsets = [11, 0, 0], sizes = [1, 4, 15], strides = [1, 1, 1]} : vector<15x4x15xf32> to vector<1x4x15xf32>
    %130 = vector.shape_cast %129 : vector<1x4x15xf32> to vector<4x15xf32>
    %131 = arith.maximumf %128, %130 : vector<4x15xf32>
    %132 = vector.extract_strided_slice %36 {offsets = [12, 0, 0], sizes = [1, 4, 15], strides = [1, 1, 1]} : vector<15x4x15xf32> to vector<1x4x15xf32>
    %133 = vector.shape_cast %132 : vector<1x4x15xf32> to vector<4x15xf32>
    %134 = arith.maximumf %131, %133 : vector<4x15xf32>
    %135 = vector.extract_strided_slice %134 {offsets = [0, 0], sizes = [4, 9], strides = [1, 1]} : vector<4x15xf32> to vector<4x9xf32>
    %136 = vector.extract_strided_slice %134 {offsets = [0, 1], sizes = [4, 9], strides = [1, 1]} : vector<4x15xf32> to vector<4x9xf32>
    %137 = arith.maximumf %135, %136 : vector<4x9xf32>
    %138 = vector.extract_strided_slice %134 {offsets = [0, 2], sizes = [4, 9], strides = [1, 1]} : vector<4x15xf32> to vector<4x9xf32>
    %139 = arith.maximumf %137, %138 : vector<4x9xf32>
    %140 = vector.extract_strided_slice %134 {offsets = [0, 3], sizes = [4, 9], strides = [1, 1]} : vector<4x15xf32> to vector<4x9xf32>
    %141 = arith.maximumf %139, %140 : vector<4x9xf32>
    %142 = vector.extract_strided_slice %134 {offsets = [0, 4], sizes = [4, 9], strides = [1, 1]} : vector<4x15xf32> to vector<4x9xf32>
    %143 = arith.maximumf %141, %142 : vector<4x9xf32>
    %144 = vector.extract_strided_slice %134 {offsets = [0, 5], sizes = [4, 9], strides = [1, 1]} : vector<4x15xf32> to vector<4x9xf32>
    %145 = arith.maximumf %143, %144 : vector<4x9xf32>
    %146 = vector.extract_strided_slice %134 {offsets = [0, 6], sizes = [4, 9], strides = [1, 1]} : vector<4x15xf32> to vector<4x9xf32>
    %147 = arith.maximumf %145, %146 : vector<4x9xf32>
    %c0_93 = arith.constant 0 : index
    %c0_94 = arith.constant 0 : index
    %148 = vector.load %arg10[%c0_93, %c0_94] : memref<9x3xf32, #tpu.memory_space<vmem>>, vector<9x3xf32>
    %cst_95 = arith.constant dense<0.000000e+00> : vector<4x3xf32>
    %149 = tpu.matmul %147, %148, %cst_95 {dimension_numbers = #tpu.dot_dimension_numbers<[1], [0], [0], [1], [0, 0, 1, 1], [], []>} : vector<4x9xf32>, vector<9x3xf32>, vector<4x3xf32> -> vector<4x3xf32>
    %c3 = arith.constant 3 : index
    %c0_96 = arith.constant 0 : index
    %c1_97 = arith.constant 1 : index
    %150 = vector.load %arg14[%c3, %c0_96, %c1_97] : memref<5x4x5xf32, #tpu.memory_space<vmem>>, vector<1x4x3xf32>
    %151 = vector.shape_cast %150 : vector<1x4x3xf32> to vector<4x3xf32>
    %152 = vector.shape_cast %149 : vector<4x3xf32> to vector<1x4x3xf32>
    tpu.vector_store %arg14[%c3, %c0_96, %c1_97], %152 {strides = array<i32>} : memref<5x4x5xf32, #tpu.memory_space<vmem>>, vector<1x4x3xf32>,
    %c0_98 = arith.constant 0 : index
    %c0_99 = arith.constant 0 : index
    %c0_100 = arith.constant 0 : index
    %153 = vector.load %arg14[%c0_98, %c0_99, %c0_100] : memref<5x4x5xf32, #tpu.memory_space<vmem>>, vector<3x4x3xf32>
    %c0_101 = arith.constant 0 : index
    %c0_102 = arith.constant 0 : index
    %c0_103 = arith.constant 0 : index
    %154 = vector.load %arg15[%c0_101, %c0_102, %c0_103] : memref<3x36x3xf32, #tpu.memory_space<vmem>>, vector<3x4x3xf32>
    tpu.vector_store %arg15[%c0_101, %c0_102, %c0_103], %153 {strides = array<i32>} : memref<3x36x3xf32, #tpu.memory_space<vmem>>, vector<3x4x3xf32>,
    %c0_104 = arith.constant 0 : index
    %c0_105 = arith.constant 0 : index
    %c1_106 = arith.constant 1 : index
    %155 = vector.load %arg14[%c0_104, %c0_105, %c1_106] : memref<5x4x5xf32, #tpu.memory_space<vmem>>, vector<3x4x3xf32>
    %c0_107 = arith.constant 0 : index
    %c4_108 = arith.constant 4 : index
    %c0_109 = arith.constant 0 : index
    %156 = vector.load %arg15[%c0_107, %c4_108, %c0_109] : memref<3x36x3xf32, #tpu.memory_space<vmem>>, vector<3x4x3xf32>
    tpu.vector_store %arg15[%c0_107, %c4_108, %c0_109], %155 {strides = array<i32>} : memref<3x36x3xf32, #tpu.memory_space<vmem>>, vector<3x4x3xf32>,
    %c0_110 = arith.constant 0 : index
    %c0_111 = arith.constant 0 : index
    %c2_112 = arith.constant 2 : index
    %157 = vector.load %arg14[%c0_110, %c0_111, %c2_112] : memref<5x4x5xf32, #tpu.memory_space<vmem>>, vector<3x4x3xf32>
    %c0_113 = arith.constant 0 : index
    %c8_114 = arith.constant 8 : index
    %c0_115 = arith.constant 0 : index
    %158 = vector.load %arg15[%c0_113, %c8_114, %c0_115] : memref<3x36x3xf32, #tpu.memory_space<vmem>>, vector<3x4x3xf32>
    tpu.vector_store %arg15[%c0_113, %c8_114, %c0_115], %157 {strides = array<i32>} : memref<3x36x3xf32, #tpu.memory_space<vmem>>, vector<3x4x3xf32>,
    %c1_116 = arith.constant 1 : index
    %c0_117 = arith.constant 0 : index
    %c0_118 = arith.constant 0 : index
    %159 = vector.load %arg14[%c1_116, %c0_117, %c0_118] : memref<5x4x5xf32, #tpu.memory_space<vmem>>, vector<3x4x3xf32>
    %c0_119 = arith.constant 0 : index
    %c12_120 = arith.constant 12 : index
    %c0_121 = arith.constant 0 : index
    %160 = vector.load %arg15[%c0_119, %c12_120, %c0_121] : memref<3x36x3xf32, #tpu.memory_space<vmem>>, vector<3x4x3xf32>
    tpu.vector_store %arg15[%c0_119, %c12_120, %c0_121], %159 {strides = array<i32>} : memref<3x36x3xf32, #tpu.memory_space<vmem>>, vector<3x4x3xf32>,
    %c1_122 = arith.constant 1 : index
    %c0_123 = arith.constant 0 : index
    %c1_124 = arith.constant 1 : index
    %161 = vector.load %arg14[%c1_122, %c0_123, %c1_124] : memref<5x4x5xf32, #tpu.memory_space<vmem>>, vector<3x4x3xf32>
    %c0_125 = arith.constant 0 : index
    %c16_126 = arith.constant 16 : index
    %c0_127 = arith.constant 0 : index
    %162 = vector.load %arg15[%c0_125, %c16_126, %c0_127] : memref<3x36x3xf32, #tpu.memory_space<vmem>>, vector<3x4x3xf32>
    tpu.vector_store %arg15[%c0_125, %c16_126, %c0_127], %161 {strides = array<i32>} : memref<3x36x3xf32, #tpu.memory_space<vmem>>, vector<3x4x3xf32>,
    %c1_128 = arith.constant 1 : index
    %c0_129 = arith.constant 0 : index
    %c2_130 = arith.constant 2 : index
    %163 = vector.load %arg14[%c1_128, %c0_129, %c2_130] : memref<5x4x5xf32, #tpu.memory_space<vmem>>, vector<3x4x3xf32>
    %c0_131 = arith.constant 0 : index
    %c20_132 = arith.constant 20 : index
    %c0_133 = arith.constant 0 : index
    %164 = vector.load %arg15[%c0_131, %c20_132, %c0_133] : memref<3x36x3xf32, #tpu.memory_space<vmem>>, vector<3x4x3xf32>
    tpu.vector_store %arg15[%c0_131, %c20_132, %c0_133], %163 {strides = array<i32>} : memref<3x36x3xf32, #tpu.memory_space<vmem>>, vector<3x4x3xf32>,
    %c2_134 = arith.constant 2 : index
    %c0_135 = arith.constant 0 : index
    %c0_136 = arith.constant 0 : index
    %165 = vector.load %arg14[%c2_134, %c0_135, %c0_136] : memref<5x4x5xf32, #tpu.memory_space<vmem>>, vector<3x4x3xf32>
    %c0_137 = arith.constant 0 : index
    %c24_138 = arith.constant 24 : index
    %c0_139 = arith.constant 0 : index
    %166 = vector.load %arg15[%c0_137, %c24_138, %c0_139] : memref<3x36x3xf32, #tpu.memory_space<vmem>>, vector<3x4x3xf32>
    tpu.vector_store %arg15[%c0_137, %c24_138, %c0_139], %165 {strides = array<i32>} : memref<3x36x3xf32, #tpu.memory_space<vmem>>, vector<3x4x3xf32>,
    %c2_140 = arith.constant 2 : index
    %c0_141 = arith.constant 0 : index
    %c1_142 = arith.constant 1 : index
    %167 = vector.load %arg14[%c2_140, %c0_141, %c1_142] : memref<5x4x5xf32, #tpu.memory_space<vmem>>, vector<3x4x3xf32>
    %c0_143 = arith.constant 0 : index
    %c28_144 = arith.constant 28 : index
    %c0_145 = arith.constant 0 : index
    %168 = vector.load %arg15[%c0_143, %c28_144, %c0_145] : memref<3x36x3xf32, #tpu.memory_space<vmem>>, vector<3x4x3xf32>
    tpu.vector_store %arg15[%c0_143, %c28_144, %c0_145], %167 {strides = array<i32>} : memref<3x36x3xf32, #tpu.memory_space<vmem>>, vector<3x4x3xf32>,
    %c2_146 = arith.constant 2 : index
    %c0_147 = arith.constant 0 : index
    %c2_148 = arith.constant 2 : index
    %169 = vector.load %arg14[%c2_146, %c0_147, %c2_148] : memref<5x4x5xf32, #tpu.memory_space<vmem>>, vector<3x4x3xf32>
    %c0_149 = arith.constant 0 : index
    %c32_150 = arith.constant 32 : index
    %c0_151 = arith.constant 0 : index
    %170 = vector.load %arg15[%c0_149, %c32_150, %c0_151] : memref<3x36x3xf32, #tpu.memory_space<vmem>>, vector<3x4x3xf32>
    tpu.vector_store %arg15[%c0_149, %c32_150, %c0_151], %169 {strides = array<i32>} : memref<3x36x3xf32, #tpu.memory_space<vmem>>, vector<3x4x3xf32>,
    %c0_152 = arith.constant 0 : index
    %c0_153 = arith.constant 0 : index
    %171 = vector.load %arg4[%c0_152, %c0_153] : memref<4x36xf32, #tpu.memory_space<vmem>>, vector<4x36xf32>
    %172 = vector.shape_cast %171 : vector<4x36xf32> to vector<1x4x36xf32>
    %173 = vector.shape_cast %172 : vector<1x4x36xf32> to vector<1x4x36xf32>
    %174 = vector.broadcast %173 : vector<1x4x36xf32> to vector<3x4x36xf32>
    %c0_154 = arith.constant 0 : index
    %c0_155 = arith.constant 0 : index
    %c0_156 = arith.constant 0 : index
    %175 = vector.load %arg15[%c0_154, %c0_155, %c0_156] : memref<3x36x3xf32, #tpu.memory_space<vmem>>, vector<3x36x3xf32>
    "tpu.trace_start"() <{level = 10 : i32, message = "hok,hkw->how"}> : () -> ()
    %cst_157 = arith.constant dense<0.000000e+00> : vector<3x4x3xf32>
    %176 = tpu.matmul %174, %175, %cst_157 {dimension_numbers = #tpu.dot_dimension_numbers<[2], [1], [1], [2], [0, 0, 0, 1, 1, 2], [0], [0]>} : vector<3x4x36xf32>, vector<3x36x3xf32>, vector<3x4x3xf32> -> vector<3x4x3xf32>
    "tpu.trace_stop"() : () -> ()
    %c0_158 = arith.constant 0 : index
    %c0_159 = arith.constant 0 : index
    %177 = vector.load %arg5[%c0_158, %c0_159] : memref<4x1xf32, #tpu.memory_space<vmem>>, vector<4x1xf32>
    %178 = vector.shape_cast %177 : vector<4x1xf32> to vector<1x4x1xf32>
    %179 = vector.broadcast %178 : vector<1x4x1xf32> to vector<3x4x3xf32>
    %180 = arith.addf %176, %179 : vector<3x4x3xf32>
    %cst_160 = arith.constant 0.000000e+00 : f32
    %181 = vector.broadcast %cst_160 : f32 to vector<3x4x3xf32>
    %182 = arith.maximumf %180, %181 : vector<3x4x3xf32>
    %c1_161 = arith.constant 1 : index
    %c0_162 = arith.constant 0 : index
    %c1_163 = arith.constant 1 : index
    %183 = vector.load %arg14[%c1_161, %c0_162, %c1_163] : memref<5x4x5xf32, #tpu.memory_space<vmem>>, vector<3x4x3xf32>
    tpu.vector_store %arg14[%c1_161, %c0_162, %c1_163], %182 {strides = array<i32>} : memref<5x4x5xf32, #tpu.memory_space<vmem>>, vector<3x4x3xf32>,
    %c0_164 = arith.constant 0 : index
    %c0_165 = arith.constant 0 : index
    %c0_166 = arith.constant 0 : index
    %184 = vector.load %arg14[%c0_164, %c0_165, %c0_166] : memref<5x4x5xf32, #tpu.memory_space<vmem>>, vector<3x4x3xf32>
    %c0_167 = arith.constant 0 : index
    %c0_168 = arith.constant 0 : index
    %c0_169 = arith.constant 0 : index
    %185 = vector.load %arg15[%c0_167, %c0_168, %c0_169] : memref<3x36x3xf32, #tpu.memory_space<vmem>>, vector<3x4x3xf32>
    tpu.vector_store %arg15[%c0_167, %c0_168, %c0_169], %184 {strides = array<i32>} : memref<3x36x3xf32, #tpu.memory_space<vmem>>, vector<3x4x3xf32>,
    %c0_170 = arith.constant 0 : index
    %c0_171 = arith.constant 0 : index
    %c1_172 = arith.constant 1 : index
    %186 = vector.load %arg14[%c0_170, %c0_171, %c1_172] : memref<5x4x5xf32, #tpu.memory_space<vmem>>, vector<3x4x3xf32>
    %c0_173 = arith.constant 0 : index
    %c4_174 = arith.constant 4 : index
    %c0_175 = arith.constant 0 : index
    %187 = vector.load %arg15[%c0_173, %c4_174, %c0_175] : memref<3x36x3xf32, #tpu.memory_space<vmem>>, vector<3x4x3xf32>
    tpu.vector_store %arg15[%c0_173, %c4_174, %c0_175], %186 {strides = array<i32>} : memref<3x36x3xf32, #tpu.memory_space<vmem>>, vector<3x4x3xf32>,
    %c0_176 = arith.constant 0 : index
    %c0_177 = arith.constant 0 : index
    %c2_178 = arith.constant 2 : index
    %188 = vector.load %arg14[%c0_176, %c0_177, %c2_178] : memref<5x4x5xf32, #tpu.memory_space<vmem>>, vector<3x4x3xf32>
    %c0_179 = arith.constant 0 : index
    %c8_180 = arith.constant 8 : index
    %c0_181 = arith.constant 0 : index
    %189 = vector.load %arg15[%c0_179, %c8_180, %c0_181] : memref<3x36x3xf32, #tpu.memory_space<vmem>>, vector<3x4x3xf32>
    tpu.vector_store %arg15[%c0_179, %c8_180, %c0_181], %188 {strides = array<i32>} : memref<3x36x3xf32, #tpu.memory_space<vmem>>, vector<3x4x3xf32>,
    %c1_182 = arith.constant 1 : index
    %c0_183 = arith.constant 0 : index
    %c0_184 = arith.constant 0 : index
    %190 = vector.load %arg14[%c1_182, %c0_183, %c0_184] : memref<5x4x5xf32, #tpu.memory_space<vmem>>, vector<3x4x3xf32>
    %c0_185 = arith.constant 0 : index
    %c12_186 = arith.constant 12 : index
    %c0_187 = arith.constant 0 : index
    %191 = vector.load %arg15[%c0_185, %c12_186, %c0_187] : memref<3x36x3xf32, #tpu.memory_space<vmem>>, vector<3x4x3xf32>
    tpu.vector_store %arg15[%c0_185, %c12_186, %c0_187], %190 {strides = array<i32>} : memref<3x36x3xf32, #tpu.memory_space<vmem>>, vector<3x4x3xf32>,
    %c1_188 = arith.constant 1 : index
    %c0_189 = arith.constant 0 : index
    %c1_190 = arith.constant 1 : index
    %192 = vector.load %arg14[%c1_188, %c0_189, %c1_190] : memref<5x4x5xf32, #tpu.memory_space<vmem>>, vector<3x4x3xf32>
    %c0_191 = arith.constant 0 : index
    %c16_192 = arith.constant 16 : index
    %c0_193 = arith.constant 0 : index
    %193 = vector.load %arg15[%c0_191, %c16_192, %c0_193] : memref<3x36x3xf32, #tpu.memory_space<vmem>>, vector<3x4x3xf32>
    tpu.vector_store %arg15[%c0_191, %c16_192, %c0_193], %192 {strides = array<i32>} : memref<3x36x3xf32, #tpu.memory_space<vmem>>, vector<3x4x3xf32>,
    %c1_194 = arith.constant 1 : index
    %c0_195 = arith.constant 0 : index
    %c2_196 = arith.constant 2 : index
    %194 = vector.load %arg14[%c1_194, %c0_195, %c2_196] : memref<5x4x5xf32, #tpu.memory_space<vmem>>, vector<3x4x3xf32>
    %c0_197 = arith.constant 0 : index
    %c20_198 = arith.constant 20 : index
    %c0_199 = arith.constant 0 : index
    %195 = vector.load %arg15[%c0_197, %c20_198, %c0_199] : memref<3x36x3xf32, #tpu.memory_space<vmem>>, vector<3x4x3xf32>
    tpu.vector_store %arg15[%c0_197, %c20_198, %c0_199], %194 {strides = array<i32>} : memref<3x36x3xf32, #tpu.memory_space<vmem>>, vector<3x4x3xf32>,
    %c2_200 = arith.constant 2 : index
    %c0_201 = arith.constant 0 : index
    %c0_202 = arith.constant 0 : index
    %196 = vector.load %arg14[%c2_200, %c0_201, %c0_202] : memref<5x4x5xf32, #tpu.memory_space<vmem>>, vector<3x4x3xf32>
    %c0_203 = arith.constant 0 : index
    %c24_204 = arith.constant 24 : index
    %c0_205 = arith.constant 0 : index
    %197 = vector.load %arg15[%c0_203, %c24_204, %c0_205] : memref<3x36x3xf32, #tpu.memory_space<vmem>>, vector<3x4x3xf32>
    tpu.vector_store %arg15[%c0_203, %c24_204, %c0_205], %196 {strides = array<i32>} : memref<3x36x3xf32, #tpu.memory_space<vmem>>, vector<3x4x3xf32>,
    %c2_206 = arith.constant 2 : index
    %c0_207 = arith.constant 0 : index
    %c1_208 = arith.constant 1 : index
    %198 = vector.load %arg14[%c2_206, %c0_207, %c1_208] : memref<5x4x5xf32, #tpu.memory_space<vmem>>, vector<3x4x3xf32>
    %c0_209 = arith.constant 0 : index
    %c28_210 = arith.constant 28 : index
    %c0_211 = arith.constant 0 : index
    %199 = vector.load %arg15[%c0_209, %c28_210, %c0_211] : memref<3x36x3xf32, #tpu.memory_space<vmem>>, vector<3x4x3xf32>
    tpu.vector_store %arg15[%c0_209, %c28_210, %c0_211], %198 {strides = array<i32>} : memref<3x36x3xf32, #tpu.memory_space<vmem>>, vector<3x4x3xf32>,
    %c2_212 = arith.constant 2 : index
    %c0_213 = arith.constant 0 : index
    %c2_214 = arith.constant 2 : index
    %200 = vector.load %arg14[%c2_212, %c0_213, %c2_214] : memref<5x4x5xf32, #tpu.memory_space<vmem>>, vector<3x4x3xf32>
    %c0_215 = arith.constant 0 : index
    %c32_216 = arith.constant 32 : index
    %c0_217 = arith.constant 0 : index
    %201 = vector.load %arg15[%c0_215, %c32_216, %c0_217] : memref<3x36x3xf32, #tpu.memory_space<vmem>>, vector<3x4x3xf32>
    tpu.vector_store %arg15[%c0_215, %c32_216, %c0_217], %200 {strides = array<i32>} : memref<3x36x3xf32, #tpu.memory_space<vmem>>, vector<3x4x3xf32>,
    %c0_218 = arith.constant 0 : index
    %c0_219 = arith.constant 0 : index
    %202 = vector.load %arg6[%c0_218, %c0_219] : memref<4x36xf32, #tpu.memory_space<vmem>>, vector<4x36xf32>
    %203 = vector.shape_cast %202 : vector<4x36xf32> to vector<1x4x36xf32>
    %204 = vector.shape_cast %203 : vector<1x4x36xf32> to vector<1x4x36xf32>
    %205 = vector.broadcast %204 : vector<1x4x36xf32> to vector<3x4x36xf32>
    %c0_220 = arith.constant 0 : index
    %c0_221 = arith.constant 0 : index
    %c0_222 = arith.constant 0 : index
    %206 = vector.load %arg15[%c0_220, %c0_221, %c0_222] : memref<3x36x3xf32, #tpu.memory_space<vmem>>, vector<3x36x3xf32>
    "tpu.trace_start"() <{level = 10 : i32, message = "hok,hkw->how"}> : () -> ()
    %cst_223 = arith.constant dense<0.000000e+00> : vector<3x4x3xf32>
    %207 = tpu.matmul %205, %206, %cst_223 {dimension_numbers = #tpu.dot_dimension_numbers<[2], [1], [1], [2], [0, 0, 0, 1, 1, 2], [0], [0]>} : vector<3x4x36xf32>, vector<3x36x3xf32>, vector<3x4x3xf32> -> vector<3x4x3xf32>
    "tpu.trace_stop"() : () -> ()
    %c0_224 = arith.constant 0 : index
    %c0_225 = arith.constant 0 : index
    %208 = vector.load %arg7[%c0_224, %c0_225] : memref<4x1xf32, #tpu.memory_space<vmem>>, vector<4x1xf32>
    %209 = vector.shape_cast %208 : vector<4x1xf32> to vector<1x4x1xf32>
    %210 = vector.broadcast %209 : vector<1x4x1xf32> to vector<3x4x3xf32>
    %211 = arith.addf %207, %210 : vector<3x4x3xf32>
    %cst_226 = arith.constant 0.000000e+00 : f32
    %212 = vector.broadcast %cst_226 : f32 to vector<3x4x3xf32>
    %213 = arith.maximumf %211, %212 : vector<3x4x3xf32>
    %c1_227 = arith.constant 1 : index
    %c0_228 = arith.constant 0 : index
    %c1_229 = arith.constant 1 : index
    %214 = vector.load %arg14[%c1_227, %c0_228, %c1_229] : memref<5x4x5xf32, #tpu.memory_space<vmem>>, vector<3x4x3xf32>
    tpu.vector_store %arg14[%c1_227, %c0_228, %c1_229], %213 {strides = array<i32>} : memref<5x4x5xf32, #tpu.memory_space<vmem>>, vector<3x4x3xf32>,
    %c0_230 = arith.constant 0 : index
    %c0_231 = arith.constant 0 : index
    %c0_232 = arith.constant 0 : index
    %215 = vector.load %arg14[%c0_230, %c0_231, %c0_232] : memref<5x4x5xf32, #tpu.memory_space<vmem>>, vector<3x4x3xf32>
    %c0_233 = arith.constant 0 : index
    %c0_234 = arith.constant 0 : index
    %c0_235 = arith.constant 0 : index
    %216 = vector.load %arg15[%c0_233, %c0_234, %c0_235] : memref<3x36x3xf32, #tpu.memory_space<vmem>>, vector<3x4x3xf32>
    tpu.vector_store %arg15[%c0_233, %c0_234, %c0_235], %215 {strides = array<i32>} : memref<3x36x3xf32, #tpu.memory_space<vmem>>, vector<3x4x3xf32>,
    %c0_236 = arith.constant 0 : index
    %c0_237 = arith.constant 0 : index
    %c1_238 = arith.constant 1 : index
    %217 = vector.load %arg14[%c0_236, %c0_237, %c1_238] : memref<5x4x5xf32, #tpu.memory_space<vmem>>, vector<3x4x3xf32>
    %c0_239 = arith.constant 0 : index
    %c4_240 = arith.constant 4 : index
    %c0_241 = arith.constant 0 : index
    %218 = vector.load %arg15[%c0_239, %c4_240, %c0_241] : memref<3x36x3xf32, #tpu.memory_space<vmem>>, vector<3x4x3xf32>
    tpu.vector_store %arg15[%c0_239, %c4_240, %c0_241], %217 {strides = array<i32>} : memref<3x36x3xf32, #tpu.memory_space<vmem>>, vector<3x4x3xf32>,
    %c0_242 = arith.constant 0 : index
    %c0_243 = arith.constant 0 : index
    %c2_244 = arith.constant 2 : index
    %219 = vector.load %arg14[%c0_242, %c0_243, %c2_244] : memref<5x4x5xf32, #tpu.memory_space<vmem>>, vector<3x4x3xf32>
    %c0_245 = arith.constant 0 : index
    %c8_246 = arith.constant 8 : index
    %c0_247 = arith.constant 0 : index
    %220 = vector.load %arg15[%c0_245, %c8_246, %c0_247] : memref<3x36x3xf32, #tpu.memory_space<vmem>>, vector<3x4x3xf32>
    tpu.vector_store %arg15[%c0_245, %c8_246, %c0_247], %219 {strides = array<i32>} : memref<3x36x3xf32, #tpu.memory_space<vmem>>, vector<3x4x3xf32>,
    %c1_248 = arith.constant 1 : index
    %c0_249 = arith.constant 0 : index
    %c0_250 = arith.constant 0 : index
    %221 = vector.load %arg14[%c1_248, %c0_249, %c0_250] : memref<5x4x5xf32, #tpu.memory_space<vmem>>, vector<3x4x3xf32>
    %c0_251 = arith.constant 0 : index
    %c12_252 = arith.constant 12 : index
    %c0_253 = arith.constant 0 : index
    %222 = vector.load %arg15[%c0_251, %c12_252, %c0_253] : memref<3x36x3xf32, #tpu.memory_space<vmem>>, vector<3x4x3xf32>
    tpu.vector_store %arg15[%c0_251, %c12_252, %c0_253], %221 {strides = array<i32>} : memref<3x36x3xf32, #tpu.memory_space<vmem>>, vector<3x4x3xf32>,
    %c1_254 = arith.constant 1 : index
    %c0_255 = arith.constant 0 : index
    %c1_256 = arith.constant 1 : index
    %223 = vector.load %arg14[%c1_254, %c0_255, %c1_256] : memref<5x4x5xf32, #tpu.memory_space<vmem>>, vector<3x4x3xf32>
    %c0_257 = arith.constant 0 : index
    %c16_258 = arith.constant 16 : index
    %c0_259 = arith.constant 0 : index
    %224 = vector.load %arg15[%c0_257, %c16_258, %c0_259] : memref<3x36x3xf32, #tpu.memory_space<vmem>>, vector<3x4x3xf32>
    tpu.vector_store %arg15[%c0_257, %c16_258, %c0_259], %223 {strides = array<i32>} : memref<3x36x3xf32, #tpu.memory_space<vmem>>, vector<3x4x3xf32>,
    %c1_260 = arith.constant 1 : index
    %c0_261 = arith.constant 0 : index
    %c2_262 = arith.constant 2 : index
    %225 = vector.load %arg14[%c1_260, %c0_261, %c2_262] : memref<5x4x5xf32, #tpu.memory_space<vmem>>, vector<3x4x3xf32>
    %c0_263 = arith.constant 0 : index
    %c20_264 = arith.constant 20 : index
    %c0_265 = arith.constant 0 : index
    %226 = vector.load %arg15[%c0_263, %c20_264, %c0_265] : memref<3x36x3xf32, #tpu.memory_space<vmem>>, vector<3x4x3xf32>
    tpu.vector_store %arg15[%c0_263, %c20_264, %c0_265], %225 {strides = array<i32>} : memref<3x36x3xf32, #tpu.memory_space<vmem>>, vector<3x4x3xf32>,
    %c2_266 = arith.constant 2 : index
    %c0_267 = arith.constant 0 : index
    %c0_268 = arith.constant 0 : index
    %227 = vector.load %arg14[%c2_266, %c0_267, %c0_268] : memref<5x4x5xf32, #tpu.memory_space<vmem>>, vector<3x4x3xf32>
    %c0_269 = arith.constant 0 : index
    %c24_270 = arith.constant 24 : index
    %c0_271 = arith.constant 0 : index
    %228 = vector.load %arg15[%c0_269, %c24_270, %c0_271] : memref<3x36x3xf32, #tpu.memory_space<vmem>>, vector<3x4x3xf32>
    tpu.vector_store %arg15[%c0_269, %c24_270, %c0_271], %227 {strides = array<i32>} : memref<3x36x3xf32, #tpu.memory_space<vmem>>, vector<3x4x3xf32>,
    %c2_272 = arith.constant 2 : index
    %c0_273 = arith.constant 0 : index
    %c1_274 = arith.constant 1 : index
    %229 = vector.load %arg14[%c2_272, %c0_273, %c1_274] : memref<5x4x5xf32, #tpu.memory_space<vmem>>, vector<3x4x3xf32>
    %c0_275 = arith.constant 0 : index
    %c28_276 = arith.constant 28 : index
    %c0_277 = arith.constant 0 : index
    %230 = vector.load %arg15[%c0_275, %c28_276, %c0_277] : memref<3x36x3xf32, #tpu.memory_space<vmem>>, vector<3x4x3xf32>
    tpu.vector_store %arg15[%c0_275, %c28_276, %c0_277], %229 {strides = array<i32>} : memref<3x36x3xf32, #tpu.memory_space<vmem>>, vector<3x4x3xf32>,
    %c2_278 = arith.constant 2 : index
    %c0_279 = arith.constant 0 : index
    %c2_280 = arith.constant 2 : index
    %231 = vector.load %arg14[%c2_278, %c0_279, %c2_280] : memref<5x4x5xf32, #tpu.memory_space<vmem>>, vector<3x4x3xf32>
    %c0_281 = arith.constant 0 : index
    %c32_282 = arith.constant 32 : index
    %c0_283 = arith.constant 0 : index
    %232 = vector.load %arg15[%c0_281, %c32_282, %c0_283] : memref<3x36x3xf32, #tpu.memory_space<vmem>>, vector<3x4x3xf32>
    tpu.vector_store %arg15[%c0_281, %c32_282, %c0_283], %231 {strides = array<i32>} : memref<3x36x3xf32, #tpu.memory_space<vmem>>, vector<3x4x3xf32>,
    %c0_284 = arith.constant 0 : index
    %c0_285 = arith.constant 0 : index
    %233 = vector.load %arg8[%c0_284, %c0_285] : memref<4x36xf32, #tpu.memory_space<vmem>>, vector<4x36xf32>
    %234 = vector.shape_cast %233 : vector<4x36xf32> to vector<1x4x36xf32>
    %235 = vector.shape_cast %234 : vector<1x4x36xf32> to vector<1x4x36xf32>
    %236 = vector.broadcast %235 : vector<1x4x36xf32> to vector<3x4x36xf32>
    %c0_286 = arith.constant 0 : index
    %c0_287 = arith.constant 0 : index
    %c0_288 = arith.constant 0 : index
    %237 = vector.load %arg15[%c0_286, %c0_287, %c0_288] : memref<3x36x3xf32, #tpu.memory_space<vmem>>, vector<3x36x3xf32>
    "tpu.trace_start"() <{level = 10 : i32, message = "hok,hkw->how"}> : () -> ()
    %cst_289 = arith.constant dense<0.000000e+00> : vector<3x4x3xf32>
    %238 = tpu.matmul %236, %237, %cst_289 {dimension_numbers = #tpu.dot_dimension_numbers<[2], [1], [1], [2], [0, 0, 0, 1, 1, 2], [0], [0]>} : vector<3x4x36xf32>, vector<3x36x3xf32>, vector<3x4x3xf32> -> vector<3x4x3xf32>
    "tpu.trace_stop"() : () -> ()
    %c0_290 = arith.constant 0 : index
    %c0_291 = arith.constant 0 : index
    %239 = vector.load %arg9[%c0_290, %c0_291] : memref<4x1xf32, #tpu.memory_space<vmem>>, vector<4x1xf32>
    %240 = vector.shape_cast %239 : vector<4x1xf32> to vector<1x4x1xf32>
    %241 = vector.broadcast %240 : vector<1x4x1xf32> to vector<3x4x3xf32>
    %242 = arith.addf %238, %241 : vector<3x4x3xf32>
    %c1_292 = arith.constant 1 : index
    %c0_293 = arith.constant 0 : index
    %c1_294 = arith.constant 1 : index
    %243 = vector.load %arg14[%c1_292, %c0_293, %c1_294] : memref<5x4x5xf32, #tpu.memory_space<vmem>>, vector<3x4x3xf32>
    tpu.vector_store %arg14[%c1_292, %c0_293, %c1_294], %242 {strides = array<i32>} : memref<5x4x5xf32, #tpu.memory_space<vmem>>, vector<3x4x3xf32>,
    %c1_295 = arith.constant 1 : index
    %c0_296 = arith.constant 0 : index
    %c1_297 = arith.constant 1 : index
    %244 = vector.load %arg14[%c1_295, %c0_296, %c1_297] : memref<5x4x5xf32, #tpu.memory_space<vmem>>, vector<1x4x3xf32>
    %245 = vector.shape_cast %244 : vector<1x4x3xf32> to vector<4x3xf32>
    %c0_298 = arith.constant 0 : index
    %c0_299 = arith.constant 0 : index
    %246 = vector.load %arg11[%c0_298, %c0_299] : memref<3x32xf32, #tpu.memory_space<vmem>>, vector<3x32xf32>
    %cst_300 = arith.constant dense<0.000000e+00> : vector<4x32xf32>
    %247 = tpu.matmul %245, %246, %cst_300 {dimension_numbers = #tpu.dot_dimension_numbers<[1], [0], [0], [1], [0, 0, 1, 1], [], []>} : vector<4x3xf32>, vector<3x32xf32>, vector<4x32xf32> -> vector<4x32xf32>
    %c0_301 = arith.constant 0 : index
    %c0_302 = arith.constant 0 : index
    %c0_303 = arith.constant 0 : index
    %c0_304 = arith.constant 0 : index
    %248 = vector.load %arg12[%c0_301, %c0_302, %c0_303, %c0_304] : memref<1x4x3x32xf32, #tpu.memory_space<vmem>>, vector<1x4x1x32xf32>
    %249 = vector.shape_cast %248 : vector<1x4x1x32xf32> to vector<4x32xf32>
    %250 = vector.shape_cast %247 : vector<4x32xf32> to vector<1x4x1x32xf32>
    tpu.vector_store %arg12[%c0_301, %c0_302, %c0_303, %c0_304], %250 {strides = array<i32>} : memref<1x4x3x32xf32, #tpu.memory_space<vmem>>, vector<1x4x1x32xf32>,
    %c2_305 = arith.constant 2 : index
    %c0_306 = arith.constant 0 : index
    %c1_307 = arith.constant 1 : index
    %251 = vector.load %arg14[%c2_305, %c0_306, %c1_307] : memref<5x4x5xf32, #tpu.memory_space<vmem>>, vector<1x4x3xf32>
    %252 = vector.shape_cast %251 : vector<1x4x3xf32> to vector<4x3xf32>
    %c0_308 = arith.constant 0 : index
    %c0_309 = arith.constant 0 : index
    %253 = vector.load %arg11[%c0_308, %c0_309] : memref<3x32xf32, #tpu.memory_space<vmem>>, vector<3x32xf32>
    %cst_310 = arith.constant dense<0.000000e+00> : vector<4x32xf32>
    %254 = tpu.matmul %252, %253, %cst_310 {dimension_numbers = #tpu.dot_dimension_numbers<[1], [0], [0], [1], [0, 0, 1, 1], [], []>} : vector<4x3xf32>, vector<3x32xf32>, vector<4x32xf32> -> vector<4x32xf32>
    %c0_311 = arith.constant 0 : index
    %c0_312 = arith.constant 0 : index
    %c1_313 = arith.constant 1 : index
    %c0_314 = arith.constant 0 : index
    %255 = vector.load %arg12[%c0_311, %c0_312, %c1_313, %c0_314] : memref<1x4x3x32xf32, #tpu.memory_space<vmem>>, vector<1x4x1x32xf32>
    %256 = vector.shape_cast %255 : vector<1x4x1x32xf32> to vector<4x32xf32>
    %257 = vector.shape_cast %254 : vector<4x32xf32> to vector<1x4x1x32xf32>
    tpu.vector_store %arg12[%c0_311, %c0_312, %c1_313, %c0_314], %257 {strides = array<i32>} : memref<1x4x3x32xf32, #tpu.memory_space<vmem>>, vector<1x4x1x32xf32>,
    %c3_315 = arith.constant 3 : index
    %c0_316 = arith.constant 0 : index
    %c1_317 = arith.constant 1 : index
    %258 = vector.load %arg14[%c3_315, %c0_316, %c1_317] : memref<5x4x5xf32, #tpu.memory_space<vmem>>, vector<1x4x3xf32>
    %259 = vector.shape_cast %258 : vector<1x4x3xf32> to vector<4x3xf32>
    %c0_318 = arith.constant 0 : index
    %c0_319 = arith.constant 0 : index
    %260 = vector.load %arg11[%c0_318, %c0_319] : memref<3x32xf32, #tpu.memory_space<vmem>>, vector<3x32xf32>
    %cst_320 = arith.constant dense<0.000000e+00> : vector<4x32xf32>
    %261 = tpu.matmul %259, %260, %cst_320 {dimension_numbers = #tpu.dot_dimension_numbers<[1], [0], [0], [1], [0, 0, 1, 1], [], []>} : vector<4x3xf32>, vector<3x32xf32>, vector<4x32xf32> -> vector<4x32xf32>
    %c0_321 = arith.constant 0 : index
    %c0_322 = arith.constant 0 : index
    %c2_323 = arith.constant 2 : index
    %c0_324 = arith.constant 0 : index
    %262 = vector.load %arg12[%c0_321, %c0_322, %c2_323, %c0_324] : memref<1x4x3x32xf32, #tpu.memory_space<vmem>>, vector<1x4x1x32xf32>
    %263 = vector.shape_cast %262 : vector<1x4x1x32xf32> to vector<4x32xf32>
    %264 = vector.shape_cast %261 : vector<4x32xf32> to vector<1x4x1x32xf32>
    tpu.vector_store %arg12[%c0_321, %c0_322, %c2_323, %c0_324], %264 {strides = array<i32>} : memref<1x4x3x32xf32, #tpu.memory_space<vmem>>, vector<1x4x1x32xf32>,
    return
  }
  func.func @transform_0(%arg0: i32) -> (i32, i32, i32, i32, i32, i32) {
    %c0_i32 = arith.constant 0 : i32
    %c0_i32_0 = arith.constant 0 : i32
    %c0_i32_1 = arith.constant 0 : i32
    %c0_i32_2 = arith.constant 0 : i32
    %c0_i32_3 = arith.constant 0 : i32
    %c0_i32_4 = arith.constant 0 : i32
    return %arg0, %c0_i32, %c0_i32_0, %c0_i32_1, %c0_i32_2, %c0_i32_3 : i32, i32, i32, i32, i32, i32
  }
  func.func @transform_1(%arg0: i32) -> (i32, i32) {
    %c0_i32 = arith.constant 0 : i32
    %c0_i32_0 = arith.constant 0 : i32
    %c0_i32_1 = arith.constant 0 : i32
    return %c0_i32, %c0_i32_0 : i32, i32
  }
  func.func @transform_2(%arg0: i32) -> (i32, i32) {
    %c0_i32 = arith.constant 0 : i32
    %c0_i32_0 = arith.constant 0 : i32
    %c0_i32_1 = arith.constant 0 : i32
    return %c0_i32, %c0_i32_0 : i32, i32
  }
  func.func @transform_3(%arg0: i32) -> (i32, i32) {
    %c0_i32 = arith.constant 0 : i32
    %c0_i32_0 = arith.constant 0 : i32
    %c0_i32_1 = arith.constant 0 : i32
    return %c0_i32, %c0_i32_0 : i32, i32
  }
  func.func @transform_4(%arg0: i32) -> (i32, i32) {
    %c0_i32 = arith.constant 0 : i32
    %c0_i32_0 = arith.constant 0 : i32
    %c0_i32_1 = arith.constant 0 : i32
    return %c0_i32, %c0_i32_0 : i32, i32
  }
  func.func @transform_5(%arg0: i32) -> (i32, i32) {
    %c0_i32 = arith.constant 0 : i32
    %c0_i32_0 = arith.constant 0 : i32
    %c0_i32_1 = arith.constant 0 : i32
    return %c0_i32, %c0_i32_0 : i32, i32
  }
  func.func @transform_6(%arg0: i32) -> (i32, i32) {
    %c0_i32 = arith.constant 0 : i32
    %c0_i32_0 = arith.constant 0 : i32
    %c0_i32_1 = arith.constant 0 : i32
    return %c0_i32, %c0_i32_0 : i32, i32
  }
  func.func @transform_7(%arg0: i32) -> (i32, i32) {
    %c0_i32 = arith.constant 0 : i32
    %c0_i32_0 = arith.constant 0 : i32
    %c0_i32_1 = arith.constant 0 : i32
    return %c0_i32, %c0_i32_0 : i32, i32
  }
  func.func @transform_8(%arg0: i32) -> (i32, i32) {
    %c0_i32 = arith.constant 0 : i32
    %c0_i32_0 = arith.constant 0 : i32
    %c0_i32_1 = arith.constant 0 : i32
    return %c0_i32, %c0_i32_0 : i32, i32
  }
  func.func @transform_9(%arg0: i32) -> (i32, i32) {
    %c0_i32 = arith.constant 0 : i32
    %c0_i32_0 = arith.constant 0 : i32
    %c0_i32_1 = arith.constant 0 : i32
    return %c0_i32, %c0_i32_0 : i32, i32
  }
  func.func @transform_10(%arg0: i32) -> (i32, i32) {
    %c0_i32 = arith.constant 0 : i32
    %c0_i32_0 = arith.constant 0 : i32
    %c0_i32_1 = arith.constant 0 : i32
    return %c0_i32, %c0_i32_0 : i32, i32
  }
  func.func @transform_11(%arg0: i32) -> (i32, i32, i32, i32) {
    %c0_i32 = arith.constant 0 : i32
    %c0_i32_0 = arith.constant 0 : i32
    %c0_i32_1 = arith.constant 0 : i32
    %c0_i32_2 = arith.constant 0 : i32
    return %arg0, %c0_i32, %c0_i32_0, %c0_i32_1 : i32, i32, i32, i32
  }
}

</mosaic_0001>

<llo_original>
// kernel: esa_forward.3
$region0: #{esa_forward.3}
  #allocation0 [shape = 'u32[]', space=smem, size = 0x4, offset = 0x4, fixed_abs, tag = 'smem constant byte address 0x4 - core index']
  #allocation1 [shape = 'u32[144,128]{1,0:T(1,128)}', space=vmem, size = 0x12000, scoped, tag = 'internal scratch']
  %s0 = inlined_call_operand.vmem [shape: f32[4,16], index: 0, kind: input, shape index: {}]
  %s1 = inlined_call_operand.vmem [shape: f32[4,1], index: 1, kind: input, shape index: {}]
  %s2 = inlined_call_operand.vmem [shape: f32[4,4], index: 2, kind: input, shape index: {}]
  %s3 = inlined_call_operand.vmem [shape: f32[4,1], index: 3, kind: input, shape index: {}]
  %s4 = inlined_call_operand.vmem [shape: f32[2,16,1024], index: 4, kind: input, shape index: {}]
  %s5 = inlined_call_operand.vmem [shape: f32[2,4,1024], index: 5, kind: output, shape index: {0}]
  %s6 = inlined_call_operand.hbm [shape: f32[2,4,1024], index: 6, kind: output, shape index: {1}]
  %7 = xla_tuple %s5, %s6
  %s8 = sld [smem:[#allocation0]]
  $region61: #{esa_forward.3} parent=0
    _
  %s10 = ssub.s32 1, %s8
  %s11 = scalar_select 0, %s10, %s8
  $region1: #{esa_forward.3} parent=0
    #allocation2 [shape = 'u8[32768]{0}', space=vmem, size = 0x8000, scoped, tag = 'output window, operand 1']
    #allocation3 [shape = 's32[2]{0}', space=sflag, size = 0x8, scoped, tag = 'scoped memory for esa_forward.3']
    %12 = vsyncpa [#allocation3], 0
    %s13 = scalar_lea.sflag [#allocation3], 1
    %14 = vsyncpa %s13, 0
    loop: start=0, step=1, limit=4
    $region2: #{esa_forward.3} parent=1 // loop_pre_header
      _
    $region3: #{esa_forward.3} parent=1 // loop_header
      %s16 = sphi 0, %s20
      %p17 = scmp.ge.s32.totalorder %s16, 4
      %s23 = sphi 0, %s35
      %s24 = sphi 0, %s31
      %s25 = sphi 0, %s23
      %s26 = sphi 0, %s24
      %s27 = sphi 0, %s25
      %s28 = sphi 0, %s26
      %s36 = sphi 0, %s36
      %s38 = sphi 0, %s36
      %s39 = sphi 0, %s38
      %s53 = sphi 0, %s39
      %s57 = sphi 0, %s57
      %s59 = sphi 0, %s57
      %s60 = sphi 0, %s59
      %s74 = sphi 0, %s60
      %s78 = sphi 0, %s78
      %s80 = sphi 0, %s78
      %s81 = sphi 0, %s80
      %s95 = sphi 0, %s81
      %s99 = sphi 0, %s99
      %s101 = sphi 0, %s99
      %s102 = sphi 0, %s101
      %s116 = sphi 0, %s102
      %s124 = sphi 0, %s126
      %s127 = sphi 0, %s124
      %s128 = sphi 0, %s127
      %s144 = sphi 0, %s128
      %s152 = sphi 0, %s154
      %s155 = sphi 0, %s152
      %s156 = sphi 0, %s155
      %s172 = sphi 0, %s156
      %s180 = sphi 0, %s182
      %s183 = sphi 0, %s180
      %s184 = sphi 0, %s183
      %s200 = sphi 0, %s184
    $region4: #{esa_forward.3} parent=1 // loop_header_branch
      %19 = sbr.rel (%p17) target = $region8
    $region5: #{esa_forward.3} parent=1 // loop_body
      %s21 = ssub.s32 %s16, 1
      %s22 = ssub.s32 %s16, 2
      %s29 = sadd.s32 1, %s24
      %p30 = scmp.ge.s32.totalorder %s29, 1
      %s31 = scalar_select %p30, 0, %s29
      %s32 = sadd.s32 1, %s23
      %s33 = scalar_select %p30, %s32, %s23
      %p34 = scmp.ge.s32.totalorder %s33, 2
      %s35 = scalar_select %p34, 0, %s33
      %s37 = sadd.s32 %s36, 1
      %p40 = scmp.eq.s32.totalorder %s16, 1
      %p41 = scmp.ne.s32.totalorder %s36, %s38
      %p42 = scmp.eq.s32.totalorder %s16, 0
      %p43 = por %p41, %p42
      %p44 = scmp.ne.s32.totalorder %s36, %s38
      %p45 = scmp.eq.s32.totalorder %s21, 1
      %p46 = por %p44, %p45
      %p47 = scmp.ne.s32.totalorder %s38, %s39
      %p48 = scmp.eq.s32.totalorder %s21, 0
      %p49 = por %p47, %p48
      %p50 = scmp.ne.s32.totalorder %s38, %s39
      %p51 = scmp.eq.s32.totalorder %s22, 1
      %p52 = por %p50, %p51
      %p54 = scmp.ne.s32.totalorder %s39, %s53
      %p55 = scmp.eq.s32.totalorder %s22, 0
      %p56 = por %p54, %p55
      %s58 = sadd.s32 %s57, 1
      %p61 = scmp.eq.s32.totalorder %s16, 1
      %p62 = scmp.ne.s32.totalorder %s57, %s59
      %p63 = scmp.eq.s32.totalorder %s16, 0
      %p64 = por %p62, %p63
      %p65 = scmp.ne.s32.totalorder %s57, %s59
      %p66 = scmp.eq.s32.totalorder %s21, 1
      %p67 = por %p65, %p66
      %p68 = scmp.ne.s32.totalorder %s59, %s60
      %p69 = scmp.eq.s32.totalorder %s21, 0
      %p70 = por %p68, %p69
      %p71 = scmp.ne.s32.totalorder %s59, %s60
      %p72 = scmp.eq.s32.totalorder %s22, 1
      %p73 = por %p71, %p72
      %p75 = scmp.ne.s32.totalorder %s60, %s74
      %p76 = scmp.eq.s32.totalorder %s22, 0
      %p77 = por %p75, %p76
      %s79 = sadd.s32 %s78, 1
      %p82 = scmp.eq.s32.totalorder %s16, 1
      %p83 = scmp.ne.s32.totalorder %s78, %s80
      %p84 = scmp.eq.s32.totalorder %s16, 0
      %p85 = por %p83, %p84
      %p86 = scmp.ne.s32.totalorder %s78, %s80
      %p87 = scmp.eq.s32.totalorder %s21, 1
      %p88 = por %p86, %p87
      %p89 = scmp.ne.s32.totalorder %s80, %s81
      %p90 = scmp.eq.s32.totalorder %s21, 0
      %p91 = por %p89, %p90
      %p92 = scmp.ne.s32.totalorder %s80, %s81
      %p93 = scmp.eq.s32.totalorder %s22, 1
      %p94 = por %p92, %p93
      %p96 = scmp.ne.s32.totalorder %s81, %s95
      %p97 = scmp.eq.s32.totalorder %s22, 0
      %p98 = por %p96, %p97
      %s100 = sadd.s32 %s99, 1
      %p103 = scmp.eq.s32.totalorder %s16, 1
      %p104 = scmp.ne.s32.totalorder %s99, %s101
      %p105 = scmp.eq.s32.totalorder %s16, 0
      %p106 = por %p104, %p105
      %p107 = scmp.ne.s32.totalorder %s99, %s101
      %p108 = scmp.eq.s32.totalorder %s21, 1
      %p109 = por %p107, %p108
      %p110 = scmp.ne.s32.totalorder %s101, %s102
      %p111 = scmp.eq.s32.totalorder %s21, 0
      %p112 = por %p110, %p111
      %p113 = scmp.ne.s32.totalorder %s101, %s102
      %p114 = scmp.eq.s32.totalorder %s22, 1
      %p115 = por %p113, %p114
      %p117 = scmp.ne.s32.totalorder %s102, %s116
      %p118 = scmp.eq.s32.totalorder %s22, 0
      %p119 = por %p117, %p118
      %s120 = ssub.s32 %s23, %s35
      %s121 = ssub.s32 %s24, %s31
      %s122 = sor.u32 %s120, %s121
      %p123 = scmp.eq.s32.totalorder %s122, 0
      %s125 = sadd.s32 %s124, 1
      %s126 = scalar_select %p123, %s124, %s125
      %p129 = pneg %p123
      %p130 = scmp.eq.s32.totalorder %s16, 1
      %p131 = por %p129, %p130
      %p132 = scmp.ne.s32.totalorder %s124, %s127
      %p133 = scmp.eq.s32.totalorder %s16, 0
      %p134 = por %p132, %p133
      %p135 = scmp.ne.s32.totalorder %s124, %s127
      %p136 = scmp.eq.s32.totalorder %s21, 1
      %p137 = por %p135, %p136
      %p138 = scmp.ne.s32.totalorder %s127, %s128
      %p139 = scmp.eq.s32.totalorder %s21, 0
      %p140 = por %p138, %p139
      %p141 = scmp.ne.s32.totalorder %s127, %s128
      %p142 = scmp.eq.s32.totalorder %s22, 1
      %p143 = por %p141, %p142
      %p145 = scmp.ne.s32.totalorder %s128, %s144
      %p146 = scmp.eq.s32.totalorder %s22, 0
      %p147 = por %p145, %p146
      %s148 = ssub.s32 %s23, %s35
      %s149 = ssub.s32 %s24, %s31
      %s150 = sor.u32 %s148, %s149
      %p151 = scmp.eq.s32.totalorder %s150, 0
      %s153 = sadd.s32 %s152, 1
      %s154 = scalar_select %p151, %s152, %s153
      %p157 = pneg %p151
      %p158 = scmp.eq.s32.totalorder %s16, 1
      %p159 = por %p157, %p158
      %p160 = scmp.ne.s32.totalorder %s152, %s155
      %p161 = scmp.eq.s32.totalorder %s16, 0
      %p162 = por %p160, %p161
      %p163 = scmp.ne.s32.totalorder %s152, %s155
      %p164 = scmp.eq.s32.totalorder %s21, 1
      %p165 = por %p163, %p164
      %p166 = scmp.ne.s32.totalorder %s155, %s156
      %p167 = scmp.eq.s32.totalorder %s21, 0
      %p168 = por %p166, %p167
      %p169 = scmp.ne.s32.totalorder %s155, %s156
      %p170 = scmp.eq.s32.totalorder %s22, 1
      %p171 = por %p169, %p170
      %p173 = scmp.ne.s32.totalorder %s156, %s172
      %p174 = scmp.eq.s32.totalorder %s22, 0
      %p175 = por %p173, %p174
      %s176 = ssub.s32 %s23, %s35
      %s177 = ssub.s32 %s24, %s31
      %s178 = sor.u32 %s176, %s177
      %p179 = scmp.eq.s32.totalorder %s178, 0
      %s181 = sadd.s32 %s180, 1
      %s182 = scalar_select %p179, %s180, %s181
      %p185 = pneg %p179
      %p186 = scmp.eq.s32.totalorder %s16, 1
      %p187 = por %p185, %p186
      %p188 = scmp.ne.s32.totalorder %s180, %s183
      %p189 = scmp.eq.s32.totalorder %s16, 0
      %p190 = por %p188, %p189
      %p191 = scmp.ne.s32.totalorder %s180, %s183
      %p192 = scmp.eq.s32.totalorder %s21, 1
      %p193 = por %p191, %p192
      %p194 = scmp.ne.s32.totalorder %s183, %s184
      %p195 = scmp.eq.s32.totalorder %s21, 0
      %p196 = por %p194, %p195
      %p197 = scmp.ne.s32.totalorder %s183, %s184
      %p198 = scmp.eq.s32.totalorder %s22, 1
      %p199 = por %p197, %p198
      %p201 = scmp.ne.s32.totalorder %s184, %s200
      %p202 = scmp.eq.s32.totalorder %s22, 0
      %p203 = por %p201, %p202
      %p204 = scmp.le.s32.totalorder 1, %s16
      %p205 = scmp.lt.s32.totalorder %s16, 3
      %p206 = pnand %p204, %p205
      %p207 = pneg %p206
      // Predicated region
      $region9: #{esa_forward.3} parent=5 // pred_check
        _
      $region10: #{esa_forward.3} parent=5 // pred_check_branch
        %209 = sbr.rel (%p206) target = $region12
      $region11: #{esa_forward.3} parent=5 // pred_region
        %s210 = ssub.s32 %s16, 1
        // Predicated region
        $region13: #{esa_forward.3} parent=11 // pred_check
          %p211 = pneg %p49
        $region14: #{esa_forward.3} parent=11 // pred_check_branch
          %213 = sbr.rel (%p211) target = $region16
        $region15: #{esa_forward.3} parent=11 // pred_region
          _
        $region16: #{esa_forward.3} parent=11 // pred_fallthru
          _
        // Predicated region
        $region17: #{esa_forward.3} parent=11 // pred_check
          %p214 = pneg %p70
        $region18: #{esa_forward.3} parent=11 // pred_check_branch
          %216 = sbr.rel (%p214) target = $region20
        $region19: #{esa_forward.3} parent=11 // pred_region
          _
        $region20: #{esa_forward.3} parent=11 // pred_fallthru
          _
        // Predicated region
        $region21: #{esa_forward.3} parent=11 // pred_check
          %p217 = pneg %p91
        $region22: #{esa_forward.3} parent=11 // pred_check_branch
          %219 = sbr.rel (%p217) target = $region24
        $region23: #{esa_forward.3} parent=11 // pred_region
          _
        $region24: #{esa_forward.3} parent=11 // pred_fallthru
          _
        // Predicated region
        $region25: #{esa_forward.3} parent=11 // pred_check
          %p220 = pneg %p112
        $region26: #{esa_forward.3} parent=11 // pred_check_branch
          %222 = sbr.rel (%p220) target = $region28
        $region27: #{esa_forward.3} parent=11 // pred_region
          _
        $region28: #{esa_forward.3} parent=11 // pred_fallthru
          _
      $region12: #{esa_forward.3} parent=5 // pred_fallthru
        _
      %p223 = scmp.lt.s32.totalorder %s16, 2
      // Predicated region
      $region29: #{esa_forward.3} parent=5 // pred_check
        %p224 = pneg %p223
      $region30: #{esa_forward.3} parent=5 // pred_check_branch
        %226 = sbr.rel (%p224) target = $region32
      $region31: #{esa_forward.3} parent=5 // pred_region
        // Predicated region
        $region33: #{esa_forward.3} parent=31 // pred_check
          %p227 = pneg %p134
        $region34: #{esa_forward.3} parent=31 // pred_check_branch
          %229 = sbr.rel (%p227) target = $region36
        $region35: #{esa_forward.3} parent=31 // pred_region
          %s230 = smul.u32 8, %s24
          %p231 = scmp.lt.s32.totalorder %s23, 1
          %s232 = scalar_select %p231, %s23, 1
          %p233 = scmp.lt.s32.totalorder %s230, 7
          %s234 = scalar_select %p233, %s230, 7
          %s235 = smul.addr %s232, 16
          %s236 = sadd.s32 %s234, %s235
          %s237 = smul.addr %s236, 8
          %s238 = scalar_lea.vmem %s4, %s237
          %s239 = smul.u32 8, %s24
        $region36: #{esa_forward.3} parent=31 // pred_fallthru
          _
      $region32: #{esa_forward.3} parent=5 // pred_fallthru
        _
      %p240 = scmp.le.s32.totalorder 1, %s16
      %p241 = scmp.lt.s32.totalorder %s16, 3
      %p242 = pnand %p240, %p241
      %p243 = pneg %p242
      // Predicated region
      $region37: #{esa_forward.3} parent=5 // pred_check
        _
      $region38: #{esa_forward.3} parent=5 // pred_check_branch
        %245 = sbr.rel (%p242) target = $region40
      $region39: #{esa_forward.3} parent=5 // pred_region
        %s246 = ssub.s32 %s16, 1
        %p247 = pneg %p49
        %p248 = pneg %p46
        %p249 = pneg %p70
        %p250 = pneg %p67
        %p251 = pneg %p91
        %p252 = pneg %p88
        %p253 = pneg %p112
        %p254 = pneg %p109
        %s255 = smul.u32 8, %s26
        %p256 = scmp.lt.s32.totalorder %s25, 1
        %s257 = scalar_select %p256, %s25, 1
        %p258 = scmp.lt.s32.totalorder %s255, 7
        %s259 = scalar_select %p258, %s255, 7
        %s260 = smul.addr %s257, 16
        %s261 = sadd.s32 %s259, %s260
        %s262 = smul.addr %s261, 8
        %s263 = scalar_lea.vmem %s4, %s262
        %p264 = pneg %p140
        %p265 = pneg %p137
        %p266 = pneg %p168
        %p267 = pneg %p165
        %s268 = smul.u32 8, %s26
        %p269 = scmp.lt.s32.totalorder %s25, 1
        %s270 = scalar_select %p269, %s25, 1
        %p271 = scmp.lt.s32.totalorder %s268, 7
        %s272 = scalar_select %p271, %s268, 7
        %s273 = smul.addr %s270, 8
        %s274 = sadd.s32 %s272, %s273
        %s275 = smul.addr %s274, 4
        %s276 = scalar_lea.vmem %s5, %s275
        %p277 = pneg %p196
        %p278 = pneg %p193
        %s279 = sand.u32 %s183, 1
        %s280 = scalar_lea.sflag [#allocation3], %s279
        %s281 = sand.u32 %s183, 1
        %s282 = smul.addr %s281, 32
        %s283 = scalar_lea.vmem [#allocation2], %s282
        %s284 = smul.u32 8, %s26
        %p285 = scmp.lt.s32.totalorder %s25, 1
        %s286 = scalar_select %p285, %s25, 1
        %p287 = scmp.lt.s32.totalorder %s284, 7
        %s288 = scalar_select %p287, %s284, 7
        %s289 = smul.addr %s286, 16
        %s290 = sadd.s32 %s288, %s289
        %s291 = smul.addr %s290, 8
        %s292 = scalar_lea.vmem %s4, %s291
        %s293 = smul.u32 8, %s26
        %s294 = smul.u32 8, %s26
        %p295 = scmp.lt.s32.totalorder %s25, 1
        %s296 = scalar_select %p295, %s25, 1
        %p297 = scmp.lt.s32.totalorder %s294, 7
        %s298 = scalar_select %p297, %s294, 7
        %s299 = smul.addr %s296, 8
        %s300 = sadd.s32 %s298, %s299
        %s301 = smul.addr %s300, 4
        %s302 = scalar_lea.vmem %s5, %s301
        %s303 = smul.u32 8, %s26
        %s304 = smul.u32 8, %s26
        %v305 = vld [vmem:[%s0] sm:$0xf]
        %v306 = vld [vmem:[%s292] sm:$0xff]
        %v307 = vld [vmem:[%s292 + $0x8] sm:$0xff]
        %v308 = vld [vmem:[%s292 + $0x10] sm:$0xff]
        %v309 = vld [vmem:[%s292 + $0x18] sm:$0xff]
        %v310 = vld [vmem:[%s292 + $0x20] sm:$0xff]
        %v311 = vld [vmem:[%s292 + $0x28] sm:$0xff]
        %v312 = vld [vmem:[%s292 + $0x30] sm:$0xff]
        %v313 = vld [vmem:[%s292 + $0x38] sm:$0xff]
        %v314 = vld [vmem:[%s292 + $0x40] sm:$0xff]
        %v315 = vld [vmem:[%s292 + $0x48] sm:$0xff]
        %v316 = vld [vmem:[%s292 + $0x50] sm:$0xff]
        %v317 = vld [vmem:[%s292 + $0x58] sm:$0xff]
        %v318 = vld [vmem:[%s292 + $0x60] sm:$0xff]
        %v319 = vld [vmem:[%s292 + $0x68] sm:$0xff]
        %v320 = vld [vmem:[%s292 + $0x70] sm:$0xff]
        %v321 = vld [vmem:[%s292 + $0x78] sm:$0xff]
        %v322 = vld [vmem:[%s1] sm:$0xf]
        %324 = vset.pattern.permute.xlu0 0
        %325 = vperm.xlu0 %324, %v322
        %v326 = vpop.permute.xlu0 %325
        %vm328 = vcmask 130048
        %v330 = vsel %vm328, %v305, 0
        %332 = vmatprep.subr.mxu0 %v307
        %333 = vmatpush1.msra.mxu0 %v306
        %334 = vmatprep.subr.mxu0 %v315
        %335 = vmatpush1.msra.mxu0 %v314
        %336 = vmatprep.subr.mxu0 0.0
        %337 = vmatpush1.msra.mxu0 0.0
        %338 = vmatprep.subr.mxu0 0.0
        %339 = vmatpush1.msra.mxu0 0.0
        %340 = vmatprep.subr.mxu0 0.0
        %341 = vmatpush1.msra.mxu0 0.0
        %342 = vmatprep.subr.mxu0 0.0
        %343 = vmatpush1.msra.mxu0 0.0
        %344 = vmatprep.subr.mxu0 0.0
        %345 = vmatpush1.msra.mxu0 0.0
        %346 = vmatprep.subr.mxu0 0.0
        %347 = vmatpush1.msra.mxu0 0.0
        %348 = vmatprep.subr.mxu0 0.0
        %349 = vmatpush1.msra.mxu0 0.0
        %350 = vmatprep.subr.mxu0 0.0
        %351 = vmatpush1.msra.mxu0 0.0
        %352 = vmatprep.subr.mxu0 0.0
        %353 = vmatpush1.msra.mxu0 0.0
        %354 = vmatprep.subr.mxu0 0.0
        %355 = vmatpush1.msra.mxu0 0.0
        %356 = vmatprep.subr.mxu0 0.0
        %357 = vmatpush1.msra.mxu0 0.0
        %358 = vmatprep.subr.mxu0 0.0
        %359 = vmatpush1.msra.mxu0 0.0
        %360 = vmatprep.subr.mxu0 0.0
        %361 = vmatpush1.msra.mxu0 0.0
        %362 = vmatprep.subr.mxu0 0.0
        %363 = vmatpush1.msra.mxu0 0.0
        %364 = vmatprep.subr.mxu0 0.0
        %365 = vmatpush1.msra.mxu0 0.0
        %366 = vmatprep.subr.mxu0 0.0
        %367 = vmatpush1.msra.mxu0 0.0
        %368 = vmatprep.subr.mxu0 0.0
        %369 = vmatpush1.msra.mxu0 0.0
        %370 = vmatprep.subr.mxu0 0.0
        %371 = vmatpush1.msra.mxu0 0.0
        %372 = vmatprep.subr.mxu0 0.0
        %373 = vmatpush1.msra.mxu0 0.0
        %374 = vmatprep.subr.mxu0 0.0
        %375 = vmatpush1.msra.mxu0 0.0
        %376 = vmatprep.subr.mxu0 0.0
        %377 = vmatpush1.msra.mxu0 0.0
        %378 = vmatprep.subr.mxu0 0.0
        %379 = vmatpush1.msra.mxu0 0.0
        %380 = vmatprep.subr.mxu0 0.0
        %381 = vmatpush1.msra.mxu0 0.0
        %382 = vmatprep.subr.mxu0 0.0
        %383 = vmatpush1.msra.mxu0 0.0
        %384 = vmatprep.subr.mxu0 0.0
        %385 = vmatpush1.msra.mxu0 0.0
        %386 = vmatprep.subr.mxu0 0.0
        %387 = vmatpush1.msra.mxu0 0.0
        %388 = vmatprep.subr.mxu0 0.0
        %389 = vmatpush1.msra.mxu0 0.0
        %390 = vmatprep.subr.mxu0 0.0
        %391 = vmatpush1.msra.mxu0 0.0
        %392 = vmatprep.subr.mxu0 0.0
        %393 = vmatpush1.msra.mxu0 0.0
        %394 = vmatprep.subr.mxu0 0.0
        %395 = vmatpush1.msra.mxu0 0.0
        %396 = vmatprep.mubr.f32.mxu0 0.0
        %397 = vmatmul.mubr.f32.gmra.mrb[0].mxu0 %v330
        %v398 = vpop.f32.mrb[0].mxu0
        %v399 = vadd.f32 %v326, %v398
        %v400 = vpop.f32.mrb[0].mxu0
        %v401 = vadd.f32 %v326, %v400
        %402 = vdwg.mxu0
        %403 = vmatprep.subr.mxu0 %v309
        %404 = vmatpush1.msra.mxu0 %v308
        %405 = vmatprep.subr.mxu0 %v317
        %406 = vmatpush1.msra.mxu0 %v316
        %407 = vmatprep.subr.mxu0 0.0
        %408 = vmatpush1.msra.mxu0 0.0
        %409 = vmatprep.subr.mxu0 0.0
        %410 = vmatpush1.msra.mxu0 0.0
        %411 = vmatprep.subr.mxu0 0.0
        %412 = vmatpush1.msra.mxu0 0.0
        %413 = vmatprep.subr.mxu0 0.0
        %414 = vmatpush1.msra.mxu0 0.0
        %415 = vmatprep.subr.mxu0 0.0
        %416 = vmatpush1.msra.mxu0 0.0
        %417 = vmatprep.subr.mxu0 0.0
        %418 = vmatpush1.msra.mxu0 0.0
        %419 = vmatprep.subr.mxu0 0.0
        %420 = vmatpush1.msra.mxu0 0.0
        %421 = vmatprep.subr.mxu0 0.0
        %422 = vmatpush1.msra.mxu0 0.0
        %423 = vmatprep.subr.mxu0 0.0
        %424 = vmatpush1.msra.mxu0 0.0
        %425 = vmatprep.subr.mxu0 0.0
        %426 = vmatpush1.msra.mxu0 0.0
        %427 = vmatprep.subr.mxu0 0.0
        %428 = vmatpush1.msra.mxu0 0.0
        %429 = vmatprep.subr.mxu0 0.0
        %430 = vmatpush1.msra.mxu0 0.0
        %431 = vmatprep.subr.mxu0 0.0
        %432 = vmatpush1.msra.mxu0 0.0
        %433 = vmatprep.subr.mxu0 0.0
        %434 = vmatpush1.msra.mxu0 0.0
        %435 = vmatprep.subr.mxu0 0.0
        %436 = vmatpush1.msra.mxu0 0.0
        %437 = vmatprep.subr.mxu0 0.0
        %438 = vmatpush1.msra.mxu0 0.0
        %439 = vmatprep.subr.mxu0 0.0
        %440 = vmatpush1.msra.mxu0 0.0
        %441 = vmatprep.subr.mxu0 0.0
        %442 = vmatpush1.msra.mxu0 0.0
        %443 = vmatprep.subr.mxu0 0.0
        %444 = vmatpush1.msra.mxu0 0.0
        %445 = vmatprep.subr.mxu0 0.0
        %446 = vmatpush1.msra.mxu0 0.0
        %447 = vmatprep.subr.mxu0 0.0
        %448 = vmatpush1.msra.mxu0 0.0
        %449 = vmatprep.subr.mxu0 0.0
        %450 = vmatpush1.msra.mxu0 0.0
        %451 = vmatprep.subr.mxu0 0.0
        %452 = vmatpush1.msra.mxu0 0.0
        %453 = vmatprep.subr.mxu0 0.0
        %454 = vmatpush1.msra.mxu0 0.0
        %455 = vmatprep.subr.mxu0 0.0
        %456 = vmatpush1.msra.mxu0 0.0
        %457 = vmatprep.subr.mxu0 0.0
        %458 = vmatpush1.msra.mxu0 0.0
        %459 = vmatprep.subr.mxu0 0.0
        %460 = vmatpush1.msra.mxu0 0.0
        %461 = vmatprep.subr.mxu0 0.0
        %462 = vmatpush1.msra.mxu0 0.0
        %463 = vmatprep.subr.mxu0 0.0
        %464 = vmatpush1.msra.mxu0 0.0
        %465 = vmatprep.subr.mxu0 0.0
        %466 = vmatpush1.msra.mxu0 0.0
        %467 = vmatprep.mubr.f32.mxu0 0.0
        %468 = vmatmul.mubr.f32.gmra.mrb[0].mxu0 %v330
        %v469 = vpop.f32.mrb[0].mxu0
        %v470 = vadd.f32 %v326, %v469
        %v471 = vpop.f32.mrb[0].mxu0
        %v472 = vadd.f32 %v326, %v471
        %473 = vdwg.mxu0
        %474 = vmatprep.subr.mxu0 %v311
        %475 = vmatpush1.msra.mxu0 %v310
        %476 = vmatprep.subr.mxu0 %v319
        %477 = vmatpush1.msra.mxu0 %v318
        %478 = vmatprep.subr.mxu0 0.0
        %479 = vmatpush1.msra.mxu0 0.0
        %480 = vmatprep.subr.mxu0 0.0
        %481 = vmatpush1.msra.mxu0 0.0
        %482 = vmatprep.subr.mxu0 0.0
        %483 = vmatpush1.msra.mxu0 0.0
        %484 = vmatprep.subr.mxu0 0.0
        %485 = vmatpush1.msra.mxu0 0.0
        %486 = vmatprep.subr.mxu0 0.0
        %487 = vmatpush1.msra.mxu0 0.0
        %488 = vmatprep.subr.mxu0 0.0
        %489 = vmatpush1.msra.mxu0 0.0
        %490 = vmatprep.subr.mxu0 0.0
        %491 = vmatpush1.msra.mxu0 0.0
        %492 = vmatprep.subr.mxu0 0.0
        %493 = vmatpush1.msra.mxu0 0.0
        %494 = vmatprep.subr.mxu0 0.0
        %495 = vmatpush1.msra.mxu0 0.0
        %496 = vmatprep.subr.mxu0 0.0
        %497 = vmatpush1.msra.mxu0 0.0
        %498 = vmatprep.subr.mxu0 0.0
        %499 = vmatpush1.msra.mxu0 0.0
        %500 = vmatprep.subr.mxu0 0.0
        %501 = vmatpush1.msra.mxu0 0.0
        %502 = vmatprep.subr.mxu0 0.0
        %503 = vmatpush1.msra.mxu0 0.0
        %504 = vmatprep.subr.mxu0 0.0
        %505 = vmatpush1.msra.mxu0 0.0
        %506 = vmatprep.subr.mxu0 0.0
        %507 = vmatpush1.msra.mxu0 0.0
        %508 = vmatprep.subr.mxu0 0.0
        %509 = vmatpush1.msra.mxu0 0.0
        %510 = vmatprep.subr.mxu0 0.0
        %511 = vmatpush1.msra.mxu0 0.0
        %512 = vmatprep.subr.mxu0 0.0
        %513 = vmatpush1.msra.mxu0 0.0
        %514 = vmatprep.subr.mxu0 0.0
        %515 = vmatpush1.msra.mxu0 0.0
        %516 = vmatprep.subr.mxu0 0.0
        %517 = vmatpush1.msra.mxu0 0.0
        %518 = vmatprep.subr.mxu0 0.0
        %519 = vmatpush1.msra.mxu0 0.0
        %520 = vmatprep.subr.mxu0 0.0
        %521 = vmatpush1.msra.mxu0 0.0
        %522 = vmatprep.subr.mxu0 0.0
        %523 = vmatpush1.msra.mxu0 0.0
        %524 = vmatprep.subr.mxu0 0.0
        %525 = vmatpush1.msra.mxu0 0.0
        %526 = vmatprep.subr.mxu0 0.0
        %527 = vmatpush1.msra.mxu0 0.0
        %528 = vmatprep.subr.mxu0 0.0
        %529 = vmatpush1.msra.mxu0 0.0
        %530 = vmatprep.subr.mxu0 0.0
        %531 = vmatpush1.msra.mxu0 0.0
        %532 = vmatprep.subr.mxu0 0.0
        %533 = vmatpush1.msra.mxu0 0.0
        %534 = vmatprep.subr.mxu0 0.0
        %535 = vmatpush1.msra.mxu0 0.0
        %536 = vmatprep.subr.mxu0 0.0
        %537 = vmatpush1.msra.mxu0 0.0
        %538 = vmatprep.mubr.f32.mxu0 0.0
        %539 = vmatmul.mubr.f32.gmra.mrb[0].mxu0 %v330
        %v540 = vpop.f32.mrb[0].mxu0
        %v541 = vadd.f32 %v326, %v540
        %v542 = vpop.f32.mrb[0].mxu0
        %v543 = vadd.f32 %v326, %v542
        %544 = vdwg.mxu0
        %545 = vmatprep.subr.mxu0 %v313
        %546 = vmatpush1.msra.mxu0 %v312
        %547 = vmatprep.subr.mxu0 %v321
        %548 = vmatpush1.msra.mxu0 %v320
        %549 = vmatprep.subr.mxu0 0.0
        %550 = vmatpush1.msra.mxu0 0.0
        %551 = vmatprep.subr.mxu0 0.0
        %552 = vmatpush1.msra.mxu0 0.0
        %553 = vmatprep.subr.mxu0 0.0
        %554 = vmatpush1.msra.mxu0 0.0
        %555 = vmatprep.subr.mxu0 0.0
        %556 = vmatpush1.msra.mxu0 0.0
        %557 = vmatprep.subr.mxu0 0.0
        %558 = vmatpush1.msra.mxu0 0.0
        %559 = vmatprep.subr.mxu0 0.0
        %560 = vmatpush1.msra.mxu0 0.0
        %561 = vmatprep.subr.mxu0 0.0
        %562 = vmatpush1.msra.mxu0 0.0
        %563 = vmatprep.subr.mxu0 0.0
        %564 = vmatpush1.msra.mxu0 0.0
        %565 = vmatprep.subr.mxu0 0.0
        %566 = vmatpush1.msra.mxu0 0.0
        %567 = vmatprep.subr.mxu0 0.0
        %568 = vmatpush1.msra.mxu0 0.0
        %569 = vmatprep.subr.mxu0 0.0
        %570 = vmatpush1.msra.mxu0 0.0
        %571 = vmatprep.subr.mxu0 0.0
        %572 = vmatpush1.msra.mxu0 0.0
        %573 = vmatprep.subr.mxu0 0.0
        %574 = vmatpush1.msra.mxu0 0.0
        %575 = vmatprep.subr.mxu0 0.0
        %576 = vmatpush1.msra.mxu0 0.0
        %577 = vmatprep.subr.mxu0 0.0
        %578 = vmatpush1.msra.mxu0 0.0
        %579 = vmatprep.subr.mxu0 0.0
        %580 = vmatpush1.msra.mxu0 0.0
        %581 = vmatprep.subr.mxu0 0.0
        %582 = vmatpush1.msra.mxu0 0.0
        %583 = vmatprep.subr.mxu0 0.0
        %584 = vmatpush1.msra.mxu0 0.0
        %585 = vmatprep.subr.mxu0 0.0
        %586 = vmatpush1.msra.mxu0 0.0
        %587 = vmatprep.subr.mxu0 0.0
        %588 = vmatpush1.msra.mxu0 0.0
        %589 = vmatprep.subr.mxu0 0.0
        %590 = vmatpush1.msra.mxu0 0.0
        %591 = vmatprep.subr.mxu0 0.0
        %592 = vmatpush1.msra.mxu0 0.0
        %593 = vmatprep.subr.mxu0 0.0
        %594 = vmatpush1.msra.mxu0 0.0
        %595 = vmatprep.subr.mxu0 0.0
        %596 = vmatpush1.msra.mxu0 0.0
        %597 = vmatprep.subr.mxu0 0.0
        %598 = vmatpush1.msra.mxu0 0.0
        %599 = vmatprep.subr.mxu0 0.0
        %600 = vmatpush1.msra.mxu0 0.0
        %601 = vmatprep.subr.mxu0 0.0
        %602 = vmatpush1.msra.mxu0 0.0
        %603 = vmatprep.subr.mxu0 0.0
        %604 = vmatpush1.msra.mxu0 0.0
        %605 = vmatprep.subr.mxu0 0.0
        %606 = vmatpush1.msra.mxu0 0.0
        %607 = vmatprep.subr.mxu0 0.0
        %608 = vmatpush1.msra.mxu0 0.0
        %609 = vmatprep.mubr.f32.mxu0 0.0
        %610 = vmatmul.mubr.f32.gmra.mrb[0].mxu0 %v330
        %v611 = vpop.f32.mrb[0].mxu0
        %v612 = vadd.f32 %v326, %v611
        %v613 = vpop.f32.mrb[0].mxu0
        %v614 = vadd.f32 %v326, %v613
        %615 = vdwg.mxu0
        %v624 = vcombine.low %v399, %v401
        %v625 = vcombine.low %v470, %v472
        %v626 = vcombine.low %v541, %v543
        %v627 = vcombine.low %v612, %v614
        %632 = vst [vmem:[%s302] sm:$0xff] %v624
        %633 = vst [vmem:[%s302 + $0x8] sm:$0xff] %v625
        %634 = vst [vmem:[%s302 + $0x10] sm:$0xff] %v626
        %635 = vst [vmem:[%s302 + $0x18] sm:$0xff] %v627
        %v636 = vld [vmem:[%s2] sm:$0xf]
        %v637 = vld [vmem:[%s3] sm:$0xf]
        %639 = vset.pattern.permute.xlu0 0
        %640 = vperm.xlu0 %639, %v637
        %v641 = vpop.permute.xlu0 %640
        %vm643 = vcmask 31744
        %v645 = vsel %vm643, %v636, 0
        %vm647 = vcmask 1043456
        %v648 = vsel %vm647, %v399, 0
        %v650 = vsel %vm647, %v401, 0
        %v652 = vsel %vm647, %v470, 0
        %v654 = vsel %vm647, %v472, 0
        %v656 = vsel %vm647, %v541, 0
        %v658 = vsel %vm647, %v543, 0
        %v660 = vsel %vm647, %v612, 0
        %v662 = vsel %vm647, %v614, 0
        %664 = vmatprep.subr.mxu0 %v650
        %665 = vmatpush1.msra.mxu0 %v648
        %666 = vmatprep.subr.mxu0 0.0
        %667 = vmatpush1.msra.mxu0 0.0
        %668 = vmatprep.subr.mxu0 0.0
        %669 = vmatpush1.msra.mxu0 0.0
        %670 = vmatprep.subr.mxu0 0.0
        %671 = vmatpush1.msra.mxu0 0.0
        %672 = vmatprep.subr.mxu0 0.0
        %673 = vmatpush1.msra.mxu0 0.0
        %674 = vmatprep.subr.mxu0 0.0
        %675 = vmatpush1.msra.mxu0 0.0
        %676 = vmatprep.subr.mxu0 0.0
        %677 = vmatpush1.msra.mxu0 0.0
        %678 = vmatprep.subr.mxu0 0.0
        %679 = vmatpush1.msra.mxu0 0.0
        %680 = vmatprep.subr.mxu0 0.0
        %681 = vmatpush1.msra.mxu0 0.0
        %682 = vmatprep.subr.mxu0 0.0
        %683 = vmatpush1.msra.mxu0 0.0
        %684 = vmatprep.subr.mxu0 0.0
        %685 = vmatpush1.msra.mxu0 0.0
        %686 = vmatprep.subr.mxu0 0.0
        %687 = vmatpush1.msra.mxu0 0.0
        %688 = vmatprep.subr.mxu0 0.0
        %689 = vmatpush1.msra.mxu0 0.0
        %690 = vmatprep.subr.mxu0 0.0
        %691 = vmatpush1.msra.mxu0 0.0
        %692 = vmatprep.subr.mxu0 0.0
        %693 = vmatpush1.msra.mxu0 0.0
        %694 = vmatprep.subr.mxu0 0.0
        %695 = vmatpush1.msra.mxu0 0.0
        %696 = vmatprep.subr.mxu0 0.0
        %697 = vmatpush1.msra.mxu0 0.0
        %698 = vmatprep.subr.mxu0 0.0
        %699 = vmatpush1.msra.mxu0 0.0
        %700 = vmatprep.subr.mxu0 0.0
        %701 = vmatpush1.msra.mxu0 0.0
        %702 = vmatprep.subr.mxu0 0.0
        %703 = vmatpush1.msra.mxu0 0.0
        %704 = vmatprep.subr.mxu0 0.0
        %705 = vmatpush1.msra.mxu0 0.0
        %706 = vmatprep.subr.mxu0 0.0
        %707 = vmatpush1.msra.mxu0 0.0
        %708 = vmatprep.subr.mxu0 0.0
        %709 = vmatpush1.msra.mxu0 0.0
        %710 = vmatprep.subr.mxu0 0.0
        %711 = vmatpush1.msra.mxu0 0.0
        %712 = vmatprep.subr.mxu0 0.0
        %713 = vmatpush1.msra.mxu0 0.0
        %714 = vmatprep.subr.mxu0 0.0
        %715 = vmatpush1.msra.mxu0 0.0
        %716 = vmatprep.subr.mxu0 0.0
        %717 = vmatpush1.msra.mxu0 0.0
        %718 = vmatprep.subr.mxu0 0.0
        %719 = vmatpush1.msra.mxu0 0.0
        %720 = vmatprep.subr.mxu0 0.0
        %721 = vmatpush1.msra.mxu0 0.0
        %722 = vmatprep.subr.mxu0 0.0
        %723 = vmatpush1.msra.mxu0 0.0
        %724 = vmatprep.subr.mxu0 0.0
        %725 = vmatpush1.msra.mxu0 0.0
        %726 = vmatprep.subr.mxu0 0.0
        %727 = vmatpush1.msra.mxu0 0.0
        %728 = vmatprep.mubr.f32.mxu0 0.0
        %729 = vmatmul.mubr.f32.gmra.mrb[0].mxu0 %v645
        %v730 = vpop.f32.mrb[0].mxu0
        %v731 = vadd.f32 %v641, %v730
        %v732 = vpop.f32.mrb[0].mxu0
        %v733 = vadd.f32 %v641, %v732
        %734 = vdwg.mxu0
        %735 = vmatprep.subr.mxu0 %v654
        %736 = vmatpush1.msra.mxu0 %v652
        %737 = vmatprep.subr.mxu0 0.0
        %738 = vmatpush1.msra.mxu0 0.0
        %739 = vmatprep.subr.mxu0 0.0
        %740 = vmatpush1.msra.mxu0 0.0
        %741 = vmatprep.subr.mxu0 0.0
        %742 = vmatpush1.msra.mxu0 0.0
        %743 = vmatprep.subr.mxu0 0.0
        %744 = vmatpush1.msra.mxu0 0.0
        %745 = vmatprep.subr.mxu0 0.0
        %746 = vmatpush1.msra.mxu0 0.0
        %747 = vmatprep.subr.mxu0 0.0
        %748 = vmatpush1.msra.mxu0 0.0
        %749 = vmatprep.subr.mxu0 0.0
        %750 = vmatpush1.msra.mxu0 0.0
        %751 = vmatprep.subr.mxu0 0.0
        %752 = vmatpush1.msra.mxu0 0.0
        %753 = vmatprep.subr.mxu0 0.0
        %754 = vmatpush1.msra.mxu0 0.0
        %755 = vmatprep.subr.mxu0 0.0
        %756 = vmatpush1.msra.mxu0 0.0
        %757 = vmatprep.subr.mxu0 0.0
        %758 = vmatpush1.msra.mxu0 0.0
        %759 = vmatprep.subr.mxu0 0.0
        %760 = vmatpush1.msra.mxu0 0.0
        %761 = vmatprep.subr.mxu0 0.0
        %762 = vmatpush1.msra.mxu0 0.0
        %763 = vmatprep.subr.mxu0 0.0
        %764 = vmatpush1.msra.mxu0 0.0
        %765 = vmatprep.subr.mxu0 0.0
        %766 = vmatpush1.msra.mxu0 0.0
        %767 = vmatprep.subr.mxu0 0.0
        %768 = vmatpush1.msra.mxu0 0.0
        %769 = vmatprep.subr.mxu0 0.0
        %770 = vmatpush1.msra.mxu0 0.0
        %771 = vmatprep.subr.mxu0 0.0
        %772 = vmatpush1.msra.mxu0 0.0
        %773 = vmatprep.subr.mxu0 0.0
        %774 = vmatpush1.msra.mxu0 0.0
        %775 = vmatprep.subr.mxu0 0.0
        %776 = vmatpush1.msra.mxu0 0.0
        %777 = vmatprep.subr.mxu0 0.0
        %778 = vmatpush1.msra.mxu0 0.0
        %779 = vmatprep.subr.mxu0 0.0
        %780 = vmatpush1.msra.mxu0 0.0
        %781 = vmatprep.subr.mxu0 0.0
        %782 = vmatpush1.msra.mxu0 0.0
        %783 = vmatprep.subr.mxu0 0.0
        %784 = vmatpush1.msra.mxu0 0.0
        %785 = vmatprep.subr.mxu0 0.0
        %786 = vmatpush1.msra.mxu0 0.0
        %787 = vmatprep.subr.mxu0 0.0
        %788 = vmatpush1.msra.mxu0 0.0
        %789 = vmatprep.subr.mxu0 0.0
        %790 = vmatpush1.msra.mxu0 0.0
        %791 = vmatprep.subr.mxu0 0.0
        %792 = vmatpush1.msra.mxu0 0.0
        %793 = vmatprep.subr.mxu0 0.0
        %794 = vmatpush1.msra.mxu0 0.0
        %795 = vmatprep.subr.mxu0 0.0
        %796 = vmatpush1.msra.mxu0 0.0
        %797 = vmatprep.subr.mxu0 0.0
        %798 = vmatpush1.msra.mxu0 0.0
        %799 = vmatprep.mubr.f32.mxu0 0.0
        %800 = vmatmul.mubr.f32.gmra.mrb[0].mxu0 %v645
        %v801 = vpop.f32.mrb[0].mxu0
        %v802 = vadd.f32 %v641, %v801
        %v803 = vpop.f32.mrb[0].mxu0
        %v804 = vadd.f32 %v641, %v803
        %805 = vdwg.mxu0
        %806 = vmatprep.subr.mxu0 %v658
        %807 = vmatpush1.msra.mxu0 %v656
        %808 = vmatprep.subr.mxu0 0.0
        %809 = vmatpush1.msra.mxu0 0.0
        %810 = vmatprep.subr.mxu0 0.0
        %811 = vmatpush1.msra.mxu0 0.0
        %812 = vmatprep.subr.mxu0 0.0
        %813 = vmatpush1.msra.mxu0 0.0
        %814 = vmatprep.subr.mxu0 0.0
        %815 = vmatpush1.msra.mxu0 0.0
        %816 = vmatprep.subr.mxu0 0.0
        %817 = vmatpush1.msra.mxu0 0.0
        %818 = vmatprep.subr.mxu0 0.0
        %819 = vmatpush1.msra.mxu0 0.0
        %820 = vmatprep.subr.mxu0 0.0
        %821 = vmatpush1.msra.mxu0 0.0
        %822 = vmatprep.subr.mxu0 0.0
        %823 = vmatpush1.msra.mxu0 0.0
        %824 = vmatprep.subr.mxu0 0.0
        %825 = vmatpush1.msra.mxu0 0.0
        %826 = vmatprep.subr.mxu0 0.0
        %827 = vmatpush1.msra.mxu0 0.0
        %828 = vmatprep.subr.mxu0 0.0
        %829 = vmatpush1.msra.mxu0 0.0
        %830 = vmatprep.subr.mxu0 0.0
        %831 = vmatpush1.msra.mxu0 0.0
        %832 = vmatprep.subr.mxu0 0.0
        %833 = vmatpush1.msra.mxu0 0.0
        %834 = vmatprep.subr.mxu0 0.0
        %835 = vmatpush1.msra.mxu0 0.0
        %836 = vmatprep.subr.mxu0 0.0
        %837 = vmatpush1.msra.mxu0 0.0
        %838 = vmatprep.subr.mxu0 0.0
        %839 = vmatpush1.msra.mxu0 0.0
        %840 = vmatprep.subr.mxu0 0.0
        %841 = vmatpush1.msra.mxu0 0.0
        %842 = vmatprep.subr.mxu0 0.0
        %843 = vmatpush1.msra.mxu0 0.0
        %844 = vmatprep.subr.mxu0 0.0
        %845 = vmatpush1.msra.mxu0 0.0
        %846 = vmatprep.subr.mxu0 0.0
        %847 = vmatpush1.msra.mxu0 0.0
        %848 = vmatprep.subr.mxu0 0.0
        %849 = vmatpush1.msra.mxu0 0.0
        %850 = vmatprep.subr.mxu0 0.0
        %851 = vmatpush1.msra.mxu0 0.0
        %852 = vmatprep.subr.mxu0 0.0
        %853 = vmatpush1.msra.mxu0 0.0
        %854 = vmatprep.subr.mxu0 0.0
        %855 = vmatpush1.msra.mxu0 0.0
        %856 = vmatprep.subr.mxu0 0.0
        %857 = vmatpush1.msra.mxu0 0.0
        %858 = vmatprep.subr.mxu0 0.0
        %859 = vmatpush1.msra.mxu0 0.0
        %860 = vmatprep.subr.mxu0 0.0
        %861 = vmatpush1.msra.mxu0 0.0
        %862 = vmatprep.subr.mxu0 0.0
        %863 = vmatpush1.msra.mxu0 0.0
        %864 = vmatprep.subr.mxu0 0.0
        %865 = vmatpush1.msra.mxu0 0.0
        %866 = vmatprep.subr.mxu0 0.0
        %867 = vmatpush1.msra.mxu0 0.0
        %868 = vmatprep.subr.mxu0 0.0
        %869 = vmatpush1.msra.mxu0 0.0
        %870 = vmatprep.mubr.f32.mxu0 0.0
        %871 = vmatmul.mubr.f32.gmra.mrb[0].mxu0 %v645
        %v872 = vpop.f32.mrb[0].mxu0
        %v873 = vadd.f32 %v641, %v872
        %v874 = vpop.f32.mrb[0].mxu0
        %v875 = vadd.f32 %v641, %v874
        %876 = vdwg.mxu0
        %877 = vmatprep.subr.mxu0 %v662
        %878 = vmatpush1.msra.mxu0 %v660
        %879 = vmatprep.subr.mxu0 0.0
        %880 = vmatpush1.msra.mxu0 0.0
        %881 = vmatprep.subr.mxu0 0.0
        %882 = vmatpush1.msra.mxu0 0.0
        %883 = vmatprep.subr.mxu0 0.0
        %884 = vmatpush1.msra.mxu0 0.0
        %885 = vmatprep.subr.mxu0 0.0
        %886 = vmatpush1.msra.mxu0 0.0
        %887 = vmatprep.subr.mxu0 0.0
        %888 = vmatpush1.msra.mxu0 0.0
        %889 = vmatprep.subr.mxu0 0.0
        %890 = vmatpush1.msra.mxu0 0.0
        %891 = vmatprep.subr.mxu0 0.0
        %892 = vmatpush1.msra.mxu0 0.0
        %893 = vmatprep.subr.mxu0 0.0
        %894 = vmatpush1.msra.mxu0 0.0
        %895 = vmatprep.subr.mxu0 0.0
        %896 = vmatpush1.msra.mxu0 0.0
        %897 = vmatprep.subr.mxu0 0.0
        %898 = vmatpush1.msra.mxu0 0.0
        %899 = vmatprep.subr.mxu0 0.0
        %900 = vmatpush1.msra.mxu0 0.0
        %901 = vmatprep.subr.mxu0 0.0
        %902 = vmatpush1.msra.mxu0 0.0
        %903 = vmatprep.subr.mxu0 0.0
        %904 = vmatpush1.msra.mxu0 0.0
        %905 = vmatprep.subr.mxu0 0.0
        %906 = vmatpush1.msra.mxu0 0.0
        %907 = vmatprep.subr.mxu0 0.0
        %908 = vmatpush1.msra.mxu0 0.0
        %909 = vmatprep.subr.mxu0 0.0
        %910 = vmatpush1.msra.mxu0 0.0
        %911 = vmatprep.subr.mxu0 0.0
        %912 = vmatpush1.msra.mxu0 0.0
        %913 = vmatprep.subr.mxu0 0.0
        %914 = vmatpush1.msra.mxu0 0.0
        %915 = vmatprep.subr.mxu0 0.0
        %916 = vmatpush1.msra.mxu0 0.0
        %917 = vmatprep.subr.mxu0 0.0
        %918 = vmatpush1.msra.mxu0 0.0
        %919 = vmatprep.subr.mxu0 0.0
        %920 = vmatpush1.msra.mxu0 0.0
        %921 = vmatprep.subr.mxu0 0.0
        %922 = vmatpush1.msra.mxu0 0.0
        %923 = vmatprep.subr.mxu0 0.0
        %924 = vmatpush1.msra.mxu0 0.0
        %925 = vmatprep.subr.mxu0 0.0
        %926 = vmatpush1.msra.mxu0 0.0
        %927 = vmatprep.subr.mxu0 0.0
        %928 = vmatpush1.msra.mxu0 0.0
        %929 = vmatprep.subr.mxu0 0.0
        %930 = vmatpush1.msra.mxu0 0.0
        %931 = vmatprep.subr.mxu0 0.0
        %932 = vmatpush1.msra.mxu0 0.0
        %933 = vmatprep.subr.mxu0 0.0
        %934 = vmatpush1.msra.mxu0 0.0
        %935 = vmatprep.subr.mxu0 0.0
        %936 = vmatpush1.msra.mxu0 0.0
        %937 = vmatprep.subr.mxu0 0.0
        %938 = vmatpush1.msra.mxu0 0.0
        %939 = vmatprep.subr.mxu0 0.0
        %940 = vmatpush1.msra.mxu0 0.0
        %941 = vmatprep.mubr.f32.mxu0 0.0
        %942 = vmatmul.mubr.f32.gmra.mrb[0].mxu0 %v645
        %v943 = vpop.f32.mrb[0].mxu0
        %v944 = vadd.f32 %v641, %v943
        %v945 = vpop.f32.mrb[0].mxu0
        %v946 = vadd.f32 %v641, %v945
        %947 = vdwg.mxu0
        %v956 = vcombine.low %v731, %v733
        %v957 = vcombine.low %v802, %v804
        %v958 = vcombine.low %v873, %v875
        %v959 = vcombine.low %v944, %v946
        %964 = vst [vmem:[%s283] sm:$0xff] %v956
        %965 = vst [vmem:[%s283 + $0x8] sm:$0xff] %v957
        %966 = vst [vmem:[%s283 + $0x10] sm:$0xff] %v958
        %967 = vst [vmem:[%s283 + $0x18] sm:$0xff] %v959
        %s968 = smul.u32 8, %s26
        %p969 = scmp.lt.s32.totalorder %s25, 1
        %s970 = scalar_select %p969, %s25, 1
        %p971 = scmp.lt.s32.totalorder %s968, 7
        %s972 = scalar_select %p971, %s968, 7
        %s973 = smul.addr %s970, 8
        %s974 = sadd.s32 %s972, %s973
        %s975 = smul.addr %s974, 4
        %s976 = scalar_lea.vmem %s5, %s975
        %s977 = sand.u32 %s183, 1
        %s978 = scalar_lea.sflag [#allocation3], %s977
        %s979 = sand.u32 %s183, 1
        %s980 = smul.addr %s979, 32
        %s981 = scalar_lea.vmem [#allocation2], %s980
        // Predicated region
        $region41: #{esa_forward.3} parent=39 // pred_check
          %p982 = pneg %p165
        $region42: #{esa_forward.3} parent=39 // pred_check_branch
          %984 = sbr.rel (%p982) target = $region44
        $region43: #{esa_forward.3} parent=39 // pred_region
          %s985 = smul.u32 8, %s26
        $region44: #{esa_forward.3} parent=39 // pred_fallthru
          _
        // Predicated region
        $region45: #{esa_forward.3} parent=39 // pred_check
          %p986 = pneg %p193
        $region46: #{esa_forward.3} parent=39 // pred_check_branch
          %988 = sbr.rel (%p986) target = $region48
        $region47: #{esa_forward.3} parent=39 // pred_region
          %s989 = smul.u32 8, %s26
          %s991 = ssub.s32 512, 512
          %992 = vsyncadd %s978, %s991
          %s993 = smul.addr %s25, 8
          %s994 = sadd.s32 %s989, %s993
          %s995 = smul.addr %s994, 64
          %s996 = scalar_lea.hbm %s6, %s995
          %s998 = sshll.u32 %s981, 4
          %s999 = int_to_ptr.vmem [resolvable:$true] %s998
          %1001 = dma.vmem_to_hbm [thread:$0]  %s999, 512, %s996, %s978
        $region48: #{esa_forward.3} parent=39 // pred_fallthru
          _
      $region40: #{esa_forward.3} parent=5 // pred_fallthru
        _
      %p1002 = scmp.le.s32.totalorder 2, %s16
      // Predicated region
      $region49: #{esa_forward.3} parent=5 // pred_check
        %p1003 = pneg %p1002
      $region50: #{esa_forward.3} parent=5 // pred_check_branch
        %1005 = sbr.rel (%p1003) target = $region52
      $region51: #{esa_forward.3} parent=5 // pred_region
        %s1006 = ssub.s32 %s16, 2
        // Predicated region
        $region53: #{esa_forward.3} parent=51 // pred_check
          %p1007 = pneg %p171
        $region54: #{esa_forward.3} parent=51 // pred_check_branch
          %1009 = sbr.rel (%p1007) target = $region56
        $region55: #{esa_forward.3} parent=51 // pred_region
          %s1010 = smul.u32 8, %s28
          %p1011 = scmp.lt.s32.totalorder %s27, 1
          %s1012 = scalar_select %p1011, %s27, 1
          %p1013 = scmp.lt.s32.totalorder %s1010, 7
          %s1014 = scalar_select %p1013, %s1010, 7
          %s1015 = smul.addr %s1012, 8
          %s1016 = sadd.s32 %s1014, %s1015
          %s1017 = smul.addr %s1016, 4
          %s1018 = scalar_lea.vmem %s5, %s1017
        $region56: #{esa_forward.3} parent=51 // pred_fallthru
          _
        // Predicated region
        $region57: #{esa_forward.3} parent=51 // pred_check
          %p1019 = pneg %p199
        $region58: #{esa_forward.3} parent=51 // pred_check_branch
          %1021 = sbr.rel (%p1019) target = $region60
        $region59: #{esa_forward.3} parent=51 // pred_region
          %s1022 = sand.u32 %s184, 1
          %s1023 = scalar_lea.sflag [#allocation3], %s1022
          %s1024 = sand.u32 %s184, 1
          %s1025 = smul.addr %s1024, 32
          %s1026 = scalar_lea.vmem [#allocation2], %s1025
          %1027 = dma.done %s1023, 512
        $region60: #{esa_forward.3} parent=51 // pred_fallthru
          _
      $region52: #{esa_forward.3} parent=5 // pred_fallthru
        _
    $region6: #{esa_forward.3} parent=1 // loop_footer
      %s20 = sadd.s32 1, %s16
    $region7: #{esa_forward.3} parent=1 // loop_footer_branch
      %15 = sbr.rel target = $region3
    $region8: #{esa_forward.3} parent=1 // loop_exit
      _
    %1028 = vsyncpa [#allocation3], 1
    %s1029 = scalar_lea.sflag [#allocation3], 1
    %1030 = vsyncpa %s1029, 1

// kernel: esa_forward.5
$region0: #{esa_forward.5}
  #allocation0 [shape = 'u32[]', space=smem, size = 0x4, offset = 0x4, fixed_abs, tag = 'smem constant byte address 0x4 - core index']
  #allocation1 [shape = 'u32[144,128]{1,0:T(1,128)}', space=vmem, size = 0x12000, scoped, tag = 'internal scratch']
  #allocation2 [shape = 'f32[4,1024]{1,0:T(4,128)}', space=vmem, size = 0x4000, scoped, tag = 'scratch operand']
  %s0 = inlined_call_operand.hbm [shape: f32[16,4], index: 0, kind: input, shape index: {}]
  %s1 = inlined_call_operand.hbm [shape: f32[16,1], index: 1, kind: input, shape index: {}]
  %s2 = inlined_call_operand.vmem [shape: f32[32,3], index: 2, kind: input, shape index: {}]
  %s3 = inlined_call_operand.vmem [shape: f32[2,4,3,32], index: 3, kind: input, shape index: {}]
  %s4 = inlined_call_operand.hbm [shape: f32[2,4,1024], index: 4, kind: input, shape index: {}]
  %s5 = inlined_call_operand.hbm [shape: f32[2,16,1024], index: 5, kind: input, shape index: {}]
  %s6 = inlined_call_operand.vmem [shape: f32[2,16,1024], index: 6, kind: output, shape index: {}]
  %s7 = sld [smem:[#allocation0]]
  $region73: #{esa_forward.5} parent=0
    _
  %s9 = ssub.s32 1, %s7
  %s10 = scalar_select 0, %s9, %s7
  $region1: #{esa_forward.5} parent=0
    #allocation3 [shape = 'u8[8192]{0}', space=vmem, size = 0x2000, scoped, tag = 'input window, operand 0, single buffered']
    #allocation4 [shape = 's32[2]{0}', space=sflag, size = 0x8, scoped, tag = 'scoped memory for esa_forward.5']
    #allocation5 [shape = 'u8[8192]{0}', space=vmem, size = 0x2000, scoped, tag = 'input window, operand 1, single buffered']
    #allocation6 [shape = 's32[1]{0}', space=sflag, size = 0x4, scoped, tag = 'scoped memory for esa_forward.5']
    #allocation7 [shape = 'u8[32768]{0}', space=vmem, size = 0x8000, scoped, tag = 'input window, operand 4']
    #allocation8 [shape = 'u8[131072]{0}', space=vmem, size = 0x20000, scoped, tag = 'input window, operand 5']
    %11 = vsyncpa [#allocation4], 0
    %12 = vsyncpa [#allocation6], 0
    loop: start=0, step=1, limit=4
    $region2: #{esa_forward.5} parent=1 // loop_pre_header
      _
    $region3: #{esa_forward.5} parent=1 // loop_header
      %s14 = sphi 0, %s18
      %p15 = scmp.ge.s32.totalorder %s14, 4
      %s21 = sphi 0, %s33
      %s22 = sphi 0, %s29
      %s23 = sphi 0, %s21
      %s24 = sphi 0, %s22
      %s25 = sphi 0, %s23
      %s26 = sphi 0, %s24
      %s34 = sphi 0, %s34
      %s36 = sphi 0, %s34
      %s37 = sphi 0, %s36
      %s51 = sphi 0, %s37
      %s55 = sphi 0, %s55
      %s57 = sphi 0, %s55
      %s58 = sphi 0, %s57
      %s72 = sphi 0, %s58
      %s78 = sphi 0, %s80
      %s81 = sphi 0, %s78
      %s82 = sphi 0, %s81
      %s98 = sphi 0, %s82
      %s104 = sphi 0, %s106
      %s107 = sphi 0, %s104
      %s108 = sphi 0, %s107
      %s124 = sphi 0, %s108
      %s132 = sphi 0, %s134
      %s135 = sphi 0, %s132
      %s136 = sphi 0, %s135
      %s152 = sphi 0, %s136
      %s160 = sphi 0, %s162
      %s163 = sphi 0, %s160
      %s164 = sphi 0, %s163
      %s180 = sphi 0, %s164
      %s188 = sphi 0, %s190
      %s191 = sphi 0, %s188
      %s192 = sphi 0, %s191
      %s208 = sphi 0, %s192
    $region4: #{esa_forward.5} parent=1 // loop_header_branch
      %17 = sbr.rel (%p15) target = $region8
    $region5: #{esa_forward.5} parent=1 // loop_body
      %s19 = ssub.s32 %s14, 1
      %s20 = ssub.s32 %s14, 2
      %s27 = sadd.s32 1, %s22
      %p28 = scmp.ge.s32.totalorder %s27, 1
      %s29 = scalar_select %p28, 0, %s27
      %s30 = sadd.s32 1, %s21
      %s31 = scalar_select %p28, %s30, %s21
      %p32 = scmp.ge.s32.totalorder %s31, 2
      %s33 = scalar_select %p32, 0, %s31
      %s35 = sadd.s32 %s34, 1
      %p38 = scmp.eq.s32.totalorder %s14, 1
      %p39 = scmp.ne.s32.totalorder %s34, %s36
      %p40 = scmp.eq.s32.totalorder %s14, 0
      %p41 = por %p39, %p40
      %p42 = scmp.ne.s32.totalorder %s34, %s36
      %p43 = scmp.eq.s32.totalorder %s19, 1
      %p44 = por %p42, %p43
      %p45 = scmp.ne.s32.totalorder %s36, %s37
      %p46 = scmp.eq.s32.totalorder %s19, 0
      %p47 = por %p45, %p46
      %p48 = scmp.ne.s32.totalorder %s36, %s37
      %p49 = scmp.eq.s32.totalorder %s20, 1
      %p50 = por %p48, %p49
      %p52 = scmp.ne.s32.totalorder %s37, %s51
      %p53 = scmp.eq.s32.totalorder %s20, 0
      %p54 = por %p52, %p53
      %s56 = sadd.s32 %s55, 1
      %p59 = scmp.eq.s32.totalorder %s14, 1
      %p60 = scmp.ne.s32.totalorder %s55, %s57
      %p61 = scmp.eq.s32.totalorder %s14, 0
      %p62 = por %p60, %p61
      %p63 = scmp.ne.s32.totalorder %s55, %s57
      %p64 = scmp.eq.s32.totalorder %s19, 1
      %p65 = por %p63, %p64
      %p66 = scmp.ne.s32.totalorder %s57, %s58
      %p67 = scmp.eq.s32.totalorder %s19, 0
      %p68 = por %p66, %p67
      %p69 = scmp.ne.s32.totalorder %s57, %s58
      %p70 = scmp.eq.s32.totalorder %s20, 1
      %p71 = por %p69, %p70
      %p73 = scmp.ne.s32.totalorder %s58, %s72
      %p74 = scmp.eq.s32.totalorder %s20, 0
      %p75 = por %p73, %p74
      %s76 = ssub.s32 %s22, %s29
      %p77 = scmp.eq.s32.totalorder %s76, 0
      %s79 = sadd.s32 %s78, 1
      %s80 = scalar_select %p77, %s78, %s79
      %p83 = pneg %p77
      %p84 = scmp.eq.s32.totalorder %s14, 1
      %p85 = por %p83, %p84
      %p86 = scmp.ne.s32.totalorder %s78, %s81
      %p87 = scmp.eq.s32.totalorder %s14, 0
      %p88 = por %p86, %p87
      %p89 = scmp.ne.s32.totalorder %s78, %s81
      %p90 = scmp.eq.s32.totalorder %s19, 1
      %p91 = por %p89, %p90
      %p92 = scmp.ne.s32.totalorder %s81, %s82
      %p93 = scmp.eq.s32.totalorder %s19, 0
      %p94 = por %p92, %p93
      %p95 = scmp.ne.s32.totalorder %s81, %s82
      %p96 = scmp.eq.s32.totalorder %s20, 1
      %p97 = por %p95, %p96
      %p99 = scmp.ne.s32.totalorder %s82, %s98
      %p100 = scmp.eq.s32.totalorder %s20, 0
      %p101 = por %p99, %p100
      %s102 = ssub.s32 %s21, %s33
      %p103 = scmp.eq.s32.totalorder %s102, 0
      %s105 = sadd.s32 %s104, 1
      %s106 = scalar_select %p103, %s104, %s105
      %p109 = pneg %p103
      %p110 = scmp.eq.s32.totalorder %s14, 1
      %p111 = por %p109, %p110
      %p112 = scmp.ne.s32.totalorder %s104, %s107
      %p113 = scmp.eq.s32.totalorder %s14, 0
      %p114 = por %p112, %p113
      %p115 = scmp.ne.s32.totalorder %s104, %s107
      %p116 = scmp.eq.s32.totalorder %s19, 1
      %p117 = por %p115, %p116
      %p118 = scmp.ne.s32.totalorder %s107, %s108
      %p119 = scmp.eq.s32.totalorder %s19, 0
      %p120 = por %p118, %p119
      %p121 = scmp.ne.s32.totalorder %s107, %s108
      %p122 = scmp.eq.s32.totalorder %s20, 1
      %p123 = por %p121, %p122
      %p125 = scmp.ne.s32.totalorder %s108, %s124
      %p126 = scmp.eq.s32.totalorder %s20, 0
      %p127 = por %p125, %p126
      %s128 = ssub.s32 %s21, %s33
      %s129 = ssub.s32 %s22, %s29
      %s130 = sor.u32 %s128, %s129
      %p131 = scmp.eq.s32.totalorder %s130, 0
      %s133 = sadd.s32 %s132, 1
      %s134 = scalar_select %p131, %s132, %s133
      %p137 = pneg %p131
      %p138 = scmp.eq.s32.totalorder %s14, 1
      %p139 = por %p137, %p138
      %p140 = scmp.ne.s32.totalorder %s132, %s135
      %p141 = scmp.eq.s32.totalorder %s14, 0
      %p142 = por %p140, %p141
      %p143 = scmp.ne.s32.totalorder %s132, %s135
      %p144 = scmp.eq.s32.totalorder %s19, 1
      %p145 = por %p143, %p144
      %p146 = scmp.ne.s32.totalorder %s135, %s136
      %p147 = scmp.eq.s32.totalorder %s19, 0
      %p148 = por %p146, %p147
      %p149 = scmp.ne.s32.totalorder %s135, %s136
      %p150 = scmp.eq.s32.totalorder %s20, 1
      %p151 = por %p149, %p150
      %p153 = scmp.ne.s32.totalorder %s136, %s152
      %p154 = scmp.eq.s32.totalorder %s20, 0
      %p155 = por %p153, %p154
      %s156 = ssub.s32 %s21, %s33
      %s157 = ssub.s32 %s22, %s29
      %s158 = sor.u32 %s156, %s157
      %p159 = scmp.eq.s32.totalorder %s158, 0
      %s161 = sadd.s32 %s160, 1
      %s162 = scalar_select %p159, %s160, %s161
      %p165 = pneg %p159
      %p166 = scmp.eq.s32.totalorder %s14, 1
      %p167 = por %p165, %p166
      %p168 = scmp.ne.s32.totalorder %s160, %s163
      %p169 = scmp.eq.s32.totalorder %s14, 0
      %p170 = por %p168, %p169
      %p171 = scmp.ne.s32.totalorder %s160, %s163
      %p172 = scmp.eq.s32.totalorder %s19, 1
      %p173 = por %p171, %p172
      %p174 = scmp.ne.s32.totalorder %s163, %s164
      %p175 = scmp.eq.s32.totalorder %s19, 0
      %p176 = por %p174, %p175
      %p177 = scmp.ne.s32.totalorder %s163, %s164
      %p178 = scmp.eq.s32.totalorder %s20, 1
      %p179 = por %p177, %p178
      %p181 = scmp.ne.s32.totalorder %s164, %s180
      %p182 = scmp.eq.s32.totalorder %s20, 0
      %p183 = por %p181, %p182
      %s184 = ssub.s32 %s21, %s33
      %s185 = ssub.s32 %s22, %s29
      %s186 = sor.u32 %s184, %s185
      %p187 = scmp.eq.s32.totalorder %s186, 0
      %s189 = sadd.s32 %s188, 1
      %s190 = scalar_select %p187, %s188, %s189
      %p193 = pneg %p187
      %p194 = scmp.eq.s32.totalorder %s14, 1
      %p195 = por %p193, %p194
      %p196 = scmp.ne.s32.totalorder %s188, %s191
      %p197 = scmp.eq.s32.totalorder %s14, 0
      %p198 = por %p196, %p197
      %p199 = scmp.ne.s32.totalorder %s188, %s191
      %p200 = scmp.eq.s32.totalorder %s19, 1
      %p201 = por %p199, %p200
      %p202 = scmp.ne.s32.totalorder %s191, %s192
      %p203 = scmp.eq.s32.totalorder %s19, 0
      %p204 = por %p202, %p203
      %p205 = scmp.ne.s32.totalorder %s191, %s192
      %p206 = scmp.eq.s32.totalorder %s20, 1
      %p207 = por %p205, %p206
      %p209 = scmp.ne.s32.totalorder %s192, %s208
      %p210 = scmp.eq.s32.totalorder %s20, 0
      %p211 = por %p209, %p210
      %p212 = scmp.le.s32.totalorder 1, %s14
      %p213 = scmp.lt.s32.totalorder %s14, 3
      %p214 = pnand %p212, %p213
      %p215 = pneg %p214
      // Predicated region
      $region9: #{esa_forward.5} parent=5 // pred_check
        _
      $region10: #{esa_forward.5} parent=5 // pred_check_branch
        %217 = sbr.rel (%p214) target = $region12
      $region11: #{esa_forward.5} parent=5 // pred_region
        %s218 = ssub.s32 %s14, 1
        // Predicated region
        $region13: #{esa_forward.5} parent=11 // pred_check
          %p219 = pneg %p47
        $region14: #{esa_forward.5} parent=11 // pred_check_branch
          %221 = sbr.rel (%p219) target = $region16
        $region15: #{esa_forward.5} parent=11 // pred_region
          %s223 = ssub.s32 256, 256
          %224 = vsyncadd [#allocation4], %s223
          %s225 = sshll.u32 [#allocation3], 4
          %s226 = int_to_ptr.vmem [resolvable:$true] %s225
          %231 = dma.hbm_to_vmem [thread:$0]  %s0, 256, %s226, [#allocation4], 128, 128, 8
        $region16: #{esa_forward.5} parent=11 // pred_fallthru
          _
        // Predicated region
        $region17: #{esa_forward.5} parent=11 // pred_check
          %p232 = pneg %p68
        $region18: #{esa_forward.5} parent=11 // pred_check_branch
          %234 = sbr.rel (%p232) target = $region20
        $region19: #{esa_forward.5} parent=11 // pred_region
          %s236 = ssub.s32 256, 256
          %237 = vsyncadd [#allocation6], %s236
          %s238 = sshll.u32 [#allocation5], 4
          %s239 = int_to_ptr.vmem [resolvable:$true] %s238
          %244 = dma.hbm_to_vmem [thread:$0]  %s1, 256, %s239, [#allocation6], 128, 128, 8
        $region20: #{esa_forward.5} parent=11 // pred_fallthru
          _
        // Predicated region
        $region21: #{esa_forward.5} parent=11 // pred_check
          %p245 = pneg %p94
        $region22: #{esa_forward.5} parent=11 // pred_check_branch
          %247 = sbr.rel (%p245) target = $region24
        $region23: #{esa_forward.5} parent=11 // pred_region
          %s248 = smul.u32 4, %s24
          %p249 = scmp.lt.s32.totalorder %s248, 3
          %s250 = scalar_select %p249, %s248, 3
          %s251 = smul.addr %s250, 8
          %s252 = scalar_lea.vmem %s2, %s251
          %s253 = smul.u32 4, %s24
        $region24: #{esa_forward.5} parent=11 // pred_fallthru
          _
      $region12: #{esa_forward.5} parent=5 // pred_fallthru
        _
      %p254 = scmp.lt.s32.totalorder %s14, 2
      // Predicated region
      $region25: #{esa_forward.5} parent=5 // pred_check
        %p255 = pneg %p254
      $region26: #{esa_forward.5} parent=5 // pred_check_branch
        %257 = sbr.rel (%p255) target = $region28
      $region27: #{esa_forward.5} parent=5 // pred_region
        // Predicated region
        $region29: #{esa_forward.5} parent=27 // pred_check
          %p258 = pneg %p114
        $region30: #{esa_forward.5} parent=27 // pred_check_branch
          %260 = sbr.rel (%p258) target = $region32
        $region31: #{esa_forward.5} parent=27 // pred_region
          %p261 = scmp.lt.s32.totalorder %s21, 1
          %s262 = scalar_select %p261, %s21, 1
          %s263 = smul.addr %s262, 4
          %s264 = smul.addr %s263, 4
          %s265 = scalar_lea.vmem %s3, %s264
        $region32: #{esa_forward.5} parent=27 // pred_fallthru
          _
        // Predicated region
        $region33: #{esa_forward.5} parent=27 // pred_check
          %p266 = pneg %p142
        $region34: #{esa_forward.5} parent=27 // pred_check_branch
          %268 = sbr.rel (%p266) target = $region36
        $region35: #{esa_forward.5} parent=27 // pred_region
          %s269 = sand.u32 %s14, 1
          %s270 = scalar_lea.sflag [#allocation4], %s269
          %s271 = sand.u32 %s132, 1
          %s272 = smul.addr %s271, 32
          %s273 = scalar_lea.vmem [#allocation7], %s272
          %s274 = smul.u32 8, %s22
          %s276 = ssub.s32 512, 512
          %277 = vsyncadd %s270, %s276
          %s278 = smul.addr %s21, 8
          %s279 = sadd.s32 %s274, %s278
          %s280 = smul.addr %s279, 64
          %s281 = scalar_lea.hbm %s4, %s280
          %s283 = sshll.u32 %s273, 4
          %s284 = int_to_ptr.vmem [resolvable:$true] %s283
          %286 = dma.hbm_to_vmem [thread:$0]  %s281, 512, %s284, %s270
        $region36: #{esa_forward.5} parent=27 // pred_fallthru
          _
        // Predicated region
        $region37: #{esa_forward.5} parent=27 // pred_check
          %p287 = pneg %p170
        $region38: #{esa_forward.5} parent=27 // pred_check_branch
          %289 = sbr.rel (%p287) target = $region40
        $region39: #{esa_forward.5} parent=27 // pred_region
          %s290 = sand.u32 %s14, 1
          %s291 = scalar_lea.sflag [#allocation4], %s290
          %s292 = sand.u32 %s160, 1
          %s293 = smul.addr %s292, 128
          %s294 = scalar_lea.vmem [#allocation8], %s293
          %s295 = smul.u32 8, %s22
          %s297 = ssub.s32 2048, 2048
          %298 = vsyncadd %s291, %s297
          %s299 = smul.addr %s21, 16
          %s300 = sadd.s32 %s295, %s299
          %s301 = smul.addr %s300, 128
          %s302 = scalar_lea.hbm %s5, %s301
          %s303 = sshll.u32 %s294, 4
          %s304 = int_to_ptr.vmem [resolvable:$true] %s303
          %309 = dma.hbm_to_vmem [thread:$0]  %s302, 2048, %s304, %s291, 1024, 1024, 64
        $region40: #{esa_forward.5} parent=27 // pred_fallthru
          _
      $region28: #{esa_forward.5} parent=5 // pred_fallthru
        _
      %p310 = scmp.le.s32.totalorder 1, %s14
      %p311 = scmp.lt.s32.totalorder %s14, 3
      %p312 = pnand %p310, %p311
      %p313 = pneg %p312
      // Predicated region
      $region41: #{esa_forward.5} parent=5 // pred_check
        _
      $region42: #{esa_forward.5} parent=5 // pred_check_branch
        %315 = sbr.rel (%p312) target = $region44
      $region43: #{esa_forward.5} parent=5 // pred_region
        %s316 = ssub.s32 %s14, 1
        // Predicated region
        $region45: #{esa_forward.5} parent=43 // pred_check
          %p317 = pneg %p47
        $region46: #{esa_forward.5} parent=43 // pred_check_branch
          %319 = sbr.rel (%p317) target = $region48
        $region47: #{esa_forward.5} parent=43 // pred_region
          %320 = dma.done [#allocation4], 256
        $region48: #{esa_forward.5} parent=43 // pred_fallthru
          _
        // Predicated region
        $region49: #{esa_forward.5} parent=43 // pred_check
          %p321 = pneg %p68
        $region50: #{esa_forward.5} parent=43 // pred_check_branch
          %323 = sbr.rel (%p321) target = $region52
        $region51: #{esa_forward.5} parent=43 // pred_region
          %324 = dma.done [#allocation6], 256
        $region52: #{esa_forward.5} parent=43 // pred_fallthru
          _
        %s325 = sand.u32 %s19, 1
        %s326 = scalar_lea.sflag [#allocation4], %s325
        %s327 = sand.u32 %s135, 1
        %s328 = smul.addr %s327, 32
        %s329 = scalar_lea.vmem [#allocation7], %s328
        // Predicated region
        $region53: #{esa_forward.5} parent=43 // pred_check
          %p330 = pneg %p148
        $region54: #{esa_forward.5} parent=43 // pred_check_branch
          %332 = sbr.rel (%p330) target = $region56
        $region55: #{esa_forward.5} parent=43 // pred_region
          %333 = dma.done %s326, 512
        $region56: #{esa_forward.5} parent=43 // pred_fallthru
          _
        %s334 = sand.u32 %s19, 1
        %s335 = scalar_lea.sflag [#allocation4], %s334
        %s336 = sand.u32 %s163, 1
        %s337 = smul.addr %s336, 128
        %s338 = scalar_lea.vmem [#allocation8], %s337
        // Predicated region
        $region57: #{esa_forward.5} parent=43 // pred_check
          %p339 = pneg %p176
        $region58: #{esa_forward.5} parent=43 // pred_check_branch
          %341 = sbr.rel (%p339) target = $region60
        $region59: #{esa_forward.5} parent=43 // pred_region
          %342 = dma.done %s335, 2048
        $region60: #{esa_forward.5} parent=43 // pred_fallthru
          _
        %p343 = pneg %p47
        %p344 = pneg %p44
        %p345 = pneg %p68
        %p346 = pneg %p65
        %s347 = smul.u32 4, %s24
        %p348 = scmp.lt.s32.totalorder %s347, 3
        %s349 = scalar_select %p348, %s347, 3
        %s350 = smul.addr %s349, 8
        %s351 = scalar_lea.vmem %s2, %s350
        %p352 = pneg %p94
        %p353 = pneg %p91
        %p354 = scmp.lt.s32.totalorder %s23, 1
        %s355 = scalar_select %p354, %s23, 1
        %s356 = smul.addr %s355, 4
        %s357 = smul.addr %s356, 4
        %s358 = scalar_lea.vmem %s3, %s357
        %p359 = pneg %p120
        %p360 = pneg %p117
        %s361 = sand.u32 %s19, 1
        %s362 = scalar_lea.sflag [#allocation4], %s361
        %s363 = sand.u32 %s135, 1
        %s364 = smul.addr %s363, 32
        %s365 = scalar_lea.vmem [#allocation7], %s364
        %p366 = pneg %p148
        %p367 = pneg %p145
        %s368 = sand.u32 %s19, 1
        %s369 = scalar_lea.sflag [#allocation4], %s368
        %s370 = sand.u32 %s163, 1
        %s371 = smul.addr %s370, 128
        %s372 = scalar_lea.vmem [#allocation8], %s371
        %p373 = pneg %p176
        %p374 = pneg %p173
        %p375 = pneg %p204
        %p376 = pneg %p201
        %s377 = smul.u32 8, %s24
        %p378 = scmp.lt.s32.totalorder %s23, 1
        %s379 = scalar_select %p378, %s23, 1
        %p380 = scmp.lt.s32.totalorder %s377, 7
        %s381 = scalar_select %p380, %s377, 7
        %s382 = smul.addr %s379, 16
        %s383 = sadd.s32 %s381, %s382
        %s384 = smul.addr %s383, 8
        %s385 = scalar_lea.vmem %s6, %s384
        %s386 = smul.u32 4, %s24
        %p387 = scmp.lt.s32.totalorder %s386, 3
        %s388 = scalar_select %p387, %s386, 3
        %s389 = smul.addr %s388, 8
        %s390 = scalar_lea.vmem %s2, %s389
        %s391 = smul.u32 4, %s24
        %p392 = scmp.lt.s32.totalorder %s23, 1
        %s393 = scalar_select %p392, %s23, 1
        %s394 = smul.addr %s393, 4
        %s395 = smul.addr %s394, 4
        %s396 = scalar_lea.vmem %s3, %s395
        %s397 = smul.u32 8, %s24
        %s398 = smul.u32 8, %s24
        %s399 = smul.u32 8, %s24
        %p400 = scmp.lt.s32.totalorder %s23, 1
        %s401 = scalar_select %p400, %s23, 1
        %p402 = scmp.lt.s32.totalorder %s399, 7
        %s403 = scalar_select %p402, %s399, 7
        %s404 = smul.addr %s401, 16
        %s405 = sadd.s32 %s403, %s404
        %s406 = smul.addr %s405, 8
        %s407 = scalar_lea.vmem %s6, %s406
        %s408 = smul.u32 8, %s24
        %v409 = vld [vmem:[%s390] sm:$0xff]
        %v410 = vld [vmem:[%s390 + $0x8] sm:$0xff]
        %v411 = vld [vmem:[%s390 + $0x10] sm:$0xff]
        %v412 = vld [vmem:[%s390 + $0x18] sm:$0xff]
        %v413 = vld [vmem:[%s396] sm:$0x7]
        %v414 = vld [vmem:[%s396 + $0x4] sm:$0x7]
        %v415 = vld [vmem:[%s396 + $0x8] sm:$0x7]
        %v416 = vld [vmem:[%s396 + $0xc] sm:$0x7]
        %vm417 = vcmask 23552
        %v419 = vsel %vm417, %v409, 0
        %v422 = vsel %vm417, %v410, 0
        %v425 = vsel %vm417, %v411, 0
        %v428 = vsel %vm417, %v412, 0
        %vm430 = vcmask 1042432
        %v432 = vsel %vm430, %v413, 0
        %434 = vmatprep.subr.mxu0 0.0
        %435 = vmatpush1.msra.mxu0 %v432
        %436 = vmatprep.subr.mxu0 0.0
        %437 = vmatpush1.msra.mxu0 0.0
        %438 = vmatprep.subr.mxu0 0.0
        %439 = vmatpush1.msra.mxu0 0.0
        %440 = vmatprep.subr.mxu0 0.0
        %441 = vmatpush1.msra.mxu0 0.0
        %442 = vmatprep.subr.mxu0 0.0
        %443 = vmatpush1.msra.mxu0 0.0
        %444 = vmatprep.subr.mxu0 0.0
        %445 = vmatpush1.msra.mxu0 0.0
        %446 = vmatprep.subr.mxu0 0.0
        %447 = vmatpush1.msra.mxu0 0.0
        %448 = vmatprep.subr.mxu0 0.0
        %449 = vmatpush1.msra.mxu0 0.0
        %450 = vmatprep.subr.mxu0 0.0
        %451 = vmatpush1.msra.mxu0 0.0
        %452 = vmatprep.subr.mxu0 0.0
        %453 = vmatpush1.msra.mxu0 0.0
        %454 = vmatprep.subr.mxu0 0.0
        %455 = vmatpush1.msra.mxu0 0.0
        %456 = vmatprep.subr.mxu0 0.0
        %457 = vmatpush1.msra.mxu0 0.0
        %458 = vmatprep.subr.mxu0 0.0
        %459 = vmatpush1.msra.mxu0 0.0
        %460 = vmatprep.subr.mxu0 0.0
        %461 = vmatpush1.msra.mxu0 0.0
        %462 = vmatprep.subr.mxu0 0.0
        %463 = vmatpush1.msra.mxu0 0.0
        %464 = vmatprep.subr.mxu0 0.0
        %465 = vmatpush1.msra.mxu0 0.0
        %466 = vmatprep.subr.mxu0 0.0
        %467 = vmatpush1.msra.mxu0 0.0
        %468 = vmatprep.subr.mxu0 0.0
        %469 = vmatpush1.msra.mxu0 0.0
        %470 = vmatprep.subr.mxu0 0.0
        %471 = vmatpush1.msra.mxu0 0.0
        %472 = vmatprep.subr.mxu0 0.0
        %473 = vmatpush1.msra.mxu0 0.0
        %474 = vmatprep.subr.mxu0 0.0
        %475 = vmatpush1.msra.mxu0 0.0
        %476 = vmatprep.subr.mxu0 0.0
        %477 = vmatpush1.msra.mxu0 0.0
        %478 = vmatprep.subr.mxu0 0.0
        %479 = vmatpush1.msra.mxu0 0.0
        %480 = vmatprep.subr.mxu0 0.0
        %481 = vmatpush1.msra.mxu0 0.0
        %482 = vmatprep.subr.mxu0 0.0
        %483 = vmatpush1.msra.mxu0 0.0
        %484 = vmatprep.subr.mxu0 0.0
        %485 = vmatpush1.msra.mxu0 0.0
        %486 = vmatprep.subr.mxu0 0.0
        %487 = vmatpush1.msra.mxu0 0.0
        %488 = vmatprep.subr.mxu0 0.0
        %489 = vmatpush1.msra.mxu0 0.0
        %490 = vmatprep.subr.mxu0 0.0
        %491 = vmatpush1.msra.mxu0 0.0
        %492 = vmatprep.subr.mxu0 0.0
        %493 = vmatpush1.msra.mxu0 0.0
        %494 = vmatprep.subr.mxu0 0.0
        %495 = vmatpush1.msra.mxu0 0.0
        %496 = vmatprep.subr.mxu0 0.0
        %497 = vmatpush1.msra.mxu0 0.0
        %498 = vmatprep.mubr.f32.mxu0 0.0
        %499 = vmatmul.mubr.f32.gmra.mrb[0].mxu0 %v419
        %v500 = vpop.f32.mrb[0].mxu0
        %v501 = vadd.f32 0.0, %v500
        %v502 = vpop.f32.mrb[0].mxu0
        %503 = vmatprep.mubr.f32.mxu0 0.0
        %504 = vmatmul.mubr.f32.gmra.mrb[0].mxu0 %v422
        %v505 = vpop.f32.mrb[0].mxu0
        %v506 = vadd.f32 0.0, %v505
        %v507 = vpop.f32.mrb[0].mxu0
        %508 = vmatprep.mubr.f32.mxu0 0.0
        %509 = vmatmul.mubr.f32.gmra.mrb[0].mxu0 %v425
        %v510 = vpop.f32.mrb[0].mxu0
        %v511 = vadd.f32 0.0, %v510
        %v512 = vpop.f32.mrb[0].mxu0
        %513 = vmatprep.mubr.f32.mxu0 0.0
        %514 = vmatmul.mubr.f32.gmra.mrb[0].mxu0 %v428
        %v515 = vpop.f32.mrb[0].mxu0
        %v516 = vadd.f32 0.0, %v515
        %v517 = vpop.f32.mrb[0].mxu0
        %518 = vdwg.mxu0
        %v520 = vsel %vm430, %v414, 0
        %522 = vmatprep.subr.mxu0 0.0
        %523 = vmatpush1.msra.mxu0 %v520
        %524 = vmatprep.subr.mxu0 0.0
        %525 = vmatpush1.msra.mxu0 0.0
        %526 = vmatprep.subr.mxu0 0.0
        %527 = vmatpush1.msra.mxu0 0.0
        %528 = vmatprep.subr.mxu0 0.0
        %529 = vmatpush1.msra.mxu0 0.0
        %530 = vmatprep.subr.mxu0 0.0
        %531 = vmatpush1.msra.mxu0 0.0
        %532 = vmatprep.subr.mxu0 0.0
        %533 = vmatpush1.msra.mxu0 0.0
        %534 = vmatprep.subr.mxu0 0.0
        %535 = vmatpush1.msra.mxu0 0.0
        %536 = vmatprep.subr.mxu0 0.0
        %537 = vmatpush1.msra.mxu0 0.0
        %538 = vmatprep.subr.mxu0 0.0
        %539 = vmatpush1.msra.mxu0 0.0
        %540 = vmatprep.subr.mxu0 0.0
        %541 = vmatpush1.msra.mxu0 0.0
        %542 = vmatprep.subr.mxu0 0.0
        %543 = vmatpush1.msra.mxu0 0.0
        %544 = vmatprep.subr.mxu0 0.0
        %545 = vmatpush1.msra.mxu0 0.0
        %546 = vmatprep.subr.mxu0 0.0
        %547 = vmatpush1.msra.mxu0 0.0
        %548 = vmatprep.subr.mxu0 0.0
        %549 = vmatpush1.msra.mxu0 0.0
        %550 = vmatprep.subr.mxu0 0.0
        %551 = vmatpush1.msra.mxu0 0.0
        %552 = vmatprep.subr.mxu0 0.0
        %553 = vmatpush1.msra.mxu0 0.0
        %554 = vmatprep.subr.mxu0 0.0
        %555 = vmatpush1.msra.mxu0 0.0
        %556 = vmatprep.subr.mxu0 0.0
        %557 = vmatpush1.msra.mxu0 0.0
        %558 = vmatprep.subr.mxu0 0.0
        %559 = vmatpush1.msra.mxu0 0.0
        %560 = vmatprep.subr.mxu0 0.0
        %561 = vmatpush1.msra.mxu0 0.0
        %562 = vmatprep.subr.mxu0 0.0
        %563 = vmatpush1.msra.mxu0 0.0
        %564 = vmatprep.subr.mxu0 0.0
        %565 = vmatpush1.msra.mxu0 0.0
        %566 = vmatprep.subr.mxu0 0.0
        %567 = vmatpush1.msra.mxu0 0.0
        %568 = vmatprep.subr.mxu0 0.0
        %569 = vmatpush1.msra.mxu0 0.0
        %570 = vmatprep.subr.mxu0 0.0
        %571 = vmatpush1.msra.mxu0 0.0
        %572 = vmatprep.subr.mxu0 0.0
        %573 = vmatpush1.msra.mxu0 0.0
        %574 = vmatprep.subr.mxu0 0.0
        %575 = vmatpush1.msra.mxu0 0.0
        %576 = vmatprep.subr.mxu0 0.0
        %577 = vmatpush1.msra.mxu0 0.0
        %578 = vmatprep.subr.mxu0 0.0
        %579 = vmatpush1.msra.mxu0 0.0
        %580 = vmatprep.subr.mxu0 0.0
        %581 = vmatpush1.msra.mxu0 0.0
        %582 = vmatprep.subr.mxu0 0.0
        %583 = vmatpush1.msra.mxu0 0.0
        %584 = vmatprep.subr.mxu0 0.0
        %585 = vmatpush1.msra.mxu0 0.0
        %586 = vmatprep.mubr.f32.mxu0 0.0
        %587 = vmatmul.mubr.f32.gmra.mrb[0].mxu0 %v419
        %v588 = vpop.f32.mrb[0].mxu0
        %v589 = vadd.f32 0.0, %v588
        %v590 = vpop.f32.mrb[0].mxu0
        %591 = vmatprep.mubr.f32.mxu0 0.0
        %592 = vmatmul.mubr.f32.gmra.mrb[0].mxu0 %v422
        %v593 = vpop.f32.mrb[0].mxu0
        %v594 = vadd.f32 0.0, %v593
        %v595 = vpop.f32.mrb[0].mxu0
        %596 = vmatprep.mubr.f32.mxu0 0.0
        %597 = vmatmul.mubr.f32.gmra.mrb[0].mxu0 %v425
        %v598 = vpop.f32.mrb[0].mxu0
        %v599 = vadd.f32 0.0, %v598
        %v600 = vpop.f32.mrb[0].mxu0
        %601 = vmatprep.mubr.f32.mxu0 0.0
        %602 = vmatmul.mubr.f32.gmra.mrb[0].mxu0 %v428
        %v603 = vpop.f32.mrb[0].mxu0
        %v604 = vadd.f32 0.0, %v603
        %v605 = vpop.f32.mrb[0].mxu0
        %606 = vdwg.mxu0
        %v608 = vsel %vm430, %v415, 0
        %610 = vmatprep.subr.mxu0 0.0
        %611 = vmatpush1.msra.mxu0 %v608
        %612 = vmatprep.subr.mxu0 0.0
        %613 = vmatpush1.msra.mxu0 0.0
        %614 = vmatprep.subr.mxu0 0.0
        %615 = vmatpush1.msra.mxu0 0.0
        %616 = vmatprep.subr.mxu0 0.0
        %617 = vmatpush1.msra.mxu0 0.0
        %618 = vmatprep.subr.mxu0 0.0
        %619 = vmatpush1.msra.mxu0 0.0
        %620 = vmatprep.subr.mxu0 0.0
        %621 = vmatpush1.msra.mxu0 0.0
        %622 = vmatprep.subr.mxu0 0.0
        %623 = vmatpush1.msra.mxu0 0.0
        %624 = vmatprep.subr.mxu0 0.0
        %625 = vmatpush1.msra.mxu0 0.0
        %626 = vmatprep.subr.mxu0 0.0
        %627 = vmatpush1.msra.mxu0 0.0
        %628 = vmatprep.subr.mxu0 0.0
        %629 = vmatpush1.msra.mxu0 0.0
        %630 = vmatprep.subr.mxu0 0.0
        %631 = vmatpush1.msra.mxu0 0.0
        %632 = vmatprep.subr.mxu0 0.0
        %633 = vmatpush1.msra.mxu0 0.0
        %634 = vmatprep.subr.mxu0 0.0
        %635 = vmatpush1.msra.mxu0 0.0
        %636 = vmatprep.subr.mxu0 0.0
        %637 = vmatpush1.msra.mxu0 0.0
        %638 = vmatprep.subr.mxu0 0.0
        %639 = vmatpush1.msra.mxu0 0.0
        %640 = vmatprep.subr.mxu0 0.0
        %641 = vmatpush1.msra.mxu0 0.0
        %642 = vmatprep.subr.mxu0 0.0
        %643 = vmatpush1.msra.mxu0 0.0
        %644 = vmatprep.subr.mxu0 0.0
        %645 = vmatpush1.msra.mxu0 0.0
        %646 = vmatprep.subr.mxu0 0.0
        %647 = vmatpush1.msra.mxu0 0.0
        %648 = vmatprep.subr.mxu0 0.0
        %649 = vmatpush1.msra.mxu0 0.0
        %650 = vmatprep.subr.mxu0 0.0
        %651 = vmatpush1.msra.mxu0 0.0
        %652 = vmatprep.subr.mxu0 0.0
        %653 = vmatpush1.msra.mxu0 0.0
        %654 = vmatprep.subr.mxu0 0.0
        %655 = vmatpush1.msra.mxu0 0.0
        %656 = vmatprep.subr.mxu0 0.0
        %657 = vmatpush1.msra.mxu0 0.0
        %658 = vmatprep.subr.mxu0 0.0
        %659 = vmatpush1.msra.mxu0 0.0
        %660 = vmatprep.subr.mxu0 0.0
        %661 = vmatpush1.msra.mxu0 0.0
        %662 = vmatprep.subr.mxu0 0.0
        %663 = vmatpush1.msra.mxu0 0.0
        %664 = vmatprep.subr.mxu0 0.0
        %665 = vmatpush1.msra.mxu0 0.0
        %666 = vmatprep.subr.mxu0 0.0
        %667 = vmatpush1.msra.mxu0 0.0
        %668 = vmatprep.subr.mxu0 0.0
        %669 = vmatpush1.msra.mxu0 0.0
        %670 = vmatprep.subr.mxu0 0.0
        %671 = vmatpush1.msra.mxu0 0.0
        %672 = vmatprep.subr.mxu0 0.0
        %673 = vmatpush1.msra.mxu0 0.0
        %674 = vmatprep.mubr.f32.mxu0 0.0
        %675 = vmatmul.mubr.f32.gmra.mrb[0].mxu0 %v419
        %v676 = vpop.f32.mrb[0].mxu0
        %v677 = vadd.f32 0.0, %v676
        %v678 = vpop.f32.mrb[0].mxu0
        %679 = vmatprep.mubr.f32.mxu0 0.0
        %680 = vmatmul.mubr.f32.gmra.mrb[0].mxu0 %v422
        %v681 = vpop.f32.mrb[0].mxu0
        %v682 = vadd.f32 0.0, %v681
        %v683 = vpop.f32.mrb[0].mxu0
        %684 = vmatprep.mubr.f32.mxu0 0.0
        %685 = vmatmul.mubr.f32.gmra.mrb[0].mxu0 %v425
        %v686 = vpop.f32.mrb[0].mxu0
        %v687 = vadd.f32 0.0, %v686
        %v688 = vpop.f32.mrb[0].mxu0
        %689 = vmatprep.mubr.f32.mxu0 0.0
        %690 = vmatmul.mubr.f32.gmra.mrb[0].mxu0 %v428
        %v691 = vpop.f32.mrb[0].mxu0
        %v692 = vadd.f32 0.0, %v691
        %v693 = vpop.f32.mrb[0].mxu0
        %694 = vdwg.mxu0
        %v696 = vsel %vm430, %v416, 0
        %698 = vmatprep.subr.mxu0 0.0
        %699 = vmatpush1.msra.mxu0 %v696
        %700 = vmatprep.subr.mxu0 0.0
        %701 = vmatpush1.msra.mxu0 0.0
        %702 = vmatprep.subr.mxu0 0.0
        %703 = vmatpush1.msra.mxu0 0.0
        %704 = vmatprep.subr.mxu0 0.0
        %705 = vmatpush1.msra.mxu0 0.0
        %706 = vmatprep.subr.mxu0 0.0
        %707 = vmatpush1.msra.mxu0 0.0
        %708 = vmatprep.subr.mxu0 0.0
        %709 = vmatpush1.msra.mxu0 0.0
        %710 = vmatprep.subr.mxu0 0.0
        %711 = vmatpush1.msra.mxu0 0.0
        %712 = vmatprep.subr.mxu0 0.0
        %713 = vmatpush1.msra.mxu0 0.0
        %714 = vmatprep.subr.mxu0 0.0
        %715 = vmatpush1.msra.mxu0 0.0
        %716 = vmatprep.subr.mxu0 0.0
        %717 = vmatpush1.msra.mxu0 0.0
        %718 = vmatprep.subr.mxu0 0.0
        %719 = vmatpush1.msra.mxu0 0.0
        %720 = vmatprep.subr.mxu0 0.0
        %721 = vmatpush1.msra.mxu0 0.0
        %722 = vmatprep.subr.mxu0 0.0
        %723 = vmatpush1.msra.mxu0 0.0
        %724 = vmatprep.subr.mxu0 0.0
        %725 = vmatpush1.msra.mxu0 0.0
        %726 = vmatprep.subr.mxu0 0.0
        %727 = vmatpush1.msra.mxu0 0.0
        %728 = vmatprep.subr.mxu0 0.0
        %729 = vmatpush1.msra.mxu0 0.0
        %730 = vmatprep.subr.mxu0 0.0
        %731 = vmatpush1.msra.mxu0 0.0
        %732 = vmatprep.subr.mxu0 0.0
        %733 = vmatpush1.msra.mxu0 0.0
        %734 = vmatprep.subr.mxu0 0.0
        %735 = vmatpush1.msra.mxu0 0.0
        %736 = vmatprep.subr.mxu0 0.0
        %737 = vmatpush1.msra.mxu0 0.0
        %738 = vmatprep.subr.mxu0 0.0
        %739 = vmatpush1.msra.mxu0 0.0
        %740 = vmatprep.subr.mxu0 0.0
        %741 = vmatpush1.msra.mxu0 0.0
        %742 = vmatprep.subr.mxu0 0.0
        %743 = vmatpush1.msra.mxu0 0.0
        %744 = vmatprep.subr.mxu0 0.0
        %745 = vmatpush1.msra.mxu0 0.0
        %746 = vmatprep.subr.mxu0 0.0
        %747 = vmatpush1.msra.mxu0 0.0
        %748 = vmatprep.subr.mxu0 0.0
        %749 = vmatpush1.msra.mxu0 0.0
        %750 = vmatprep.subr.mxu0 0.0
        %751 = vmatpush1.msra.mxu0 0.0
        %752 = vmatprep.subr.mxu0 0.0
        %753 = vmatpush1.msra.mxu0 0.0
        %754 = vmatprep.subr.mxu0 0.0
        %755 = vmatpush1.msra.mxu0 0.0
        %756 = vmatprep.subr.mxu0 0.0
        %757 = vmatpush1.msra.mxu0 0.0
        %758 = vmatprep.subr.mxu0 0.0
        %759 = vmatpush1.msra.mxu0 0.0
        %760 = vmatprep.subr.mxu0 0.0
        %761 = vmatpush1.msra.mxu0 0.0
        %762 = vmatprep.mubr.f32.mxu0 0.0
        %763 = vmatmul.mubr.f32.gmra.mrb[0].mxu0 %v419
        %v764 = vpop.f32.mrb[0].mxu0
        %v765 = vadd.f32 0.0, %v764
        %v766 = vpop.f32.mrb[0].mxu0
        %767 = vmatprep.mubr.f32.mxu0 0.0
        %768 = vmatmul.mubr.f32.gmra.mrb[0].mxu0 %v422
        %v769 = vpop.f32.mrb[0].mxu0
        %v770 = vadd.f32 0.0, %v769
        %v771 = vpop.f32.mrb[0].mxu0
        %772 = vmatprep.mubr.f32.mxu0 0.0
        %773 = vmatmul.mubr.f32.gmra.mrb[0].mxu0 %v425
        %v774 = vpop.f32.mrb[0].mxu0
        %v775 = vadd.f32 0.0, %v774
        %v776 = vpop.f32.mrb[0].mxu0
        %777 = vmatprep.mubr.f32.mxu0 0.0
        %778 = vmatmul.mubr.f32.gmra.mrb[0].mxu0 %v428
        %v779 = vpop.f32.mrb[0].mxu0
        %v780 = vadd.f32 0.0, %v779
        %v781 = vpop.f32.mrb[0].mxu0
        %782 = vdwg.mxu0
        %v783 = vld [vmem:[%s329] sm:$0xf]
        %v785 = vrot.slane %v783, 1
        %v786 = vrot.slane %v783, 2
        %v787 = vrot.slane %v783, 3
        %v792 = vadd.f32 %v501, %v783
        %v793 = vadd.f32 %v589, %v785
        %v794 = vadd.f32 %v677, %v786
        %v795 = vadd.f32 %v765, %v787
        %v800 = vrot.slane %v793, 7
        %vm801 = vcmask 1041409
        %v802 = vsel %vm801, %v800, %v792
        %vm803 = vcmask 1045509
        %v804 = vsel %vm803, %v800, %v802
        %v805 = vrot.slane %v794, 6
        %vm806 = vcmask 1042434
        %v807 = vsel %vm806, %v805, %v804
        %vm808 = vcmask 1046534
        %v809 = vsel %vm808, %v805, %v807
        %v810 = vrot.slane %v795, 5
        %vm811 = vcmask 1043459
        %v812 = vsel %vm811, %v810, %v809
        %vm813 = vcmask 1047559
        %v814 = vsel %vm813, %v810, %v812
        %vm816 = vcmask 257024
        %817 = vst.msk [vmem:[#allocation2] sm:$0xf] %vm816, %v814
        %v818 = vld [vmem:[%s329] sm:$0xf]
        %v820 = vrot.slane %v818, 7
        %v821 = vrot.slane %v818, 1
        %v822 = vrot.slane %v818, 2
        %823 = vrot.lane.b32.xlu0 %v820, 96
        %v824 = vpop.permute.xlu0 %823
        %825 = vrot.lane.b32.xlu0 %v818, 96
        %v826 = vpop.permute.xlu0 %825
        %827 = vrot.lane.b32.xlu0 %v821, 96
        %v828 = vpop.permute.xlu0 %827
        %829 = vrot.lane.b32.xlu0 %v822, 96
        %v830 = vpop.permute.xlu0 %829
        %v835 = vadd.f32 %v501, %v824
        %v836 = vadd.f32 %v589, %v826
        %v837 = vadd.f32 %v677, %v828
        %v838 = vadd.f32 %v765, %v830
        %v843 = vrot.slane %v835, 1
        %v844 = vsel %vm801, %v836, %v843
        %v845 = vsel %vm803, %v836, %v844
        %v846 = vrot.slane %v837, 7
        %v847 = vsel %vm806, %v846, %v845
        %v848 = vsel %vm808, %v846, %v847
        %v849 = vrot.slane %v838, 6
        %v850 = vsel %vm811, %v849, %v848
        %v851 = vsel %vm813, %v849, %v850
        %852 = vrot.lane.b32.xlu0 %v851, 32
        %v853 = vpop.permute.xlu0 %852
        %vm855 = vcmask 519424
        %856 = vst.msk [vmem:[#allocation2] sm:$0xf] %vm855, %v853
        %v857 = vld [vmem:[%s329] sm:$0xf]
        %v859 = vrot.slane %v857, 6
        %v860 = vrot.slane %v857, 7
        %v861 = vrot.slane %v857, 1
        %862 = vrot.lane.b32.xlu0 %v859, 64
        %v863 = vpop.permute.xlu0 %862
        %864 = vrot.lane.b32.xlu0 %v860, 64
        %v865 = vpop.permute.xlu0 %864
        %866 = vrot.lane.b32.xlu0 %v857, 64
        %v867 = vpop.permute.xlu0 %866
        %868 = vrot.lane.b32.xlu0 %v861, 64
        %v869 = vpop.permute.xlu0 %868
        %v874 = vadd.f32 %v501, %v863
        %v875 = vadd.f32 %v589, %v865
        %v876 = vadd.f32 %v677, %v867
        %v877 = vadd.f32 %v765, %v869
        %v882 = vrot.slane %v874, 2
        %v883 = vrot.slane %v875, 1
        %v884 = vsel %vm801, %v883, %v882
        %v885 = vsel %vm803, %v883, %v884
        %v886 = vsel %vm806, %v876, %v885
        %v887 = vsel %vm808, %v876, %v886
        %v888 = vrot.slane %v877, 7
        %v889 = vsel %vm811, %v888, %v887
        %v890 = vsel %vm813, %v888, %v889
        %891 = vrot.lane.b32.xlu0 %v890, 64
        %v892 = vpop.permute.xlu0 %891
        %vm894 = vcmask 781824
        %895 = vst.msk [vmem:[#allocation2] sm:$0xf] %vm894, %v892
        %v896 = vld [vmem:[%s329] sm:$0xf]
        %v898 = vrot.slane %v896, 5
        %v899 = vrot.slane %v896, 6
        %v900 = vrot.slane %v896, 7
        %901 = vrot.lane.b32.xlu0 %v898, 32
        %v902 = vpop.permute.xlu0 %901
        %903 = vrot.lane.b32.xlu0 %v899, 32
        %v904 = vpop.permute.xlu0 %903
        %905 = vrot.lane.b32.xlu0 %v900, 32
        %v906 = vpop.permute.xlu0 %905
        %907 = vrot.lane.b32.xlu0 %v896, 32
        %v908 = vpop.permute.xlu0 %907
        %v913 = vadd.f32 %v501, %v902
        %v914 = vadd.f32 %v589, %v904
        %v915 = vadd.f32 %v677, %v906
        %v916 = vadd.f32 %v765, %v908
        %v921 = vrot.slane %v913, 3
        %v922 = vrot.slane %v914, 2
        %v923 = vsel %vm801, %v922, %v921
        %v924 = vsel %vm803, %v922, %v923
        %v925 = vrot.slane %v915, 1
        %v926 = vsel %vm806, %v925, %v924
        %v927 = vsel %vm808, %v925, %v926
        %v928 = vsel %vm811, %v916, %v927
        %v929 = vsel %vm813, %v916, %v928
        %930 = vrot.lane.b32.xlu0 %v929, 96
        %v931 = vpop.permute.xlu0 %930
        %vm933 = vcmask 1044224
        %934 = vst.msk [vmem:[#allocation2] sm:$0xf] %vm933, %v931
        %v935 = vld [vmem:[%s329 + $0x4] sm:$0xf]
        %v937 = vcombine.low %v935, %v935
        %v938 = vrot.slane %v937, 1
        %v939 = vrot.slane %v937, 2
        %v940 = vrot.slane %v937, 3
        %v945 = vadd.f32 %v501, %v937
        %v946 = vadd.f32 %v589, %v938
        %v947 = vadd.f32 %v677, %v939
        %v948 = vadd.f32 %v765, %v940
        %v953 = vcombine.high %v945, %v945
        %v954 = vcombine.high %v946, %v946
        %v955 = vcombine.high %v947, %v947
        %v956 = vcombine.high %v948, %v948
        %v957 = vrot.slane %v954, 7
        %v958 = vsel %vm801, %v957, %v953
        %v959 = vsel %vm803, %v957, %v958
        %v960 = vrot.slane %v955, 6
        %v961 = vsel %vm806, %v960, %v959
        %v962 = vsel %vm808, %v960, %v961
        %v963 = vrot.slane %v956, 5
        %v964 = vsel %vm811, %v963, %v962
        %v965 = vsel %vm813, %v963, %v964
        %967 = vst.msk [vmem:[#allocation2 + $0x4] sm:$0xf] %vm816, %v965
        %v968 = vld [vmem:[%s329 + $0x4] sm:$0xf]
        %v970 = vrot.slane %v968, 3
        %v971 = vrot.slane %v968, 4
        %v972 = vrot.slane %v968, 5
        %v973 = vrot.slane %v968, 6
        %974 = vrot.lane.b32.xlu0 %v970, 96
        %v975 = vpop.permute.xlu0 %974
        %976 = vrot.lane.b32.xlu0 %v971, 96
        %v977 = vpop.permute.xlu0 %976
        %978 = vrot.lane.b32.xlu0 %v972, 96
        %v979 = vpop.permute.xlu0 %978
        %980 = vrot.lane.b32.xlu0 %v973, 96
        %v981 = vpop.permute.xlu0 %980
        %v986 = vadd.f32 %v501, %v975
        %v987 = vadd.f32 %v589, %v977
        %v988 = vadd.f32 %v677, %v979
        %v989 = vadd.f32 %v765, %v981
        %v994 = vcombine.high %v986, %v986
        %v995 = vcombine.high %v987, %v987
        %v996 = vcombine.high %v988, %v988
        %v997 = vcombine.high %v989, %v989
        %v998 = vrot.slane %v994, 1
        %v999 = vsel %vm801, %v995, %v998
        %v1000 = vsel %vm803, %v995, %v999
        %v1001 = vrot.slane %v996, 7
        %v1002 = vsel %vm806, %v1001, %v1000
        %v1003 = vsel %vm808, %v1001, %v1002
        %v1004 = vrot.slane %v997, 6
        %v1005 = vsel %vm811, %v1004, %v1003
        %v1006 = vsel %vm813, %v1004, %v1005
        %1007 = vrot.lane.b32.xlu0 %v1006, 32
        %v1008 = vpop.permute.xlu0 %1007
        %1010 = vst.msk [vmem:[#allocation2 + $0x4] sm:$0xf] %vm855, %v1008
        %v1011 = vld [vmem:[%s329 + $0x4] sm:$0xf]
        %v1013 = vrot.slane %v1011, 2
        %v1014 = vrot.slane %v1011, 3
        %v1015 = vrot.slane %v1011, 4
        %v1016 = vrot.slane %v1011, 5
        %1017 = vrot.lane.b32.xlu0 %v1013, 64
        %v1018 = vpop.permute.xlu0 %1017
        %1019 = vrot.lane.b32.xlu0 %v1014, 64
        %v1020 = vpop.permute.xlu0 %1019
        %1021 = vrot.lane.b32.xlu0 %v1015, 64
        %v1022 = vpop.permute.xlu0 %1021
        %1023 = vrot.lane.b32.xlu0 %v1016, 64
        %v1024 = vpop.permute.xlu0 %1023
        %v1029 = vadd.f32 %v501, %v1018
        %v1030 = vadd.f32 %v589, %v1020
        %v1031 = vadd.f32 %v677, %v1022
        %v1032 = vadd.f32 %v765, %v1024
        %v1037 = vcombine.high %v1029, %v1029
        %v1038 = vcombine.high %v1030, %v1030
        %v1039 = vcombine.high %v1031, %v1031
        %v1040 = vcombine.high %v1032, %v1032
        %v1041 = vrot.slane %v1037, 2
        %v1042 = vrot.slane %v1038, 1
        %v1043 = vsel %vm801, %v1042, %v1041
        %v1044 = vsel %vm803, %v1042, %v1043
        %v1045 = vsel %vm806, %v1039, %v1044
        %v1046 = vsel %vm808, %v1039, %v1045
        %v1047 = vrot.slane %v1040, 7
        %v1048 = vsel %vm811, %v1047, %v1046
        %v1049 = vsel %vm813, %v1047, %v1048
        %1050 = vrot.lane.b32.xlu0 %v1049, 64
        %v1051 = vpop.permute.xlu0 %1050
        %1053 = vst.msk [vmem:[#allocation2 + $0x4] sm:$0xf] %vm894, %v1051
        %v1054 = vld [vmem:[%s329 + $0x4] sm:$0xf]
        %v1056 = vrot.slane %v1054, 1
        %v1057 = vrot.slane %v1054, 2
        %v1058 = vrot.slane %v1054, 3
        %v1059 = vrot.slane %v1054, 4
        %1060 = vrot.lane.b32.xlu0 %v1056, 32
        %v1061 = vpop.permute.xlu0 %1060
        %1062 = vrot.lane.b32.xlu0 %v1057, 32
        %v1063 = vpop.permute.xlu0 %1062
        %1064 = vrot.lane.b32.xlu0 %v1058, 32
        %v1065 = vpop.permute.xlu0 %1064
        %1066 = vrot.lane.b32.xlu0 %v1059, 32
        %v1067 = vpop.permute.xlu0 %1066
        %v1072 = vadd.f32 %v501, %v1061
        %v1073 = vadd.f32 %v589, %v1063
        %v1074 = vadd.f32 %v677, %v1065
        %v1075 = vadd.f32 %v765, %v1067
        %v1080 = vcombine.high %v1072, %v1072
        %v1081 = vcombine.high %v1073, %v1073
        %v1082 = vcombine.high %v1074, %v1074
        %v1083 = vcombine.high %v1075, %v1075
        %v1084 = vrot.slane %v1080, 3
        %v1085 = vrot.slane %v1081, 2
        %v1086 = vsel %vm801, %v1085, %v1084
        %v1087 = vsel %vm803, %v1085, %v1086
        %v1088 = vrot.slane %v1082, 1
        %v1089 = vsel %vm806, %v1088, %v1087
        %v1090 = vsel %vm808, %v1088, %v1089
        %v1091 = vsel %vm811, %v1083, %v1090
        %v1092 = vsel %vm813, %v1083, %v1091
        %1093 = vrot.lane.b32.xlu0 %v1092, 96
        %v1094 = vpop.permute.xlu0 %1093
        %1096 = vst.msk [vmem:[#allocation2 + $0x4] sm:$0xf] %vm933, %v1094
        %v1097 = vld [vmem:[%s329 + $0x8] sm:$0xf]
        %v1099 = vrot.slane %v1097, 1
        %v1100 = vrot.slane %v1097, 2
        %v1101 = vrot.slane %v1097, 3
        %v1106 = vadd.f32 %v506, %v1097
        %v1107 = vadd.f32 %v594, %v1099
        %v1108 = vadd.f32 %v682, %v1100
        %v1109 = vadd.f32 %v770, %v1101
        %v1114 = vrot.slane %v1107, 7
        %v1115 = vsel %vm801, %v1114, %v1106
        %v1116 = vsel %vm803, %v1114, %v1115
        %v1117 = vrot.slane %v1108, 6
        %v1118 = vsel %vm806, %v1117, %v1116
        %v1119 = vsel %vm808, %v1117, %v1118
        %v1120 = vrot.slane %v1109, 5
        %v1121 = vsel %vm811, %v1120, %v1119
        %v1122 = vsel %vm813, %v1120, %v1121
        %1124 = vst.msk [vmem:[#allocation2 + $0x8] sm:$0xf] %vm816, %v1122
        %v1125 = vld [vmem:[%s329 + $0x8] sm:$0xf]
        %v1127 = vrot.slane %v1125, 7
        %v1128 = vrot.slane %v1125, 1
        %v1129 = vrot.slane %v1125, 2
        %1130 = vrot.lane.b32.xlu0 %v1127, 96
        %v1131 = vpop.permute.xlu0 %1130
        %1132 = vrot.lane.b32.xlu0 %v1125, 96
        %v1133 = vpop.permute.xlu0 %1132
        %1134 = vrot.lane.b32.xlu0 %v1128, 96
        %v1135 = vpop.permute.xlu0 %1134
        %1136 = vrot.lane.b32.xlu0 %v1129, 96
        %v1137 = vpop.permute.xlu0 %1136
        %v1142 = vadd.f32 %v506, %v1131
        %v1143 = vadd.f32 %v594, %v1133
        %v1144 = vadd.f32 %v682, %v1135
        %v1145 = vadd.f32 %v770, %v1137
        %v1150 = vrot.slane %v1142, 1
        %v1151 = vsel %vm801, %v1143, %v1150
        %v1152 = vsel %vm803, %v1143, %v1151
        %v1153 = vrot.slane %v1144, 7
        %v1154 = vsel %vm806, %v1153, %v1152
        %v1155 = vsel %vm808, %v1153, %v1154
        %v1156 = vrot.slane %v1145, 6
        %v1157 = vsel %vm811, %v1156, %v1155
        %v1158 = vsel %vm813, %v1156, %v1157
        %1159 = vrot.lane.b32.xlu0 %v1158, 32
        %v1160 = vpop.permute.xlu0 %1159
        %1162 = vst.msk [vmem:[#allocation2 + $0x8] sm:$0xf] %vm855, %v1160
        %v1163 = vld [vmem:[%s329 + $0x8] sm:$0xf]
        %v1165 = vrot.slane %v1163, 6
        %v1166 = vrot.slane %v1163, 7
        %v1167 = vrot.slane %v1163, 1
        %1168 = vrot.lane.b32.xlu0 %v1165, 64
        %v1169 = vpop.permute.xlu0 %1168
        %1170 = vrot.lane.b32.xlu0 %v1166, 64
        %v1171 = vpop.permute.xlu0 %1170
        %1172 = vrot.lane.b32.xlu0 %v1163, 64
        %v1173 = vpop.permute.xlu0 %1172
        %1174 = vrot.lane.b32.xlu0 %v1167, 64
        %v1175 = vpop.permute.xlu0 %1174
        %v1180 = vadd.f32 %v506, %v1169
        %v1181 = vadd.f32 %v594, %v1171
        %v1182 = vadd.f32 %v682, %v1173
        %v1183 = vadd.f32 %v770, %v1175
        %v1188 = vrot.slane %v1180, 2
        %v1189 = vrot.slane %v1181, 1
        %v1190 = vsel %vm801, %v1189, %v1188
        %v1191 = vsel %vm803, %v1189, %v1190
        %v1192 = vsel %vm806, %v1182, %v1191
        %v1193 = vsel %vm808, %v1182, %v1192
        %v1194 = vrot.slane %v1183, 7
        %v1195 = vsel %vm811, %v1194, %v1193
        %v1196 = vsel %vm813, %v1194, %v1195
        %1197 = vrot.lane.b32.xlu0 %v1196, 64
        %v1198 = vpop.permute.xlu0 %1197
        %1200 = vst.msk [vmem:[#allocation2 + $0x8] sm:$0xf] %vm894, %v1198
        %v1201 = vld [vmem:[%s329 + $0x8] sm:$0xf]
        %v1203 = vrot.slane %v1201, 5
        %v1204 = vrot.slane %v1201, 6
        %v1205 = vrot.slane %v1201, 7
        %1206 = vrot.lane.b32.xlu0 %v1203, 32
        %v1207 = vpop.permute.xlu0 %1206
        %1208 = vrot.lane.b32.xlu0 %v1204, 32
        %v1209 = vpop.permute.xlu0 %1208
        %1210 = vrot.lane.b32.xlu0 %v1205, 32
        %v1211 = vpop.permute.xlu0 %1210
        %1212 = vrot.lane.b32.xlu0 %v1201, 32
        %v1213 = vpop.permute.xlu0 %1212
        %v1218 = vadd.f32 %v506, %v1207
        %v1219 = vadd.f32 %v594, %v1209
        %v1220 = vadd.f32 %v682, %v1211
        %v1221 = vadd.f32 %v770, %v1213
        %v1226 = vrot.slane %v1218, 3
        %v1227 = vrot.slane %v1219, 2
        %v1228 = vsel %vm801, %v1227, %v1226
        %v1229 = vsel %vm803, %v1227, %v1228
        %v1230 = vrot.slane %v1220, 1
        %v1231 = vsel %vm806, %v1230, %v1229
        %v1232 = vsel %vm808, %v1230, %v1231
        %v1233 = vsel %vm811, %v1221, %v1232
        %v1234 = vsel %vm813, %v1221, %v1233
        %1235 = vrot.lane.b32.xlu0 %v1234, 96
        %v1236 = vpop.permute.xlu0 %1235
        %1238 = vst.msk [vmem:[#allocation2 + $0x8] sm:$0xf] %vm933, %v1236
        %v1239 = vld [vmem:[%s329 + $0xc] sm:$0xf]
        %v1241 = vcombine.low %v1239, %v1239
        %v1242 = vrot.slane %v1241, 1
        %v1243 = vrot.slane %v1241, 2
        %v1244 = vrot.slane %v1241, 3
        %v1249 = vadd.f32 %v506, %v1241
        %v1250 = vadd.f32 %v594, %v1242
        %v1251 = vadd.f32 %v682, %v1243
        %v1252 = vadd.f32 %v770, %v1244
        %v1257 = vcombine.high %v1249, %v1249
        %v1258 = vcombine.high %v1250, %v1250
        %v1259 = vcombine.high %v1251, %v1251
        %v1260 = vcombine.high %v1252, %v1252
        %v1261 = vrot.slane %v1258, 7
        %v1262 = vsel %vm801, %v1261, %v1257
        %v1263 = vsel %vm803, %v1261, %v1262
        %v1264 = vrot.slane %v1259, 6
        %v1265 = vsel %vm806, %v1264, %v1263
        %v1266 = vsel %vm808, %v1264, %v1265
        %v1267 = vrot.slane %v1260, 5
        %v1268 = vsel %vm811, %v1267, %v1266
        %v1269 = vsel %vm813, %v1267, %v1268
        %1271 = vst.msk [vmem:[#allocation2 + $0xc] sm:$0xf] %vm816, %v1269
        %v1272 = vld [vmem:[%s329 + $0xc] sm:$0xf]
        %v1274 = vrot.slane %v1272, 3
        %v1275 = vrot.slane %v1272, 4
        %v1276 = vrot.slane %v1272, 5
        %v1277 = vrot.slane %v1272, 6
        %1278 = vrot.lane.b32.xlu0 %v1274, 96
        %v1279 = vpop.permute.xlu0 %1278
        %1280 = vrot.lane.b32.xlu0 %v1275, 96
        %v1281 = vpop.permute.xlu0 %1280
        %1282 = vrot.lane.b32.xlu0 %v1276, 96
        %v1283 = vpop.permute.xlu0 %1282
        %1284 = vrot.lane.b32.xlu0 %v1277, 96
        %v1285 = vpop.permute.xlu0 %1284
        %v1290 = vadd.f32 %v506, %v1279
        %v1291 = vadd.f32 %v594, %v1281
        %v1292 = vadd.f32 %v682, %v1283
        %v1293 = vadd.f32 %v770, %v1285
        %v1298 = vcombine.high %v1290, %v1290
        %v1299 = vcombine.high %v1291, %v1291
        %v1300 = vcombine.high %v1292, %v1292
        %v1301 = vcombine.high %v1293, %v1293
        %v1302 = vrot.slane %v1298, 1
        %v1303 = vsel %vm801, %v1299, %v1302
        %v1304 = vsel %vm803, %v1299, %v1303
        %v1305 = vrot.slane %v1300, 7
        %v1306 = vsel %vm806, %v1305, %v1304
        %v1307 = vsel %vm808, %v1305, %v1306
        %v1308 = vrot.slane %v1301, 6
        %v1309 = vsel %vm811, %v1308, %v1307
        %v1310 = vsel %vm813, %v1308, %v1309
        %1311 = vrot.lane.b32.xlu0 %v1310, 32
        %v1312 = vpop.permute.xlu0 %1311
        %1314 = vst.msk [vmem:[#allocation2 + $0xc] sm:$0xf] %vm855, %v1312
        %v1315 = vld [vmem:[%s329 + $0xc] sm:$0xf]
        %v1317 = vrot.slane %v1315, 2
        %v1318 = vrot.slane %v1315, 3
        %v1319 = vrot.slane %v1315, 4
        %v1320 = vrot.slane %v1315, 5
        %1321 = vrot.lane.b32.xlu0 %v1317, 64
        %v1322 = vpop.permute.xlu0 %1321
        %1323 = vrot.lane.b32.xlu0 %v1318, 64
        %v1324 = vpop.permute.xlu0 %1323
        %1325 = vrot.lane.b32.xlu0 %v1319, 64
        %v1326 = vpop.permute.xlu0 %1325
        %1327 = vrot.lane.b32.xlu0 %v1320, 64
        %v1328 = vpop.permute.xlu0 %1327
        %v1333 = vadd.f32 %v506, %v1322
        %v1334 = vadd.f32 %v594, %v1324
        %v1335 = vadd.f32 %v682, %v1326
        %v1336 = vadd.f32 %v770, %v1328
        %v1341 = vcombine.high %v1333, %v1333
        %v1342 = vcombine.high %v1334, %v1334
        %v1343 = vcombine.high %v1335, %v1335
        %v1344 = vcombine.high %v1336, %v1336
        %v1345 = vrot.slane %v1341, 2
        %v1346 = vrot.slane %v1342, 1
        %v1347 = vsel %vm801, %v1346, %v1345
        %v1348 = vsel %vm803, %v1346, %v1347
        %v1349 = vsel %vm806, %v1343, %v1348
        %v1350 = vsel %vm808, %v1343, %v1349
        %v1351 = vrot.slane %v1344, 7
        %v1352 = vsel %vm811, %v1351, %v1350
        %v1353 = vsel %vm813, %v1351, %v1352
        %1354 = vrot.lane.b32.xlu0 %v1353, 64
        %v1355 = vpop.permute.xlu0 %1354
        %1357 = vst.msk [vmem:[#allocation2 + $0xc] sm:$0xf] %vm894, %v1355
        %v1358 = vld [vmem:[%s329 + $0xc] sm:$0xf]
        %v1360 = vrot.slane %v1358, 1
        %v1361 = vrot.slane %v1358, 2
        %v1362 = vrot.slane %v1358, 3
        %v1363 = vrot.slane %v1358, 4
        %1364 = vrot.lane.b32.xlu0 %v1360, 32
        %v1365 = vpop.permute.xlu0 %1364
        %1366 = vrot.lane.b32.xlu0 %v1361, 32
        %v1367 = vpop.permute.xlu0 %1366
        %1368 = vrot.lane.b32.xlu0 %v1362, 32
        %v1369 = vpop.permute.xlu0 %1368
        %1370 = vrot.lane.b32.xlu0 %v1363, 32
        %v1371 = vpop.permute.xlu0 %1370
        %v1376 = vadd.f32 %v506, %v1365
        %v1377 = vadd.f32 %v594, %v1367
        %v1378 = vadd.f32 %v682, %v1369
        %v1379 = vadd.f32 %v770, %v1371
        %v1384 = vcombine.high %v1376, %v1376
        %v1385 = vcombine.high %v1377, %v1377
        %v1386 = vcombine.high %v1378, %v1378
        %v1387 = vcombine.high %v1379, %v1379
        %v1388 = vrot.slane %v1384, 3
        %v1389 = vrot.slane %v1385, 2
        %v1390 = vsel %vm801, %v1389, %v1388
        %v1391 = vsel %vm803, %v1389, %v1390
        %v1392 = vrot.slane %v1386, 1
        %v1393 = vsel %vm806, %v1392, %v1391
        %v1394 = vsel %vm808, %v1392, %v1393
        %v1395 = vsel %vm811, %v1387, %v1394
        %v1396 = vsel %vm813, %v1387, %v1395
        %1397 = vrot.lane.b32.xlu0 %v1396, 96
        %v1398 = vpop.permute.xlu0 %1397
        %1400 = vst.msk [vmem:[#allocation2 + $0xc] sm:$0xf] %vm933, %v1398
        %v1401 = vld [vmem:[%s329 + $0x10] sm:$0xf]
        %v1403 = vrot.slane %v1401, 1
        %v1404 = vrot.slane %v1401, 2
        %v1405 = vrot.slane %v1401, 3
        %v1410 = vadd.f32 %v511, %v1401
        %v1411 = vadd.f32 %v599, %v1403
        %v1412 = vadd.f32 %v687, %v1404
        %v1413 = vadd.f32 %v775, %v1405
        %v1418 = vrot.slane %v1411, 7
        %v1419 = vsel %vm801, %v1418, %v1410
        %v1420 = vsel %vm803, %v1418, %v1419
        %v1421 = vrot.slane %v1412, 6
        %v1422 = vsel %vm806, %v1421, %v1420
        %v1423 = vsel %vm808, %v1421, %v1422
        %v1424 = vrot.slane %v1413, 5
        %v1425 = vsel %vm811, %v1424, %v1423
        %v1426 = vsel %vm813, %v1424, %v1425
        %1428 = vst.msk [vmem:[#allocation2 + $0x10] sm:$0xf] %vm816, %v1426
        %v1429 = vld [vmem:[%s329 + $0x10] sm:$0xf]
        %v1431 = vrot.slane %v1429, 7
        %v1432 = vrot.slane %v1429, 1
        %v1433 = vrot.slane %v1429, 2
        %1434 = vrot.lane.b32.xlu0 %v1431, 96
        %v1435 = vpop.permute.xlu0 %1434
        %1436 = vrot.lane.b32.xlu0 %v1429, 96
        %v1437 = vpop.permute.xlu0 %1436
        %1438 = vrot.lane.b32.xlu0 %v1432, 96
        %v1439 = vpop.permute.xlu0 %1438
        %1440 = vrot.lane.b32.xlu0 %v1433, 96
        %v1441 = vpop.permute.xlu0 %1440
        %v1446 = vadd.f32 %v511, %v1435
        %v1447 = vadd.f32 %v599, %v1437
        %v1448 = vadd.f32 %v687, %v1439
        %v1449 = vadd.f32 %v775, %v1441
        %v1454 = vrot.slane %v1446, 1
        %v1455 = vsel %vm801, %v1447, %v1454
        %v1456 = vsel %vm803, %v1447, %v1455
        %v1457 = vrot.slane %v1448, 7
        %v1458 = vsel %vm806, %v1457, %v1456
        %v1459 = vsel %vm808, %v1457, %v1458
        %v1460 = vrot.slane %v1449, 6
        %v1461 = vsel %vm811, %v1460, %v1459
        %v1462 = vsel %vm813, %v1460, %v1461
        %1463 = vrot.lane.b32.xlu0 %v1462, 32
        %v1464 = vpop.permute.xlu0 %1463
        %1466 = vst.msk [vmem:[#allocation2 + $0x10] sm:$0xf] %vm855, %v1464
        %v1467 = vld [vmem:[%s329 + $0x10] sm:$0xf]
        %v1469 = vrot.slane %v1467, 6
        %v1470 = vrot.slane %v1467, 7
        %v1471 = vrot.slane %v1467, 1
        %1472 = vrot.lane.b32.xlu0 %v1469, 64
        %v1473 = vpop.permute.xlu0 %1472
        %1474 = vrot.lane.b32.xlu0 %v1470, 64
        %v1475 = vpop.permute.xlu0 %1474
        %1476 = vrot.lane.b32.xlu0 %v1467, 64
        %v1477 = vpop.permute.xlu0 %1476
        %1478 = vrot.lane.b32.xlu0 %v1471, 64
        %v1479 = vpop.permute.xlu0 %1478
        %v1484 = vadd.f32 %v511, %v1473
        %v1485 = vadd.f32 %v599, %v1475
        %v1486 = vadd.f32 %v687, %v1477
        %v1487 = vadd.f32 %v775, %v1479
        %v1492 = vrot.slane %v1484, 2
        %v1493 = vrot.slane %v1485, 1
        %v1494 = vsel %vm801, %v1493, %v1492
        %v1495 = vsel %vm803, %v1493, %v1494
        %v1496 = vsel %vm806, %v1486, %v1495
        %v1497 = vsel %vm808, %v1486, %v1496
        %v1498 = vrot.slane %v1487, 7
        %v1499 = vsel %vm811, %v1498, %v1497
        %v1500 = vsel %vm813, %v1498, %v1499
        %1501 = vrot.lane.b32.xlu0 %v1500, 64
        %v1502 = vpop.permute.xlu0 %1501
        %1504 = vst.msk [vmem:[#allocation2 + $0x10] sm:$0xf] %vm894, %v1502
        %v1505 = vld [vmem:[%s329 + $0x10] sm:$0xf]
        %v1507 = vrot.slane %v1505, 5
        %v1508 = vrot.slane %v1505, 6
        %v1509 = vrot.slane %v1505, 7
        %1510 = vrot.lane.b32.xlu0 %v1507, 32
        %v1511 = vpop.permute.xlu0 %1510
        %1512 = vrot.lane.b32.xlu0 %v1508, 32
        %v1513 = vpop.permute.xlu0 %1512
        %1514 = vrot.lane.b32.xlu0 %v1509, 32
        %v1515 = vpop.permute.xlu0 %1514
        %1516 = vrot.lane.b32.xlu0 %v1505, 32
        %v1517 = vpop.permute.xlu0 %1516
        %v1522 = vadd.f32 %v511, %v1511
        %v1523 = vadd.f32 %v599, %v1513
        %v1524 = vadd.f32 %v687, %v1515
        %v1525 = vadd.f32 %v775, %v1517
        %v1530 = vrot.slane %v1522, 3
        %v1531 = vrot.slane %v1523, 2
        %v1532 = vsel %vm801, %v1531, %v1530
        %v1533 = vsel %vm803, %v1531, %v1532
        %v1534 = vrot.slane %v1524, 1
        %v1535 = vsel %vm806, %v1534, %v1533
        %v1536 = vsel %vm808, %v1534, %v1535
        %v1537 = vsel %vm811, %v1525, %v1536
        %v1538 = vsel %vm813, %v1525, %v1537
        %1539 = vrot.lane.b32.xlu0 %v1538, 96
        %v1540 = vpop.permute.xlu0 %1539
        %1542 = vst.msk [vmem:[#allocation2 + $0x10] sm:$0xf] %vm933, %v1540
        %v1543 = vld [vmem:[%s329 + $0x14] sm:$0xf]
        %v1545 = vcombine.low %v1543, %v1543
        %v1546 = vrot.slane %v1545, 1
        %v1547 = vrot.slane %v1545, 2
        %v1548 = vrot.slane %v1545, 3
        %v1553 = vadd.f32 %v511, %v1545
        %v1554 = vadd.f32 %v599, %v1546
        %v1555 = vadd.f32 %v687, %v1547
        %v1556 = vadd.f32 %v775, %v1548
        %v1561 = vcombine.high %v1553, %v1553
        %v1562 = vcombine.high %v1554, %v1554
        %v1563 = vcombine.high %v1555, %v1555
        %v1564 = vcombine.high %v1556, %v1556
        %v1565 = vrot.slane %v1562, 7
        %v1566 = vsel %vm801, %v1565, %v1561
        %v1567 = vsel %vm803, %v1565, %v1566
        %v1568 = vrot.slane %v1563, 6
        %v1569 = vsel %vm806, %v1568, %v1567
        %v1570 = vsel %vm808, %v1568, %v1569
        %v1571 = vrot.slane %v1564, 5
        %v1572 = vsel %vm811, %v1571, %v1570
        %v1573 = vsel %vm813, %v1571, %v1572
        %1575 = vst.msk [vmem:[#allocation2 + $0x14] sm:$0xf] %vm816, %v1573
        %v1576 = vld [vmem:[%s329 + $0x14] sm:$0xf]
        %v1578 = vrot.slane %v1576, 3
        %v1579 = vrot.slane %v1576, 4
        %v1580 = vrot.slane %v1576, 5
        %v1581 = vrot.slane %v1576, 6
        %1582 = vrot.lane.b32.xlu0 %v1578, 96
        %v1583 = vpop.permute.xlu0 %1582
        %1584 = vrot.lane.b32.xlu0 %v1579, 96
        %v1585 = vpop.permute.xlu0 %1584
        %1586 = vrot.lane.b32.xlu0 %v1580, 96
        %v1587 = vpop.permute.xlu0 %1586
        %1588 = vrot.lane.b32.xlu0 %v1581, 96
        %v1589 = vpop.permute.xlu0 %1588
        %v1594 = vadd.f32 %v511, %v1583
        %v1595 = vadd.f32 %v599, %v1585
        %v1596 = vadd.f32 %v687, %v1587
        %v1597 = vadd.f32 %v775, %v1589
        %v1602 = vcombine.high %v1594, %v1594
        %v1603 = vcombine.high %v1595, %v1595
        %v1604 = vcombine.high %v1596, %v1596
        %v1605 = vcombine.high %v1597, %v1597
        %v1606 = vrot.slane %v1602, 1
        %v1607 = vsel %vm801, %v1603, %v1606
        %v1608 = vsel %vm803, %v1603, %v1607
        %v1609 = vrot.slane %v1604, 7
        %v1610 = vsel %vm806, %v1609, %v1608
        %v1611 = vsel %vm808, %v1609, %v1610
        %v1612 = vrot.slane %v1605, 6
        %v1613 = vsel %vm811, %v1612, %v1611
        %v1614 = vsel %vm813, %v1612, %v1613
        %1615 = vrot.lane.b32.xlu0 %v1614, 32
        %v1616 = vpop.permute.xlu0 %1615
        %1618 = vst.msk [vmem:[#allocation2 + $0x14] sm:$0xf] %vm855, %v1616
        %v1619 = vld [vmem:[%s329 + $0x14] sm:$0xf]
        %v1621 = vrot.slane %v1619, 2
        %v1622 = vrot.slane %v1619, 3
        %v1623 = vrot.slane %v1619, 4
        %v1624 = vrot.slane %v1619, 5
        %1625 = vrot.lane.b32.xlu0 %v1621, 64
        %v1626 = vpop.permute.xlu0 %1625
        %1627 = vrot.lane.b32.xlu0 %v1622, 64
        %v1628 = vpop.permute.xlu0 %1627
        %1629 = vrot.lane.b32.xlu0 %v1623, 64
        %v1630 = vpop.permute.xlu0 %1629
        %1631 = vrot.lane.b32.xlu0 %v1624, 64
        %v1632 = vpop.permute.xlu0 %1631
        %v1637 = vadd.f32 %v511, %v1626
        %v1638 = vadd.f32 %v599, %v1628
        %v1639 = vadd.f32 %v687, %v1630
        %v1640 = vadd.f32 %v775, %v1632
        %v1645 = vcombine.high %v1637, %v1637
        %v1646 = vcombine.high %v1638, %v1638
        %v1647 = vcombine.high %v1639, %v1639
        %v1648 = vcombine.high %v1640, %v1640
        %v1649 = vrot.slane %v1645, 2
        %v1650 = vrot.slane %v1646, 1
        %v1651 = vsel %vm801, %v1650, %v1649
        %v1652 = vsel %vm803, %v1650, %v1651
        %v1653 = vsel %vm806, %v1647, %v1652
        %v1654 = vsel %vm808, %v1647, %v1653
        %v1655 = vrot.slane %v1648, 7
        %v1656 = vsel %vm811, %v1655, %v1654
        %v1657 = vsel %vm813, %v1655, %v1656
        %1658 = vrot.lane.b32.xlu0 %v1657, 64
        %v1659 = vpop.permute.xlu0 %1658
        %1661 = vst.msk [vmem:[#allocation2 + $0x14] sm:$0xf] %vm894, %v1659
        %v1662 = vld [vmem:[%s329 + $0x14] sm:$0xf]
        %v1664 = vrot.slane %v1662, 1
        %v1665 = vrot.slane %v1662, 2
        %v1666 = vrot.slane %v1662, 3
        %v1667 = vrot.slane %v1662, 4
        %1668 = vrot.lane.b32.xlu0 %v1664, 32
        %v1669 = vpop.permute.xlu0 %1668
        %1670 = vrot.lane.b32.xlu0 %v1665, 32
        %v1671 = vpop.permute.xlu0 %1670
        %1672 = vrot.lane.b32.xlu0 %v1666, 32
        %v1673 = vpop.permute.xlu0 %1672
        %1674 = vrot.lane.b32.xlu0 %v1667, 32
        %v1675 = vpop.permute.xlu0 %1674
        %v1680 = vadd.f32 %v511, %v1669
        %v1681 = vadd.f32 %v599, %v1671
        %v1682 = vadd.f32 %v687, %v1673
        %v1683 = vadd.f32 %v775, %v1675
        %v1688 = vcombine.high %v1680, %v1680
        %v1689 = vcombine.high %v1681, %v1681
        %v1690 = vcombine.high %v1682, %v1682
        %v1691 = vcombine.high %v1683, %v1683
        %v1692 = vrot.slane %v1688, 3
        %v1693 = vrot.slane %v1689, 2
        %v1694 = vsel %vm801, %v1693, %v1692
        %v1695 = vsel %vm803, %v1693, %v1694
        %v1696 = vrot.slane %v1690, 1
        %v1697 = vsel %vm806, %v1696, %v1695
        %v1698 = vsel %vm808, %v1696, %v1697
        %v1699 = vsel %vm811, %v1691, %v1698
        %v1700 = vsel %vm813, %v1691, %v1699
        %1701 = vrot.lane.b32.xlu0 %v1700, 96
        %v1702 = vpop.permute.xlu0 %1701
        %1704 = vst.msk [vmem:[#allocation2 + $0x14] sm:$0xf] %vm933, %v1702
        %v1705 = vld [vmem:[%s329 + $0x18] sm:$0xf]
        %v1707 = vrot.slane %v1705, 1
        %v1708 = vrot.slane %v1705, 2
        %v1709 = vrot.slane %v1705, 3
        %v1714 = vadd.f32 %v516, %v1705
        %v1715 = vadd.f32 %v604, %v1707
        %v1716 = vadd.f32 %v692, %v1708
        %v1717 = vadd.f32 %v780, %v1709
        %v1722 = vrot.slane %v1715, 7
        %v1723 = vsel %vm801, %v1722, %v1714
        %v1724 = vsel %vm803, %v1722, %v1723
        %v1725 = vrot.slane %v1716, 6
        %v1726 = vsel %vm806, %v1725, %v1724
        %v1727 = vsel %vm808, %v1725, %v1726
        %v1728 = vrot.slane %v1717, 5
        %v1729 = vsel %vm811, %v1728, %v1727
        %v1730 = vsel %vm813, %v1728, %v1729
        %1732 = vst.msk [vmem:[#allocation2 + $0x18] sm:$0xf] %vm816, %v1730
        %v1733 = vld [vmem:[%s329 + $0x18] sm:$0xf]
        %v1735 = vrot.slane %v1733, 7
        %v1736 = vrot.slane %v1733, 1
        %v1737 = vrot.slane %v1733, 2
        %1738 = vrot.lane.b32.xlu0 %v1735, 96
        %v1739 = vpop.permute.xlu0 %1738
        %1740 = vrot.lane.b32.xlu0 %v1733, 96
        %v1741 = vpop.permute.xlu0 %1740
        %1742 = vrot.lane.b32.xlu0 %v1736, 96
        %v1743 = vpop.permute.xlu0 %1742
        %1744 = vrot.lane.b32.xlu0 %v1737, 96
        %v1745 = vpop.permute.xlu0 %1744
        %v1750 = vadd.f32 %v516, %v1739
        %v1751 = vadd.f32 %v604, %v1741
        %v1752 = vadd.f32 %v692, %v1743
        %v1753 = vadd.f32 %v780, %v1745
        %v1758 = vrot.slane %v1750, 1
        %v1759 = vsel %vm801, %v1751, %v1758
        %v1760 = vsel %vm803, %v1751, %v1759
        %v1761 = vrot.slane %v1752, 7
        %v1762 = vsel %vm806, %v1761, %v1760
        %v1763 = vsel %vm808, %v1761, %v1762
        %v1764 = vrot.slane %v1753, 6
        %v1765 = vsel %vm811, %v1764, %v1763
        %v1766 = vsel %vm813, %v1764, %v1765
        %1767 = vrot.lane.b32.xlu0 %v1766, 32
        %v1768 = vpop.permute.xlu0 %1767
        %1770 = vst.msk [vmem:[#allocation2 + $0x18] sm:$0xf] %vm855, %v1768
        %v1771 = vld [vmem:[%s329 + $0x18] sm:$0xf]
        %v1773 = vrot.slane %v1771, 6
        %v1774 = vrot.slane %v1771, 7
        %v1775 = vrot.slane %v1771, 1
        %1776 = vrot.lane.b32.xlu0 %v1773, 64
        %v1777 = vpop.permute.xlu0 %1776
        %1778 = vrot.lane.b32.xlu0 %v1774, 64
        %v1779 = vpop.permute.xlu0 %1778
        %1780 = vrot.lane.b32.xlu0 %v1771, 64
        %v1781 = vpop.permute.xlu0 %1780
        %1782 = vrot.lane.b32.xlu0 %v1775, 64
        %v1783 = vpop.permute.xlu0 %1782
        %v1788 = vadd.f32 %v516, %v1777
        %v1789 = vadd.f32 %v604, %v1779
        %v1790 = vadd.f32 %v692, %v1781
        %v1791 = vadd.f32 %v780, %v1783
        %v1796 = vrot.slane %v1788, 2
        %v1797 = vrot.slane %v1789, 1
        %v1798 = vsel %vm801, %v1797, %v1796
        %v1799 = vsel %vm803, %v1797, %v1798
        %v1800 = vsel %vm806, %v1790, %v1799
        %v1801 = vsel %vm808, %v1790, %v1800
        %v1802 = vrot.slane %v1791, 7
        %v1803 = vsel %vm811, %v1802, %v1801
        %v1804 = vsel %vm813, %v1802, %v1803
        %1805 = vrot.lane.b32.xlu0 %v1804, 64
        %v1806 = vpop.permute.xlu0 %1805
        %1808 = vst.msk [vmem:[#allocation2 + $0x18] sm:$0xf] %vm894, %v1806
        %v1809 = vld [vmem:[%s329 + $0x18] sm:$0xf]
        %v1811 = vrot.slane %v1809, 5
        %v1812 = vrot.slane %v1809, 6
        %v1813 = vrot.slane %v1809, 7
        %1814 = vrot.lane.b32.xlu0 %v1811, 32
        %v1815 = vpop.permute.xlu0 %1814
        %1816 = vrot.lane.b32.xlu0 %v1812, 32
        %v1817 = vpop.permute.xlu0 %1816
        %1818 = vrot.lane.b32.xlu0 %v1813, 32
        %v1819 = vpop.permute.xlu0 %1818
        %1820 = vrot.lane.b32.xlu0 %v1809, 32
        %v1821 = vpop.permute.xlu0 %1820
        %v1826 = vadd.f32 %v516, %v1815
        %v1827 = vadd.f32 %v604, %v1817
        %v1828 = vadd.f32 %v692, %v1819
        %v1829 = vadd.f32 %v780, %v1821
        %v1834 = vrot.slane %v1826, 3
        %v1835 = vrot.slane %v1827, 2
        %v1836 = vsel %vm801, %v1835, %v1834
        %v1837 = vsel %vm803, %v1835, %v1836
        %v1838 = vrot.slane %v1828, 1
        %v1839 = vsel %vm806, %v1838, %v1837
        %v1840 = vsel %vm808, %v1838, %v1839
        %v1841 = vsel %vm811, %v1829, %v1840
        %v1842 = vsel %vm813, %v1829, %v1841
        %1843 = vrot.lane.b32.xlu0 %v1842, 96
        %v1844 = vpop.permute.xlu0 %1843
        %1846 = vst.msk [vmem:[#allocation2 + $0x18] sm:$0xf] %vm933, %v1844
        %v1847 = vld [vmem:[%s329 + $0x1c] sm:$0xf]
        %v1849 = vcombine.low %v1847, %v1847
        %v1850 = vrot.slane %v1849, 1
        %v1851 = vrot.slane %v1849, 2
        %v1852 = vrot.slane %v1849, 3
        %v1857 = vadd.f32 %v516, %v1849
        %v1858 = vadd.f32 %v604, %v1850
        %v1859 = vadd.f32 %v692, %v1851
        %v1860 = vadd.f32 %v780, %v1852
        %v1865 = vcombine.high %v1857, %v1857
        %v1866 = vcombine.high %v1858, %v1858
        %v1867 = vcombine.high %v1859, %v1859
        %v1868 = vcombine.high %v1860, %v1860
        %v1869 = vrot.slane %v1866, 7
        %v1870 = vsel %vm801, %v1869, %v1865
        %v1871 = vsel %vm803, %v1869, %v1870
        %v1872 = vrot.slane %v1867, 6
        %v1873 = vsel %vm806, %v1872, %v1871
        %v1874 = vsel %vm808, %v1872, %v1873
        %v1875 = vrot.slane %v1868, 5
        %v1876 = vsel %vm811, %v1875, %v1874
        %v1877 = vsel %vm813, %v1875, %v1876
        %1879 = vst.msk [vmem:[#allocation2 + $0x1c] sm:$0xf] %vm816, %v1877
        %v1880 = vld [vmem:[%s329 + $0x1c] sm:$0xf]
        %v1882 = vrot.slane %v1880, 3
        %v1883 = vrot.slane %v1880, 4
        %v1884 = vrot.slane %v1880, 5
        %v1885 = vrot.slane %v1880, 6
        %1886 = vrot.lane.b32.xlu0 %v1882, 96
        %v1887 = vpop.permute.xlu0 %1886
        %1888 = vrot.lane.b32.xlu0 %v1883, 96
        %v1889 = vpop.permute.xlu0 %1888
        %1890 = vrot.lane.b32.xlu0 %v1884, 96
        %v1891 = vpop.permute.xlu0 %1890
        %1892 = vrot.lane.b32.xlu0 %v1885, 96
        %v1893 = vpop.permute.xlu0 %1892
        %v1898 = vadd.f32 %v516, %v1887
        %v1899 = vadd.f32 %v604, %v1889
        %v1900 = vadd.f32 %v692, %v1891
        %v1901 = vadd.f32 %v780, %v1893
        %v1906 = vcombine.high %v1898, %v1898
        %v1907 = vcombine.high %v1899, %v1899
        %v1908 = vcombine.high %v1900, %v1900
        %v1909 = vcombine.high %v1901, %v1901
        %v1910 = vrot.slane %v1906, 1
        %v1911 = vsel %vm801, %v1907, %v1910
        %v1912 = vsel %vm803, %v1907, %v1911
        %v1913 = vrot.slane %v1908, 7
        %v1914 = vsel %vm806, %v1913, %v1912
        %v1915 = vsel %vm808, %v1913, %v1914
        %v1916 = vrot.slane %v1909, 6
        %v1917 = vsel %vm811, %v1916, %v1915
        %v1918 = vsel %vm813, %v1916, %v1917
        %1919 = vrot.lane.b32.xlu0 %v1918, 32
        %v1920 = vpop.permute.xlu0 %1919
        %1922 = vst.msk [vmem:[#allocation2 + $0x1c] sm:$0xf] %vm855, %v1920
        %v1923 = vld [vmem:[%s329 + $0x1c] sm:$0xf]
        %v1925 = vrot.slane %v1923, 2
        %v1926 = vrot.slane %v1923, 3
        %v1927 = vrot.slane %v1923, 4
        %v1928 = vrot.slane %v1923, 5
        %1929 = vrot.lane.b32.xlu0 %v1925, 64
        %v1930 = vpop.permute.xlu0 %1929
        %1931 = vrot.lane.b32.xlu0 %v1926, 64
        %v1932 = vpop.permute.xlu0 %1931
        %1933 = vrot.lane.b32.xlu0 %v1927, 64
        %v1934 = vpop.permute.xlu0 %1933
        %1935 = vrot.lane.b32.xlu0 %v1928, 64
        %v1936 = vpop.permute.xlu0 %1935
        %v1941 = vadd.f32 %v516, %v1930
        %v1942 = vadd.f32 %v604, %v1932
        %v1943 = vadd.f32 %v692, %v1934
        %v1944 = vadd.f32 %v780, %v1936
        %v1949 = vcombine.high %v1941, %v1941
        %v1950 = vcombine.high %v1942, %v1942
        %v1951 = vcombine.high %v1943, %v1943
        %v1952 = vcombine.high %v1944, %v1944
        %v1953 = vrot.slane %v1949, 2
        %v1954 = vrot.slane %v1950, 1
        %v1955 = vsel %vm801, %v1954, %v1953
        %v1956 = vsel %vm803, %v1954, %v1955
        %v1957 = vsel %vm806, %v1951, %v1956
        %v1958 = vsel %vm808, %v1951, %v1957
        %v1959 = vrot.slane %v1952, 7
        %v1960 = vsel %vm811, %v1959, %v1958
        %v1961 = vsel %vm813, %v1959, %v1960
        %1962 = vrot.lane.b32.xlu0 %v1961, 64
        %v1963 = vpop.permute.xlu0 %1962
        %1965 = vst.msk [vmem:[#allocation2 + $0x1c] sm:$0xf] %vm894, %v1963
        %v1966 = vld [vmem:[%s329 + $0x1c] sm:$0xf]
        %v1968 = vrot.slane %v1966, 1
        %v1969 = vrot.slane %v1966, 2
        %v1970 = vrot.slane %v1966, 3
        %v1971 = vrot.slane %v1966, 4
        %1972 = vrot.lane.b32.xlu0 %v1968, 32
        %v1973 = vpop.permute.xlu0 %1972
        %1974 = vrot.lane.b32.xlu0 %v1969, 32
        %v1975 = vpop.permute.xlu0 %1974
        %1976 = vrot.lane.b32.xlu0 %v1970, 32
        %v1977 = vpop.permute.xlu0 %1976
        %1978 = vrot.lane.b32.xlu0 %v1971, 32
        %v1979 = vpop.permute.xlu0 %1978
        %v1984 = vadd.f32 %v516, %v1973
        %v1985 = vadd.f32 %v604, %v1975
        %v1986 = vadd.f32 %v692, %v1977
        %v1987 = vadd.f32 %v780, %v1979
        %v1992 = vcombine.high %v1984, %v1984
        %v1993 = vcombine.high %v1985, %v1985
        %v1994 = vcombine.high %v1986, %v1986
        %v1995 = vcombine.high %v1987, %v1987
        %v1996 = vrot.slane %v1992, 3
        %v1997 = vrot.slane %v1993, 2
        %v1998 = vsel %vm801, %v1997, %v1996
        %v1999 = vsel %vm803, %v1997, %v1998
        %v2000 = vrot.slane %v1994, 1
        %v2001 = vsel %vm806, %v2000, %v1999
        %v2002 = vsel %vm808, %v2000, %v2001
        %v2003 = vsel %vm811, %v1995, %v2002
        %v2004 = vsel %vm813, %v1995, %v2003
        %2005 = vrot.lane.b32.xlu0 %v2004, 96
        %v2006 = vpop.permute.xlu0 %2005
        %2008 = vst.msk [vmem:[#allocation2 + $0x1c] sm:$0xf] %vm933, %v2006
        %v2009 = vld [vmem:[#allocation3] sm:$0xff]
        %v2010 = vld [vmem:[#allocation3 + $0x8] sm:$0xff]
        %v2011 = vld [vmem:[#allocation2] sm:$0xff]
        %v2012 = vld [vmem:[#allocation2 + $0x8] sm:$0xff]
        %v2013 = vld [vmem:[#allocation2 + $0x10] sm:$0xff]
        %v2014 = vld [vmem:[#allocation2 + $0x18] sm:$0xff]
        %v2015 = vld [vmem:[#allocation5] sm:$0xff]
        %v2016 = vld [vmem:[#allocation5 + $0x8] sm:$0xff]
        %2018 = vset.pattern.permute.xlu0 0
        %2019 = vperm.xlu0 %2018, %v2015
        %v2020 = vpop.permute.xlu0 %2019
        %2023 = vset.pattern.permute.xlu0 0
        %2024 = vperm.xlu0 %2023, %v2016
        %v2025 = vpop.permute.xlu0 %2024
        %v2031 = vcombine.high %v2011, %v2011
        %v2032 = vcombine.high %v2012, %v2012
        %v2033 = vcombine.high %v2013, %v2013
        %v2034 = vcombine.high %v2014, %v2014
        %vm2035 = vcmask 31744
        %v2037 = vsel %vm2035, %v2009, 0
        %v2040 = vsel %vm2035, %v2010, 0
        %vm2042 = vcmask 1043456
        %v2043 = vsel %vm2042, %v2011, 0
        %v2045 = vsel %vm2042, %v2031, 0
        %v2047 = vsel %vm2042, %v2012, 0
        %v2049 = vsel %vm2042, %v2032, 0
        %v2051 = vsel %vm2042, %v2013, 0
        %v2053 = vsel %vm2042, %v2033, 0
        %v2055 = vsel %vm2042, %v2014, 0
        %v2057 = vsel %vm2042, %v2034, 0
        %2059 = vmatprep.subr.mxu0 %v2045
        %2060 = vmatpush1.msra.mxu0 %v2043
        %2061 = vmatprep.subr.mxu0 0.0
        %2062 = vmatpush1.msra.mxu0 0.0
        %2063 = vmatprep.subr.mxu0 0.0
        %2064 = vmatpush1.msra.mxu0 0.0
        %2065 = vmatprep.subr.mxu0 0.0
        %2066 = vmatpush1.msra.mxu0 0.0
        %2067 = vmatprep.subr.mxu0 0.0
        %2068 = vmatpush1.msra.mxu0 0.0
        %2069 = vmatprep.subr.mxu0 0.0
        %2070 = vmatpush1.msra.mxu0 0.0
        %2071 = vmatprep.subr.mxu0 0.0
        %2072 = vmatpush1.msra.mxu0 0.0
        %2073 = vmatprep.subr.mxu0 0.0
        %2074 = vmatpush1.msra.mxu0 0.0
        %2075 = vmatprep.subr.mxu0 0.0
        %2076 = vmatpush1.msra.mxu0 0.0
        %2077 = vmatprep.subr.mxu0 0.0
        %2078 = vmatpush1.msra.mxu0 0.0
        %2079 = vmatprep.subr.mxu0 0.0
        %2080 = vmatpush1.msra.mxu0 0.0
        %2081 = vmatprep.subr.mxu0 0.0
        %2082 = vmatpush1.msra.mxu0 0.0
        %2083 = vmatprep.subr.mxu0 0.0
        %2084 = vmatpush1.msra.mxu0 0.0
        %2085 = vmatprep.subr.mxu0 0.0
        %2086 = vmatpush1.msra.mxu0 0.0
        %2087 = vmatprep.subr.mxu0 0.0
        %2088 = vmatpush1.msra.mxu0 0.0
        %2089 = vmatprep.subr.mxu0 0.0
        %2090 = vmatpush1.msra.mxu0 0.0
        %2091 = vmatprep.subr.mxu0 0.0
        %2092 = vmatpush1.msra.mxu0 0.0
        %2093 = vmatprep.subr.mxu0 0.0
        %2094 = vmatpush1.msra.mxu0 0.0
        %2095 = vmatprep.subr.mxu0 0.0
        %2096 = vmatpush1.msra.mxu0 0.0
        %2097 = vmatprep.subr.mxu0 0.0
        %2098 = vmatpush1.msra.mxu0 0.0
        %2099 = vmatprep.subr.mxu0 0.0
        %2100 = vmatpush1.msra.mxu0 0.0
        %2101 = vmatprep.subr.mxu0 0.0
        %2102 = vmatpush1.msra.mxu0 0.0
        %2103 = vmatprep.subr.mxu0 0.0
        %2104 = vmatpush1.msra.mxu0 0.0
        %2105 = vmatprep.subr.mxu0 0.0
        %2106 = vmatpush1.msra.mxu0 0.0
        %2107 = vmatprep.subr.mxu0 0.0
        %2108 = vmatpush1.msra.mxu0 0.0
        %2109 = vmatprep.subr.mxu0 0.0
        %2110 = vmatpush1.msra.mxu0 0.0
        %2111 = vmatprep.subr.mxu0 0.0
        %2112 = vmatpush1.msra.mxu0 0.0
        %2113 = vmatprep.subr.mxu0 0.0
        %2114 = vmatpush1.msra.mxu0 0.0
        %2115 = vmatprep.subr.mxu0 0.0
        %2116 = vmatpush1.msra.mxu0 0.0
        %2117 = vmatprep.subr.mxu0 0.0
        %2118 = vmatpush1.msra.mxu0 0.0
        %2119 = vmatprep.subr.mxu0 0.0
        %2120 = vmatpush1.msra.mxu0 0.0
        %2121 = vmatprep.subr.mxu0 0.0
        %2122 = vmatpush1.msra.mxu0 0.0
        %2123 = vmatprep.mubr.f32.mxu0 0.0
        %2124 = vmatmul.mubr.f32.gmra.mrb[0].mxu0 %v2037
        %v2125 = vpop.f32.mrb[0].mxu0
        %v2126 = vadd.f32 %v2020, %v2125
        %v2127 = vpop.f32.mrb[0].mxu0
        %v2128 = vadd.f32 %v2020, %v2127
        %2129 = vmatprep.mubr.f32.mxu0 0.0
        %2130 = vmatmul.mubr.f32.gmra.mrb[0].mxu0 %v2040
        %v2131 = vpop.f32.mrb[0].mxu0
        %v2132 = vadd.f32 %v2025, %v2131
        %v2133 = vpop.f32.mrb[0].mxu0
        %v2134 = vadd.f32 %v2025, %v2133
        %2135 = vdwg.mxu0
        %2136 = vmatprep.subr.mxu0 %v2049
        %2137 = vmatpush1.msra.mxu0 %v2047
        %2138 = vmatprep.subr.mxu0 0.0
        %2139 = vmatpush1.msra.mxu0 0.0
        %2140 = vmatprep.subr.mxu0 0.0
        %2141 = vmatpush1.msra.mxu0 0.0
        %2142 = vmatprep.subr.mxu0 0.0
        %2143 = vmatpush1.msra.mxu0 0.0
        %2144 = vmatprep.subr.mxu0 0.0
        %2145 = vmatpush1.msra.mxu0 0.0
        %2146 = vmatprep.subr.mxu0 0.0
        %2147 = vmatpush1.msra.mxu0 0.0
        %2148 = vmatprep.subr.mxu0 0.0
        %2149 = vmatpush1.msra.mxu0 0.0
        %2150 = vmatprep.subr.mxu0 0.0
        %2151 = vmatpush1.msra.mxu0 0.0
        %2152 = vmatprep.subr.mxu0 0.0
        %2153 = vmatpush1.msra.mxu0 0.0
        %2154 = vmatprep.subr.mxu0 0.0
        %2155 = vmatpush1.msra.mxu0 0.0
        %2156 = vmatprep.subr.mxu0 0.0
        %2157 = vmatpush1.msra.mxu0 0.0
        %2158 = vmatprep.subr.mxu0 0.0
        %2159 = vmatpush1.msra.mxu0 0.0
        %2160 = vmatprep.subr.mxu0 0.0
        %2161 = vmatpush1.msra.mxu0 0.0
        %2162 = vmatprep.subr.mxu0 0.0
        %2163 = vmatpush1.msra.mxu0 0.0
        %2164 = vmatprep.subr.mxu0 0.0
        %2165 = vmatpush1.msra.mxu0 0.0
        %2166 = vmatprep.subr.mxu0 0.0
        %2167 = vmatpush1.msra.mxu0 0.0
        %2168 = vmatprep.subr.mxu0 0.0
        %2169 = vmatpush1.msra.mxu0 0.0
        %2170 = vmatprep.subr.mxu0 0.0
        %2171 = vmatpush1.msra.mxu0 0.0
        %2172 = vmatprep.subr.mxu0 0.0
        %2173 = vmatpush1.msra.mxu0 0.0
        %2174 = vmatprep.subr.mxu0 0.0
        %2175 = vmatpush1.msra.mxu0 0.0
        %2176 = vmatprep.subr.mxu0 0.0
        %2177 = vmatpush1.msra.mxu0 0.0
        %2178 = vmatprep.subr.mxu0 0.0
        %2179 = vmatpush1.msra.mxu0 0.0
        %2180 = vmatprep.subr.mxu0 0.0
        %2181 = vmatpush1.msra.mxu0 0.0
        %2182 = vmatprep.subr.mxu0 0.0
        %2183 = vmatpush1.msra.mxu0 0.0
        %2184 = vmatprep.subr.mxu0 0.0
        %2185 = vmatpush1.msra.mxu0 0.0
        %2186 = vmatprep.subr.mxu0 0.0
        %2187 = vmatpush1.msra.mxu0 0.0
        %2188 = vmatprep.subr.mxu0 0.0
        %2189 = vmatpush1.msra.mxu0 0.0
        %2190 = vmatprep.subr.mxu0 0.0
        %2191 = vmatpush1.msra.mxu0 0.0
        %2192 = vmatprep.subr.mxu0 0.0
        %2193 = vmatpush1.msra.mxu0 0.0
        %2194 = vmatprep.subr.mxu0 0.0
        %2195 = vmatpush1.msra.mxu0 0.0
        %2196 = vmatprep.subr.mxu0 0.0
        %2197 = vmatpush1.msra.mxu0 0.0
        %2198 = vmatprep.subr.mxu0 0.0
        %2199 = vmatpush1.msra.mxu0 0.0
        %2200 = vmatprep.mubr.f32.mxu0 0.0
        %2201 = vmatmul.mubr.f32.gmra.mrb[0].mxu0 %v2037
        %v2202 = vpop.f32.mrb[0].mxu0
        %v2203 = vadd.f32 %v2020, %v2202
        %v2204 = vpop.f32.mrb[0].mxu0
        %v2205 = vadd.f32 %v2020, %v2204
        %2206 = vmatprep.mubr.f32.mxu0 0.0
        %2207 = vmatmul.mubr.f32.gmra.mrb[0].mxu0 %v2040
        %v2208 = vpop.f32.mrb[0].mxu0
        %v2209 = vadd.f32 %v2025, %v2208
        %v2210 = vpop.f32.mrb[0].mxu0
        %v2211 = vadd.f32 %v2025, %v2210
        %2212 = vdwg.mxu0
        %2213 = vmatprep.subr.mxu0 %v2053
        %2214 = vmatpush1.msra.mxu0 %v2051
        %2215 = vmatprep.subr.mxu0 0.0
        %2216 = vmatpush1.msra.mxu0 0.0
        %2217 = vmatprep.subr.mxu0 0.0
        %2218 = vmatpush1.msra.mxu0 0.0
        %2219 = vmatprep.subr.mxu0 0.0
        %2220 = vmatpush1.msra.mxu0 0.0
        %2221 = vmatprep.subr.mxu0 0.0
        %2222 = vmatpush1.msra.mxu0 0.0
        %2223 = vmatprep.subr.mxu0 0.0
        %2224 = vmatpush1.msra.mxu0 0.0
        %2225 = vmatprep.subr.mxu0 0.0
        %2226 = vmatpush1.msra.mxu0 0.0
        %2227 = vmatprep.subr.mxu0 0.0
        %2228 = vmatpush1.msra.mxu0 0.0
        %2229 = vmatprep.subr.mxu0 0.0
        %2230 = vmatpush1.msra.mxu0 0.0
        %2231 = vmatprep.subr.mxu0 0.0
        %2232 = vmatpush1.msra.mxu0 0.0
        %2233 = vmatprep.subr.mxu0 0.0
        %2234 = vmatpush1.msra.mxu0 0.0
        %2235 = vmatprep.subr.mxu0 0.0
        %2236 = vmatpush1.msra.mxu0 0.0
        %2237 = vmatprep.subr.mxu0 0.0
        %2238 = vmatpush1.msra.mxu0 0.0
        %2239 = vmatprep.subr.mxu0 0.0
        %2240 = vmatpush1.msra.mxu0 0.0
        %2241 = vmatprep.subr.mxu0 0.0
        %2242 = vmatpush1.msra.mxu0 0.0
        %2243 = vmatprep.subr.mxu0 0.0
        %2244 = vmatpush1.msra.mxu0 0.0
        %2245 = vmatprep.subr.mxu0 0.0
        %2246 = vmatpush1.msra.mxu0 0.0
        %2247 = vmatprep.subr.mxu0 0.0
        %2248 = vmatpush1.msra.mxu0 0.0
        %2249 = vmatprep.subr.mxu0 0.0
        %2250 = vmatpush1.msra.mxu0 0.0
        %2251 = vmatprep.subr.mxu0 0.0
        %2252 = vmatpush1.msra.mxu0 0.0
        %2253 = vmatprep.subr.mxu0 0.0
        %2254 = vmatpush1.msra.mxu0 0.0
        %2255 = vmatprep.subr.mxu0 0.0
        %2256 = vmatpush1.msra.mxu0 0.0
        %2257 = vmatprep.subr.mxu0 0.0
        %2258 = vmatpush1.msra.mxu0 0.0
        %2259 = vmatprep.subr.mxu0 0.0
        %2260 = vmatpush1.msra.mxu0 0.0
        %2261 = vmatprep.subr.mxu0 0.0
        %2262 = vmatpush1.msra.mxu0 0.0
        %2263 = vmatprep.subr.mxu0 0.0
        %2264 = vmatpush1.msra.mxu0 0.0
        %2265 = vmatprep.subr.mxu0 0.0
        %2266 = vmatpush1.msra.mxu0 0.0
        %2267 = vmatprep.subr.mxu0 0.0
        %2268 = vmatpush1.msra.mxu0 0.0
        %2269 = vmatprep.subr.mxu0 0.0
        %2270 = vmatpush1.msra.mxu0 0.0
        %2271 = vmatprep.subr.mxu0 0.0
        %2272 = vmatpush1.msra.mxu0 0.0
        %2273 = vmatprep.subr.mxu0 0.0
        %2274 = vmatpush1.msra.mxu0 0.0
        %2275 = vmatprep.subr.mxu0 0.0
        %2276 = vmatpush1.msra.mxu0 0.0
        %2277 = vmatprep.mubr.f32.mxu0 0.0
        %2278 = vmatmul.mubr.f32.gmra.mrb[0].mxu0 %v2037
        %v2279 = vpop.f32.mrb[0].mxu0
        %v2280 = vadd.f32 %v2020, %v2279
        %v2281 = vpop.f32.mrb[0].mxu0
        %v2282 = vadd.f32 %v2020, %v2281
        %2283 = vmatprep.mubr.f32.mxu0 0.0
        %2284 = vmatmul.mubr.f32.gmra.mrb[0].mxu0 %v2040
        %v2285 = vpop.f32.mrb[0].mxu0
        %v2286 = vadd.f32 %v2025, %v2285
        %v2287 = vpop.f32.mrb[0].mxu0
        %v2288 = vadd.f32 %v2025, %v2287
        %2289 = vdwg.mxu0
        %2290 = vmatprep.subr.mxu0 %v2057
        %2291 = vmatpush1.msra.mxu0 %v2055
        %2292 = vmatprep.subr.mxu0 0.0
        %2293 = vmatpush1.msra.mxu0 0.0
        %2294 = vmatprep.subr.mxu0 0.0
        %2295 = vmatpush1.msra.mxu0 0.0
        %2296 = vmatprep.subr.mxu0 0.0
        %2297 = vmatpush1.msra.mxu0 0.0
        %2298 = vmatprep.subr.mxu0 0.0
        %2299 = vmatpush1.msra.mxu0 0.0
        %2300 = vmatprep.subr.mxu0 0.0
        %2301 = vmatpush1.msra.mxu0 0.0
        %2302 = vmatprep.subr.mxu0 0.0
        %2303 = vmatpush1.msra.mxu0 0.0
        %2304 = vmatprep.subr.mxu0 0.0
        %2305 = vmatpush1.msra.mxu0 0.0
        %2306 = vmatprep.subr.mxu0 0.0
        %2307 = vmatpush1.msra.mxu0 0.0
        %2308 = vmatprep.subr.mxu0 0.0
        %2309 = vmatpush1.msra.mxu0 0.0
        %2310 = vmatprep.subr.mxu0 0.0
        %2311 = vmatpush1.msra.mxu0 0.0
        %2312 = vmatprep.subr.mxu0 0.0
        %2313 = vmatpush1.msra.mxu0 0.0
        %2314 = vmatprep.subr.mxu0 0.0
        %2315 = vmatpush1.msra.mxu0 0.0
        %2316 = vmatprep.subr.mxu0 0.0
        %2317 = vmatpush1.msra.mxu0 0.0
        %2318 = vmatprep.subr.mxu0 0.0
        %2319 = vmatpush1.msra.mxu0 0.0
        %2320 = vmatprep.subr.mxu0 0.0
        %2321 = vmatpush1.msra.mxu0 0.0
        %2322 = vmatprep.subr.mxu0 0.0
        %2323 = vmatpush1.msra.mxu0 0.0
        %2324 = vmatprep.subr.mxu0 0.0
        %2325 = vmatpush1.msra.mxu0 0.0
        %2326 = vmatprep.subr.mxu0 0.0
        %2327 = vmatpush1.msra.mxu0 0.0
        %2328 = vmatprep.subr.mxu0 0.0
        %2329 = vmatpush1.msra.mxu0 0.0
        %2330 = vmatprep.subr.mxu0 0.0
        %2331 = vmatpush1.msra.mxu0 0.0
        %2332 = vmatprep.subr.mxu0 0.0
        %2333 = vmatpush1.msra.mxu0 0.0
        %2334 = vmatprep.subr.mxu0 0.0
        %2335 = vmatpush1.msra.mxu0 0.0
        %2336 = vmatprep.subr.mxu0 0.0
        %2337 = vmatpush1.msra.mxu0 0.0
        %2338 = vmatprep.subr.mxu0 0.0
        %2339 = vmatpush1.msra.mxu0 0.0
        %2340 = vmatprep.subr.mxu0 0.0
        %2341 = vmatpush1.msra.mxu0 0.0
        %2342 = vmatprep.subr.mxu0 0.0
        %2343 = vmatpush1.msra.mxu0 0.0
        %2344 = vmatprep.subr.mxu0 0.0
        %2345 = vmatpush1.msra.mxu0 0.0
        %2346 = vmatprep.subr.mxu0 0.0
        %2347 = vmatpush1.msra.mxu0 0.0
        %2348 = vmatprep.subr.mxu0 0.0
        %2349 = vmatpush1.msra.mxu0 0.0
        %2350 = vmatprep.subr.mxu0 0.0
        %2351 = vmatpush1.msra.mxu0 0.0
        %2352 = vmatprep.subr.mxu0 0.0
        %2353 = vmatpush1.msra.mxu0 0.0
        %2354 = vmatprep.mubr.f32.mxu0 0.0
        %2355 = vmatmul.mubr.f32.gmra.mrb[0].mxu0 %v2037
        %v2356 = vpop.f32.mrb[0].mxu0
        %v2357 = vadd.f32 %v2020, %v2356
        %v2358 = vpop.f32.mrb[0].mxu0
        %v2359 = vadd.f32 %v2020, %v2358
        %2360 = vmatprep.mubr.f32.mxu0 0.0
        %2361 = vmatmul.mubr.f32.gmra.mrb[0].mxu0 %v2040
        %v2362 = vpop.f32.mrb[0].mxu0
        %v2363 = vadd.f32 %v2025, %v2362
        %v2364 = vpop.f32.mrb[0].mxu0
        %v2365 = vadd.f32 %v2025, %v2364
        %2366 = vdwg.mxu0
        %v2367 = vld [vmem:[%s338] sm:$0xff]
        %v2368 = vld [vmem:[%s338 + $0x8] sm:$0xff]
        %v2369 = vld [vmem:[%s338 + $0x10] sm:$0xff]
        %v2370 = vld [vmem:[%s338 + $0x18] sm:$0xff]
        %v2371 = vld [vmem:[%s338 + $0x20] sm:$0xff]
        %v2372 = vld [vmem:[%s338 + $0x28] sm:$0xff]
        %v2373 = vld [vmem:[%s338 + $0x30] sm:$0xff]
        %v2374 = vld [vmem:[%s338 + $0x38] sm:$0xff]
        %v2375 = vld [vmem:[%s338 + $0x40] sm:$0xff]
        %v2376 = vld [vmem:[%s338 + $0x48] sm:$0xff]
        %v2377 = vld [vmem:[%s338 + $0x50] sm:$0xff]
        %v2378 = vld [vmem:[%s338 + $0x58] sm:$0xff]
        %v2379 = vld [vmem:[%s338 + $0x60] sm:$0xff]
        %v2380 = vld [vmem:[%s338 + $0x68] sm:$0xff]
        %v2381 = vld [vmem:[%s338 + $0x70] sm:$0xff]
        %v2382 = vld [vmem:[%s338 + $0x78] sm:$0xff]
        %v2383 = vxor.u32 %v2126, 2147483648
        %v2384 = vxor.u32 %v2128, 2147483648
        %v2385 = vxor.u32 %v2203, 2147483648
        %v2386 = vxor.u32 %v2205, 2147483648
        %v2387 = vxor.u32 %v2280, 2147483648
        %v2388 = vxor.u32 %v2282, 2147483648
        %v2389 = vxor.u32 %v2357, 2147483648
        %v2390 = vxor.u32 %v2359, 2147483648
        %v2391 = vxor.u32 %v2132, 2147483648
        %v2392 = vxor.u32 %v2134, 2147483648
        %v2393 = vxor.u32 %v2209, 2147483648
        %v2394 = vxor.u32 %v2211, 2147483648
        %v2395 = vxor.u32 %v2286, 2147483648
        %v2396 = vxor.u32 %v2288, 2147483648
        %v2397 = vxor.u32 %v2363, 2147483648
        %v2398 = vxor.u32 %v2365, 2147483648
        %v2399 = vmul.f32 %v2383, 1.442695
        %v2400 = vpow.pop %v2399
        %v2401 = vmul.f32 %v2384, 1.442695
        %v2402 = vpow.pop %v2401
        %v2403 = vmul.f32 %v2385, 1.442695
        %v2404 = vpow.pop %v2403
        %v2405 = vmul.f32 %v2386, 1.442695
        %v2406 = vpow.pop %v2405
        %v2407 = vmul.f32 %v2387, 1.442695
        %v2408 = vpow.pop %v2407
        %v2409 = vmul.f32 %v2388, 1.442695
        %v2410 = vpow.pop %v2409
        %v2411 = vmul.f32 %v2389, 1.442695
        %v2412 = vpow.pop %v2411
        %v2413 = vmul.f32 %v2390, 1.442695
        %v2414 = vpow.pop %v2413
        %v2415 = vmul.f32 %v2391, 1.442695
        %v2416 = vpow.pop %v2415
        %v2417 = vmul.f32 %v2392, 1.442695
        %v2418 = vpow.pop %v2417
        %v2419 = vmul.f32 %v2393, 1.442695
        %v2420 = vpow.pop %v2419
        %v2421 = vmul.f32 %v2394, 1.442695
        %v2422 = vpow.pop %v2421
        %v2423 = vmul.f32 %v2395, 1.442695
        %v2424 = vpow.pop %v2423
        %v2425 = vmul.f32 %v2396, 1.442695
        %v2426 = vpow.pop %v2425
        %v2427 = vmul.f32 %v2397, 1.442695
        %v2428 = vpow.pop %v2427
        %v2429 = vmul.f32 %v2398, 1.442695
        %v2430 = vpow.pop %v2429
        %v2431 = vadd.f32 %v2400, 1.0
        %v2432 = vadd.f32 %v2402, 1.0
        %v2433 = vadd.f32 %v2404, 1.0
        %v2434 = vadd.f32 %v2406, 1.0
        %v2435 = vadd.f32 %v2408, 1.0
        %v2436 = vadd.f32 %v2410, 1.0
        %v2437 = vadd.f32 %v2412, 1.0
        %v2438 = vadd.f32 %v2414, 1.0
        %v2439 = vadd.f32 %v2416, 1.0
        %v2440 = vadd.f32 %v2418, 1.0
        %v2441 = vadd.f32 %v2420, 1.0
        %v2442 = vadd.f32 %v2422, 1.0
        %v2443 = vadd.f32 %v2424, 1.0
        %v2444 = vadd.f32 %v2426, 1.0
        %v2445 = vadd.f32 %v2428, 1.0
        %v2446 = vadd.f32 %v2430, 1.0
        %v2447 = vrcp.pop %v2431
        %v2448 = vmul.f32 1.0, %v2447
        %v2449 = vrcp.pop %v2432
        %v2450 = vmul.f32 1.0, %v2449
        %v2451 = vrcp.pop %v2433
        %v2452 = vmul.f32 1.0, %v2451
        %v2453 = vrcp.pop %v2434
        %v2454 = vmul.f32 1.0, %v2453
        %v2455 = vrcp.pop %v2435
        %v2456 = vmul.f32 1.0, %v2455
        %v2457 = vrcp.pop %v2436
        %v2458 = vmul.f32 1.0, %v2457
        %v2459 = vrcp.pop %v2437
        %v2460 = vmul.f32 1.0, %v2459
        %v2461 = vrcp.pop %v2438
        %v2462 = vmul.f32 1.0, %v2461
        %v2463 = vrcp.pop %v2439
        %v2464 = vmul.f32 1.0, %v2463
        %v2465 = vrcp.pop %v2440
        %v2466 = vmul.f32 1.0, %v2465
        %v2467 = vrcp.pop %v2441
        %v2468 = vmul.f32 1.0, %v2467
        %v2469 = vrcp.pop %v2442
        %v2470 = vmul.f32 1.0, %v2469
        %v2471 = vrcp.pop %v2443
        %v2472 = vmul.f32 1.0, %v2471
        %v2473 = vrcp.pop %v2444
        %v2474 = vmul.f32 1.0, %v2473
        %v2475 = vrcp.pop %v2445
        %v2476 = vmul.f32 1.0, %v2475
        %v2477 = vrcp.pop %v2446
        %v2478 = vmul.f32 1.0, %v2477
        %v2479 = vmul.f32 %v2367, %v2448
        %v2480 = vmul.f32 %v2368, %v2450
        %v2481 = vmul.f32 %v2369, %v2452
        %v2482 = vmul.f32 %v2370, %v2454
        %v2483 = vmul.f32 %v2371, %v2456
        %v2484 = vmul.f32 %v2372, %v2458
        %v2485 = vmul.f32 %v2373, %v2460
        %v2486 = vmul.f32 %v2374, %v2462
        %v2487 = vmul.f32 %v2375, %v2464
        %v2488 = vmul.f32 %v2376, %v2466
        %v2489 = vmul.f32 %v2377, %v2468
        %v2490 = vmul.f32 %v2378, %v2470
        %v2491 = vmul.f32 %v2379, %v2472
        %v2492 = vmul.f32 %v2380, %v2474
        %v2493 = vmul.f32 %v2381, %v2476
        %v2494 = vmul.f32 %v2382, %v2478
        %2495 = vst [vmem:[%s407] sm:$0xff] %v2479
        %2496 = vst [vmem:[%s407 + $0x8] sm:$0xff] %v2480
        %2497 = vst [vmem:[%s407 + $0x10] sm:$0xff] %v2481
        %2498 = vst [vmem:[%s407 + $0x18] sm:$0xff] %v2482
        %2499 = vst [vmem:[%s407 + $0x20] sm:$0xff] %v2483
        %2500 = vst [vmem:[%s407 + $0x28] sm:$0xff] %v2484
        %2501 = vst [vmem:[%s407 + $0x30] sm:$0xff] %v2485
        %2502 = vst [vmem:[%s407 + $0x38] sm:$0xff] %v2486
        %2503 = vst [vmem:[%s407 + $0x40] sm:$0xff] %v2487
        %2504 = vst [vmem:[%s407 + $0x48] sm:$0xff] %v2488
        %2505 = vst [vmem:[%s407 + $0x50] sm:$0xff] %v2489
        %2506 = vst [vmem:[%s407 + $0x58] sm:$0xff] %v2490
        %2507 = vst [vmem:[%s407 + $0x60] sm:$0xff] %v2491
        %2508 = vst [vmem:[%s407 + $0x68] sm:$0xff] %v2492
        %2509 = vst [vmem:[%s407 + $0x70] sm:$0xff] %v2493
        %2510 = vst [vmem:[%s407 + $0x78] sm:$0xff] %v2494
        %s2511 = smul.u32 8, %s24
        %p2512 = scmp.lt.s32.totalorder %s23, 1
        %s2513 = scalar_select %p2512, %s23, 1
        %p2514 = scmp.lt.s32.totalorder %s2511, 7
        %s2515 = scalar_select %p2514, %s2511, 7
        %s2516 = smul.addr %s2513, 16
        %s2517 = sadd.s32 %s2515, %s2516
        %s2518 = smul.addr %s2517, 8
        %s2519 = scalar_lea.vmem %s6, %s2518
        // Predicated region
        $region61: #{esa_forward.5} parent=43 // pred_check
          %p2520 = pneg %p201
        $region62: #{esa_forward.5} parent=43 // pred_check_branch
          %2522 = sbr.rel (%p2520) target = $region64
        $region63: #{esa_forward.5} parent=43 // pred_region
          %s2523 = smul.u32 8, %s24
        $region64: #{esa_forward.5} parent=43 // pred_fallthru
          _
      $region44: #{esa_forward.5} parent=5 // pred_fallthru
        _
      %p2524 = scmp.le.s32.totalorder 2, %s14
      // Predicated region
      $region65: #{esa_forward.5} parent=5 // pred_check
        %p2525 = pneg %p2524
      $region66: #{esa_forward.5} parent=5 // pred_check_branch
        %2527 = sbr.rel (%p2525) target = $region68
      $region67: #{esa_forward.5} parent=5 // pred_region
        %s2528 = ssub.s32 %s14, 2
        // Predicated region
        $region69: #{esa_forward.5} parent=67 // pred_check
          %p2529 = pneg %p207
        $region70: #{esa_forward.5} parent=67 // pred_check_branch
          %2531 = sbr.rel (%p2529) target = $region72
        $region71: #{esa_forward.5} parent=67 // pred_region
          %s2532 = smul.u32 8, %s26
          %p2533 = scmp.lt.s32.totalorder %s25, 1
          %s2534 = scalar_select %p2533, %s25, 1
          %p2535 = scmp.lt.s32.totalorder %s2532, 7
          %s2536 = scalar_select %p2535, %s2532, 7
          %s2537 = smul.addr %s2534, 16
          %s2538 = sadd.s32 %s2536, %s2537
          %s2539 = smul.addr %s2538, 8
          %s2540 = scalar_lea.vmem %s6, %s2539
        $region72: #{esa_forward.5} parent=67 // pred_fallthru
          _
      $region68: #{esa_forward.5} parent=5 // pred_fallthru
        _
    $region6: #{esa_forward.5} parent=1 // loop_footer
      %s18 = sadd.s32 1, %s14
    $region7: #{esa_forward.5} parent=1 // loop_footer_branch
      %13 = sbr.rel target = $region3
    $region8: #{esa_forward.5} parent=1 // loop_exit
      _
    %2541 = vsyncpa [#allocation4], 1
    %s2542 = scalar_lea.sflag [#allocation4], 1
    %2543 = vsyncpa %s2542, 1
    %2544 = vsyncpa [#allocation6], 1

// kernel: esa_forward.4
$region0: #{esa_forward.4}
  #allocation0 [shape = 'u32[]', space=smem, size = 0x4, offset = 0x4, fixed_abs, tag = 'smem constant byte address 0x4 - core index']
  #allocation1 [shape = 'u32[144,128]{1,0:T(1,128)}', space=vmem, size = 0x12000, scoped, tag = 'internal scratch']
  #allocation2 [shape = 'f32[15,36,15]{2,1,0:T(8,128)}', space=vmem, size = 0x4b000, scoped, tag = 'scratch operand']
  #allocation3 [shape = 'f32[5,4,5]{2,1,0:T(4,128)}', space=vmem, size = 0x2800, scoped, tag = 'scratch operand']
  #allocation4 [shape = 'f32[3,36,3]{2,1,0:T(8,128)}', space=vmem, size = 0xf000, scoped, tag = 'scratch operand']
  %s0 = inlined_call_operand.hbm [shape: f32[2,2,2,16,4,16], index: 0, kind: input, shape index: {}]
  %s1 = inlined_call_operand.hbm [shape: f32[4,36], index: 1, kind: input, shape index: {}]
  %s2 = inlined_call_operand.hbm [shape: f32[4,1], index: 2, kind: input, shape index: {}]
  %s3 = inlined_call_operand.hbm [shape: f32[4,36], index: 3, kind: input, shape index: {}]
  %s4 = inlined_call_operand.hbm [shape: f32[4,1], index: 4, kind: input, shape index: {}]
  %s5 = inlined_call_operand.hbm [shape: f32[4,36], index: 5, kind: input, shape index: {}]
  %s6 = inlined_call_operand.hbm [shape: f32[4,1], index: 6, kind: input, shape index: {}]
  %s7 = inlined_call_operand.hbm [shape: f32[4,36], index: 7, kind: input, shape index: {}]
  %s8 = inlined_call_operand.hbm [shape: f32[4,1], index: 8, kind: input, shape index: {}]
  %s9 = inlined_call_operand.hbm [shape: f32[9,3], index: 9, kind: input, shape index: {}]
  %s10 = inlined_call_operand.hbm [shape: f32[3,32], index: 10, kind: input, shape index: {}]
  %s11 = inlined_call_operand.hbm [shape: f32[2,4,3,32], index: 11, kind: output, shape index: {}]
  %s12 = sld [smem:[#allocation0]]
  $region121: #{esa_forward.4} parent=0
    _
  %s14 = ssub.s32 1, %s12
  %s15 = scalar_select 0, %s14, %s12
  $region1: #{esa_forward.4} parent=0
    #allocation5 [shape = 'u8[262144]{0}', space=vmem, size = 0x40000, scoped, tag = 'input window, operand 0']
    #allocation6 [shape = 's32[2]{0}', space=sflag, size = 0x8, scoped, tag = 'scoped memory for esa_forward.4']
    #allocation7 [shape = 's32[2]{0}', space=sflag, size = 0x8, scoped, tag = 'scoped memory for esa_forward.4']
    #allocation8 [shape = 'u8[2048]{0}', space=vmem, size = 0x800, scoped, tag = 'input window, operand 1, single buffered']
    #allocation9 [shape = 's32[1]{0}', space=sflag, size = 0x4, scoped, tag = 'scoped memory for esa_forward.4']
    #allocation10 [shape = 'u8[2048]{0}', space=vmem, size = 0x800, scoped, tag = 'input window, operand 2, single buffered']
    #allocation11 [shape = 'u8[2048]{0}', space=vmem, size = 0x800, scoped, tag = 'input window, operand 3, single buffered']
    #allocation12 [shape = 's32[1]{0}', space=sflag, size = 0x4, scoped, tag = 'scoped memory for esa_forward.4']
    #allocation13 [shape = 'u8[2048]{0}', space=vmem, size = 0x800, scoped, tag = 'input window, operand 4, single buffered']
    #allocation14 [shape = 'u8[2048]{0}', space=vmem, size = 0x800, scoped, tag = 'input window, operand 5, single buffered']
    #allocation15 [shape = 's32[1]{0}', space=sflag, size = 0x4, scoped, tag = 'scoped memory for esa_forward.4']
    #allocation16 [shape = 'u8[2048]{0}', space=vmem, size = 0x800, scoped, tag = 'input window, operand 6, single buffered']
    #allocation17 [shape = 'u8[2048]{0}', space=vmem, size = 0x800, scoped, tag = 'input window, operand 7, single buffered']
    #allocation18 [shape = 's32[1]{0}', space=sflag, size = 0x4, scoped, tag = 'scoped memory for esa_forward.4']
    #allocation19 [shape = 'u8[2048]{0}', space=vmem, size = 0x800, scoped, tag = 'input window, operand 8, single buffered']
    #allocation20 [shape = 'u8[8192]{0}', space=vmem, size = 0x2000, scoped, tag = 'input window, operand 9, single buffered']
    #allocation21 [shape = 's32[1]{0}', space=sflag, size = 0x4, scoped, tag = 'scoped memory for esa_forward.4']
    #allocation22 [shape = 'u8[2048]{0}', space=vmem, size = 0x800, scoped, tag = 'input window, operand 10, single buffered']
    #allocation23 [shape = 'u8[16384]{0}', space=vmem, size = 0x4000, scoped, tag = 'output window, operand 0']
    %16 = vsyncpa [#allocation6], 0
    %s17 = scalar_lea.sflag [#allocation6], 1
    %18 = vsyncpa %s17, 0
    %19 = vsyncpa [#allocation9], 0
    %20 = vsyncpa [#allocation12], 0
    %21 = vsyncpa [#allocation15], 0
    %22 = vsyncpa [#allocation18], 0
    %23 = vsyncpa [#allocation21], 0
    %24 = vsyncpa [#allocation7], 0
    %s25 = scalar_lea.sflag [#allocation7], 1
    %26 = vsyncpa %s25, 0
    loop: start=0, step=1, limit=4
    $region2: #{esa_forward.4} parent=1 // loop_pre_header
      _
    $region3: #{esa_forward.4} parent=1 // loop_header
      %s28 = sphi 0, %s32
      %p29 = scmp.ge.s32.totalorder %s28, 4
      %s38 = sphi 0, %s40
      %s41 = sphi 0, %s38
      %s42 = sphi 0, %s41
      %s58 = sphi 0, %s42
      %s62 = sphi 0, %s62
      %s64 = sphi 0, %s62
      %s65 = sphi 0, %s64
      %s79 = sphi 0, %s65
      %s83 = sphi 0, %s83
      %s85 = sphi 0, %s83
      %s86 = sphi 0, %s85
      %s100 = sphi 0, %s86
      %s104 = sphi 0, %s104
      %s106 = sphi 0, %s104
      %s107 = sphi 0, %s106
      %s121 = sphi 0, %s107
      %s125 = sphi 0, %s125
      %s127 = sphi 0, %s125
      %s128 = sphi 0, %s127
      %s142 = sphi 0, %s128
      %s146 = sphi 0, %s146
      %s148 = sphi 0, %s146
      %s149 = sphi 0, %s148
      %s163 = sphi 0, %s149
      %s167 = sphi 0, %s167
      %s169 = sphi 0, %s167
      %s170 = sphi 0, %s169
      %s184 = sphi 0, %s170
      %s188 = sphi 0, %s188
      %s190 = sphi 0, %s188
      %s191 = sphi 0, %s190
      %s205 = sphi 0, %s191
      %s209 = sphi 0, %s209
      %s211 = sphi 0, %s209
      %s212 = sphi 0, %s211
      %s226 = sphi 0, %s212
      %s230 = sphi 0, %s230
      %s232 = sphi 0, %s230
      %s233 = sphi 0, %s232
      %s247 = sphi 0, %s233
      %s251 = sphi 0, %s251
      %s253 = sphi 0, %s251
      %s254 = sphi 0, %s253
      %s268 = sphi 0, %s254
      %s274 = sphi 0, %s276
      %s277 = sphi 0, %s274
      %s278 = sphi 0, %s277
      %s294 = sphi 0, %s278
    $region4: #{esa_forward.4} parent=1 // loop_header_branch
      %31 = sbr.rel (%p29) target = $region8
    $region5: #{esa_forward.4} parent=1 // loop_body
      %s33 = ssub.s32 %s28, 1
      %s34 = ssub.s32 %s28, 2
      %s35 = sadd.s32 %s28, 1
      %s36 = ssub.s32 %s28, %s35
      %p37 = scmp.eq.s32.totalorder %s36, 0
      %s39 = sadd.s32 %s38, 1
      %s40 = scalar_select %p37, %s38, %s39
      %p43 = pneg %p37
      %p44 = scmp.eq.s32.totalorder %s28, 1
      %p45 = por %p43, %p44
      %p46 = scmp.ne.s32.totalorder %s38, %s41
      %p47 = scmp.eq.s32.totalorder %s28, 0
      %p48 = por %p46, %p47
      %p49 = scmp.ne.s32.totalorder %s38, %s41
      %p50 = scmp.eq.s32.totalorder %s33, 1
      %p51 = por %p49, %p50
      %p52 = scmp.ne.s32.totalorder %s41, %s42
      %p53 = scmp.eq.s32.totalorder %s33, 0
      %p54 = por %p52, %p53
      %p55 = scmp.ne.s32.totalorder %s41, %s42
      %p56 = scmp.eq.s32.totalorder %s34, 1
      %p57 = por %p55, %p56
      %p59 = scmp.ne.s32.totalorder %s42, %s58
      %p60 = scmp.eq.s32.totalorder %s34, 0
      %p61 = por %p59, %p60
      %s63 = sadd.s32 %s62, 1
      %p66 = scmp.eq.s32.totalorder %s28, 1
      %p67 = scmp.ne.s32.totalorder %s62, %s64
      %p68 = scmp.eq.s32.totalorder %s28, 0
      %p69 = por %p67, %p68
      %p70 = scmp.ne.s32.totalorder %s62, %s64
      %p71 = scmp.eq.s32.totalorder %s33, 1
      %p72 = por %p70, %p71
      %p73 = scmp.ne.s32.totalorder %s64, %s65
      %p74 = scmp.eq.s32.totalorder %s33, 0
      %p75 = por %p73, %p74
      %p76 = scmp.ne.s32.totalorder %s64, %s65
      %p77 = scmp.eq.s32.totalorder %s34, 1
      %p78 = por %p76, %p77
      %p80 = scmp.ne.s32.totalorder %s65, %s79
      %p81 = scmp.eq.s32.totalorder %s34, 0
      %p82 = por %p80, %p81
      %s84 = sadd.s32 %s83, 1
      %p87 = scmp.eq.s32.totalorder %s28, 1
      %p88 = scmp.ne.s32.totalorder %s83, %s85
      %p89 = scmp.eq.s32.totalorder %s28, 0
      %p90 = por %p88, %p89
      %p91 = scmp.ne.s32.totalorder %s83, %s85
      %p92 = scmp.eq.s32.totalorder %s33, 1
      %p93 = por %p91, %p92
      %p94 = scmp.ne.s32.totalorder %s85, %s86
      %p95 = scmp.eq.s32.totalorder %s33, 0
      %p96 = por %p94, %p95
      %p97 = scmp.ne.s32.totalorder %s85, %s86
      %p98 = scmp.eq.s32.totalorder %s34, 1
      %p99 = por %p97, %p98
      %p101 = scmp.ne.s32.totalorder %s86, %s100
      %p102 = scmp.eq.s32.totalorder %s34, 0
      %p103 = por %p101, %p102
      %s105 = sadd.s32 %s104, 1
      %p108 = scmp.eq.s32.totalorder %s28, 1
      %p109 = scmp.ne.s32.totalorder %s104, %s106
      %p110 = scmp.eq.s32.totalorder %s28, 0
      %p111 = por %p109, %p110
      %p112 = scmp.ne.s32.totalorder %s104, %s106
      %p113 = scmp.eq.s32.totalorder %s33, 1
      %p114 = por %p112, %p113
      %p115 = scmp.ne.s32.totalorder %s106, %s107
      %p116 = scmp.eq.s32.totalorder %s33, 0
      %p117 = por %p115, %p116
      %p118 = scmp.ne.s32.totalorder %s106, %s107
      %p119 = scmp.eq.s32.totalorder %s34, 1
      %p120 = por %p118, %p119
      %p122 = scmp.ne.s32.totalorder %s107, %s121
      %p123 = scmp.eq.s32.totalorder %s34, 0
      %p124 = por %p122, %p123
      %s126 = sadd.s32 %s125, 1
      %p129 = scmp.eq.s32.totalorder %s28, 1
      %p130 = scmp.ne.s32.totalorder %s125, %s127
      %p131 = scmp.eq.s32.totalorder %s28, 0
      %p132 = por %p130, %p131
      %p133 = scmp.ne.s32.totalorder %s125, %s127
      %p134 = scmp.eq.s32.totalorder %s33, 1
      %p135 = por %p133, %p134
      %p136 = scmp.ne.s32.totalorder %s127, %s128
      %p137 = scmp.eq.s32.totalorder %s33, 0
      %p138 = por %p136, %p137
      %p139 = scmp.ne.s32.totalorder %s127, %s128
      %p140 = scmp.eq.s32.totalorder %s34, 1
      %p141 = por %p139, %p140
      %p143 = scmp.ne.s32.totalorder %s128, %s142
      %p144 = scmp.eq.s32.totalorder %s34, 0
      %p145 = por %p143, %p144
      %s147 = sadd.s32 %s146, 1
      %p150 = scmp.eq.s32.totalorder %s28, 1
      %p151 = scmp.ne.s32.totalorder %s146, %s148
      %p152 = scmp.eq.s32.totalorder %s28, 0
      %p153 = por %p151, %p152
      %p154 = scmp.ne.s32.totalorder %s146, %s148
      %p155 = scmp.eq.s32.totalorder %s33, 1
      %p156 = por %p154, %p155
      %p157 = scmp.ne.s32.totalorder %s148, %s149
      %p158 = scmp.eq.s32.totalorder %s33, 0
      %p159 = por %p157, %p158
      %p160 = scmp.ne.s32.totalorder %s148, %s149
      %p161 = scmp.eq.s32.totalorder %s34, 1
      %p162 = por %p160, %p161
      %p164 = scmp.ne.s32.totalorder %s149, %s163
      %p165 = scmp.eq.s32.totalorder %s34, 0
      %p166 = por %p164, %p165
      %s168 = sadd.s32 %s167, 1
      %p171 = scmp.eq.s32.totalorder %s28, 1
      %p172 = scmp.ne.s32.totalorder %s167, %s169
      %p173 = scmp.eq.s32.totalorder %s28, 0
      %p174 = por %p172, %p173
      %p175 = scmp.ne.s32.totalorder %s167, %s169
      %p176 = scmp.eq.s32.totalorder %s33, 1
      %p177 = por %p175, %p176
      %p178 = scmp.ne.s32.totalorder %s169, %s170
      %p179 = scmp.eq.s32.totalorder %s33, 0
      %p180 = por %p178, %p179
      %p181 = scmp.ne.s32.totalorder %s169, %s170
      %p182 = scmp.eq.s32.totalorder %s34, 1
      %p183 = por %p181, %p182
      %p185 = scmp.ne.s32.totalorder %s170, %s184
      %p186 = scmp.eq.s32.totalorder %s34, 0
      %p187 = por %p185, %p186
      %s189 = sadd.s32 %s188, 1
      %p192 = scmp.eq.s32.totalorder %s28, 1
      %p193 = scmp.ne.s32.totalorder %s188, %s190
      %p194 = scmp.eq.s32.totalorder %s28, 0
      %p195 = por %p193, %p194
      %p196 = scmp.ne.s32.totalorder %s188, %s190
      %p197 = scmp.eq.s32.totalorder %s33, 1
      %p198 = por %p196, %p197
      %p199 = scmp.ne.s32.totalorder %s190, %s191
      %p200 = scmp.eq.s32.totalorder %s33, 0
      %p201 = por %p199, %p200
      %p202 = scmp.ne.s32.totalorder %s190, %s191
      %p203 = scmp.eq.s32.totalorder %s34, 1
      %p204 = por %p202, %p203
      %p206 = scmp.ne.s32.totalorder %s191, %s205
      %p207 = scmp.eq.s32.totalorder %s34, 0
      %p208 = por %p206, %p207
      %s210 = sadd.s32 %s209, 1
      %p213 = scmp.eq.s32.totalorder %s28, 1
      %p214 = scmp.ne.s32.totalorder %s209, %s211
      %p215 = scmp.eq.s32.totalorder %s28, 0
      %p216 = por %p214, %p215
      %p217 = scmp.ne.s32.totalorder %s209, %s211
      %p218 = scmp.eq.s32.totalorder %s33, 1
      %p219 = por %p217, %p218
      %p220 = scmp.ne.s32.totalorder %s211, %s212
      %p221 = scmp.eq.s32.totalorder %s33, 0
      %p222 = por %p220, %p221
      %p223 = scmp.ne.s32.totalorder %s211, %s212
      %p224 = scmp.eq.s32.totalorder %s34, 1
      %p225 = por %p223, %p224
      %p227 = scmp.ne.s32.totalorder %s212, %s226
      %p228 = scmp.eq.s32.totalorder %s34, 0
      %p229 = por %p227, %p228
      %s231 = sadd.s32 %s230, 1
      %p234 = scmp.eq.s32.totalorder %s28, 1
      %p235 = scmp.ne.s32.totalorder %s230, %s232
      %p236 = scmp.eq.s32.totalorder %s28, 0
      %p237 = por %p235, %p236
      %p238 = scmp.ne.s32.totalorder %s230, %s232
      %p239 = scmp.eq.s32.totalorder %s33, 1
      %p240 = por %p238, %p239
      %p241 = scmp.ne.s32.totalorder %s232, %s233
      %p242 = scmp.eq.s32.totalorder %s33, 0
      %p243 = por %p241, %p242
      %p244 = scmp.ne.s32.totalorder %s232, %s233
      %p245 = scmp.eq.s32.totalorder %s34, 1
      %p246 = por %p244, %p245
      %p248 = scmp.ne.s32.totalorder %s233, %s247
      %p249 = scmp.eq.s32.totalorder %s34, 0
      %p250 = por %p248, %p249
      %s252 = sadd.s32 %s251, 1
      %p255 = scmp.eq.s32.totalorder %s28, 1
      %p256 = scmp.ne.s32.totalorder %s251, %s253
      %p257 = scmp.eq.s32.totalorder %s28, 0
      %p258 = por %p256, %p257
      %p259 = scmp.ne.s32.totalorder %s251, %s253
      %p260 = scmp.eq.s32.totalorder %s33, 1
      %p261 = por %p259, %p260
      %p262 = scmp.ne.s32.totalorder %s253, %s254
      %p263 = scmp.eq.s32.totalorder %s33, 0
      %p264 = por %p262, %p263
      %p265 = scmp.ne.s32.totalorder %s253, %s254
      %p266 = scmp.eq.s32.totalorder %s34, 1
      %p267 = por %p265, %p266
      %p269 = scmp.ne.s32.totalorder %s254, %s268
      %p270 = scmp.eq.s32.totalorder %s34, 0
      %p271 = por %p269, %p270
      %s272 = ssub.s32 %s28, %s35
      %p273 = scmp.eq.s32.totalorder %s272, 0
      %s275 = sadd.s32 %s274, 1
      %s276 = scalar_select %p273, %s274, %s275
      %p279 = pneg %p273
      %p280 = scmp.eq.s32.totalorder %s28, 1
      %p281 = por %p279, %p280
      %p282 = scmp.ne.s32.totalorder %s274, %s277
      %p283 = scmp.eq.s32.totalorder %s28, 0
      %p284 = por %p282, %p283
      %p285 = scmp.ne.s32.totalorder %s274, %s277
      %p286 = scmp.eq.s32.totalorder %s33, 1
      %p287 = por %p285, %p286
      %p288 = scmp.ne.s32.totalorder %s277, %s278
      %p289 = scmp.eq.s32.totalorder %s33, 0
      %p290 = por %p288, %p289
      %p291 = scmp.ne.s32.totalorder %s277, %s278
      %p292 = scmp.eq.s32.totalorder %s34, 1
      %p293 = por %p291, %p292
      %p295 = scmp.ne.s32.totalorder %s278, %s294
      %p296 = scmp.eq.s32.totalorder %s34, 0
      %p297 = por %p295, %p296
      %p298 = scmp.le.s32.totalorder 1, %s28
      %p299 = scmp.lt.s32.totalorder %s28, 3
      %p300 = pnand %p298, %p299
      %p301 = pneg %p300
      // Predicated region
      $region9: #{esa_forward.4} parent=5 // pred_check
        _
      $region10: #{esa_forward.4} parent=5 // pred_check_branch
        %303 = sbr.rel (%p300) target = $region12
      $region11: #{esa_forward.4} parent=5 // pred_region
        %s304 = ssub.s32 %s28, 1
        // Predicated region
        $region13: #{esa_forward.4} parent=11 // pred_check
          %p305 = pneg %p75
        $region14: #{esa_forward.4} parent=11 // pred_check_branch
          %307 = sbr.rel (%p305) target = $region16
        $region15: #{esa_forward.4} parent=11 // pred_region
          %s309 = ssub.s32 64, 64
          %310 = vsyncadd [#allocation9], %s309
          %s312 = sshll.u32 [#allocation8], 4
          %s313 = int_to_ptr.vmem [resolvable:$true] %s312
          %315 = dma.hbm_to_vmem [thread:$0]  %s1, 64, %s313, [#allocation9]
        $region16: #{esa_forward.4} parent=11 // pred_fallthru
          _
        // Predicated region
        $region17: #{esa_forward.4} parent=11 // pred_check
          %p316 = pneg %p96
        $region18: #{esa_forward.4} parent=11 // pred_check_branch
          %318 = sbr.rel (%p316) target = $region20
        $region19: #{esa_forward.4} parent=11 // pred_region
          %s320 = ssub.s32 64, 64
          %321 = vsyncadd [#allocation9], %s320
          %s323 = sshll.u32 [#allocation10], 4
          %s324 = int_to_ptr.vmem [resolvable:$true] %s323
          %326 = dma.hbm_to_vmem [thread:$0]  %s2, 64, %s324, [#allocation9]
        $region20: #{esa_forward.4} parent=11 // pred_fallthru
          _
        // Predicated region
        $region21: #{esa_forward.4} parent=11 // pred_check
          %p327 = pneg %p117
        $region22: #{esa_forward.4} parent=11 // pred_check_branch
          %329 = sbr.rel (%p327) target = $region24
        $region23: #{esa_forward.4} parent=11 // pred_region
          %s331 = ssub.s32 64, 64
          %332 = vsyncadd [#allocation12], %s331
          %s334 = sshll.u32 [#allocation11], 4
          %s335 = int_to_ptr.vmem [resolvable:$true] %s334
          %337 = dma.hbm_to_vmem [thread:$0]  %s3, 64, %s335, [#allocation12]
        $region24: #{esa_forward.4} parent=11 // pred_fallthru
          _
        // Predicated region
        $region25: #{esa_forward.4} parent=11 // pred_check
          %p338 = pneg %p138
        $region26: #{esa_forward.4} parent=11 // pred_check_branch
          %340 = sbr.rel (%p338) target = $region28
        $region27: #{esa_forward.4} parent=11 // pred_region
          %s342 = ssub.s32 64, 64
          %343 = vsyncadd [#allocation12], %s342
          %s345 = sshll.u32 [#allocation13], 4
          %s346 = int_to_ptr.vmem [resolvable:$true] %s345
          %348 = dma.hbm_to_vmem [thread:$0]  %s4, 64, %s346, [#allocation12]
        $region28: #{esa_forward.4} parent=11 // pred_fallthru
          _
        // Predicated region
        $region29: #{esa_forward.4} parent=11 // pred_check
          %p349 = pneg %p159
        $region30: #{esa_forward.4} parent=11 // pred_check_branch
          %351 = sbr.rel (%p349) target = $region32
        $region31: #{esa_forward.4} parent=11 // pred_region
          %s353 = ssub.s32 64, 64
          %354 = vsyncadd [#allocation15], %s353
          %s356 = sshll.u32 [#allocation14], 4
          %s357 = int_to_ptr.vmem [resolvable:$true] %s356
          %359 = dma.hbm_to_vmem [thread:$0]  %s5, 64, %s357, [#allocation15]
        $region32: #{esa_forward.4} parent=11 // pred_fallthru
          _
        // Predicated region
        $region33: #{esa_forward.4} parent=11 // pred_check
          %p360 = pneg %p180
        $region34: #{esa_forward.4} parent=11 // pred_check_branch
          %362 = sbr.rel (%p360) target = $region36
        $region35: #{esa_forward.4} parent=11 // pred_region
          %s364 = ssub.s32 64, 64
          %365 = vsyncadd [#allocation15], %s364
          %s367 = sshll.u32 [#allocation16], 4
          %s368 = int_to_ptr.vmem [resolvable:$true] %s367
          %370 = dma.hbm_to_vmem [thread:$0]  %s6, 64, %s368, [#allocation15]
        $region36: #{esa_forward.4} parent=11 // pred_fallthru
          _
        // Predicated region
        $region37: #{esa_forward.4} parent=11 // pred_check
          %p371 = pneg %p201
        $region38: #{esa_forward.4} parent=11 // pred_check_branch
          %373 = sbr.rel (%p371) target = $region40
        $region39: #{esa_forward.4} parent=11 // pred_region
          %s375 = ssub.s32 64, 64
          %376 = vsyncadd [#allocation18], %s375
          %s378 = sshll.u32 [#allocation17], 4
          %s379 = int_to_ptr.vmem [resolvable:$true] %s378
          %381 = dma.hbm_to_vmem [thread:$0]  %s7, 64, %s379, [#allocation18]
        $region40: #{esa_forward.4} parent=11 // pred_fallthru
          _
        // Predicated region
        $region41: #{esa_forward.4} parent=11 // pred_check
          %p382 = pneg %p222
        $region42: #{esa_forward.4} parent=11 // pred_check_branch
          %384 = sbr.rel (%p382) target = $region44
        $region43: #{esa_forward.4} parent=11 // pred_region
          %s386 = ssub.s32 64, 64
          %387 = vsyncadd [#allocation18], %s386
          %s389 = sshll.u32 [#allocation19], 4
          %s390 = int_to_ptr.vmem [resolvable:$true] %s389
          %392 = dma.hbm_to_vmem [thread:$0]  %s8, 64, %s390, [#allocation18]
        $region44: #{esa_forward.4} parent=11 // pred_fallthru
          _
        // Predicated region
        $region45: #{esa_forward.4} parent=11 // pred_check
          %p393 = pneg %p243
        $region46: #{esa_forward.4} parent=11 // pred_check_branch
          %395 = sbr.rel (%p393) target = $region48
        $region47: #{esa_forward.4} parent=11 // pred_region
          %s397 = ssub.s32 256, 256
          %398 = vsyncadd [#allocation21], %s397
          %s399 = sshll.u32 [#allocation20], 4
          %s400 = int_to_ptr.vmem [resolvable:$true] %s399
          %405 = dma.hbm_to_vmem [thread:$0]  %s9, 256, %s400, [#allocation21], 128, 128, 8
        $region48: #{esa_forward.4} parent=11 // pred_fallthru
          _
        // Predicated region
        $region49: #{esa_forward.4} parent=11 // pred_check
          %p406 = pneg %p264
        $region50: #{esa_forward.4} parent=11 // pred_check_branch
          %408 = sbr.rel (%p406) target = $region52
        $region51: #{esa_forward.4} parent=11 // pred_region
          %s410 = ssub.s32 64, 64
          %411 = vsyncadd [#allocation21], %s410
          %s413 = sshll.u32 [#allocation22], 4
          %s414 = int_to_ptr.vmem [resolvable:$true] %s413
          %416 = dma.hbm_to_vmem [thread:$0]  %s10, 64, %s414, [#allocation21]
        $region52: #{esa_forward.4} parent=11 // pred_fallthru
          _
      $region12: #{esa_forward.4} parent=5 // pred_fallthru
        _
      %p417 = scmp.lt.s32.totalorder %s28, 2
      // Predicated region
      $region53: #{esa_forward.4} parent=5 // pred_check
        %p418 = pneg %p417
      $region54: #{esa_forward.4} parent=5 // pred_check_branch
        %420 = sbr.rel (%p418) target = $region56
      $region55: #{esa_forward.4} parent=5 // pred_region
        // Predicated region
        $region57: #{esa_forward.4} parent=55 // pred_check
          %p421 = pneg %p48
        $region58: #{esa_forward.4} parent=55 // pred_check_branch
          %423 = sbr.rel (%p421) target = $region60
        $region59: #{esa_forward.4} parent=55 // pred_region
          %s424 = sand.u32 %s38, 1
          %s425 = scalar_lea.sflag [#allocation6], %s424
          %s426 = sand.u32 %s38, 1
          %s427 = smul.addr %s426, 256
          %s428 = scalar_lea.vmem [#allocation5], %s427
          %s430 = ssub.s32 4096, 4096
          %431 = vsyncadd %s425, %s430
          %s432 = smul.addr %s28, 64
          %s433 = smul.addr %s432, 64
          %s434 = scalar_lea.hbm %s0, %s433
          %s435 = sshll.u32 %s428, 4
          %s436 = int_to_ptr.vmem [resolvable:$true] %s435
          %441 = dma.hbm_to_vmem [thread:$0]  %s434, 4096, %s436, %s425, 64, 64, 4
        $region60: #{esa_forward.4} parent=55 // pred_fallthru
          _
      $region56: #{esa_forward.4} parent=5 // pred_fallthru
        _
      %p442 = scmp.le.s32.totalorder 1, %s28
      %p443 = scmp.lt.s32.totalorder %s28, 3
      %p444 = pnand %p442, %p443
      %p445 = pneg %p444
      // Predicated region
      $region61: #{esa_forward.4} parent=5 // pred_check
        _
      $region62: #{esa_forward.4} parent=5 // pred_check_branch
        %447 = sbr.rel (%p444) target = $region64
      $region63: #{esa_forward.4} parent=5 // pred_region
        %s448 = ssub.s32 %s28, 1
        %s449 = sand.u32 %s41, 1
        %s450 = scalar_lea.sflag [#allocation6], %s449
        %s451 = sand.u32 %s41, 1
        %s452 = smul.addr %s451, 256
        %s453 = scalar_lea.vmem [#allocation5], %s452
        // Predicated region
        $region65: #{esa_forward.4} parent=63 // pred_check
          %p454 = pneg %p54
        $region66: #{esa_forward.4} parent=63 // pred_check_branch
          %456 = sbr.rel (%p454) target = $region68
        $region67: #{esa_forward.4} parent=63 // pred_region
          %457 = dma.done %s450, 4096
        $region68: #{esa_forward.4} parent=63 // pred_fallthru
          _
        // Predicated region
        $region69: #{esa_forward.4} parent=63 // pred_check
          %p458 = pneg %p75
        $region70: #{esa_forward.4} parent=63 // pred_check_branch
          %460 = sbr.rel (%p458) target = $region72
        $region71: #{esa_forward.4} parent=63 // pred_region
          %461 = dma.done [#allocation9], 64
        $region72: #{esa_forward.4} parent=63 // pred_fallthru
          _
        // Predicated region
        $region73: #{esa_forward.4} parent=63 // pred_check
          %p462 = pneg %p96
        $region74: #{esa_forward.4} parent=63 // pred_check_branch
          %464 = sbr.rel (%p462) target = $region76
        $region75: #{esa_forward.4} parent=63 // pred_region
          %465 = dma.done [#allocation9], 64
        $region76: #{esa_forward.4} parent=63 // pred_fallthru
          _
        // Predicated region
        $region77: #{esa_forward.4} parent=63 // pred_check
          %p466 = pneg %p117
        $region78: #{esa_forward.4} parent=63 // pred_check_branch
          %468 = sbr.rel (%p466) target = $region80
        $region79: #{esa_forward.4} parent=63 // pred_region
          %469 = dma.done [#allocation12], 64
        $region80: #{esa_forward.4} parent=63 // pred_fallthru
          _
        // Predicated region
        $region81: #{esa_forward.4} parent=63 // pred_check
          %p470 = pneg %p138
        $region82: #{esa_forward.4} parent=63 // pred_check_branch
          %472 = sbr.rel (%p470) target = $region84
        $region83: #{esa_forward.4} parent=63 // pred_region
          %473 = dma.done [#allocation12], 64
        $region84: #{esa_forward.4} parent=63 // pred_fallthru
          _
        // Predicated region
        $region85: #{esa_forward.4} parent=63 // pred_check
          %p474 = pneg %p159
        $region86: #{esa_forward.4} parent=63 // pred_check_branch
          %476 = sbr.rel (%p474) target = $region88
        $region87: #{esa_forward.4} parent=63 // pred_region
          %477 = dma.done [#allocation15], 64
        $region88: #{esa_forward.4} parent=63 // pred_fallthru
          _
        // Predicated region
        $region89: #{esa_forward.4} parent=63 // pred_check
          %p478 = pneg %p180
        $region90: #{esa_forward.4} parent=63 // pred_check_branch
          %480 = sbr.rel (%p478) target = $region92
        $region91: #{esa_forward.4} parent=63 // pred_region
          %481 = dma.done [#allocation15], 64
        $region92: #{esa_forward.4} parent=63 // pred_fallthru
          _
        // Predicated region
        $region93: #{esa_forward.4} parent=63 // pred_check
          %p482 = pneg %p201
        $region94: #{esa_forward.4} parent=63 // pred_check_branch
          %484 = sbr.rel (%p482) target = $region96
        $region95: #{esa_forward.4} parent=63 // pred_region
          %485 = dma.done [#allocation18], 64
        $region96: #{esa_forward.4} parent=63 // pred_fallthru
          _
        // Predicated region
        $region97: #{esa_forward.4} parent=63 // pred_check
          %p486 = pneg %p222
        $region98: #{esa_forward.4} parent=63 // pred_check_branch
          %488 = sbr.rel (%p486) target = $region100
        $region99: #{esa_forward.4} parent=63 // pred_region
          %489 = dma.done [#allocation18], 64
        $region100: #{esa_forward.4} parent=63 // pred_fallthru
          _
        // Predicated region
        $region101: #{esa_forward.4} parent=63 // pred_check
          %p490 = pneg %p243
        $region102: #{esa_forward.4} parent=63 // pred_check_branch
          %492 = sbr.rel (%p490) target = $region104
        $region103: #{esa_forward.4} parent=63 // pred_region
          %493 = dma.done [#allocation21], 256
        $region104: #{esa_forward.4} parent=63 // pred_fallthru
          _
        // Predicated region
        $region105: #{esa_forward.4} parent=63 // pred_check
          %p494 = pneg %p264
        $region106: #{esa_forward.4} parent=63 // pred_check_branch
          %496 = sbr.rel (%p494) target = $region108
        $region107: #{esa_forward.4} parent=63 // pred_region
          %497 = dma.done [#allocation21], 64
        $region108: #{esa_forward.4} parent=63 // pred_fallthru
          _
        %s498 = sand.u32 %s41, 1
        %s499 = scalar_lea.sflag [#allocation6], %s498
        %s500 = sand.u32 %s41, 1
        %s501 = smul.addr %s500, 256
        %s502 = scalar_lea.vmem [#allocation5], %s501
        %p503 = pneg %p54
        %p504 = pneg %p51
        %p505 = pneg %p75
        %p506 = pneg %p72
        %p507 = pneg %p96
        %p508 = pneg %p93
        %p509 = pneg %p117
        %p510 = pneg %p114
        %p511 = pneg %p138
        %p512 = pneg %p135
        %p513 = pneg %p159
        %p514 = pneg %p156
        %p515 = pneg %p180
        %p516 = pneg %p177
        %p517 = pneg %p201
        %p518 = pneg %p198
        %p519 = pneg %p222
        %p520 = pneg %p219
        %p521 = pneg %p243
        %p522 = pneg %p240
        %p523 = pneg %p264
        %p524 = pneg %p261
        %p525 = pneg %p290
        %p526 = pneg %p287
        %s527 = sand.u32 %s277, 1
        %s528 = scalar_lea.sflag [#allocation7], %s527
        %s529 = sand.u32 %s277, 1
        %s530 = smul.addr %s529, 16
        %s531 = scalar_lea.vmem [#allocation23], %s530
        %v532 = vld [vmem:[%s453] sm:$0xf]
        %v533 = vld [vmem:[%s453 + $0x4] sm:$0xf]
        %v534 = vld [vmem:[%s453 + $0x8] sm:$0xf]
        %v535 = vld [vmem:[%s453 + $0xc] sm:$0xf]
        %v536 = vld [vmem:[%s453 + $0x10] sm:$0xf]
        %v537 = vld [vmem:[%s453 + $0x14] sm:$0xf]
        %v538 = vld [vmem:[%s453 + $0x18] sm:$0xf]
        %v539 = vld [vmem:[%s453 + $0x1c] sm:$0xf]
        %v540 = vld [vmem:[%s453 + $0x20] sm:$0xf]
        %v541 = vld [vmem:[%s453 + $0x24] sm:$0xf]
        %v542 = vld [vmem:[%s453 + $0x28] sm:$0xf]
        %v543 = vld [vmem:[%s453 + $0x2c] sm:$0xf]
        %v544 = vld [vmem:[%s453 + $0x30] sm:$0xf]
        %v545 = vld [vmem:[%s453 + $0x34] sm:$0xf]
        %v546 = vld [vmem:[%s453 + $0x38] sm:$0xf]
        %vm547 = vcmask 117760
        %548 = vst.msk [vmem:[#allocation2] sm:$0xf] %vm547, %v532
        %549 = vst.msk [vmem:[#allocation2 + $0x28] sm:$0xf] %vm547, %v533
        %550 = vst.msk [vmem:[#allocation2 + $0x50] sm:$0xf] %vm547, %v534
        %551 = vst.msk [vmem:[#allocation2 + $0x78] sm:$0xf] %vm547, %v535
        %552 = vst.msk [vmem:[#allocation2 + $0xa0] sm:$0xf] %vm547, %v536
        %553 = vst.msk [vmem:[#allocation2 + $0xc8] sm:$0xf] %vm547, %v537
        %554 = vst.msk [vmem:[#allocation2 + $0xf0] sm:$0xf] %vm547, %v538
        %555 = vst.msk [vmem:[#allocation2 + $0x118] sm:$0xf] %vm547, %v539
        %556 = vst.msk [vmem:[#allocation2 + $0x140] sm:$0xf] %vm547, %v540
        %557 = vst.msk [vmem:[#allocation2 + $0x168] sm:$0xf] %vm547, %v541
        %558 = vst.msk [vmem:[#allocation2 + $0x190] sm:$0xf] %vm547, %v542
        %559 = vst.msk [vmem:[#allocation2 + $0x1b8] sm:$0xf] %vm547, %v543
        %560 = vst.msk [vmem:[#allocation2 + $0x1e0] sm:$0xf] %vm547, %v544
        %561 = vst.msk [vmem:[#allocation2 + $0x208] sm:$0xf] %vm547, %v545
        %562 = vst.msk [vmem:[#allocation2 + $0x230] sm:$0xf] %vm547, %v546
        %s563 = scalar_lea.vmem %s453, 64 [#allocation5]
        %v564 = vld [vmem:[%s563] sm:$0xf]
        %v565 = vld [vmem:[%s563 + $0x4] sm:$0xf]
        %v566 = vld [vmem:[%s563 + $0x8] sm:$0xf]
        %v567 = vld [vmem:[%s563 + $0xc] sm:$0xf]
        %v568 = vld [vmem:[%s563 + $0x10] sm:$0xf]
        %v569 = vld [vmem:[%s563 + $0x14] sm:$0xf]
        %v570 = vld [vmem:[%s563 + $0x18] sm:$0xf]
        %v571 = vld [vmem:[%s563 + $0x1c] sm:$0xf]
        %v572 = vld [vmem:[%s563 + $0x20] sm:$0xf]
        %v573 = vld [vmem:[%s563 + $0x24] sm:$0xf]
        %v574 = vld [vmem:[%s563 + $0x28] sm:$0xf]
        %v575 = vld [vmem:[%s563 + $0x2c] sm:$0xf]
        %v576 = vld [vmem:[%s563 + $0x30] sm:$0xf]
        %v577 = vld [vmem:[%s563 + $0x34] sm:$0xf]
        %v578 = vld [vmem:[%s563 + $0x38] sm:$0xf]
        %579 = vst.msk [vmem:[#allocation2 + $0x4] sm:$0xf] %vm547, %v564
        %580 = vst.msk [vmem:[#allocation2 + $0x2c] sm:$0xf] %vm547, %v565
        %581 = vst.msk [vmem:[#allocation2 + $0x54] sm:$0xf] %vm547, %v566
        %582 = vst.msk [vmem:[#allocation2 + $0x7c] sm:$0xf] %vm547, %v567
        %583 = vst.msk [vmem:[#allocation2 + $0xa4] sm:$0xf] %vm547, %v568
        %584 = vst.msk [vmem:[#allocation2 + $0xcc] sm:$0xf] %vm547, %v569
        %585 = vst.msk [vmem:[#allocation2 + $0xf4] sm:$0xf] %vm547, %v570
        %586 = vst.msk [vmem:[#allocation2 + $0x11c] sm:$0xf] %vm547, %v571
        %587 = vst.msk [vmem:[#allocation2 + $0x144] sm:$0xf] %vm547, %v572
        %588 = vst.msk [vmem:[#allocation2 + $0x16c] sm:$0xf] %vm547, %v573
        %589 = vst.msk [vmem:[#allocation2 + $0x194] sm:$0xf] %vm547, %v574
        %590 = vst.msk [vmem:[#allocation2 + $0x1bc] sm:$0xf] %vm547, %v575
        %591 = vst.msk [vmem:[#allocation2 + $0x1e4] sm:$0xf] %vm547, %v576
        %592 = vst.msk [vmem:[#allocation2 + $0x20c] sm:$0xf] %vm547, %v577
        %593 = vst.msk [vmem:[#allocation2 + $0x234] sm:$0xf] %vm547, %v578
        %v594 = vld [vmem:[%s453] sm:$0xf]
        %v595 = vld [vmem:[%s453 + $0x4] sm:$0xf]
        %v596 = vld [vmem:[%s453 + $0x8] sm:$0xf]
        %v597 = vld [vmem:[%s453 + $0xc] sm:$0xf]
        %v598 = vld [vmem:[%s453 + $0x10] sm:$0xf]
        %v599 = vld [vmem:[%s453 + $0x14] sm:$0xf]
        %v600 = vld [vmem:[%s453 + $0x18] sm:$0xf]
        %v601 = vld [vmem:[%s453 + $0x1c] sm:$0xf]
        %v602 = vld [vmem:[%s453 + $0x20] sm:$0xf]
        %v603 = vld [vmem:[%s453 + $0x24] sm:$0xf]
        %v604 = vld [vmem:[%s453 + $0x28] sm:$0xf]
        %v605 = vld [vmem:[%s453 + $0x2c] sm:$0xf]
        %v606 = vld [vmem:[%s453 + $0x30] sm:$0xf]
        %v607 = vld [vmem:[%s453 + $0x34] sm:$0xf]
        %v608 = vld [vmem:[%s453 + $0x38] sm:$0xf]
        %624 = vrot.lane.b32.xlu0 %v594, 127
        %v625 = vpop.permute.xlu0 %624
        %626 = vrot.lane.b32.xlu0 %v595, 127
        %v627 = vpop.permute.xlu0 %626
        %628 = vrot.lane.b32.xlu0 %v596, 127
        %v629 = vpop.permute.xlu0 %628
        %630 = vrot.lane.b32.xlu0 %v597, 127
        %v631 = vpop.permute.xlu0 %630
        %632 = vrot.lane.b32.xlu0 %v598, 127
        %v633 = vpop.permute.xlu0 %632
        %634 = vrot.lane.b32.xlu0 %v599, 127
        %v635 = vpop.permute.xlu0 %634
        %636 = vrot.lane.b32.xlu0 %v600, 127
        %v637 = vpop.permute.xlu0 %636
        %638 = vrot.lane.b32.xlu0 %v601, 127
        %v639 = vpop.permute.xlu0 %638
        %640 = vrot.lane.b32.xlu0 %v602, 127
        %v641 = vpop.permute.xlu0 %640
        %642 = vrot.lane.b32.xlu0 %v603, 127
        %v643 = vpop.permute.xlu0 %642
        %644 = vrot.lane.b32.xlu0 %v604, 127
        %v645 = vpop.permute.xlu0 %644
        %646 = vrot.lane.b32.xlu0 %v605, 127
        %v647 = vpop.permute.xlu0 %646
        %648 = vrot.lane.b32.xlu0 %v606, 127
        %v649 = vpop.permute.xlu0 %648
        %650 = vrot.lane.b32.xlu0 %v607, 127
        %v651 = vpop.permute.xlu0 %650
        %652 = vrot.lane.b32.xlu0 %v608, 127
        %v653 = vpop.permute.xlu0 %652
        %669 = vst.msk [vmem:[#allocation2 + $0x8] sm:$0xf] %vm547, %v625
        %670 = vst.msk [vmem:[#allocation2 + $0x30] sm:$0xf] %vm547, %v627
        %671 = vst.msk [vmem:[#allocation2 + $0x58] sm:$0xf] %vm547, %v629
        %672 = vst.msk [vmem:[#allocation2 + $0x80] sm:$0xf] %vm547, %v631
        %673 = vst.msk [vmem:[#allocation2 + $0xa8] sm:$0xf] %vm547, %v633
        %674 = vst.msk [vmem:[#allocation2 + $0xd0] sm:$0xf] %vm547, %v635
        %675 = vst.msk [vmem:[#allocation2 + $0xf8] sm:$0xf] %vm547, %v637
        %676 = vst.msk [vmem:[#allocation2 + $0x120] sm:$0xf] %vm547, %v639
        %677 = vst.msk [vmem:[#allocation2 + $0x148] sm:$0xf] %vm547, %v641
        %678 = vst.msk [vmem:[#allocation2 + $0x170] sm:$0xf] %vm547, %v643
        %679 = vst.msk [vmem:[#allocation2 + $0x198] sm:$0xf] %vm547, %v645
        %680 = vst.msk [vmem:[#allocation2 + $0x1c0] sm:$0xf] %vm547, %v647
        %681 = vst.msk [vmem:[#allocation2 + $0x1e8] sm:$0xf] %vm547, %v649
        %682 = vst.msk [vmem:[#allocation2 + $0x210] sm:$0xf] %vm547, %v651
        %683 = vst.msk [vmem:[#allocation2 + $0x238] sm:$0xf] %vm547, %v653
        %s684 = scalar_lea.vmem %s453, 128 [#allocation5]
        %v685 = vld [vmem:[%s684] sm:$0xf]
        %v686 = vld [vmem:[%s684 + $0x4] sm:$0xf]
        %v687 = vld [vmem:[%s684 + $0x8] sm:$0xf]
        %v688 = vld [vmem:[%s684 + $0xc] sm:$0xf]
        %v689 = vld [vmem:[%s684 + $0x10] sm:$0xf]
        %v690 = vld [vmem:[%s684 + $0x14] sm:$0xf]
        %v691 = vld [vmem:[%s684 + $0x18] sm:$0xf]
        %v692 = vld [vmem:[%s684 + $0x1c] sm:$0xf]
        %v693 = vld [vmem:[%s684 + $0x20] sm:$0xf]
        %v694 = vld [vmem:[%s684 + $0x24] sm:$0xf]
        %v695 = vld [vmem:[%s684 + $0x28] sm:$0xf]
        %v696 = vld [vmem:[%s684 + $0x2c] sm:$0xf]
        %v697 = vld [vmem:[%s684 + $0x30] sm:$0xf]
        %v698 = vld [vmem:[%s684 + $0x34] sm:$0xf]
        %v699 = vld [vmem:[%s684 + $0x38] sm:$0xf]
        %700 = vst.msk [vmem:[#allocation2 + $0xc] sm:$0xf] %vm547, %v685
        %701 = vst.msk [vmem:[#allocation2 + $0x34] sm:$0xf] %vm547, %v686
        %702 = vst.msk [vmem:[#allocation2 + $0x5c] sm:$0xf] %vm547, %v687
        %703 = vst.msk [vmem:[#allocation2 + $0x84] sm:$0xf] %vm547, %v688
        %704 = vst.msk [vmem:[#allocation2 + $0xac] sm:$0xf] %vm547, %v689
        %705 = vst.msk [vmem:[#allocation2 + $0xd4] sm:$0xf] %vm547, %v690
        %706 = vst.msk [vmem:[#allocation2 + $0xfc] sm:$0xf] %vm547, %v691
        %707 = vst.msk [vmem:[#allocation2 + $0x124] sm:$0xf] %vm547, %v692
        %708 = vst.msk [vmem:[#allocation2 + $0x14c] sm:$0xf] %vm547, %v693
        %709 = vst.msk [vmem:[#allocation2 + $0x174] sm:$0xf] %vm547, %v694
        %710 = vst.msk [vmem:[#allocation2 + $0x19c] sm:$0xf] %vm547, %v695
        %711 = vst.msk [vmem:[#allocation2 + $0x1c4] sm:$0xf] %vm547, %v696
        %712 = vst.msk [vmem:[#allocation2 + $0x1ec] sm:$0xf] %vm547, %v697
        %713 = vst.msk [vmem:[#allocation2 + $0x214] sm:$0xf] %vm547, %v698
        %714 = vst.msk [vmem:[#allocation2 + $0x23c] sm:$0xf] %vm547, %v699
        %s715 = scalar_lea.vmem %s453, 192 [#allocation5]
        %v716 = vld [vmem:[%s715] sm:$0xf]
        %v717 = vld [vmem:[%s715 + $0x4] sm:$0xf]
        %v718 = vld [vmem:[%s715 + $0x8] sm:$0xf]
        %v719 = vld [vmem:[%s715 + $0xc] sm:$0xf]
        %v720 = vld [vmem:[%s715 + $0x10] sm:$0xf]
        %v721 = vld [vmem:[%s715 + $0x14] sm:$0xf]
        %v722 = vld [vmem:[%s715 + $0x18] sm:$0xf]
        %v723 = vld [vmem:[%s715 + $0x1c] sm:$0xf]
        %v724 = vld [vmem:[%s715 + $0x20] sm:$0xf]
        %v725 = vld [vmem:[%s715 + $0x24] sm:$0xf]
        %v726 = vld [vmem:[%s715 + $0x28] sm:$0xf]
        %v727 = vld [vmem:[%s715 + $0x2c] sm:$0xf]
        %v728 = vld [vmem:[%s715 + $0x30] sm:$0xf]
        %v729 = vld [vmem:[%s715 + $0x34] sm:$0xf]
        %v730 = vld [vmem:[%s715 + $0x38] sm:$0xf]
        %731 = vst.msk [vmem:[#allocation2 + $0x10] sm:$0xf] %vm547, %v716
        %732 = vst.msk [vmem:[#allocation2 + $0x38] sm:$0xf] %vm547, %v717
        %733 = vst.msk [vmem:[#allocation2 + $0x60] sm:$0xf] %vm547, %v718
        %734 = vst.msk [vmem:[#allocation2 + $0x88] sm:$0xf] %vm547, %v719
        %735 = vst.msk [vmem:[#allocation2 + $0xb0] sm:$0xf] %vm547, %v720
        %736 = vst.msk [vmem:[#allocation2 + $0xd8] sm:$0xf] %vm547, %v721
        %737 = vst.msk [vmem:[#allocation2 + $0x100] sm:$0xf] %vm547, %v722
        %738 = vst.msk [vmem:[#allocation2 + $0x128] sm:$0xf] %vm547, %v723
        %739 = vst.msk [vmem:[#allocation2 + $0x150] sm:$0xf] %vm547, %v724
        %740 = vst.msk [vmem:[#allocation2 + $0x178] sm:$0xf] %vm547, %v725
        %741 = vst.msk [vmem:[#allocation2 + $0x1a0] sm:$0xf] %vm547, %v726
        %742 = vst.msk [vmem:[#allocation2 + $0x1c8] sm:$0xf] %vm547, %v727
        %743 = vst.msk [vmem:[#allocation2 + $0x1f0] sm:$0xf] %vm547, %v728
        %744 = vst.msk [vmem:[#allocation2 + $0x218] sm:$0xf] %vm547, %v729
        %745 = vst.msk [vmem:[#allocation2 + $0x240] sm:$0xf] %vm547, %v730
        %v746 = vld [vmem:[%s684] sm:$0xf]
        %v747 = vld [vmem:[%s684 + $0x4] sm:$0xf]
        %v748 = vld [vmem:[%s684 + $0x8] sm:$0xf]
        %v749 = vld [vmem:[%s684 + $0xc] sm:$0xf]
        %v750 = vld [vmem:[%s684 + $0x10] sm:$0xf]
        %v751 = vld [vmem:[%s684 + $0x14] sm:$0xf]
        %v752 = vld [vmem:[%s684 + $0x18] sm:$0xf]
        %v753 = vld [vmem:[%s684 + $0x1c] sm:$0xf]
        %v754 = vld [vmem:[%s684 + $0x20] sm:$0xf]
        %v755 = vld [vmem:[%s684 + $0x24] sm:$0xf]
        %v756 = vld [vmem:[%s684 + $0x28] sm:$0xf]
        %v757 = vld [vmem:[%s684 + $0x2c] sm:$0xf]
        %v758 = vld [vmem:[%s684 + $0x30] sm:$0xf]
        %v759 = vld [vmem:[%s684 + $0x34] sm:$0xf]
        %v760 = vld [vmem:[%s684 + $0x38] sm:$0xf]
        %776 = vrot.lane.b32.xlu0 %v746, 127
        %v777 = vpop.permute.xlu0 %776
        %778 = vrot.lane.b32.xlu0 %v747, 127
        %v779 = vpop.permute.xlu0 %778
        %780 = vrot.lane.b32.xlu0 %v748, 127
        %v781 = vpop.permute.xlu0 %780
        %782 = vrot.lane.b32.xlu0 %v749, 127
        %v783 = vpop.permute.xlu0 %782
        %784 = vrot.lane.b32.xlu0 %v750, 127
        %v785 = vpop.permute.xlu0 %784
        %786 = vrot.lane.b32.xlu0 %v751, 127
        %v787 = vpop.permute.xlu0 %786
        %788 = vrot.lane.b32.xlu0 %v752, 127
        %v789 = vpop.permute.xlu0 %788
        %790 = vrot.lane.b32.xlu0 %v753, 127
        %v791 = vpop.permute.xlu0 %790
        %792 = vrot.lane.b32.xlu0 %v754, 127
        %v793 = vpop.permute.xlu0 %792
        %794 = vrot.lane.b32.xlu0 %v755, 127
        %v795 = vpop.permute.xlu0 %794
        %796 = vrot.lane.b32.xlu0 %v756, 127
        %v797 = vpop.permute.xlu0 %796
        %798 = vrot.lane.b32.xlu0 %v757, 127
        %v799 = vpop.permute.xlu0 %798
        %800 = vrot.lane.b32.xlu0 %v758, 127
        %v801 = vpop.permute.xlu0 %800
        %802 = vrot.lane.b32.xlu0 %v759, 127
        %v803 = vpop.permute.xlu0 %802
        %804 = vrot.lane.b32.xlu0 %v760, 127
        %v805 = vpop.permute.xlu0 %804
        %821 = vst.msk [vmem:[#allocation2 + $0x14] sm:$0xf] %vm547, %v777
        %822 = vst.msk [vmem:[#allocation2 + $0x3c] sm:$0xf] %vm547, %v779
        %823 = vst.msk [vmem:[#allocation2 + $0x64] sm:$0xf] %vm547, %v781
        %824 = vst.msk [vmem:[#allocation2 + $0x8c] sm:$0xf] %vm547, %v783
        %825 = vst.msk [vmem:[#allocation2 + $0xb4] sm:$0xf] %vm547, %v785
        %826 = vst.msk [vmem:[#allocation2 + $0xdc] sm:$0xf] %vm547, %v787
        %827 = vst.msk [vmem:[#allocation2 + $0x104] sm:$0xf] %vm547, %v789
        %828 = vst.msk [vmem:[#allocation2 + $0x12c] sm:$0xf] %vm547, %v791
        %829 = vst.msk [vmem:[#allocation2 + $0x154] sm:$0xf] %vm547, %v793
        %830 = vst.msk [vmem:[#allocation2 + $0x17c] sm:$0xf] %vm547, %v795
        %831 = vst.msk [vmem:[#allocation2 + $0x1a4] sm:$0xf] %vm547, %v797
        %832 = vst.msk [vmem:[#allocation2 + $0x1cc] sm:$0xf] %vm547, %v799
        %833 = vst.msk [vmem:[#allocation2 + $0x1f4] sm:$0xf] %vm547, %v801
        %834 = vst.msk [vmem:[#allocation2 + $0x21c] sm:$0xf] %vm547, %v803
        %835 = vst.msk [vmem:[#allocation2 + $0x244] sm:$0xf] %vm547, %v805
        %s836 = scalar_lea.vmem %s453, 4 [#allocation5]
        %v837 = vld [vmem:[%s836] sm:$0xf]
        %v838 = vld [vmem:[%s836 + $0x4] sm:$0xf]
        %v839 = vld [vmem:[%s836 + $0x8] sm:$0xf]
        %v840 = vld [vmem:[%s836 + $0xc] sm:$0xf]
        %v841 = vld [vmem:[%s836 + $0x10] sm:$0xf]
        %v842 = vld [vmem:[%s836 + $0x14] sm:$0xf]
        %v843 = vld [vmem:[%s836 + $0x18] sm:$0xf]
        %v844 = vld [vmem:[%s836 + $0x1c] sm:$0xf]
        %v845 = vld [vmem:[%s836 + $0x20] sm:$0xf]
        %v846 = vld [vmem:[%s836 + $0x24] sm:$0xf]
        %v847 = vld [vmem:[%s836 + $0x28] sm:$0xf]
        %v848 = vld [vmem:[%s836 + $0x2c] sm:$0xf]
        %v849 = vld [vmem:[%s836 + $0x30] sm:$0xf]
        %v850 = vld [vmem:[%s836 + $0x34] sm:$0xf]
        %v851 = vld [vmem:[%s836 + $0x38] sm:$0xf]
        %852 = vst.msk [vmem:[#allocation2 + $0x18] sm:$0xf] %vm547, %v837
        %853 = vst.msk [vmem:[#allocation2 + $0x40] sm:$0xf] %vm547, %v838
        %854 = vst.msk [vmem:[#allocation2 + $0x68] sm:$0xf] %vm547, %v839
        %855 = vst.msk [vmem:[#allocation2 + $0x90] sm:$0xf] %vm547, %v840
        %856 = vst.msk [vmem:[#allocation2 + $0xb8] sm:$0xf] %vm547, %v841
        %857 = vst.msk [vmem:[#allocation2 + $0xe0] sm:$0xf] %vm547, %v842
        %858 = vst.msk [vmem:[#allocation2 + $0x108] sm:$0xf] %vm547, %v843
        %859 = vst.msk [vmem:[#allocation2 + $0x130] sm:$0xf] %vm547, %v844
        %860 = vst.msk [vmem:[#allocation2 + $0x158] sm:$0xf] %vm547, %v845
        %861 = vst.msk [vmem:[#allocation2 + $0x180] sm:$0xf] %vm547, %v846
        %862 = vst.msk [vmem:[#allocation2 + $0x1a8] sm:$0xf] %vm547, %v847
        %863 = vst.msk [vmem:[#allocation2 + $0x1d0] sm:$0xf] %vm547, %v848
        %864 = vst.msk [vmem:[#allocation2 + $0x1f8] sm:$0xf] %vm547, %v849
        %865 = vst.msk [vmem:[#allocation2 + $0x220] sm:$0xf] %vm547, %v850
        %866 = vst.msk [vmem:[#allocation2 + $0x248] sm:$0xf] %vm547, %v851
        %s867 = scalar_lea.vmem %s453, 68 [#allocation5]
        %v868 = vld [vmem:[%s867] sm:$0xf]
        %v869 = vld [vmem:[%s867 + $0x4] sm:$0xf]
        %v870 = vld [vmem:[%s867 + $0x8] sm:$0xf]
        %v871 = vld [vmem:[%s867 + $0xc] sm:$0xf]
        %v872 = vld [vmem:[%s867 + $0x10] sm:$0xf]
        %v873 = vld [vmem:[%s867 + $0x14] sm:$0xf]
        %v874 = vld [vmem:[%s867 + $0x18] sm:$0xf]
        %v875 = vld [vmem:[%s867 + $0x1c] sm:$0xf]
        %v876 = vld [vmem:[%s867 + $0x20] sm:$0xf]
        %v877 = vld [vmem:[%s867 + $0x24] sm:$0xf]
        %v878 = vld [vmem:[%s867 + $0x28] sm:$0xf]
        %v879 = vld [vmem:[%s867 + $0x2c] sm:$0xf]
        %v880 = vld [vmem:[%s867 + $0x30] sm:$0xf]
        %v881 = vld [vmem:[%s867 + $0x34] sm:$0xf]
        %v882 = vld [vmem:[%s867 + $0x38] sm:$0xf]
        %883 = vst.msk [vmem:[#allocation2 + $0x1c] sm:$0xf] %vm547, %v868
        %884 = vst.msk [vmem:[#allocation2 + $0x44] sm:$0xf] %vm547, %v869
        %885 = vst.msk [vmem:[#allocation2 + $0x6c] sm:$0xf] %vm547, %v870
        %886 = vst.msk [vmem:[#allocation2 + $0x94] sm:$0xf] %vm547, %v871
        %887 = vst.msk [vmem:[#allocation2 + $0xbc] sm:$0xf] %vm547, %v872
        %888 = vst.msk [vmem:[#allocation2 + $0xe4] sm:$0xf] %vm547, %v873
        %889 = vst.msk [vmem:[#allocation2 + $0x10c] sm:$0xf] %vm547, %v874
        %890 = vst.msk [vmem:[#allocation2 + $0x134] sm:$0xf] %vm547, %v875
        %891 = vst.msk [vmem:[#allocation2 + $0x15c] sm:$0xf] %vm547, %v876
        %892 = vst.msk [vmem:[#allocation2 + $0x184] sm:$0xf] %vm547, %v877
        %893 = vst.msk [vmem:[#allocation2 + $0x1ac] sm:$0xf] %vm547, %v878
        %894 = vst.msk [vmem:[#allocation2 + $0x1d4] sm:$0xf] %vm547, %v879
        %895 = vst.msk [vmem:[#allocation2 + $0x1fc] sm:$0xf] %vm547, %v880
        %896 = vst.msk [vmem:[#allocation2 + $0x224] sm:$0xf] %vm547, %v881
        %897 = vst.msk [vmem:[#allocation2 + $0x24c] sm:$0xf] %vm547, %v882
        %v898 = vld [vmem:[%s836] sm:$0xf]
        %v899 = vld [vmem:[%s836 + $0x4] sm:$0xf]
        %v900 = vld [vmem:[%s836 + $0x8] sm:$0xf]
        %v901 = vld [vmem:[%s836 + $0xc] sm:$0xf]
        %v902 = vld [vmem:[%s836 + $0x10] sm:$0xf]
        %v903 = vld [vmem:[%s836 + $0x14] sm:$0xf]
        %v904 = vld [vmem:[%s836 + $0x18] sm:$0xf]
        %v905 = vld [vmem:[%s836 + $0x1c] sm:$0xf]
        %v906 = vld [vmem:[%s836 + $0x20] sm:$0xf]
        %v907 = vld [vmem:[%s836 + $0x24] sm:$0xf]
        %v908 = vld [vmem:[%s836 + $0x28] sm:$0xf]
        %v909 = vld [vmem:[%s836 + $0x2c] sm:$0xf]
        %v910 = vld [vmem:[%s836 + $0x30] sm:$0xf]
        %v911 = vld [vmem:[%s836 + $0x34] sm:$0xf]
        %v912 = vld [vmem:[%s836 + $0x38] sm:$0xf]
        %928 = vrot.lane.b32.xlu0 %v898, 127
        %v929 = vpop.permute.xlu0 %928
        %930 = vrot.lane.b32.xlu0 %v899, 127
        %v931 = vpop.permute.xlu0 %930
        %932 = vrot.lane.b32.xlu0 %v900, 127
        %v933 = vpop.permute.xlu0 %932
        %934 = vrot.lane.b32.xlu0 %v901, 127
        %v935 = vpop.permute.xlu0 %934
        %936 = vrot.lane.b32.xlu0 %v902, 127
        %v937 = vpop.permute.xlu0 %936
        %938 = vrot.lane.b32.xlu0 %v903, 127
        %v939 = vpop.permute.xlu0 %938
        %940 = vrot.lane.b32.xlu0 %v904, 127
        %v941 = vpop.permute.xlu0 %940
        %942 = vrot.lane.b32.xlu0 %v905, 127
        %v943 = vpop.permute.xlu0 %942
        %944 = vrot.lane.b32.xlu0 %v906, 127
        %v945 = vpop.permute.xlu0 %944
        %946 = vrot.lane.b32.xlu0 %v907, 127
        %v947 = vpop.permute.xlu0 %946
        %948 = vrot.lane.b32.xlu0 %v908, 127
        %v949 = vpop.permute.xlu0 %948
        %950 = vrot.lane.b32.xlu0 %v909, 127
        %v951 = vpop.permute.xlu0 %950
        %952 = vrot.lane.b32.xlu0 %v910, 127
        %v953 = vpop.permute.xlu0 %952
        %954 = vrot.lane.b32.xlu0 %v911, 127
        %v955 = vpop.permute.xlu0 %954
        %956 = vrot.lane.b32.xlu0 %v912, 127
        %v957 = vpop.permute.xlu0 %956
        %973 = vst.msk [vmem:[#allocation2 + $0x20] sm:$0xf] %vm547, %v929
        %974 = vst.msk [vmem:[#allocation2 + $0x48] sm:$0xf] %vm547, %v931
        %975 = vst.msk [vmem:[#allocation2 + $0x70] sm:$0xf] %vm547, %v933
        %976 = vst.msk [vmem:[#allocation2 + $0x98] sm:$0xf] %vm547, %v935
        %977 = vst.msk [vmem:[#allocation2 + $0xc0] sm:$0xf] %vm547, %v937
        %978 = vst.msk [vmem:[#allocation2 + $0xe8] sm:$0xf] %vm547, %v939
        %979 = vst.msk [vmem:[#allocation2 + $0x110] sm:$0xf] %vm547, %v941
        %980 = vst.msk [vmem:[#allocation2 + $0x138] sm:$0xf] %vm547, %v943
        %981 = vst.msk [vmem:[#allocation2 + $0x160] sm:$0xf] %vm547, %v945
        %982 = vst.msk [vmem:[#allocation2 + $0x188] sm:$0xf] %vm547, %v947
        %983 = vst.msk [vmem:[#allocation2 + $0x1b0] sm:$0xf] %vm547, %v949
        %984 = vst.msk [vmem:[#allocation2 + $0x1d8] sm:$0xf] %vm547, %v951
        %985 = vst.msk [vmem:[#allocation2 + $0x200] sm:$0xf] %vm547, %v953
        %986 = vst.msk [vmem:[#allocation2 + $0x228] sm:$0xf] %vm547, %v955
        %987 = vst.msk [vmem:[#allocation2 + $0x250] sm:$0xf] %vm547, %v957
        %v988 = vld [vmem:[#allocation8] sm:$0xf]
        %v989 = vld [vmem:[#allocation2] sm:$0xff]
        %v990 = vld [vmem:[#allocation2 + $0x8] sm:$0xff]
        %v991 = vld [vmem:[#allocation2 + $0x10] sm:$0xff]
        %v992 = vld [vmem:[#allocation2 + $0x18] sm:$0xff]
        %v993 = vld [vmem:[#allocation2 + $0x20] sm:$0xf]
        %v994 = vld [vmem:[#allocation2 + $0x28] sm:$0xff]
        %v995 = vld [vmem:[#allocation2 + $0x30] sm:$0xff]
        %v996 = vld [vmem:[#allocation2 + $0x38] sm:$0xff]
        %v997 = vld [vmem:[#allocation2 + $0x40] sm:$0xff]
        %v998 = vld [vmem:[#allocation2 + $0x48] sm:$0xf]
        %v999 = vld [vmem:[#allocation2 + $0x50] sm:$0xff]
        %v1000 = vld [vmem:[#allocation2 + $0x58] sm:$0xff]
        %v1001 = vld [vmem:[#allocation2 + $0x60] sm:$0xff]
        %v1002 = vld [vmem:[#allocation2 + $0x68] sm:$0xff]
        %v1003 = vld [vmem:[#allocation2 + $0x70] sm:$0xf]
        %v1004 = vld [vmem:[#allocation2 + $0x78] sm:$0xff]
        %v1005 = vld [vmem:[#allocation2 + $0x80] sm:$0xff]
        %v1006 = vld [vmem:[#allocation2 + $0x88] sm:$0xff]
        %v1007 = vld [vmem:[#allocation2 + $0x90] sm:$0xff]
        %v1008 = vld [vmem:[#allocation2 + $0x98] sm:$0xf]
        %v1009 = vld [vmem:[#allocation2 + $0xa0] sm:$0xff]
        %v1010 = vld [vmem:[#allocation2 + $0xa8] sm:$0xff]
        %v1011 = vld [vmem:[#allocation2 + $0xb0] sm:$0xff]
        %v1012 = vld [vmem:[#allocation2 + $0xb8] sm:$0xff]
        %v1013 = vld [vmem:[#allocation2 + $0xc0] sm:$0xf]
        %v1014 = vld [vmem:[#allocation2 + $0xc8] sm:$0xff]
        %v1015 = vld [vmem:[#allocation2 + $0xd0] sm:$0xff]
        %v1016 = vld [vmem:[#allocation2 + $0xd8] sm:$0xff]
        %v1017 = vld [vmem:[#allocation2 + $0xe0] sm:$0xff]
        %v1018 = vld [vmem:[#allocation2 + $0xe8] sm:$0xf]
        %v1019 = vld [vmem:[#allocation2 + $0xf0] sm:$0xff]
        %v1020 = vld [vmem:[#allocation2 + $0xf8] sm:$0xff]
        %v1021 = vld [vmem:[#allocation2 + $0x100] sm:$0xff]
        %v1022 = vld [vmem:[#allocation2 + $0x108] sm:$0xff]
        %v1023 = vld [vmem:[#allocation2 + $0x110] sm:$0xf]
        %v1024 = vld [vmem:[#allocation2 + $0x118] sm:$0xff]
        %v1025 = vld [vmem:[#allocation2 + $0x120] sm:$0xff]
        %v1026 = vld [vmem:[#allocation2 + $0x128] sm:$0xff]
        %v1027 = vld [vmem:[#allocation2 + $0x130] sm:$0xff]
        %v1028 = vld [vmem:[#allocation2 + $0x138] sm:$0xf]
        %v1029 = vld [vmem:[#allocation2 + $0x140] sm:$0xff]
        %v1030 = vld [vmem:[#allocation2 + $0x148] sm:$0xff]
        %v1031 = vld [vmem:[#allocation2 + $0x150] sm:$0xff]
        %v1032 = vld [vmem:[#allocation2 + $0x158] sm:$0xff]
        %v1033 = vld [vmem:[#allocation2 + $0x160] sm:$0xf]
        %v1034 = vld [vmem:[#allocation2 + $0x168] sm:$0xff]
        %v1035 = vld [vmem:[#allocation2 + $0x170] sm:$0xff]
        %v1036 = vld [vmem:[#allocation2 + $0x178] sm:$0xff]
        %v1037 = vld [vmem:[#allocation2 + $0x180] sm:$0xff]
        %v1038 = vld [vmem:[#allocation2 + $0x188] sm:$0xf]
        %v1039 = vld [vmem:[#allocation2 + $0x190] sm:$0xff]
        %v1040 = vld [vmem:[#allocation2 + $0x198] sm:$0xff]
        %v1041 = vld [vmem:[#allocation2 + $0x1a0] sm:$0xff]
        %v1042 = vld [vmem:[#allocation2 + $0x1a8] sm:$0xff]
        %v1043 = vld [vmem:[#allocation2 + $0x1b0] sm:$0xf]
        %v1044 = vld [vmem:[#allocation2 + $0x1b8] sm:$0xff]
        %v1045 = vld [vmem:[#allocation2 + $0x1c0] sm:$0xff]
        %v1046 = vld [vmem:[#allocation2 + $0x1c8] sm:$0xff]
        %v1047 = vld [vmem:[#allocation2 + $0x1d0] sm:$0xff]
        %v1048 = vld [vmem:[#allocation2 + $0x1d8] sm:$0xf]
        %v1049 = vld [vmem:[#allocation2 + $0x1e0] sm:$0xff]
        %v1050 = vld [vmem:[#allocation2 + $0x1e8] sm:$0xff]
        %v1051 = vld [vmem:[#allocation2 + $0x1f0] sm:$0xff]
        %v1052 = vld [vmem:[#allocation2 + $0x1f8] sm:$0xff]
        %v1053 = vld [vmem:[#allocation2 + $0x200] sm:$0xf]
        %v1054 = vld [vmem:[#allocation10] sm:$0xf]
        %1056 = vset.pattern.permute.xlu0 0
        %1057 = vperm.xlu0 %1056, %v1054
        %v1058 = vpop.permute.xlu0 %1057
        %vm1060 = vcmask 293888
        %v1062 = vsel %vm1060, %v988, 0
        %vm1064 = vcmask 1043456
        %v1066 = vsel %vm1064, %v993, 0
        %1068 = vmatprep.subr.mxu0 0.0
        %1069 = vmatpush1.msra.mxu0 %v989
        %1070 = vmatprep.subr.mxu0 0.0
        %1071 = vmatpush1.msra.mxu0 %v990
        %1072 = vmatprep.subr.mxu0 0.0
        %1073 = vmatpush1.msra.mxu0 %v991
        %1074 = vmatprep.subr.mxu0 0.0
        %1075 = vmatpush1.msra.mxu0 %v992
        %1076 = vmatprep.subr.mxu0 0.0
        %1077 = vmatpush1.msra.mxu0 %v1066
        %1078 = vmatprep.subr.mxu0 0.0
        %1079 = vmatpush1.msra.mxu0 0.0
        %1080 = vmatprep.subr.mxu0 0.0
        %1081 = vmatpush1.msra.mxu0 0.0
        %1082 = vmatprep.subr.mxu0 0.0
        %1083 = vmatpush1.msra.mxu0 0.0
        %1084 = vmatprep.subr.mxu0 0.0
        %1085 = vmatpush1.msra.mxu0 0.0
        %1086 = vmatprep.subr.mxu0 0.0
        %1087 = vmatpush1.msra.mxu0 0.0
        %1088 = vmatprep.subr.mxu0 0.0
        %1089 = vmatpush1.msra.mxu0 0.0
        %1090 = vmatprep.subr.mxu0 0.0
        %1091 = vmatpush1.msra.mxu0 0.0
        %1092 = vmatprep.subr.mxu0 0.0
        %1093 = vmatpush1.msra.mxu0 0.0
        %1094 = vmatprep.subr.mxu0 0.0
        %1095 = vmatpush1.msra.mxu0 0.0
        %1096 = vmatprep.subr.mxu0 0.0
        %1097 = vmatpush1.msra.mxu0 0.0
        %1098 = vmatprep.subr.mxu0 0.0
        %1099 = vmatpush1.msra.mxu0 0.0
        %1100 = vmatprep.subr.mxu0 0.0
        %1101 = vmatpush1.msra.mxu0 0.0
        %1102 = vmatprep.subr.mxu0 0.0
        %1103 = vmatpush1.msra.mxu0 0.0
        %1104 = vmatprep.subr.mxu0 0.0
        %1105 = vmatpush1.msra.mxu0 0.0
        %1106 = vmatprep.subr.mxu0 0.0
        %1107 = vmatpush1.msra.mxu0 0.0
        %1108 = vmatprep.subr.mxu0 0.0
        %1109 = vmatpush1.msra.mxu0 0.0
        %1110 = vmatprep.subr.mxu0 0.0
        %1111 = vmatpush1.msra.mxu0 0.0
        %1112 = vmatprep.subr.mxu0 0.0
        %1113 = vmatpush1.msra.mxu0 0.0
        %1114 = vmatprep.subr.mxu0 0.0
        %1115 = vmatpush1.msra.mxu0 0.0
        %1116 = vmatprep.subr.mxu0 0.0
        %1117 = vmatpush1.msra.mxu0 0.0
        %1118 = vmatprep.subr.mxu0 0.0
        %1119 = vmatpush1.msra.mxu0 0.0
        %1120 = vmatprep.subr.mxu0 0.0
        %1121 = vmatpush1.msra.mxu0 0.0
        %1122 = vmatprep.subr.mxu0 0.0
        %1123 = vmatpush1.msra.mxu0 0.0
        %1124 = vmatprep.subr.mxu0 0.0
        %1125 = vmatpush1.msra.mxu0 0.0
        %1126 = vmatprep.subr.mxu0 0.0
        %1127 = vmatpush1.msra.mxu0 0.0
        %1128 = vmatprep.subr.mxu0 0.0
        %1129 = vmatpush1.msra.mxu0 0.0
        %1130 = vmatprep.subr.mxu0 0.0
        %1131 = vmatpush1.msra.mxu0 0.0
        %1132 = vmatprep.mubr.f32.mxu0 0.0
        %1133 = vmatmul.mubr.f32.gmra.mrb[0].mxu0 %v1062
        %v1134 = vpop.f32.mrb[0].mxu0
        %v1135 = vadd.f32 %v1058, %v1134
        %v1136 = vpop.f32.mrb[0].mxu0
        %1137 = vdwg.mxu0
        %v1139 = vsel %vm1064, %v998, 0
        %1141 = vmatprep.subr.mxu0 0.0
        %1142 = vmatpush1.msra.mxu0 %v994
        %1143 = vmatprep.subr.mxu0 0.0
        %1144 = vmatpush1.msra.mxu0 %v995
        %1145 = vmatprep.subr.mxu0 0.0
        %1146 = vmatpush1.msra.mxu0 %v996
        %1147 = vmatprep.subr.mxu0 0.0
        %1148 = vmatpush1.msra.mxu0 %v997
        %1149 = vmatprep.subr.mxu0 0.0
        %1150 = vmatpush1.msra.mxu0 %v1139
        %1151 = vmatprep.subr.mxu0 0.0
        %1152 = vmatpush1.msra.mxu0 0.0
        %1153 = vmatprep.subr.mxu0 0.0
        %1154 = vmatpush1.msra.mxu0 0.0
        %1155 = vmatprep.subr.mxu0 0.0
        %1156 = vmatpush1.msra.mxu0 0.0
        %1157 = vmatprep.subr.mxu0 0.0
        %1158 = vmatpush1.msra.mxu0 0.0
        %1159 = vmatprep.subr.mxu0 0.0
        %1160 = vmatpush1.msra.mxu0 0.0
        %1161 = vmatprep.subr.mxu0 0.0
        %1162 = vmatpush1.msra.mxu0 0.0
        %1163 = vmatprep.subr.mxu0 0.0
        %1164 = vmatpush1.msra.mxu0 0.0
        %1165 = vmatprep.subr.mxu0 0.0
        %1166 = vmatpush1.msra.mxu0 0.0
        %1167 = vmatprep.subr.mxu0 0.0
        %1168 = vmatpush1.msra.mxu0 0.0
        %1169 = vmatprep.subr.mxu0 0.0
        %1170 = vmatpush1.msra.mxu0 0.0
        %1171 = vmatprep.subr.mxu0 0.0
        %1172 = vmatpush1.msra.mxu0 0.0
        %1173 = vmatprep.subr.mxu0 0.0
        %1174 = vmatpush1.msra.mxu0 0.0
        %1175 = vmatprep.subr.mxu0 0.0
        %1176 = vmatpush1.msra.mxu0 0.0
        %1177 = vmatprep.subr.mxu0 0.0
        %1178 = vmatpush1.msra.mxu0 0.0
        %1179 = vmatprep.subr.mxu0 0.0
        %1180 = vmatpush1.msra.mxu0 0.0
        %1181 = vmatprep.subr.mxu0 0.0
        %1182 = vmatpush1.msra.mxu0 0.0
        %1183 = vmatprep.subr.mxu0 0.0
        %1184 = vmatpush1.msra.mxu0 0.0
        %1185 = vmatprep.subr.mxu0 0.0
        %1186 = vmatpush1.msra.mxu0 0.0
        %1187 = vmatprep.subr.mxu0 0.0
        %1188 = vmatpush1.msra.mxu0 0.0
        %1189 = vmatprep.subr.mxu0 0.0
        %1190 = vmatpush1.msra.mxu0 0.0
        %1191 = vmatprep.subr.mxu0 0.0
        %1192 = vmatpush1.msra.mxu0 0.0
        %1193 = vmatprep.subr.mxu0 0.0
        %1194 = vmatpush1.msra.mxu0 0.0
        %1195 = vmatprep.subr.mxu0 0.0
        %1196 = vmatpush1.msra.mxu0 0.0
        %1197 = vmatprep.subr.mxu0 0.0
        %1198 = vmatpush1.msra.mxu0 0.0
        %1199 = vmatprep.subr.mxu0 0.0
        %1200 = vmatpush1.msra.mxu0 0.0
        %1201 = vmatprep.subr.mxu0 0.0
        %1202 = vmatpush1.msra.mxu0 0.0
        %1203 = vmatprep.subr.mxu0 0.0
        %1204 = vmatpush1.msra.mxu0 0.0
        %1205 = vmatprep.mubr.f32.mxu0 0.0
        %1206 = vmatmul.mubr.f32.gmra.mrb[0].mxu0 %v1062
        %v1207 = vpop.f32.mrb[0].mxu0
        %v1208 = vadd.f32 %v1058, %v1207
        %v1209 = vpop.f32.mrb[0].mxu0
        %1210 = vdwg.mxu0
        %v1212 = vsel %vm1064, %v1003, 0
        %1214 = vmatprep.subr.mxu0 0.0
        %1215 = vmatpush1.msra.mxu0 %v999
        %1216 = vmatprep.subr.mxu0 0.0
        %1217 = vmatpush1.msra.mxu0 %v1000
        %1218 = vmatprep.subr.mxu0 0.0
        %1219 = vmatpush1.msra.mxu0 %v1001
        %1220 = vmatprep.subr.mxu0 0.0
        %1221 = vmatpush1.msra.mxu0 %v1002
        %1222 = vmatprep.subr.mxu0 0.0
        %1223 = vmatpush1.msra.mxu0 %v1212
        %1224 = vmatprep.subr.mxu0 0.0
        %1225 = vmatpush1.msra.mxu0 0.0
        %1226 = vmatprep.subr.mxu0 0.0
        %1227 = vmatpush1.msra.mxu0 0.0
        %1228 = vmatprep.subr.mxu0 0.0
        %1229 = vmatpush1.msra.mxu0 0.0
        %1230 = vmatprep.subr.mxu0 0.0
        %1231 = vmatpush1.msra.mxu0 0.0
        %1232 = vmatprep.subr.mxu0 0.0
        %1233 = vmatpush1.msra.mxu0 0.0
        %1234 = vmatprep.subr.mxu0 0.0
        %1235 = vmatpush1.msra.mxu0 0.0
        %1236 = vmatprep.subr.mxu0 0.0
        %1237 = vmatpush1.msra.mxu0 0.0
        %1238 = vmatprep.subr.mxu0 0.0
        %1239 = vmatpush1.msra.mxu0 0.0
        %1240 = vmatprep.subr.mxu0 0.0
        %1241 = vmatpush1.msra.mxu0 0.0
        %1242 = vmatprep.subr.mxu0 0.0
        %1243 = vmatpush1.msra.mxu0 0.0
        %1244 = vmatprep.subr.mxu0 0.0
        %1245 = vmatpush1.msra.mxu0 0.0
        %1246 = vmatprep.subr.mxu0 0.0
        %1247 = vmatpush1.msra.mxu0 0.0
        %1248 = vmatprep.subr.mxu0 0.0
        %1249 = vmatpush1.msra.mxu0 0.0
        %1250 = vmatprep.subr.mxu0 0.0
        %1251 = vmatpush1.msra.mxu0 0.0
        %1252 = vmatprep.subr.mxu0 0.0
        %1253 = vmatpush1.msra.mxu0 0.0
        %1254 = vmatprep.subr.mxu0 0.0
        %1255 = vmatpush1.msra.mxu0 0.0
        %1256 = vmatprep.subr.mxu0 0.0
        %1257 = vmatpush1.msra.mxu0 0.0
        %1258 = vmatprep.subr.mxu0 0.0
        %1259 = vmatpush1.msra.mxu0 0.0
        %1260 = vmatprep.subr.mxu0 0.0
        %1261 = vmatpush1.msra.mxu0 0.0
        %1262 = vmatprep.subr.mxu0 0.0
        %1263 = vmatpush1.msra.mxu0 0.0
        %1264 = vmatprep.subr.mxu0 0.0
        %1265 = vmatpush1.msra.mxu0 0.0
        %1266 = vmatprep.subr.mxu0 0.0
        %1267 = vmatpush1.msra.mxu0 0.0
        %1268 = vmatprep.subr.mxu0 0.0
        %1269 = vmatpush1.msra.mxu0 0.0
        %1270 = vmatprep.subr.mxu0 0.0
        %1271 = vmatpush1.msra.mxu0 0.0
        %1272 = vmatprep.subr.mxu0 0.0
        %1273 = vmatpush1.msra.mxu0 0.0
        %1274 = vmatprep.subr.mxu0 0.0
        %1275 = vmatpush1.msra.mxu0 0.0
        %1276 = vmatprep.subr.mxu0 0.0
        %1277 = vmatpush1.msra.mxu0 0.0
        %1278 = vmatprep.mubr.f32.mxu0 0.0
        %1279 = vmatmul.mubr.f32.gmra.mrb[0].mxu0 %v1062
        %v1280 = vpop.f32.mrb[0].mxu0
        %v1281 = vadd.f32 %v1058, %v1280
        %v1282 = vpop.f32.mrb[0].mxu0
        %1283 = vdwg.mxu0
        %v1285 = vsel %vm1064, %v1008, 0
        %1287 = vmatprep.subr.mxu0 0.0
        %1288 = vmatpush1.msra.mxu0 %v1004
        %1289 = vmatprep.subr.mxu0 0.0
        %1290 = vmatpush1.msra.mxu0 %v1005
        %1291 = vmatprep.subr.mxu0 0.0
        %1292 = vmatpush1.msra.mxu0 %v1006
        %1293 = vmatprep.subr.mxu0 0.0
        %1294 = vmatpush1.msra.mxu0 %v1007
        %1295 = vmatprep.subr.mxu0 0.0
        %1296 = vmatpush1.msra.mxu0 %v1285
        %1297 = vmatprep.subr.mxu0 0.0
        %1298 = vmatpush1.msra.mxu0 0.0
        %1299 = vmatprep.subr.mxu0 0.0
        %1300 = vmatpush1.msra.mxu0 0.0
        %1301 = vmatprep.subr.mxu0 0.0
        %1302 = vmatpush1.msra.mxu0 0.0
        %1303 = vmatprep.subr.mxu0 0.0
        %1304 = vmatpush1.msra.mxu0 0.0
        %1305 = vmatprep.subr.mxu0 0.0
        %1306 = vmatpush1.msra.mxu0 0.0
        %1307 = vmatprep.subr.mxu0 0.0
        %1308 = vmatpush1.msra.mxu0 0.0
        %1309 = vmatprep.subr.mxu0 0.0
        %1310 = vmatpush1.msra.mxu0 0.0
        %1311 = vmatprep.subr.mxu0 0.0
        %1312 = vmatpush1.msra.mxu0 0.0
        %1313 = vmatprep.subr.mxu0 0.0
        %1314 = vmatpush1.msra.mxu0 0.0
        %1315 = vmatprep.subr.mxu0 0.0
        %1316 = vmatpush1.msra.mxu0 0.0
        %1317 = vmatprep.subr.mxu0 0.0
        %1318 = vmatpush1.msra.mxu0 0.0
        %1319 = vmatprep.subr.mxu0 0.0
        %1320 = vmatpush1.msra.mxu0 0.0
        %1321 = vmatprep.subr.mxu0 0.0
        %1322 = vmatpush1.msra.mxu0 0.0
        %1323 = vmatprep.subr.mxu0 0.0
        %1324 = vmatpush1.msra.mxu0 0.0
        %1325 = vmatprep.subr.mxu0 0.0
        %1326 = vmatpush1.msra.mxu0 0.0
        %1327 = vmatprep.subr.mxu0 0.0
        %1328 = vmatpush1.msra.mxu0 0.0
        %1329 = vmatprep.subr.mxu0 0.0
        %1330 = vmatpush1.msra.mxu0 0.0
        %1331 = vmatprep.subr.mxu0 0.0
        %1332 = vmatpush1.msra.mxu0 0.0
        %1333 = vmatprep.subr.mxu0 0.0
        %1334 = vmatpush1.msra.mxu0 0.0
        %1335 = vmatprep.subr.mxu0 0.0
        %1336 = vmatpush1.msra.mxu0 0.0
        %1337 = vmatprep.subr.mxu0 0.0
        %1338 = vmatpush1.msra.mxu0 0.0
        %1339 = vmatprep.subr.mxu0 0.0
        %1340 = vmatpush1.msra.mxu0 0.0
        %1341 = vmatprep.subr.mxu0 0.0
        %1342 = vmatpush1.msra.mxu0 0.0
        %1343 = vmatprep.subr.mxu0 0.0
        %1344 = vmatpush1.msra.mxu0 0.0
        %1345 = vmatprep.subr.mxu0 0.0
        %1346 = vmatpush1.msra.mxu0 0.0
        %1347 = vmatprep.subr.mxu0 0.0
        %1348 = vmatpush1.msra.mxu0 0.0
        %1349 = vmatprep.subr.mxu0 0.0
        %1350 = vmatpush1.msra.mxu0 0.0
        %1351 = vmatprep.mubr.f32.mxu0 0.0
        %1352 = vmatmul.mubr.f32.gmra.mrb[0].mxu0 %v1062
        %v1353 = vpop.f32.mrb[0].mxu0
        %v1354 = vadd.f32 %v1058, %v1353
        %v1355 = vpop.f32.mrb[0].mxu0
        %1356 = vdwg.mxu0
        %v1358 = vsel %vm1064, %v1013, 0
        %1360 = vmatprep.subr.mxu0 0.0
        %1361 = vmatpush1.msra.mxu0 %v1009
        %1362 = vmatprep.subr.mxu0 0.0
        %1363 = vmatpush1.msra.mxu0 %v1010
        %1364 = vmatprep.subr.mxu0 0.0
        %1365 = vmatpush1.msra.mxu0 %v1011
        %1366 = vmatprep.subr.mxu0 0.0
        %1367 = vmatpush1.msra.mxu0 %v1012
        %1368 = vmatprep.subr.mxu0 0.0
        %1369 = vmatpush1.msra.mxu0 %v1358
        %1370 = vmatprep.subr.mxu0 0.0
        %1371 = vmatpush1.msra.mxu0 0.0
        %1372 = vmatprep.subr.mxu0 0.0
        %1373 = vmatpush1.msra.mxu0 0.0
        %1374 = vmatprep.subr.mxu0 0.0
        %1375 = vmatpush1.msra.mxu0 0.0
        %1376 = vmatprep.subr.mxu0 0.0
        %1377 = vmatpush1.msra.mxu0 0.0
        %1378 = vmatprep.subr.mxu0 0.0
        %1379 = vmatpush1.msra.mxu0 0.0
        %1380 = vmatprep.subr.mxu0 0.0
        %1381 = vmatpush1.msra.mxu0 0.0
        %1382 = vmatprep.subr.mxu0 0.0
        %1383 = vmatpush1.msra.mxu0 0.0
        %1384 = vmatprep.subr.mxu0 0.0
        %1385 = vmatpush1.msra.mxu0 0.0
        %1386 = vmatprep.subr.mxu0 0.0
        %1387 = vmatpush1.msra.mxu0 0.0
        %1388 = vmatprep.subr.mxu0 0.0
        %1389 = vmatpush1.msra.mxu0 0.0
        %1390 = vmatprep.subr.mxu0 0.0
        %1391 = vmatpush1.msra.mxu0 0.0
        %1392 = vmatprep.subr.mxu0 0.0
        %1393 = vmatpush1.msra.mxu0 0.0
        %1394 = vmatprep.subr.mxu0 0.0
        %1395 = vmatpush1.msra.mxu0 0.0
        %1396 = vmatprep.subr.mxu0 0.0
        %1397 = vmatpush1.msra.mxu0 0.0
        %1398 = vmatprep.subr.mxu0 0.0
        %1399 = vmatpush1.msra.mxu0 0.0
        %1400 = vmatprep.subr.mxu0 0.0
        %1401 = vmatpush1.msra.mxu0 0.0
        %1402 = vmatprep.subr.mxu0 0.0
        %1403 = vmatpush1.msra.mxu0 0.0
        %1404 = vmatprep.subr.mxu0 0.0
        %1405 = vmatpush1.msra.mxu0 0.0
        %1406 = vmatprep.subr.mxu0 0.0
        %1407 = vmatpush1.msra.mxu0 0.0
        %1408 = vmatprep.subr.mxu0 0.0
        %1409 = vmatpush1.msra.mxu0 0.0
        %1410 = vmatprep.subr.mxu0 0.0
        %1411 = vmatpush1.msra.mxu0 0.0
        %1412 = vmatprep.subr.mxu0 0.0
        %1413 = vmatpush1.msra.mxu0 0.0
        %1414 = vmatprep.subr.mxu0 0.0
        %1415 = vmatpush1.msra.mxu0 0.0
        %1416 = vmatprep.subr.mxu0 0.0
        %1417 = vmatpush1.msra.mxu0 0.0
        %1418 = vmatprep.subr.mxu0 0.0
        %1419 = vmatpush1.msra.mxu0 0.0
        %1420 = vmatprep.subr.mxu0 0.0
        %1421 = vmatpush1.msra.mxu0 0.0
        %1422 = vmatprep.subr.mxu0 0.0
        %1423 = vmatpush1.msra.mxu0 0.0
        %1424 = vmatprep.mubr.f32.mxu0 0.0
        %1425 = vmatmul.mubr.f32.gmra.mrb[0].mxu0 %v1062
        %v1426 = vpop.f32.mrb[0].mxu0
        %v1427 = vadd.f32 %v1058, %v1426
        %v1428 = vpop.f32.mrb[0].mxu0
        %1429 = vdwg.mxu0
        %v1431 = vsel %vm1064, %v1018, 0
        %1433 = vmatprep.subr.mxu0 0.0
        %1434 = vmatpush1.msra.mxu0 %v1014
        %1435 = vmatprep.subr.mxu0 0.0
        %1436 = vmatpush1.msra.mxu0 %v1015
        %1437 = vmatprep.subr.mxu0 0.0
        %1438 = vmatpush1.msra.mxu0 %v1016
        %1439 = vmatprep.subr.mxu0 0.0
        %1440 = vmatpush1.msra.mxu0 %v1017
        %1441 = vmatprep.subr.mxu0 0.0
        %1442 = vmatpush1.msra.mxu0 %v1431
        %1443 = vmatprep.subr.mxu0 0.0
        %1444 = vmatpush1.msra.mxu0 0.0
        %1445 = vmatprep.subr.mxu0 0.0
        %1446 = vmatpush1.msra.mxu0 0.0
        %1447 = vmatprep.subr.mxu0 0.0
        %1448 = vmatpush1.msra.mxu0 0.0
        %1449 = vmatprep.subr.mxu0 0.0
        %1450 = vmatpush1.msra.mxu0 0.0
        %1451 = vmatprep.subr.mxu0 0.0
        %1452 = vmatpush1.msra.mxu0 0.0
        %1453 = vmatprep.subr.mxu0 0.0
        %1454 = vmatpush1.msra.mxu0 0.0
        %1455 = vmatprep.subr.mxu0 0.0
        %1456 = vmatpush1.msra.mxu0 0.0
        %1457 = vmatprep.subr.mxu0 0.0
        %1458 = vmatpush1.msra.mxu0 0.0
        %1459 = vmatprep.subr.mxu0 0.0
        %1460 = vmatpush1.msra.mxu0 0.0
        %1461 = vmatprep.subr.mxu0 0.0
        %1462 = vmatpush1.msra.mxu0 0.0
        %1463 = vmatprep.subr.mxu0 0.0
        %1464 = vmatpush1.msra.mxu0 0.0
        %1465 = vmatprep.subr.mxu0 0.0
        %1466 = vmatpush1.msra.mxu0 0.0
        %1467 = vmatprep.subr.mxu0 0.0
        %1468 = vmatpush1.msra.mxu0 0.0
        %1469 = vmatprep.subr.mxu0 0.0
        %1470 = vmatpush1.msra.mxu0 0.0
        %1471 = vmatprep.subr.mxu0 0.0
        %1472 = vmatpush1.msra.mxu0 0.0
        %1473 = vmatprep.subr.mxu0 0.0
        %1474 = vmatpush1.msra.mxu0 0.0
        %1475 = vmatprep.subr.mxu0 0.0
        %1476 = vmatpush1.msra.mxu0 0.0
        %1477 = vmatprep.subr.mxu0 0.0
        %1478 = vmatpush1.msra.mxu0 0.0
        %1479 = vmatprep.subr.mxu0 0.0
        %1480 = vmatpush1.msra.mxu0 0.0
        %1481 = vmatprep.subr.mxu0 0.0
        %1482 = vmatpush1.msra.mxu0 0.0
        %1483 = vmatprep.subr.mxu0 0.0
        %1484 = vmatpush1.msra.mxu0 0.0
        %1485 = vmatprep.subr.mxu0 0.0
        %1486 = vmatpush1.msra.mxu0 0.0
        %1487 = vmatprep.subr.mxu0 0.0
        %1488 = vmatpush1.msra.mxu0 0.0
        %1489 = vmatprep.subr.mxu0 0.0
        %1490 = vmatpush1.msra.mxu0 0.0
        %1491 = vmatprep.subr.mxu0 0.0
        %1492 = vmatpush1.msra.mxu0 0.0
        %1493 = vmatprep.subr.mxu0 0.0
        %1494 = vmatpush1.msra.mxu0 0.0
        %1495 = vmatprep.subr.mxu0 0.0
        %1496 = vmatpush1.msra.mxu0 0.0
        %1497 = vmatprep.mubr.f32.mxu0 0.0
        %1498 = vmatmul.mubr.f32.gmra.mrb[0].mxu0 %v1062
        %v1499 = vpop.f32.mrb[0].mxu0
        %v1500 = vadd.f32 %v1058, %v1499
        %v1501 = vpop.f32.mrb[0].mxu0
        %1502 = vdwg.mxu0
        %v1504 = vsel %vm1064, %v1023, 0
        %1506 = vmatprep.subr.mxu0 0.0
        %1507 = vmatpush1.msra.mxu0 %v1019
        %1508 = vmatprep.subr.mxu0 0.0
        %1509 = vmatpush1.msra.mxu0 %v1020
        %1510 = vmatprep.subr.mxu0 0.0
        %1511 = vmatpush1.msra.mxu0 %v1021
        %1512 = vmatprep.subr.mxu0 0.0
        %1513 = vmatpush1.msra.mxu0 %v1022
        %1514 = vmatprep.subr.mxu0 0.0
        %1515 = vmatpush1.msra.mxu0 %v1504
        %1516 = vmatprep.subr.mxu0 0.0
        %1517 = vmatpush1.msra.mxu0 0.0
        %1518 = vmatprep.subr.mxu0 0.0
        %1519 = vmatpush1.msra.mxu0 0.0
        %1520 = vmatprep.subr.mxu0 0.0
        %1521 = vmatpush1.msra.mxu0 0.0
        %1522 = vmatprep.subr.mxu0 0.0
        %1523 = vmatpush1.msra.mxu0 0.0
        %1524 = vmatprep.subr.mxu0 0.0
        %1525 = vmatpush1.msra.mxu0 0.0
        %1526 = vmatprep.subr.mxu0 0.0
        %1527 = vmatpush1.msra.mxu0 0.0
        %1528 = vmatprep.subr.mxu0 0.0
        %1529 = vmatpush1.msra.mxu0 0.0
        %1530 = vmatprep.subr.mxu0 0.0
        %1531 = vmatpush1.msra.mxu0 0.0
        %1532 = vmatprep.subr.mxu0 0.0
        %1533 = vmatpush1.msra.mxu0 0.0
        %1534 = vmatprep.subr.mxu0 0.0
        %1535 = vmatpush1.msra.mxu0 0.0
        %1536 = vmatprep.subr.mxu0 0.0
        %1537 = vmatpush1.msra.mxu0 0.0
        %1538 = vmatprep.subr.mxu0 0.0
        %1539 = vmatpush1.msra.mxu0 0.0
        %1540 = vmatprep.subr.mxu0 0.0
        %1541 = vmatpush1.msra.mxu0 0.0
        %1542 = vmatprep.subr.mxu0 0.0
        %1543 = vmatpush1.msra.mxu0 0.0
        %1544 = vmatprep.subr.mxu0 0.0
        %1545 = vmatpush1.msra.mxu0 0.0
        %1546 = vmatprep.subr.mxu0 0.0
        %1547 = vmatpush1.msra.mxu0 0.0
        %1548 = vmatprep.subr.mxu0 0.0
        %1549 = vmatpush1.msra.mxu0 0.0
        %1550 = vmatprep.subr.mxu0 0.0
        %1551 = vmatpush1.msra.mxu0 0.0
        %1552 = vmatprep.subr.mxu0 0.0
        %1553 = vmatpush1.msra.mxu0 0.0
        %1554 = vmatprep.subr.mxu0 0.0
        %1555 = vmatpush1.msra.mxu0 0.0
        %1556 = vmatprep.subr.mxu0 0.0
        %1557 = vmatpush1.msra.mxu0 0.0
        %1558 = vmatprep.subr.mxu0 0.0
        %1559 = vmatpush1.msra.mxu0 0.0
        %1560 = vmatprep.subr.mxu0 0.0
        %1561 = vmatpush1.msra.mxu0 0.0
        %1562 = vmatprep.subr.mxu0 0.0
        %1563 = vmatpush1.msra.mxu0 0.0
        %1564 = vmatprep.subr.mxu0 0.0
        %1565 = vmatpush1.msra.mxu0 0.0
        %1566 = vmatprep.subr.mxu0 0.0
        %1567 = vmatpush1.msra.mxu0 0.0
        %1568 = vmatprep.subr.mxu0 0.0
        %1569 = vmatpush1.msra.mxu0 0.0
        %1570 = vmatprep.mubr.f32.mxu0 0.0
        %1571 = vmatmul.mubr.f32.gmra.mrb[0].mxu0 %v1062
        %v1572 = vpop.f32.mrb[0].mxu0
        %v1573 = vadd.f32 %v1058, %v1572
        %v1574 = vpop.f32.mrb[0].mxu0
        %1575 = vdwg.mxu0
        %v1577 = vsel %vm1064, %v1028, 0
        %1579 = vmatprep.subr.mxu0 0.0
        %1580 = vmatpush1.msra.mxu0 %v1024
        %1581 = vmatprep.subr.mxu0 0.0
        %1582 = vmatpush1.msra.mxu0 %v1025
        %1583 = vmatprep.subr.mxu0 0.0
        %1584 = vmatpush1.msra.mxu0 %v1026
        %1585 = vmatprep.subr.mxu0 0.0
        %1586 = vmatpush1.msra.mxu0 %v1027
        %1587 = vmatprep.subr.mxu0 0.0
        %1588 = vmatpush1.msra.mxu0 %v1577
        %1589 = vmatprep.subr.mxu0 0.0
        %1590 = vmatpush1.msra.mxu0 0.0
        %1591 = vmatprep.subr.mxu0 0.0
        %1592 = vmatpush1.msra.mxu0 0.0
        %1593 = vmatprep.subr.mxu0 0.0
        %1594 = vmatpush1.msra.mxu0 0.0
        %1595 = vmatprep.subr.mxu0 0.0
        %1596 = vmatpush1.msra.mxu0 0.0
        %1597 = vmatprep.subr.mxu0 0.0
        %1598 = vmatpush1.msra.mxu0 0.0
        %1599 = vmatprep.subr.mxu0 0.0
        %1600 = vmatpush1.msra.mxu0 0.0
        %1601 = vmatprep.subr.mxu0 0.0
        %1602 = vmatpush1.msra.mxu0 0.0
        %1603 = vmatprep.subr.mxu0 0.0
        %1604 = vmatpush1.msra.mxu0 0.0
        %1605 = vmatprep.subr.mxu0 0.0
        %1606 = vmatpush1.msra.mxu0 0.0
        %1607 = vmatprep.subr.mxu0 0.0
        %1608 = vmatpush1.msra.mxu0 0.0
        %1609 = vmatprep.subr.mxu0 0.0
        %1610 = vmatpush1.msra.mxu0 0.0
        %1611 = vmatprep.subr.mxu0 0.0
        %1612 = vmatpush1.msra.mxu0 0.0
        %1613 = vmatprep.subr.mxu0 0.0
        %1614 = vmatpush1.msra.mxu0 0.0
        %1615 = vmatprep.subr.mxu0 0.0
        %1616 = vmatpush1.msra.mxu0 0.0
        %1617 = vmatprep.subr.mxu0 0.0
        %1618 = vmatpush1.msra.mxu0 0.0
        %1619 = vmatprep.subr.mxu0 0.0
        %1620 = vmatpush1.msra.mxu0 0.0
        %1621 = vmatprep.subr.mxu0 0.0
        %1622 = vmatpush1.msra.mxu0 0.0
        %1623 = vmatprep.subr.mxu0 0.0
        %1624 = vmatpush1.msra.mxu0 0.0
        %1625 = vmatprep.subr.mxu0 0.0
        %1626 = vmatpush1.msra.mxu0 0.0
        %1627 = vmatprep.subr.mxu0 0.0
        %1628 = vmatpush1.msra.mxu0 0.0
        %1629 = vmatprep.subr.mxu0 0.0
        %1630 = vmatpush1.msra.mxu0 0.0
        %1631 = vmatprep.subr.mxu0 0.0
        %1632 = vmatpush1.msra.mxu0 0.0
        %1633 = vmatprep.subr.mxu0 0.0
        %1634 = vmatpush1.msra.mxu0 0.0
        %1635 = vmatprep.subr.mxu0 0.0
        %1636 = vmatpush1.msra.mxu0 0.0
        %1637 = vmatprep.subr.mxu0 0.0
        %1638 = vmatpush1.msra.mxu0 0.0
        %1639 = vmatprep.subr.mxu0 0.0
        %1640 = vmatpush1.msra.mxu0 0.0
        %1641 = vmatprep.subr.mxu0 0.0
        %1642 = vmatpush1.msra.mxu0 0.0
        %1643 = vmatprep.mubr.f32.mxu0 0.0
        %1644 = vmatmul.mubr.f32.gmra.mrb[0].mxu0 %v1062
        %v1645 = vpop.f32.mrb[0].mxu0
        %v1646 = vadd.f32 %v1058, %v1645
        %v1647 = vpop.f32.mrb[0].mxu0
        %1648 = vdwg.mxu0
        %v1650 = vsel %vm1064, %v1033, 0
        %1652 = vmatprep.subr.mxu0 0.0
        %1653 = vmatpush1.msra.mxu0 %v1029
        %1654 = vmatprep.subr.mxu0 0.0
        %1655 = vmatpush1.msra.mxu0 %v1030
        %1656 = vmatprep.subr.mxu0 0.0
        %1657 = vmatpush1.msra.mxu0 %v1031
        %1658 = vmatprep.subr.mxu0 0.0
        %1659 = vmatpush1.msra.mxu0 %v1032
        %1660 = vmatprep.subr.mxu0 0.0
        %1661 = vmatpush1.msra.mxu0 %v1650
        %1662 = vmatprep.subr.mxu0 0.0
        %1663 = vmatpush1.msra.mxu0 0.0
        %1664 = vmatprep.subr.mxu0 0.0
        %1665 = vmatpush1.msra.mxu0 0.0
        %1666 = vmatprep.subr.mxu0 0.0
        %1667 = vmatpush1.msra.mxu0 0.0
        %1668 = vmatprep.subr.mxu0 0.0
        %1669 = vmatpush1.msra.mxu0 0.0
        %1670 = vmatprep.subr.mxu0 0.0
        %1671 = vmatpush1.msra.mxu0 0.0
        %1672 = vmatprep.subr.mxu0 0.0
        %1673 = vmatpush1.msra.mxu0 0.0
        %1674 = vmatprep.subr.mxu0 0.0
        %1675 = vmatpush1.msra.mxu0 0.0
        %1676 = vmatprep.subr.mxu0 0.0
        %1677 = vmatpush1.msra.mxu0 0.0
        %1678 = vmatprep.subr.mxu0 0.0
        %1679 = vmatpush1.msra.mxu0 0.0
        %1680 = vmatprep.subr.mxu0 0.0
        %1681 = vmatpush1.msra.mxu0 0.0
        %1682 = vmatprep.subr.mxu0 0.0
        %1683 = vmatpush1.msra.mxu0 0.0
        %1684 = vmatprep.subr.mxu0 0.0
        %1685 = vmatpush1.msra.mxu0 0.0
        %1686 = vmatprep.subr.mxu0 0.0
        %1687 = vmatpush1.msra.mxu0 0.0
        %1688 = vmatprep.subr.mxu0 0.0
        %1689 = vmatpush1.msra.mxu0 0.0
        %1690 = vmatprep.subr.mxu0 0.0
        %1691 = vmatpush1.msra.mxu0 0.0
        %1692 = vmatprep.subr.mxu0 0.0
        %1693 = vmatpush1.msra.mxu0 0.0
        %1694 = vmatprep.subr.mxu0 0.0
        %1695 = vmatpush1.msra.mxu0 0.0
        %1696 = vmatprep.subr.mxu0 0.0
        %1697 = vmatpush1.msra.mxu0 0.0
        %1698 = vmatprep.subr.mxu0 0.0
        %1699 = vmatpush1.msra.mxu0 0.0
        %1700 = vmatprep.subr.mxu0 0.0
        %1701 = vmatpush1.msra.mxu0 0.0
        %1702 = vmatprep.subr.mxu0 0.0
        %1703 = vmatpush1.msra.mxu0 0.0
        %1704 = vmatprep.subr.mxu0 0.0
        %1705 = vmatpush1.msra.mxu0 0.0
        %1706 = vmatprep.subr.mxu0 0.0
        %1707 = vmatpush1.msra.mxu0 0.0
        %1708 = vmatprep.subr.mxu0 0.0
        %1709 = vmatpush1.msra.mxu0 0.0
        %1710 = vmatprep.subr.mxu0 0.0
        %1711 = vmatpush1.msra.mxu0 0.0
        %1712 = vmatprep.subr.mxu0 0.0
        %1713 = vmatpush1.msra.mxu0 0.0
        %1714 = vmatprep.subr.mxu0 0.0
        %1715 = vmatpush1.msra.mxu0 0.0
        %1716 = vmatprep.mubr.f32.mxu0 0.0
        %1717 = vmatmul.mubr.f32.gmra.mrb[0].mxu0 %v1062
        %v1718 = vpop.f32.mrb[0].mxu0
        %v1719 = vadd.f32 %v1058, %v1718
        %v1720 = vpop.f32.mrb[0].mxu0
        %1721 = vdwg.mxu0
        %v1723 = vsel %vm1064, %v1038, 0
        %1725 = vmatprep.subr.mxu0 0.0
        %1726 = vmatpush1.msra.mxu0 %v1034
        %1727 = vmatprep.subr.mxu0 0.0
        %1728 = vmatpush1.msra.mxu0 %v1035
        %1729 = vmatprep.subr.mxu0 0.0
        %1730 = vmatpush1.msra.mxu0 %v1036
        %1731 = vmatprep.subr.mxu0 0.0
        %1732 = vmatpush1.msra.mxu0 %v1037
        %1733 = vmatprep.subr.mxu0 0.0
        %1734 = vmatpush1.msra.mxu0 %v1723
        %1735 = vmatprep.subr.mxu0 0.0
        %1736 = vmatpush1.msra.mxu0 0.0
        %1737 = vmatprep.subr.mxu0 0.0
        %1738 = vmatpush1.msra.mxu0 0.0
        %1739 = vmatprep.subr.mxu0 0.0
        %1740 = vmatpush1.msra.mxu0 0.0
        %1741 = vmatprep.subr.mxu0 0.0
        %1742 = vmatpush1.msra.mxu0 0.0
        %1743 = vmatprep.subr.mxu0 0.0
        %1744 = vmatpush1.msra.mxu0 0.0
        %1745 = vmatprep.subr.mxu0 0.0
        %1746 = vmatpush1.msra.mxu0 0.0
        %1747 = vmatprep.subr.mxu0 0.0
        %1748 = vmatpush1.msra.mxu0 0.0
        %1749 = vmatprep.subr.mxu0 0.0
        %1750 = vmatpush1.msra.mxu0 0.0
        %1751 = vmatprep.subr.mxu0 0.0
        %1752 = vmatpush1.msra.mxu0 0.0
        %1753 = vmatprep.subr.mxu0 0.0
        %1754 = vmatpush1.msra.mxu0 0.0
        %1755 = vmatprep.subr.mxu0 0.0
        %1756 = vmatpush1.msra.mxu0 0.0
        %1757 = vmatprep.subr.mxu0 0.0
        %1758 = vmatpush1.msra.mxu0 0.0
        %1759 = vmatprep.subr.mxu0 0.0
        %1760 = vmatpush1.msra.mxu0 0.0
        %1761 = vmatprep.subr.mxu0 0.0
        %1762 = vmatpush1.msra.mxu0 0.0
        %1763 = vmatprep.subr.mxu0 0.0
        %1764 = vmatpush1.msra.mxu0 0.0
        %1765 = vmatprep.subr.mxu0 0.0
        %1766 = vmatpush1.msra.mxu0 0.0
        %1767 = vmatprep.subr.mxu0 0.0
        %1768 = vmatpush1.msra.mxu0 0.0
        %1769 = vmatprep.subr.mxu0 0.0
        %1770 = vmatpush1.msra.mxu0 0.0
        %1771 = vmatprep.subr.mxu0 0.0
        %1772 = vmatpush1.msra.mxu0 0.0
        %1773 = vmatprep.subr.mxu0 0.0
        %1774 = vmatpush1.msra.mxu0 0.0
        %1775 = vmatprep.subr.mxu0 0.0
        %1776 = vmatpush1.msra.mxu0 0.0
        %1777 = vmatprep.subr.mxu0 0.0
        %1778 = vmatpush1.msra.mxu0 0.0
        %1779 = vmatprep.subr.mxu0 0.0
        %1780 = vmatpush1.msra.mxu0 0.0
        %1781 = vmatprep.subr.mxu0 0.0
        %1782 = vmatpush1.msra.mxu0 0.0
        %1783 = vmatprep.subr.mxu0 0.0
        %1784 = vmatpush1.msra.mxu0 0.0
        %1785 = vmatprep.subr.mxu0 0.0
        %1786 = vmatpush1.msra.mxu0 0.0
        %1787 = vmatprep.subr.mxu0 0.0
        %1788 = vmatpush1.msra.mxu0 0.0
        %1789 = vmatprep.mubr.f32.mxu0 0.0
        %1790 = vmatmul.mubr.f32.gmra.mrb[0].mxu0 %v1062
        %v1791 = vpop.f32.mrb[0].mxu0
        %v1792 = vadd.f32 %v1058, %v1791
        %v1793 = vpop.f32.mrb[0].mxu0
        %1794 = vdwg.mxu0
        %v1796 = vsel %vm1064, %v1043, 0
        %1798 = vmatprep.subr.mxu0 0.0
        %1799 = vmatpush1.msra.mxu0 %v1039
        %1800 = vmatprep.subr.mxu0 0.0
        %1801 = vmatpush1.msra.mxu0 %v1040
        %1802 = vmatprep.subr.mxu0 0.0
        %1803 = vmatpush1.msra.mxu0 %v1041
        %1804 = vmatprep.subr.mxu0 0.0
        %1805 = vmatpush1.msra.mxu0 %v1042
        %1806 = vmatprep.subr.mxu0 0.0
        %1807 = vmatpush1.msra.mxu0 %v1796
        %1808 = vmatprep.subr.mxu0 0.0
        %1809 = vmatpush1.msra.mxu0 0.0
        %1810 = vmatprep.subr.mxu0 0.0
        %1811 = vmatpush1.msra.mxu0 0.0
        %1812 = vmatprep.subr.mxu0 0.0
        %1813 = vmatpush1.msra.mxu0 0.0
        %1814 = vmatprep.subr.mxu0 0.0
        %1815 = vmatpush1.msra.mxu0 0.0
        %1816 = vmatprep.subr.mxu0 0.0
        %1817 = vmatpush1.msra.mxu0 0.0
        %1818 = vmatprep.subr.mxu0 0.0
        %1819 = vmatpush1.msra.mxu0 0.0
        %1820 = vmatprep.subr.mxu0 0.0
        %1821 = vmatpush1.msra.mxu0 0.0
        %1822 = vmatprep.subr.mxu0 0.0
        %1823 = vmatpush1.msra.mxu0 0.0
        %1824 = vmatprep.subr.mxu0 0.0
        %1825 = vmatpush1.msra.mxu0 0.0
        %1826 = vmatprep.subr.mxu0 0.0
        %1827 = vmatpush1.msra.mxu0 0.0
        %1828 = vmatprep.subr.mxu0 0.0
        %1829 = vmatpush1.msra.mxu0 0.0
        %1830 = vmatprep.subr.mxu0 0.0
        %1831 = vmatpush1.msra.mxu0 0.0
        %1832 = vmatprep.subr.mxu0 0.0
        %1833 = vmatpush1.msra.mxu0 0.0
        %1834 = vmatprep.subr.mxu0 0.0
        %1835 = vmatpush1.msra.mxu0 0.0
        %1836 = vmatprep.subr.mxu0 0.0
        %1837 = vmatpush1.msra.mxu0 0.0
        %1838 = vmatprep.subr.mxu0 0.0
        %1839 = vmatpush1.msra.mxu0 0.0
        %1840 = vmatprep.subr.mxu0 0.0
        %1841 = vmatpush1.msra.mxu0 0.0
        %1842 = vmatprep.subr.mxu0 0.0
        %1843 = vmatpush1.msra.mxu0 0.0
        %1844 = vmatprep.subr.mxu0 0.0
        %1845 = vmatpush1.msra.mxu0 0.0
        %1846 = vmatprep.subr.mxu0 0.0
        %1847 = vmatpush1.msra.mxu0 0.0
        %1848 = vmatprep.subr.mxu0 0.0
        %1849 = vmatpush1.msra.mxu0 0.0
        %1850 = vmatprep.subr.mxu0 0.0
        %1851 = vmatpush1.msra.mxu0 0.0
        %1852 = vmatprep.subr.mxu0 0.0
        %1853 = vmatpush1.msra.mxu0 0.0
        %1854 = vmatprep.subr.mxu0 0.0
        %1855 = vmatpush1.msra.mxu0 0.0
        %1856 = vmatprep.subr.mxu0 0.0
        %1857 = vmatpush1.msra.mxu0 0.0
        %1858 = vmatprep.subr.mxu0 0.0
        %1859 = vmatpush1.msra.mxu0 0.0
        %1860 = vmatprep.subr.mxu0 0.0
        %1861 = vmatpush1.msra.mxu0 0.0
        %1862 = vmatprep.mubr.f32.mxu0 0.0
        %1863 = vmatmul.mubr.f32.gmra.mrb[0].mxu0 %v1062
        %v1864 = vpop.f32.mrb[0].mxu0
        %v1865 = vadd.f32 %v1058, %v1864
        %v1866 = vpop.f32.mrb[0].mxu0
        %1867 = vdwg.mxu0
        %v1869 = vsel %vm1064, %v1048, 0
        %1871 = vmatprep.subr.mxu0 0.0
        %1872 = vmatpush1.msra.mxu0 %v1044
        %1873 = vmatprep.subr.mxu0 0.0
        %1874 = vmatpush1.msra.mxu0 %v1045
        %1875 = vmatprep.subr.mxu0 0.0
        %1876 = vmatpush1.msra.mxu0 %v1046
        %1877 = vmatprep.subr.mxu0 0.0
        %1878 = vmatpush1.msra.mxu0 %v1047
        %1879 = vmatprep.subr.mxu0 0.0
        %1880 = vmatpush1.msra.mxu0 %v1869
        %1881 = vmatprep.subr.mxu0 0.0
        %1882 = vmatpush1.msra.mxu0 0.0
        %1883 = vmatprep.subr.mxu0 0.0
        %1884 = vmatpush1.msra.mxu0 0.0
        %1885 = vmatprep.subr.mxu0 0.0
        %1886 = vmatpush1.msra.mxu0 0.0
        %1887 = vmatprep.subr.mxu0 0.0
        %1888 = vmatpush1.msra.mxu0 0.0
        %1889 = vmatprep.subr.mxu0 0.0
        %1890 = vmatpush1.msra.mxu0 0.0
        %1891 = vmatprep.subr.mxu0 0.0
        %1892 = vmatpush1.msra.mxu0 0.0
        %1893 = vmatprep.subr.mxu0 0.0
        %1894 = vmatpush1.msra.mxu0 0.0
        %1895 = vmatprep.subr.mxu0 0.0
        %1896 = vmatpush1.msra.mxu0 0.0
        %1897 = vmatprep.subr.mxu0 0.0
        %1898 = vmatpush1.msra.mxu0 0.0
        %1899 = vmatprep.subr.mxu0 0.0
        %1900 = vmatpush1.msra.mxu0 0.0
        %1901 = vmatprep.subr.mxu0 0.0
        %1902 = vmatpush1.msra.mxu0 0.0
        %1903 = vmatprep.subr.mxu0 0.0
        %1904 = vmatpush1.msra.mxu0 0.0
        %1905 = vmatprep.subr.mxu0 0.0
        %1906 = vmatpush1.msra.mxu0 0.0
        %1907 = vmatprep.subr.mxu0 0.0
        %1908 = vmatpush1.msra.mxu0 0.0
        %1909 = vmatprep.subr.mxu0 0.0
        %1910 = vmatpush1.msra.mxu0 0.0
        %1911 = vmatprep.subr.mxu0 0.0
        %1912 = vmatpush1.msra.mxu0 0.0
        %1913 = vmatprep.subr.mxu0 0.0
        %1914 = vmatpush1.msra.mxu0 0.0
        %1915 = vmatprep.subr.mxu0 0.0
        %1916 = vmatpush1.msra.mxu0 0.0
        %1917 = vmatprep.subr.mxu0 0.0
        %1918 = vmatpush1.msra.mxu0 0.0
        %1919 = vmatprep.subr.mxu0 0.0
        %1920 = vmatpush1.msra.mxu0 0.0
        %1921 = vmatprep.subr.mxu0 0.0
        %1922 = vmatpush1.msra.mxu0 0.0
        %1923 = vmatprep.subr.mxu0 0.0
        %1924 = vmatpush1.msra.mxu0 0.0
        %1925 = vmatprep.subr.mxu0 0.0
        %1926 = vmatpush1.msra.mxu0 0.0
        %1927 = vmatprep.subr.mxu0 0.0
        %1928 = vmatpush1.msra.mxu0 0.0
        %1929 = vmatprep.subr.mxu0 0.0
        %1930 = vmatpush1.msra.mxu0 0.0
        %1931 = vmatprep.subr.mxu0 0.0
        %1932 = vmatpush1.msra.mxu0 0.0
        %1933 = vmatprep.subr.mxu0 0.0
        %1934 = vmatpush1.msra.mxu0 0.0
        %1935 = vmatprep.mubr.f32.mxu0 0.0
        %1936 = vmatmul.mubr.f32.gmra.mrb[0].mxu0 %v1062
        %v1937 = vpop.f32.mrb[0].mxu0
        %v1938 = vadd.f32 %v1058, %v1937
        %v1939 = vpop.f32.mrb[0].mxu0
        %1940 = vdwg.mxu0
        %v1942 = vsel %vm1064, %v1053, 0
        %1944 = vmatprep.subr.mxu0 0.0
        %1945 = vmatpush1.msra.mxu0 %v1049
        %1946 = vmatprep.subr.mxu0 0.0
        %1947 = vmatpush1.msra.mxu0 %v1050
        %1948 = vmatprep.subr.mxu0 0.0
        %1949 = vmatpush1.msra.mxu0 %v1051
        %1950 = vmatprep.subr.mxu0 0.0
        %1951 = vmatpush1.msra.mxu0 %v1052
        %1952 = vmatprep.subr.mxu0 0.0
        %1953 = vmatpush1.msra.mxu0 %v1942
        %1954 = vmatprep.subr.mxu0 0.0
        %1955 = vmatpush1.msra.mxu0 0.0
        %1956 = vmatprep.subr.mxu0 0.0
        %1957 = vmatpush1.msra.mxu0 0.0
        %1958 = vmatprep.subr.mxu0 0.0
        %1959 = vmatpush1.msra.mxu0 0.0
        %1960 = vmatprep.subr.mxu0 0.0
        %1961 = vmatpush1.msra.mxu0 0.0
        %1962 = vmatprep.subr.mxu0 0.0
        %1963 = vmatpush1.msra.mxu0 0.0
        %1964 = vmatprep.subr.mxu0 0.0
        %1965 = vmatpush1.msra.mxu0 0.0
        %1966 = vmatprep.subr.mxu0 0.0
        %1967 = vmatpush1.msra.mxu0 0.0
        %1968 = vmatprep.subr.mxu0 0.0
        %1969 = vmatpush1.msra.mxu0 0.0
        %1970 = vmatprep.subr.mxu0 0.0
        %1971 = vmatpush1.msra.mxu0 0.0
        %1972 = vmatprep.subr.mxu0 0.0
        %1973 = vmatpush1.msra.mxu0 0.0
        %1974 = vmatprep.subr.mxu0 0.0
        %1975 = vmatpush1.msra.mxu0 0.0
        %1976 = vmatprep.subr.mxu0 0.0
        %1977 = vmatpush1.msra.mxu0 0.0
        %1978 = vmatprep.subr.mxu0 0.0
        %1979 = vmatpush1.msra.mxu0 0.0
        %1980 = vmatprep.subr.mxu0 0.0
        %1981 = vmatpush1.msra.mxu0 0.0
        %1982 = vmatprep.subr.mxu0 0.0
        %1983 = vmatpush1.msra.mxu0 0.0
        %1984 = vmatprep.subr.mxu0 0.0
        %1985 = vmatpush1.msra.mxu0 0.0
        %1986 = vmatprep.subr.mxu0 0.0
        %1987 = vmatpush1.msra.mxu0 0.0
        %1988 = vmatprep.subr.mxu0 0.0
        %1989 = vmatpush1.msra.mxu0 0.0
        %1990 = vmatprep.subr.mxu0 0.0
        %1991 = vmatpush1.msra.mxu0 0.0
        %1992 = vmatprep.subr.mxu0 0.0
        %1993 = vmatpush1.msra.mxu0 0.0
        %1994 = vmatprep.subr.mxu0 0.0
        %1995 = vmatpush1.msra.mxu0 0.0
        %1996 = vmatprep.subr.mxu0 0.0
        %1997 = vmatpush1.msra.mxu0 0.0
        %1998 = vmatprep.subr.mxu0 0.0
        %1999 = vmatpush1.msra.mxu0 0.0
        %2000 = vmatprep.subr.mxu0 0.0
        %2001 = vmatpush1.msra.mxu0 0.0
        %2002 = vmatprep.subr.mxu0 0.0
        %2003 = vmatpush1.msra.mxu0 0.0
        %2004 = vmatprep.subr.mxu0 0.0
        %2005 = vmatpush1.msra.mxu0 0.0
        %2006 = vmatprep.subr.mxu0 0.0
        %2007 = vmatpush1.msra.mxu0 0.0
        %2008 = vmatprep.mubr.f32.mxu0 0.0
        %2009 = vmatmul.mubr.f32.gmra.mrb[0].mxu0 %v1062
        %v2010 = vpop.f32.mrb[0].mxu0
        %v2011 = vadd.f32 %v1058, %v2010
        %v2012 = vpop.f32.mrb[0].mxu0
        %2013 = vdwg.mxu0
        %vm2014 = vcmask 35840
        %2015 = vst.msk [vmem:[#allocation3] sm:$0xf] %vm2014, 0.0
        %2016 = vst.msk [vmem:[#allocation3 + $0x4] sm:$0xf] %vm2014, 0.0
        %2017 = vst.msk [vmem:[#allocation3 + $0x8] sm:$0xf] %vm2014, 0.0
        %2018 = vst.msk [vmem:[#allocation3 + $0xc] sm:$0xf] %vm2014, 0.0
        %2019 = vst.msk [vmem:[#allocation3 + $0x10] sm:$0xf] %vm2014, 0.0
        %v2020 = vmax.f32 %v1135, %v1208
        %v2021 = vmax.f32 %v2020, %v1281
        %v2022 = vmax.f32 %v2021, %v1354
        %v2023 = vmax.f32 %v2022, %v1427
        %v2024 = vmax.f32 %v2023, %v1500
        %v2025 = vmax.f32 %v2024, %v1573
        %2027 = vrot.lane.b32.xlu0 %v2025, 127
        %v2028 = vpop.permute.xlu0 %2027
        %v2030 = vmax.f32 %v2025, %v2028
        %2031 = vrot.lane.b32.xlu0 %v2025, 126
        %v2032 = vpop.permute.xlu0 %2031
        %v2034 = vmax.f32 %v2030, %v2032
        %2035 = vrot.lane.b32.xlu0 %v2025, 125
        %v2036 = vpop.permute.xlu0 %2035
        %v2038 = vmax.f32 %v2034, %v2036
        %2039 = vrot.lane.b32.xlu0 %v2025, 124
        %v2040 = vpop.permute.xlu0 %2039
        %v2042 = vmax.f32 %v2038, %v2040
        %2043 = vrot.lane.b32.xlu0 %v2025, 123
        %v2044 = vpop.permute.xlu0 %2043
        %v2046 = vmax.f32 %v2042, %v2044
        %2047 = vrot.lane.b32.xlu0 %v2025, 122
        %v2048 = vpop.permute.xlu0 %2047
        %v2050 = vmax.f32 %v2046, %v2048
        %v2051 = vld [vmem:[#allocation20] sm:$0xff]
        %v2052 = vld [vmem:[#allocation20 + $0x8] sm:$0x1]
        %vm2053 = vcmask 72704
        %v2055 = vsel %vm2053, %v2050, 0
        %vm2057 = vcmask 1040384
        %v2059 = vsel %vm2057, %v2052, 0
        %2061 = vmatprep.subr.mxu0 0.0
        %2062 = vmatpush1.msra.mxu0 %v2051
        %2063 = vmatprep.subr.mxu0 0.0
        %2064 = vmatpush1.msra.mxu0 %v2059
        %2065 = vmatprep.subr.mxu0 0.0
        %2066 = vmatpush1.msra.mxu0 0.0
        %2067 = vmatprep.subr.mxu0 0.0
        %2068 = vmatpush1.msra.mxu0 0.0
        %2069 = vmatprep.subr.mxu0 0.0
        %2070 = vmatpush1.msra.mxu0 0.0
        %2071 = vmatprep.subr.mxu0 0.0
        %2072 = vmatpush1.msra.mxu0 0.0
        %2073 = vmatprep.subr.mxu0 0.0
        %2074 = vmatpush1.msra.mxu0 0.0
        %2075 = vmatprep.subr.mxu0 0.0
        %2076 = vmatpush1.msra.mxu0 0.0
        %2077 = vmatprep.subr.mxu0 0.0
        %2078 = vmatpush1.msra.mxu0 0.0
        %2079 = vmatprep.subr.mxu0 0.0
        %2080 = vmatpush1.msra.mxu0 0.0
        %2081 = vmatprep.subr.mxu0 0.0
        %2082 = vmatpush1.msra.mxu0 0.0
        %2083 = vmatprep.subr.mxu0 0.0
        %2084 = vmatpush1.msra.mxu0 0.0
        %2085 = vmatprep.subr.mxu0 0.0
        %2086 = vmatpush1.msra.mxu0 0.0
        %2087 = vmatprep.subr.mxu0 0.0
        %2088 = vmatpush1.msra.mxu0 0.0
        %2089 = vmatprep.subr.mxu0 0.0
        %2090 = vmatpush1.msra.mxu0 0.0
        %2091 = vmatprep.subr.mxu0 0.0
        %2092 = vmatpush1.msra.mxu0 0.0
        %2093 = vmatprep.subr.mxu0 0.0
        %2094 = vmatpush1.msra.mxu0 0.0
        %2095 = vmatprep.subr.mxu0 0.0
        %2096 = vmatpush1.msra.mxu0 0.0
        %2097 = vmatprep.subr.mxu0 0.0
        %2098 = vmatpush1.msra.mxu0 0.0
        %2099 = vmatprep.subr.mxu0 0.0
        %2100 = vmatpush1.msra.mxu0 0.0
        %2101 = vmatprep.subr.mxu0 0.0
        %2102 = vmatpush1.msra.mxu0 0.0
        %2103 = vmatprep.subr.mxu0 0.0
        %2104 = vmatpush1.msra.mxu0 0.0
        %2105 = vmatprep.subr.mxu0 0.0
        %2106 = vmatpush1.msra.mxu0 0.0
        %2107 = vmatprep.subr.mxu0 0.0
        %2108 = vmatpush1.msra.mxu0 0.0
        %2109 = vmatprep.subr.mxu0 0.0
        %2110 = vmatpush1.msra.mxu0 0.0
        %2111 = vmatprep.subr.mxu0 0.0
        %2112 = vmatpush1.msra.mxu0 0.0
        %2113 = vmatprep.subr.mxu0 0.0
        %2114 = vmatpush1.msra.mxu0 0.0
        %2115 = vmatprep.subr.mxu0 0.0
        %2116 = vmatpush1.msra.mxu0 0.0
        %2117 = vmatprep.subr.mxu0 0.0
        %2118 = vmatpush1.msra.mxu0 0.0
        %2119 = vmatprep.subr.mxu0 0.0
        %2120 = vmatpush1.msra.mxu0 0.0
        %2121 = vmatprep.subr.mxu0 0.0
        %2122 = vmatpush1.msra.mxu0 0.0
        %2123 = vmatprep.subr.mxu0 0.0
        %2124 = vmatpush1.msra.mxu0 0.0
        %2125 = vmatprep.mubr.f32.mxu0 0.0
        %2126 = vmatmul.mubr.f32.gmra.mrb[0].mxu0 %v2055
        %v2127 = vpop.f32.mrb[0].mxu0
        %v2128 = vadd.f32 0.0, %v2127
        %v2129 = vpop.f32.mrb[0].mxu0
        %2130 = vdwg.mxu0
        %2132 = vrot.lane.b32.xlu0 %v2128, 1
        %v2133 = vpop.permute.xlu0 %2132
        %s2135 = scalar_lea.vmem [#allocation3], 4
        %vm2136 = vcmask 27656
        %2137 = vst.msk [vmem:[%s2135] sm:$0xf] %vm2136, %v2133
        %v2138 = vmax.f32 %v1354, %v1427
        %v2139 = vmax.f32 %v2138, %v1500
        %v2140 = vmax.f32 %v2139, %v1573
        %v2141 = vmax.f32 %v2140, %v1646
        %v2142 = vmax.f32 %v2141, %v1719
        %v2143 = vmax.f32 %v2142, %v1792
        %2145 = vrot.lane.b32.xlu0 %v2143, 127
        %v2146 = vpop.permute.xlu0 %2145
        %v2148 = vmax.f32 %v2143, %v2146
        %2149 = vrot.lane.b32.xlu0 %v2143, 126
        %v2150 = vpop.permute.xlu0 %2149
        %v2152 = vmax.f32 %v2148, %v2150
        %2153 = vrot.lane.b32.xlu0 %v2143, 125
        %v2154 = vpop.permute.xlu0 %2153
        %v2156 = vmax.f32 %v2152, %v2154
        %2157 = vrot.lane.b32.xlu0 %v2143, 124
        %v2158 = vpop.permute.xlu0 %2157
        %v2160 = vmax.f32 %v2156, %v2158
        %2161 = vrot.lane.b32.xlu0 %v2143, 123
        %v2162 = vpop.permute.xlu0 %2161
        %v2164 = vmax.f32 %v2160, %v2162
        %2165 = vrot.lane.b32.xlu0 %v2143, 122
        %v2166 = vpop.permute.xlu0 %2165
        %v2168 = vmax.f32 %v2164, %v2166
        %v2169 = vld [vmem:[#allocation20] sm:$0xff]
        %v2170 = vld [vmem:[#allocation20 + $0x8] sm:$0x1]
        %v2172 = vsel %vm2053, %v2168, 0
        %v2175 = vsel %vm2057, %v2170, 0
        %2177 = vmatprep.subr.mxu0 0.0
        %2178 = vmatpush1.msra.mxu0 %v2169
        %2179 = vmatprep.subr.mxu0 0.0
        %2180 = vmatpush1.msra.mxu0 %v2175
        %2181 = vmatprep.subr.mxu0 0.0
        %2182 = vmatpush1.msra.mxu0 0.0
        %2183 = vmatprep.subr.mxu0 0.0
        %2184 = vmatpush1.msra.mxu0 0.0
        %2185 = vmatprep.subr.mxu0 0.0
        %2186 = vmatpush1.msra.mxu0 0.0
        %2187 = vmatprep.subr.mxu0 0.0
        %2188 = vmatpush1.msra.mxu0 0.0
        %2189 = vmatprep.subr.mxu0 0.0
        %2190 = vmatpush1.msra.mxu0 0.0
        %2191 = vmatprep.subr.mxu0 0.0
        %2192 = vmatpush1.msra.mxu0 0.0
        %2193 = vmatprep.subr.mxu0 0.0
        %2194 = vmatpush1.msra.mxu0 0.0
        %2195 = vmatprep.subr.mxu0 0.0
        %2196 = vmatpush1.msra.mxu0 0.0
        %2197 = vmatprep.subr.mxu0 0.0
        %2198 = vmatpush1.msra.mxu0 0.0
        %2199 = vmatprep.subr.mxu0 0.0
        %2200 = vmatpush1.msra.mxu0 0.0
        %2201 = vmatprep.subr.mxu0 0.0
        %2202 = vmatpush1.msra.mxu0 0.0
        %2203 = vmatprep.subr.mxu0 0.0
        %2204 = vmatpush1.msra.mxu0 0.0
        %2205 = vmatprep.subr.mxu0 0.0
        %2206 = vmatpush1.msra.mxu0 0.0
        %2207 = vmatprep.subr.mxu0 0.0
        %2208 = vmatpush1.msra.mxu0 0.0
        %2209 = vmatprep.subr.mxu0 0.0
        %2210 = vmatpush1.msra.mxu0 0.0
        %2211 = vmatprep.subr.mxu0 0.0
        %2212 = vmatpush1.msra.mxu0 0.0
        %2213 = vmatprep.subr.mxu0 0.0
        %2214 = vmatpush1.msra.mxu0 0.0
        %2215 = vmatprep.subr.mxu0 0.0
        %2216 = vmatpush1.msra.mxu0 0.0
        %2217 = vmatprep.subr.mxu0 0.0
        %2218 = vmatpush1.msra.mxu0 0.0
        %2219 = vmatprep.subr.mxu0 0.0
        %2220 = vmatpush1.msra.mxu0 0.0
        %2221 = vmatprep.subr.mxu0 0.0
        %2222 = vmatpush1.msra.mxu0 0.0
        %2223 = vmatprep.subr.mxu0 0.0
        %2224 = vmatpush1.msra.mxu0 0.0
        %2225 = vmatprep.subr.mxu0 0.0
        %2226 = vmatpush1.msra.mxu0 0.0
        %2227 = vmatprep.subr.mxu0 0.0
        %2228 = vmatpush1.msra.mxu0 0.0
        %2229 = vmatprep.subr.mxu0 0.0
        %2230 = vmatpush1.msra.mxu0 0.0
        %2231 = vmatprep.subr.mxu0 0.0
        %2232 = vmatpush1.msra.mxu0 0.0
        %2233 = vmatprep.subr.mxu0 0.0
        %2234 = vmatpush1.msra.mxu0 0.0
        %2235 = vmatprep.subr.mxu0 0.0
        %2236 = vmatpush1.msra.mxu0 0.0
        %2237 = vmatprep.subr.mxu0 0.0
        %2238 = vmatpush1.msra.mxu0 0.0
        %2239 = vmatprep.subr.mxu0 0.0
        %2240 = vmatpush1.msra.mxu0 0.0
        %2241 = vmatprep.mubr.f32.mxu0 0.0
        %2242 = vmatmul.mubr.f32.gmra.mrb[0].mxu0 %v2172
        %v2243 = vpop.f32.mrb[0].mxu0
        %v2244 = vadd.f32 0.0, %v2243
        %v2245 = vpop.f32.mrb[0].mxu0
        %2246 = vdwg.mxu0
        %2248 = vrot.lane.b32.xlu0 %v2244, 1
        %v2249 = vpop.permute.xlu0 %2248
        %s2251 = scalar_lea.vmem [#allocation3], 8
        %2252 = vst.msk [vmem:[%s2251] sm:$0xf] %vm2136, %v2249
        %v2253 = vmax.f32 %v1573, %v1646
        %v2254 = vmax.f32 %v2253, %v1719
        %v2255 = vmax.f32 %v2254, %v1792
        %v2256 = vmax.f32 %v2255, %v1865
        %v2257 = vmax.f32 %v2256, %v1938
        %v2258 = vmax.f32 %v2257, %v2011
        %2260 = vrot.lane.b32.xlu0 %v2258, 127
        %v2261 = vpop.permute.xlu0 %2260
        %v2263 = vmax.f32 %v2258, %v2261
        %2264 = vrot.lane.b32.xlu0 %v2258, 126
        %v2265 = vpop.permute.xlu0 %2264
        %v2267 = vmax.f32 %v2263, %v2265
        %2268 = vrot.lane.b32.xlu0 %v2258, 125
        %v2269 = vpop.permute.xlu0 %2268
        %v2271 = vmax.f32 %v2267, %v2269
        %2272 = vrot.lane.b32.xlu0 %v2258, 124
        %v2273 = vpop.permute.xlu0 %2272
        %v2275 = vmax.f32 %v2271, %v2273
        %2276 = vrot.lane.b32.xlu0 %v2258, 123
        %v2277 = vpop.permute.xlu0 %2276
        %v2279 = vmax.f32 %v2275, %v2277
        %2280 = vrot.lane.b32.xlu0 %v2258, 122
        %v2281 = vpop.permute.xlu0 %2280
        %v2283 = vmax.f32 %v2279, %v2281
        %v2284 = vld [vmem:[#allocation20] sm:$0xff]
        %v2285 = vld [vmem:[#allocation20 + $0x8] sm:$0x1]
        %v2287 = vsel %vm2053, %v2283, 0
        %v2290 = vsel %vm2057, %v2285, 0
        %2292 = vmatprep.subr.mxu0 0.0
        %2293 = vmatpush1.msra.mxu0 %v2284
        %2294 = vmatprep.subr.mxu0 0.0
        %2295 = vmatpush1.msra.mxu0 %v2290
        %2296 = vmatprep.subr.mxu0 0.0
        %2297 = vmatpush1.msra.mxu0 0.0
        %2298 = vmatprep.subr.mxu0 0.0
        %2299 = vmatpush1.msra.mxu0 0.0
        %2300 = vmatprep.subr.mxu0 0.0
        %2301 = vmatpush1.msra.mxu0 0.0
        %2302 = vmatprep.subr.mxu0 0.0
        %2303 = vmatpush1.msra.mxu0 0.0
        %2304 = vmatprep.subr.mxu0 0.0
        %2305 = vmatpush1.msra.mxu0 0.0
        %2306 = vmatprep.subr.mxu0 0.0
        %2307 = vmatpush1.msra.mxu0 0.0
        %2308 = vmatprep.subr.mxu0 0.0
        %2309 = vmatpush1.msra.mxu0 0.0
        %2310 = vmatprep.subr.mxu0 0.0
        %2311 = vmatpush1.msra.mxu0 0.0
        %2312 = vmatprep.subr.mxu0 0.0
        %2313 = vmatpush1.msra.mxu0 0.0
        %2314 = vmatprep.subr.mxu0 0.0
        %2315 = vmatpush1.msra.mxu0 0.0
        %2316 = vmatprep.subr.mxu0 0.0
        %2317 = vmatpush1.msra.mxu0 0.0
        %2318 = vmatprep.subr.mxu0 0.0
        %2319 = vmatpush1.msra.mxu0 0.0
        %2320 = vmatprep.subr.mxu0 0.0
        %2321 = vmatpush1.msra.mxu0 0.0
        %2322 = vmatprep.subr.mxu0 0.0
        %2323 = vmatpush1.msra.mxu0 0.0
        %2324 = vmatprep.subr.mxu0 0.0
        %2325 = vmatpush1.msra.mxu0 0.0
        %2326 = vmatprep.subr.mxu0 0.0
        %2327 = vmatpush1.msra.mxu0 0.0
        %2328 = vmatprep.subr.mxu0 0.0
        %2329 = vmatpush1.msra.mxu0 0.0
        %2330 = vmatprep.subr.mxu0 0.0
        %2331 = vmatpush1.msra.mxu0 0.0
        %2332 = vmatprep.subr.mxu0 0.0
        %2333 = vmatpush1.msra.mxu0 0.0
        %2334 = vmatprep.subr.mxu0 0.0
        %2335 = vmatpush1.msra.mxu0 0.0
        %2336 = vmatprep.subr.mxu0 0.0
        %2337 = vmatpush1.msra.mxu0 0.0
        %2338 = vmatprep.subr.mxu0 0.0
        %2339 = vmatpush1.msra.mxu0 0.0
        %2340 = vmatprep.subr.mxu0 0.0
        %2341 = vmatpush1.msra.mxu0 0.0
        %2342 = vmatprep.subr.mxu0 0.0
        %2343 = vmatpush1.msra.mxu0 0.0
        %2344 = vmatprep.subr.mxu0 0.0
        %2345 = vmatpush1.msra.mxu0 0.0
        %2346 = vmatprep.subr.mxu0 0.0
        %2347 = vmatpush1.msra.mxu0 0.0
        %2348 = vmatprep.subr.mxu0 0.0
        %2349 = vmatpush1.msra.mxu0 0.0
        %2350 = vmatprep.subr.mxu0 0.0
        %2351 = vmatpush1.msra.mxu0 0.0
        %2352 = vmatprep.subr.mxu0 0.0
        %2353 = vmatpush1.msra.mxu0 0.0
        %2354 = vmatprep.subr.mxu0 0.0
        %2355 = vmatpush1.msra.mxu0 0.0
        %2356 = vmatprep.mubr.f32.mxu0 0.0
        %2357 = vmatmul.mubr.f32.gmra.mrb[0].mxu0 %v2287
        %v2358 = vpop.f32.mrb[0].mxu0
        %v2359 = vadd.f32 0.0, %v2358
        %v2360 = vpop.f32.mrb[0].mxu0
        %2361 = vdwg.mxu0
        %2363 = vrot.lane.b32.xlu0 %v2359, 1
        %v2364 = vpop.permute.xlu0 %2363
        %s2366 = scalar_lea.vmem [#allocation3], 12
        %2367 = vst.msk [vmem:[%s2366] sm:$0xf] %vm2136, %v2364
        %v2368 = vld [vmem:[#allocation3] sm:$0xf]
        %v2369 = vld [vmem:[#allocation3 + $0x4] sm:$0xf]
        %v2370 = vld [vmem:[#allocation3 + $0x8] sm:$0xf]
        %vm2371 = vcmask 19456
        %2372 = vst.msk [vmem:[#allocation4] sm:$0xf] %vm2371, %v2368
        %2373 = vst.msk [vmem:[#allocation4 + $0x28] sm:$0xf] %vm2371, %v2369
        %2374 = vst.msk [vmem:[#allocation4 + $0x50] sm:$0xf] %vm2371, %v2370
        %v2375 = vld [vmem:[#allocation3] sm:$0xf]
        %v2376 = vld [vmem:[#allocation3 + $0x4] sm:$0xf]
        %v2377 = vld [vmem:[#allocation3 + $0x8] sm:$0xf]
        %2381 = vrot.lane.b32.xlu0 %v2375, 127
        %v2382 = vpop.permute.xlu0 %2381
        %2383 = vrot.lane.b32.xlu0 %v2376, 127
        %v2384 = vpop.permute.xlu0 %2383
        %2385 = vrot.lane.b32.xlu0 %v2377, 127
        %v2386 = vpop.permute.xlu0 %2385
        %2390 = vst.msk [vmem:[#allocation4 + $0x4] sm:$0xf] %vm2371, %v2382
        %2391 = vst.msk [vmem:[#allocation4 + $0x2c] sm:$0xf] %vm2371, %v2384
        %2392 = vst.msk [vmem:[#allocation4 + $0x54] sm:$0xf] %vm2371, %v2386
        %v2393 = vld [vmem:[#allocation3] sm:$0xf]
        %v2394 = vld [vmem:[#allocation3 + $0x4] sm:$0xf]
        %v2395 = vld [vmem:[#allocation3 + $0x8] sm:$0xf]
        %2399 = vrot.lane.b32.xlu0 %v2393, 126
        %v2400 = vpop.permute.xlu0 %2399
        %2401 = vrot.lane.b32.xlu0 %v2394, 126
        %v2402 = vpop.permute.xlu0 %2401
        %2403 = vrot.lane.b32.xlu0 %v2395, 126
        %v2404 = vpop.permute.xlu0 %2403
        %2408 = vst.msk [vmem:[#allocation4 + $0x8] sm:$0xf] %vm2371, %v2400
        %2409 = vst.msk [vmem:[#allocation4 + $0x30] sm:$0xf] %vm2371, %v2402
        %2410 = vst.msk [vmem:[#allocation4 + $0x58] sm:$0xf] %vm2371, %v2404
        %v2411 = vld [vmem:[%s2135] sm:$0xf]
        %v2412 = vld [vmem:[%s2135 + $0x4] sm:$0xf]
        %v2413 = vld [vmem:[%s2135 + $0x8] sm:$0xf]
        %2414 = vst.msk [vmem:[#allocation4 + $0xc] sm:$0xf] %vm2371, %v2411
        %2415 = vst.msk [vmem:[#allocation4 + $0x34] sm:$0xf] %vm2371, %v2412
        %2416 = vst.msk [vmem:[#allocation4 + $0x5c] sm:$0xf] %vm2371, %v2413
        %v2417 = vld [vmem:[%s2135] sm:$0xf]
        %v2418 = vld [vmem:[%s2135 + $0x4] sm:$0xf]
        %v2419 = vld [vmem:[%s2135 + $0x8] sm:$0xf]
        %2423 = vrot.lane.b32.xlu0 %v2417, 127
        %v2424 = vpop.permute.xlu0 %2423
        %2425 = vrot.lane.b32.xlu0 %v2418, 127
        %v2426 = vpop.permute.xlu0 %2425
        %2427 = vrot.lane.b32.xlu0 %v2419, 127
        %v2428 = vpop.permute.xlu0 %2427
        %2432 = vst.msk [vmem:[#allocation4 + $0x10] sm:$0xf] %vm2371, %v2424
        %2433 = vst.msk [vmem:[#allocation4 + $0x38] sm:$0xf] %vm2371, %v2426
        %2434 = vst.msk [vmem:[#allocation4 + $0x60] sm:$0xf] %vm2371, %v2428
        %v2435 = vld [vmem:[%s2135] sm:$0xf]
        %v2436 = vld [vmem:[%s2135 + $0x4] sm:$0xf]
        %v2437 = vld [vmem:[%s2135 + $0x8] sm:$0xf]
        %2441 = vrot.lane.b32.xlu0 %v2435, 126
        %v2442 = vpop.permute.xlu0 %2441
        %2443 = vrot.lane.b32.xlu0 %v2436, 126
        %v2444 = vpop.permute.xlu0 %2443
        %2445 = vrot.lane.b32.xlu0 %v2437, 126
        %v2446 = vpop.permute.xlu0 %2445
        %2450 = vst.msk [vmem:[#allocation4 + $0x14] sm:$0xf] %vm2371, %v2442
        %2451 = vst.msk [vmem:[#allocation4 + $0x3c] sm:$0xf] %vm2371, %v2444
        %2452 = vst.msk [vmem:[#allocation4 + $0x64] sm:$0xf] %vm2371, %v2446
        %v2453 = vld [vmem:[%s2251] sm:$0xf]
        %v2454 = vld [vmem:[%s2251 + $0x4] sm:$0xf]
        %v2455 = vld [vmem:[%s2251 + $0x8] sm:$0xf]
        %2456 = vst.msk [vmem:[#allocation4 + $0x18] sm:$0xf] %vm2371, %v2453
        %2457 = vst.msk [vmem:[#allocation4 + $0x40] sm:$0xf] %vm2371, %v2454
        %2458 = vst.msk [vmem:[#allocation4 + $0x68] sm:$0xf] %vm2371, %v2455
        %v2459 = vld [vmem:[%s2251] sm:$0xf]
        %v2460 = vld [vmem:[%s2251 + $0x4] sm:$0xf]
        %v2461 = vld [vmem:[%s2251 + $0x8] sm:$0xf]
        %2465 = vrot.lane.b32.xlu0 %v2459, 127
        %v2466 = vpop.permute.xlu0 %2465
        %2467 = vrot.lane.b32.xlu0 %v2460, 127
        %v2468 = vpop.permute.xlu0 %2467
        %2469 = vrot.lane.b32.xlu0 %v2461, 127
        %v2470 = vpop.permute.xlu0 %2469
        %2474 = vst.msk [vmem:[#allocation4 + $0x1c] sm:$0xf] %vm2371, %v2466
        %2475 = vst.msk [vmem:[#allocation4 + $0x44] sm:$0xf] %vm2371, %v2468
        %2476 = vst.msk [vmem:[#allocation4 + $0x6c] sm:$0xf] %vm2371, %v2470
        %v2477 = vld [vmem:[%s2251] sm:$0xf]
        %v2478 = vld [vmem:[%s2251 + $0x4] sm:$0xf]
        %v2479 = vld [vmem:[%s2251 + $0x8] sm:$0xf]
        %2483 = vrot.lane.b32.xlu0 %v2477, 126
        %v2484 = vpop.permute.xlu0 %2483
        %2485 = vrot.lane.b32.xlu0 %v2478, 126
        %v2486 = vpop.permute.xlu0 %2485
        %2487 = vrot.lane.b32.xlu0 %v2479, 126
        %v2488 = vpop.permute.xlu0 %2487
        %2492 = vst.msk [vmem:[#allocation4 + $0x20] sm:$0xf] %vm2371, %v2484
        %2493 = vst.msk [vmem:[#allocation4 + $0x48] sm:$0xf] %vm2371, %v2486
        %2494 = vst.msk [vmem:[#allocation4 + $0x70] sm:$0xf] %vm2371, %v2488
        %v2495 = vld [vmem:[#allocation11] sm:$0xf]
        %v2496 = vld [vmem:[#allocation4] sm:$0xff]
        %v2497 = vld [vmem:[#allocation4 + $0x8] sm:$0xff]
        %v2498 = vld [vmem:[#allocation4 + $0x10] sm:$0xff]
        %v2499 = vld [vmem:[#allocation4 + $0x18] sm:$0xff]
        %v2500 = vld [vmem:[#allocation4 + $0x20] sm:$0xf]
        %v2501 = vld [vmem:[#allocation4 + $0x28] sm:$0xff]
        %v2502 = vld [vmem:[#allocation4 + $0x30] sm:$0xff]
        %v2503 = vld [vmem:[#allocation4 + $0x38] sm:$0xff]
        %v2504 = vld [vmem:[#allocation4 + $0x40] sm:$0xff]
        %v2505 = vld [vmem:[#allocation4 + $0x48] sm:$0xf]
        %v2506 = vld [vmem:[#allocation4 + $0x50] sm:$0xff]
        %v2507 = vld [vmem:[#allocation4 + $0x58] sm:$0xff]
        %v2508 = vld [vmem:[#allocation4 + $0x60] sm:$0xff]
        %v2509 = vld [vmem:[#allocation4 + $0x68] sm:$0xff]
        %v2510 = vld [vmem:[#allocation4 + $0x70] sm:$0xf]
        %v2511 = vld [vmem:[#allocation13] sm:$0xf]
        %2513 = vset.pattern.permute.xlu0 0
        %2514 = vperm.xlu0 %2513, %v2511
        %v2515 = vpop.permute.xlu0 %2514
        %v2518 = vsel %vm1060, %v2495, 0
        %v2521 = vsel %vm1064, %v2500, 0
        %2523 = vmatprep.subr.mxu0 0.0
        %2524 = vmatpush1.msra.mxu0 %v2496
        %2525 = vmatprep.subr.mxu0 0.0
        %2526 = vmatpush1.msra.mxu0 %v2497
        %2527 = vmatprep.subr.mxu0 0.0
        %2528 = vmatpush1.msra.mxu0 %v2498
        %2529 = vmatprep.subr.mxu0 0.0
        %2530 = vmatpush1.msra.mxu0 %v2499
        %2531 = vmatprep.subr.mxu0 0.0
        %2532 = vmatpush1.msra.mxu0 %v2521
        %2533 = vmatprep.subr.mxu0 0.0
        %2534 = vmatpush1.msra.mxu0 0.0
        %2535 = vmatprep.subr.mxu0 0.0
        %2536 = vmatpush1.msra.mxu0 0.0
        %2537 = vmatprep.subr.mxu0 0.0
        %2538 = vmatpush1.msra.mxu0 0.0
        %2539 = vmatprep.subr.mxu0 0.0
        %2540 = vmatpush1.msra.mxu0 0.0
        %2541 = vmatprep.subr.mxu0 0.0
        %2542 = vmatpush1.msra.mxu0 0.0
        %2543 = vmatprep.subr.mxu0 0.0
        %2544 = vmatpush1.msra.mxu0 0.0
        %2545 = vmatprep.subr.mxu0 0.0
        %2546 = vmatpush1.msra.mxu0 0.0
        %2547 = vmatprep.subr.mxu0 0.0
        %2548 = vmatpush1.msra.mxu0 0.0
        %2549 = vmatprep.subr.mxu0 0.0
        %2550 = vmatpush1.msra.mxu0 0.0
        %2551 = vmatprep.subr.mxu0 0.0
        %2552 = vmatpush1.msra.mxu0 0.0
        %2553 = vmatprep.subr.mxu0 0.0
        %2554 = vmatpush1.msra.mxu0 0.0
        %2555 = vmatprep.subr.mxu0 0.0
        %2556 = vmatpush1.msra.mxu0 0.0
        %2557 = vmatprep.subr.mxu0 0.0
        %2558 = vmatpush1.msra.mxu0 0.0
        %2559 = vmatprep.subr.mxu0 0.0
        %2560 = vmatpush1.msra.mxu0 0.0
        %2561 = vmatprep.subr.mxu0 0.0
        %2562 = vmatpush1.msra.mxu0 0.0
        %2563 = vmatprep.subr.mxu0 0.0
        %2564 = vmatpush1.msra.mxu0 0.0
        %2565 = vmatprep.subr.mxu0 0.0
        %2566 = vmatpush1.msra.mxu0 0.0
        %2567 = vmatprep.subr.mxu0 0.0
        %2568 = vmatpush1.msra.mxu0 0.0
        %2569 = vmatprep.subr.mxu0 0.0
        %2570 = vmatpush1.msra.mxu0 0.0
        %2571 = vmatprep.subr.mxu0 0.0
        %2572 = vmatpush1.msra.mxu0 0.0
        %2573 = vmatprep.subr.mxu0 0.0
        %2574 = vmatpush1.msra.mxu0 0.0
        %2575 = vmatprep.subr.mxu0 0.0
        %2576 = vmatpush1.msra.mxu0 0.0
        %2577 = vmatprep.subr.mxu0 0.0
        %2578 = vmatpush1.msra.mxu0 0.0
        %2579 = vmatprep.subr.mxu0 0.0
        %2580 = vmatpush1.msra.mxu0 0.0
        %2581 = vmatprep.subr.mxu0 0.0
        %2582 = vmatpush1.msra.mxu0 0.0
        %2583 = vmatprep.subr.mxu0 0.0
        %2584 = vmatpush1.msra.mxu0 0.0
        %2585 = vmatprep.subr.mxu0 0.0
        %2586 = vmatpush1.msra.mxu0 0.0
        %2587 = vmatprep.mubr.f32.mxu0 0.0
        %2588 = vmatmul.mubr.f32.gmra.mrb[0].mxu0 %v2518
        %v2589 = vpop.f32.mrb[0].mxu0
        %v2590 = vadd.f32 %v2515, %v2589
        %v2591 = vpop.f32.mrb[0].mxu0
        %2592 = vdwg.mxu0
        %v2594 = vsel %vm1064, %v2505, 0
        %2596 = vmatprep.subr.mxu0 0.0
        %2597 = vmatpush1.msra.mxu0 %v2501
        %2598 = vmatprep.subr.mxu0 0.0
        %2599 = vmatpush1.msra.mxu0 %v2502
        %2600 = vmatprep.subr.mxu0 0.0
        %2601 = vmatpush1.msra.mxu0 %v2503
        %2602 = vmatprep.subr.mxu0 0.0
        %2603 = vmatpush1.msra.mxu0 %v2504
        %2604 = vmatprep.subr.mxu0 0.0
        %2605 = vmatpush1.msra.mxu0 %v2594
        %2606 = vmatprep.subr.mxu0 0.0
        %2607 = vmatpush1.msra.mxu0 0.0
        %2608 = vmatprep.subr.mxu0 0.0
        %2609 = vmatpush1.msra.mxu0 0.0
        %2610 = vmatprep.subr.mxu0 0.0
        %2611 = vmatpush1.msra.mxu0 0.0
        %2612 = vmatprep.subr.mxu0 0.0
        %2613 = vmatpush1.msra.mxu0 0.0
        %2614 = vmatprep.subr.mxu0 0.0
        %2615 = vmatpush1.msra.mxu0 0.0
        %2616 = vmatprep.subr.mxu0 0.0
        %2617 = vmatpush1.msra.mxu0 0.0
        %2618 = vmatprep.subr.mxu0 0.0
        %2619 = vmatpush1.msra.mxu0 0.0
        %2620 = vmatprep.subr.mxu0 0.0
        %2621 = vmatpush1.msra.mxu0 0.0
        %2622 = vmatprep.subr.mxu0 0.0
        %2623 = vmatpush1.msra.mxu0 0.0
        %2624 = vmatprep.subr.mxu0 0.0
        %2625 = vmatpush1.msra.mxu0 0.0
        %2626 = vmatprep.subr.mxu0 0.0
        %2627 = vmatpush1.msra.mxu0 0.0
        %2628 = vmatprep.subr.mxu0 0.0
        %2629 = vmatpush1.msra.mxu0 0.0
        %2630 = vmatprep.subr.mxu0 0.0
        %2631 = vmatpush1.msra.mxu0 0.0
        %2632 = vmatprep.subr.mxu0 0.0
        %2633 = vmatpush1.msra.mxu0 0.0
        %2634 = vmatprep.subr.mxu0 0.0
        %2635 = vmatpush1.msra.mxu0 0.0
        %2636 = vmatprep.subr.mxu0 0.0
        %2637 = vmatpush1.msra.mxu0 0.0
        %2638 = vmatprep.subr.mxu0 0.0
        %2639 = vmatpush1.msra.mxu0 0.0
        %2640 = vmatprep.subr.mxu0 0.0
        %2641 = vmatpush1.msra.mxu0 0.0
        %2642 = vmatprep.subr.mxu0 0.0
        %2643 = vmatpush1.msra.mxu0 0.0
        %2644 = vmatprep.subr.mxu0 0.0
        %2645 = vmatpush1.msra.mxu0 0.0
        %2646 = vmatprep.subr.mxu0 0.0
        %2647 = vmatpush1.msra.mxu0 0.0
        %2648 = vmatprep.subr.mxu0 0.0
        %2649 = vmatpush1.msra.mxu0 0.0
        %2650 = vmatprep.subr.mxu0 0.0
        %2651 = vmatpush1.msra.mxu0 0.0
        %2652 = vmatprep.subr.mxu0 0.0
        %2653 = vmatpush1.msra.mxu0 0.0
        %2654 = vmatprep.subr.mxu0 0.0
        %2655 = vmatpush1.msra.mxu0 0.0
        %2656 = vmatprep.subr.mxu0 0.0
        %2657 = vmatpush1.msra.mxu0 0.0
        %2658 = vmatprep.subr.mxu0 0.0
        %2659 = vmatpush1.msra.mxu0 0.0
        %2660 = vmatprep.mubr.f32.mxu0 0.0
        %2661 = vmatmul.mubr.f32.gmra.mrb[0].mxu0 %v2518
        %v2662 = vpop.f32.mrb[0].mxu0
        %v2663 = vadd.f32 %v2515, %v2662
        %v2664 = vpop.f32.mrb[0].mxu0
        %2665 = vdwg.mxu0
        %v2667 = vsel %vm1064, %v2510, 0
        %2669 = vmatprep.subr.mxu0 0.0
        %2670 = vmatpush1.msra.mxu0 %v2506
        %2671 = vmatprep.subr.mxu0 0.0
        %2672 = vmatpush1.msra.mxu0 %v2507
        %2673 = vmatprep.subr.mxu0 0.0
        %2674 = vmatpush1.msra.mxu0 %v2508
        %2675 = vmatprep.subr.mxu0 0.0
        %2676 = vmatpush1.msra.mxu0 %v2509
        %2677 = vmatprep.subr.mxu0 0.0
        %2678 = vmatpush1.msra.mxu0 %v2667
        %2679 = vmatprep.subr.mxu0 0.0
        %2680 = vmatpush1.msra.mxu0 0.0
        %2681 = vmatprep.subr.mxu0 0.0
        %2682 = vmatpush1.msra.mxu0 0.0
        %2683 = vmatprep.subr.mxu0 0.0
        %2684 = vmatpush1.msra.mxu0 0.0
        %2685 = vmatprep.subr.mxu0 0.0
        %2686 = vmatpush1.msra.mxu0 0.0
        %2687 = vmatprep.subr.mxu0 0.0
        %2688 = vmatpush1.msra.mxu0 0.0
        %2689 = vmatprep.subr.mxu0 0.0
        %2690 = vmatpush1.msra.mxu0 0.0
        %2691 = vmatprep.subr.mxu0 0.0
        %2692 = vmatpush1.msra.mxu0 0.0
        %2693 = vmatprep.subr.mxu0 0.0
        %2694 = vmatpush1.msra.mxu0 0.0
        %2695 = vmatprep.subr.mxu0 0.0
        %2696 = vmatpush1.msra.mxu0 0.0
        %2697 = vmatprep.subr.mxu0 0.0
        %2698 = vmatpush1.msra.mxu0 0.0
        %2699 = vmatprep.subr.mxu0 0.0
        %2700 = vmatpush1.msra.mxu0 0.0
        %2701 = vmatprep.subr.mxu0 0.0
        %2702 = vmatpush1.msra.mxu0 0.0
        %2703 = vmatprep.subr.mxu0 0.0
        %2704 = vmatpush1.msra.mxu0 0.0
        %2705 = vmatprep.subr.mxu0 0.0
        %2706 = vmatpush1.msra.mxu0 0.0
        %2707 = vmatprep.subr.mxu0 0.0
        %2708 = vmatpush1.msra.mxu0 0.0
        %2709 = vmatprep.subr.mxu0 0.0
        %2710 = vmatpush1.msra.mxu0 0.0
        %2711 = vmatprep.subr.mxu0 0.0
        %2712 = vmatpush1.msra.mxu0 0.0
        %2713 = vmatprep.subr.mxu0 0.0
        %2714 = vmatpush1.msra.mxu0 0.0
        %2715 = vmatprep.subr.mxu0 0.0
        %2716 = vmatpush1.msra.mxu0 0.0
        %2717 = vmatprep.subr.mxu0 0.0
        %2718 = vmatpush1.msra.mxu0 0.0
        %2719 = vmatprep.subr.mxu0 0.0
        %2720 = vmatpush1.msra.mxu0 0.0
        %2721 = vmatprep.subr.mxu0 0.0
        %2722 = vmatpush1.msra.mxu0 0.0
        %2723 = vmatprep.subr.mxu0 0.0
        %2724 = vmatpush1.msra.mxu0 0.0
        %2725 = vmatprep.subr.mxu0 0.0
        %2726 = vmatpush1.msra.mxu0 0.0
        %2727 = vmatprep.subr.mxu0 0.0
        %2728 = vmatpush1.msra.mxu0 0.0
        %2729 = vmatprep.subr.mxu0 0.0
        %2730 = vmatpush1.msra.mxu0 0.0
        %2731 = vmatprep.subr.mxu0 0.0
        %2732 = vmatpush1.msra.mxu0 0.0
        %2733 = vmatprep.mubr.f32.mxu0 0.0
        %2734 = vmatmul.mubr.f32.gmra.mrb[0].mxu0 %v2518
        %v2735 = vpop.f32.mrb[0].mxu0
        %v2736 = vadd.f32 %v2515, %v2735
        %v2737 = vpop.f32.mrb[0].mxu0
        %2738 = vdwg.mxu0
        %v2739 = vmax.f32 %v2590, 0.0
        %v2740 = vmax.f32 %v2663, 0.0
        %v2741 = vmax.f32 %v2736, 0.0
        %2745 = vrot.lane.b32.xlu0 %v2739, 1
        %v2746 = vpop.permute.xlu0 %2745
        %2747 = vrot.lane.b32.xlu0 %v2740, 1
        %v2748 = vpop.permute.xlu0 %2747
        %2749 = vrot.lane.b32.xlu0 %v2741, 1
        %v2750 = vpop.permute.xlu0 %2749
        %2754 = vst.msk [vmem:[%s2135] sm:$0xf] %vm2136, %v2746
        %2755 = vst.msk [vmem:[%s2135 + $0x4] sm:$0xf] %vm2136, %v2748
        %2756 = vst.msk [vmem:[%s2135 + $0x8] sm:$0xf] %vm2136, %v2750
        %v2757 = vld [vmem:[#allocation3] sm:$0xf]
        %v2758 = vld [vmem:[#allocation3 + $0x4] sm:$0xf]
        %v2759 = vld [vmem:[#allocation3 + $0x8] sm:$0xf]
        %2760 = vst.msk [vmem:[#allocation4] sm:$0xf] %vm2371, %v2757
        %2761 = vst.msk [vmem:[#allocation4 + $0x28] sm:$0xf] %vm2371, %v2758
        %2762 = vst.msk [vmem:[#allocation4 + $0x50] sm:$0xf] %vm2371, %v2759
        %v2763 = vld [vmem:[#allocation3] sm:$0xf]
        %v2764 = vld [vmem:[#allocation3 + $0x4] sm:$0xf]
        %v2765 = vld [vmem:[#allocation3 + $0x8] sm:$0xf]
        %2769 = vrot.lane.b32.xlu0 %v2763, 127
        %v2770 = vpop.permute.xlu0 %2769
        %2771 = vrot.lane.b32.xlu0 %v2764, 127
        %v2772 = vpop.permute.xlu0 %2771
        %2773 = vrot.lane.b32.xlu0 %v2765, 127
        %v2774 = vpop.permute.xlu0 %2773
        %2778 = vst.msk [vmem:[#allocation4 + $0x4] sm:$0xf] %vm2371, %v2770
        %2779 = vst.msk [vmem:[#allocation4 + $0x2c] sm:$0xf] %vm2371, %v2772
        %2780 = vst.msk [vmem:[#allocation4 + $0x54] sm:$0xf] %vm2371, %v2774
        %v2781 = vld [vmem:[#allocation3] sm:$0xf]
        %v2782 = vld [vmem:[#allocation3 + $0x4] sm:$0xf]
        %v2783 = vld [vmem:[#allocation3 + $0x8] sm:$0xf]
        %2787 = vrot.lane.b32.xlu0 %v2781, 126
        %v2788 = vpop.permute.xlu0 %2787
        %2789 = vrot.lane.b32.xlu0 %v2782, 126
        %v2790 = vpop.permute.xlu0 %2789
        %2791 = vrot.lane.b32.xlu0 %v2783, 126
        %v2792 = vpop.permute.xlu0 %2791
        %2796 = vst.msk [vmem:[#allocation4 + $0x8] sm:$0xf] %vm2371, %v2788
        %2797 = vst.msk [vmem:[#allocation4 + $0x30] sm:$0xf] %vm2371, %v2790
        %2798 = vst.msk [vmem:[#allocation4 + $0x58] sm:$0xf] %vm2371, %v2792
        %v2799 = vld [vmem:[%s2135] sm:$0xf]
        %v2800 = vld [vmem:[%s2135 + $0x4] sm:$0xf]
        %v2801 = vld [vmem:[%s2135 + $0x8] sm:$0xf]
        %2802 = vst.msk [vmem:[#allocation4 + $0xc] sm:$0xf] %vm2371, %v2799
        %2803 = vst.msk [vmem:[#allocation4 + $0x34] sm:$0xf] %vm2371, %v2800
        %2804 = vst.msk [vmem:[#allocation4 + $0x5c] sm:$0xf] %vm2371, %v2801
        %v2805 = vld [vmem:[%s2135] sm:$0xf]
        %v2806 = vld [vmem:[%s2135 + $0x4] sm:$0xf]
        %v2807 = vld [vmem:[%s2135 + $0x8] sm:$0xf]
        %2811 = vrot.lane.b32.xlu0 %v2805, 127
        %v2812 = vpop.permute.xlu0 %2811
        %2813 = vrot.lane.b32.xlu0 %v2806, 127
        %v2814 = vpop.permute.xlu0 %2813
        %2815 = vrot.lane.b32.xlu0 %v2807, 127
        %v2816 = vpop.permute.xlu0 %2815
        %2820 = vst.msk [vmem:[#allocation4 + $0x10] sm:$0xf] %vm2371, %v2812
        %2821 = vst.msk [vmem:[#allocation4 + $0x38] sm:$0xf] %vm2371, %v2814
        %2822 = vst.msk [vmem:[#allocation4 + $0x60] sm:$0xf] %vm2371, %v2816
        %v2823 = vld [vmem:[%s2135] sm:$0xf]
        %v2824 = vld [vmem:[%s2135 + $0x4] sm:$0xf]
        %v2825 = vld [vmem:[%s2135 + $0x8] sm:$0xf]
        %2829 = vrot.lane.b32.xlu0 %v2823, 126
        %v2830 = vpop.permute.xlu0 %2829
        %2831 = vrot.lane.b32.xlu0 %v2824, 126
        %v2832 = vpop.permute.xlu0 %2831
        %2833 = vrot.lane.b32.xlu0 %v2825, 126
        %v2834 = vpop.permute.xlu0 %2833
        %2838 = vst.msk [vmem:[#allocation4 + $0x14] sm:$0xf] %vm2371, %v2830
        %2839 = vst.msk [vmem:[#allocation4 + $0x3c] sm:$0xf] %vm2371, %v2832
        %2840 = vst.msk [vmem:[#allocation4 + $0x64] sm:$0xf] %vm2371, %v2834
        %v2841 = vld [vmem:[%s2251] sm:$0xf]
        %v2842 = vld [vmem:[%s2251 + $0x4] sm:$0xf]
        %v2843 = vld [vmem:[%s2251 + $0x8] sm:$0xf]
        %2844 = vst.msk [vmem:[#allocation4 + $0x18] sm:$0xf] %vm2371, %v2841
        %2845 = vst.msk [vmem:[#allocation4 + $0x40] sm:$0xf] %vm2371, %v2842
        %2846 = vst.msk [vmem:[#allocation4 + $0x68] sm:$0xf] %vm2371, %v2843
        %v2847 = vld [vmem:[%s2251] sm:$0xf]
        %v2848 = vld [vmem:[%s2251 + $0x4] sm:$0xf]
        %v2849 = vld [vmem:[%s2251 + $0x8] sm:$0xf]
        %2853 = vrot.lane.b32.xlu0 %v2847, 127
        %v2854 = vpop.permute.xlu0 %2853
        %2855 = vrot.lane.b32.xlu0 %v2848, 127
        %v2856 = vpop.permute.xlu0 %2855
        %2857 = vrot.lane.b32.xlu0 %v2849, 127
        %v2858 = vpop.permute.xlu0 %2857
        %2862 = vst.msk [vmem:[#allocation4 + $0x1c] sm:$0xf] %vm2371, %v2854
        %2863 = vst.msk [vmem:[#allocation4 + $0x44] sm:$0xf] %vm2371, %v2856
        %2864 = vst.msk [vmem:[#allocation4 + $0x6c] sm:$0xf] %vm2371, %v2858
        %v2865 = vld [vmem:[%s2251] sm:$0xf]
        %v2866 = vld [vmem:[%s2251 + $0x4] sm:$0xf]
        %v2867 = vld [vmem:[%s2251 + $0x8] sm:$0xf]
        %2871 = vrot.lane.b32.xlu0 %v2865, 126
        %v2872 = vpop.permute.xlu0 %2871
        %2873 = vrot.lane.b32.xlu0 %v2866, 126
        %v2874 = vpop.permute.xlu0 %2873
        %2875 = vrot.lane.b32.xlu0 %v2867, 126
        %v2876 = vpop.permute.xlu0 %2875
        %2880 = vst.msk [vmem:[#allocation4 + $0x20] sm:$0xf] %vm2371, %v2872
        %2881 = vst.msk [vmem:[#allocation4 + $0x48] sm:$0xf] %vm2371, %v2874
        %2882 = vst.msk [vmem:[#allocation4 + $0x70] sm:$0xf] %vm2371, %v2876
        %v2883 = vld [vmem:[#allocation14] sm:$0xf]
        %v2884 = vld [vmem:[#allocation4] sm:$0xff]
        %v2885 = vld [vmem:[#allocation4 + $0x8] sm:$0xff]
        %v2886 = vld [vmem:[#allocation4 + $0x10] sm:$0xff]
        %v2887 = vld [vmem:[#allocation4 + $0x18] sm:$0xff]
        %v2888 = vld [vmem:[#allocation4 + $0x20] sm:$0xf]
        %v2889 = vld [vmem:[#allocation4 + $0x28] sm:$0xff]
        %v2890 = vld [vmem:[#allocation4 + $0x30] sm:$0xff]
        %v2891 = vld [vmem:[#allocation4 + $0x38] sm:$0xff]
        %v2892 = vld [vmem:[#allocation4 + $0x40] sm:$0xff]
        %v2893 = vld [vmem:[#allocation4 + $0x48] sm:$0xf]
        %v2894 = vld [vmem:[#allocation4 + $0x50] sm:$0xff]
        %v2895 = vld [vmem:[#allocation4 + $0x58] sm:$0xff]
        %v2896 = vld [vmem:[#allocation4 + $0x60] sm:$0xff]
        %v2897 = vld [vmem:[#allocation4 + $0x68] sm:$0xff]
        %v2898 = vld [vmem:[#allocation4 + $0x70] sm:$0xf]
        %v2899 = vld [vmem:[#allocation16] sm:$0xf]
        %2901 = vset.pattern.permute.xlu0 0
        %2902 = vperm.xlu0 %2901, %v2899
        %v2903 = vpop.permute.xlu0 %2902
        %v2906 = vsel %vm1060, %v2883, 0
        %v2909 = vsel %vm1064, %v2888, 0
        %2911 = vmatprep.subr.mxu0 0.0
        %2912 = vmatpush1.msra.mxu0 %v2884
        %2913 = vmatprep.subr.mxu0 0.0
        %2914 = vmatpush1.msra.mxu0 %v2885
        %2915 = vmatprep.subr.mxu0 0.0
        %2916 = vmatpush1.msra.mxu0 %v2886
        %2917 = vmatprep.subr.mxu0 0.0
        %2918 = vmatpush1.msra.mxu0 %v2887
        %2919 = vmatprep.subr.mxu0 0.0
        %2920 = vmatpush1.msra.mxu0 %v2909
        %2921 = vmatprep.subr.mxu0 0.0
        %2922 = vmatpush1.msra.mxu0 0.0
        %2923 = vmatprep.subr.mxu0 0.0
        %2924 = vmatpush1.msra.mxu0 0.0
        %2925 = vmatprep.subr.mxu0 0.0
        %2926 = vmatpush1.msra.mxu0 0.0
        %2927 = vmatprep.subr.mxu0 0.0
        %2928 = vmatpush1.msra.mxu0 0.0
        %2929 = vmatprep.subr.mxu0 0.0
        %2930 = vmatpush1.msra.mxu0 0.0
        %2931 = vmatprep.subr.mxu0 0.0
        %2932 = vmatpush1.msra.mxu0 0.0
        %2933 = vmatprep.subr.mxu0 0.0
        %2934 = vmatpush1.msra.mxu0 0.0
        %2935 = vmatprep.subr.mxu0 0.0
        %2936 = vmatpush1.msra.mxu0 0.0
        %2937 = vmatprep.subr.mxu0 0.0
        %2938 = vmatpush1.msra.mxu0 0.0
        %2939 = vmatprep.subr.mxu0 0.0
        %2940 = vmatpush1.msra.mxu0 0.0
        %2941 = vmatprep.subr.mxu0 0.0
        %2942 = vmatpush1.msra.mxu0 0.0
        %2943 = vmatprep.subr.mxu0 0.0
        %2944 = vmatpush1.msra.mxu0 0.0
        %2945 = vmatprep.subr.mxu0 0.0
        %2946 = vmatpush1.msra.mxu0 0.0
        %2947 = vmatprep.subr.mxu0 0.0
        %2948 = vmatpush1.msra.mxu0 0.0
        %2949 = vmatprep.subr.mxu0 0.0
        %2950 = vmatpush1.msra.mxu0 0.0
        %2951 = vmatprep.subr.mxu0 0.0
        %2952 = vmatpush1.msra.mxu0 0.0
        %2953 = vmatprep.subr.mxu0 0.0
        %2954 = vmatpush1.msra.mxu0 0.0
        %2955 = vmatprep.subr.mxu0 0.0
        %2956 = vmatpush1.msra.mxu0 0.0
        %2957 = vmatprep.subr.mxu0 0.0
        %2958 = vmatpush1.msra.mxu0 0.0
        %2959 = vmatprep.subr.mxu0 0.0
        %2960 = vmatpush1.msra.mxu0 0.0
        %2961 = vmatprep.subr.mxu0 0.0
        %2962 = vmatpush1.msra.mxu0 0.0
        %2963 = vmatprep.subr.mxu0 0.0
        %2964 = vmatpush1.msra.mxu0 0.0
        %2965 = vmatprep.subr.mxu0 0.0
        %2966 = vmatpush1.msra.mxu0 0.0
        %2967 = vmatprep.subr.mxu0 0.0
        %2968 = vmatpush1.msra.mxu0 0.0
        %2969 = vmatprep.subr.mxu0 0.0
        %2970 = vmatpush1.msra.mxu0 0.0
        %2971 = vmatprep.subr.mxu0 0.0
        %2972 = vmatpush1.msra.mxu0 0.0
        %2973 = vmatprep.subr.mxu0 0.0
        %2974 = vmatpush1.msra.mxu0 0.0
        %2975 = vmatprep.mubr.f32.mxu0 0.0
        %2976 = vmatmul.mubr.f32.gmra.mrb[0].mxu0 %v2906
        %v2977 = vpop.f32.mrb[0].mxu0
        %v2978 = vadd.f32 %v2903, %v2977
        %v2979 = vpop.f32.mrb[0].mxu0
        %2980 = vdwg.mxu0
        %v2982 = vsel %vm1064, %v2893, 0
        %2984 = vmatprep.subr.mxu0 0.0
        %2985 = vmatpush1.msra.mxu0 %v2889
        %2986 = vmatprep.subr.mxu0 0.0
        %2987 = vmatpush1.msra.mxu0 %v2890
        %2988 = vmatprep.subr.mxu0 0.0
        %2989 = vmatpush1.msra.mxu0 %v2891
        %2990 = vmatprep.subr.mxu0 0.0
        %2991 = vmatpush1.msra.mxu0 %v2892
        %2992 = vmatprep.subr.mxu0 0.0
        %2993 = vmatpush1.msra.mxu0 %v2982
        %2994 = vmatprep.subr.mxu0 0.0
        %2995 = vmatpush1.msra.mxu0 0.0
        %2996 = vmatprep.subr.mxu0 0.0
        %2997 = vmatpush1.msra.mxu0 0.0
        %2998 = vmatprep.subr.mxu0 0.0
        %2999 = vmatpush1.msra.mxu0 0.0
        %3000 = vmatprep.subr.mxu0 0.0
        %3001 = vmatpush1.msra.mxu0 0.0
        %3002 = vmatprep.subr.mxu0 0.0
        %3003 = vmatpush1.msra.mxu0 0.0
        %3004 = vmatprep.subr.mxu0 0.0
        %3005 = vmatpush1.msra.mxu0 0.0
        %3006 = vmatprep.subr.mxu0 0.0
        %3007 = vmatpush1.msra.mxu0 0.0
        %3008 = vmatprep.subr.mxu0 0.0
        %3009 = vmatpush1.msra.mxu0 0.0
        %3010 = vmatprep.subr.mxu0 0.0
        %3011 = vmatpush1.msra.mxu0 0.0
        %3012 = vmatprep.subr.mxu0 0.0
        %3013 = vmatpush1.msra.mxu0 0.0
        %3014 = vmatprep.subr.mxu0 0.0
        %3015 = vmatpush1.msra.mxu0 0.0
        %3016 = vmatprep.subr.mxu0 0.0
        %3017 = vmatpush1.msra.mxu0 0.0
        %3018 = vmatprep.subr.mxu0 0.0
        %3019 = vmatpush1.msra.mxu0 0.0
        %3020 = vmatprep.subr.mxu0 0.0
        %3021 = vmatpush1.msra.mxu0 0.0
        %3022 = vmatprep.subr.mxu0 0.0
        %3023 = vmatpush1.msra.mxu0 0.0
        %3024 = vmatprep.subr.mxu0 0.0
        %3025 = vmatpush1.msra.mxu0 0.0
        %3026 = vmatprep.subr.mxu0 0.0
        %3027 = vmatpush1.msra.mxu0 0.0
        %3028 = vmatprep.subr.mxu0 0.0
        %3029 = vmatpush1.msra.mxu0 0.0
        %3030 = vmatprep.subr.mxu0 0.0
        %3031 = vmatpush1.msra.mxu0 0.0
        %3032 = vmatprep.subr.mxu0 0.0
        %3033 = vmatpush1.msra.mxu0 0.0
        %3034 = vmatprep.subr.mxu0 0.0
        %3035 = vmatpush1.msra.mxu0 0.0
        %3036 = vmatprep.subr.mxu0 0.0
        %3037 = vmatpush1.msra.mxu0 0.0
        %3038 = vmatprep.subr.mxu0 0.0
        %3039 = vmatpush1.msra.mxu0 0.0
        %3040 = vmatprep.subr.mxu0 0.0
        %3041 = vmatpush1.msra.mxu0 0.0
        %3042 = vmatprep.subr.mxu0 0.0
        %3043 = vmatpush1.msra.mxu0 0.0
        %3044 = vmatprep.subr.mxu0 0.0
        %3045 = vmatpush1.msra.mxu0 0.0
        %3046 = vmatprep.subr.mxu0 0.0
        %3047 = vmatpush1.msra.mxu0 0.0
        %3048 = vmatprep.mubr.f32.mxu0 0.0
        %3049 = vmatmul.mubr.f32.gmra.mrb[0].mxu0 %v2906
        %v3050 = vpop.f32.mrb[0].mxu0
        %v3051 = vadd.f32 %v2903, %v3050
        %v3052 = vpop.f32.mrb[0].mxu0
        %3053 = vdwg.mxu0
        %v3055 = vsel %vm1064, %v2898, 0
        %3057 = vmatprep.subr.mxu0 0.0
        %3058 = vmatpush1.msra.mxu0 %v2894
        %3059 = vmatprep.subr.mxu0 0.0
        %3060 = vmatpush1.msra.mxu0 %v2895
        %3061 = vmatprep.subr.mxu0 0.0
        %3062 = vmatpush1.msra.mxu0 %v2896
        %3063 = vmatprep.subr.mxu0 0.0
        %3064 = vmatpush1.msra.mxu0 %v2897
        %3065 = vmatprep.subr.mxu0 0.0
        %3066 = vmatpush1.msra.mxu0 %v3055
        %3067 = vmatprep.subr.mxu0 0.0
        %3068 = vmatpush1.msra.mxu0 0.0
        %3069 = vmatprep.subr.mxu0 0.0
        %3070 = vmatpush1.msra.mxu0 0.0
        %3071 = vmatprep.subr.mxu0 0.0
        %3072 = vmatpush1.msra.mxu0 0.0
        %3073 = vmatprep.subr.mxu0 0.0
        %3074 = vmatpush1.msra.mxu0 0.0
        %3075 = vmatprep.subr.mxu0 0.0
        %3076 = vmatpush1.msra.mxu0 0.0
        %3077 = vmatprep.subr.mxu0 0.0
        %3078 = vmatpush1.msra.mxu0 0.0
        %3079 = vmatprep.subr.mxu0 0.0
        %3080 = vmatpush1.msra.mxu0 0.0
        %3081 = vmatprep.subr.mxu0 0.0
        %3082 = vmatpush1.msra.mxu0 0.0
        %3083 = vmatprep.subr.mxu0 0.0
        %3084 = vmatpush1.msra.mxu0 0.0
        %3085 = vmatprep.subr.mxu0 0.0
        %3086 = vmatpush1.msra.mxu0 0.0
        %3087 = vmatprep.subr.mxu0 0.0
        %3088 = vmatpush1.msra.mxu0 0.0
        %3089 = vmatprep.subr.mxu0 0.0
        %3090 = vmatpush1.msra.mxu0 0.0
        %3091 = vmatprep.subr.mxu0 0.0
        %3092 = vmatpush1.msra.mxu0 0.0
        %3093 = vmatprep.subr.mxu0 0.0
        %3094 = vmatpush1.msra.mxu0 0.0
        %3095 = vmatprep.subr.mxu0 0.0
        %3096 = vmatpush1.msra.mxu0 0.0
        %3097 = vmatprep.subr.mxu0 0.0
        %3098 = vmatpush1.msra.mxu0 0.0
        %3099 = vmatprep.subr.mxu0 0.0
        %3100 = vmatpush1.msra.mxu0 0.0
        %3101 = vmatprep.subr.mxu0 0.0
        %3102 = vmatpush1.msra.mxu0 0.0
        %3103 = vmatprep.subr.mxu0 0.0
        %3104 = vmatpush1.msra.mxu0 0.0
        %3105 = vmatprep.subr.mxu0 0.0
        %3106 = vmatpush1.msra.mxu0 0.0
        %3107 = vmatprep.subr.mxu0 0.0
        %3108 = vmatpush1.msra.mxu0 0.0
        %3109 = vmatprep.subr.mxu0 0.0
        %3110 = vmatpush1.msra.mxu0 0.0
        %3111 = vmatprep.subr.mxu0 0.0
        %3112 = vmatpush1.msra.mxu0 0.0
        %3113 = vmatprep.subr.mxu0 0.0
        %3114 = vmatpush1.msra.mxu0 0.0
        %3115 = vmatprep.subr.mxu0 0.0
        %3116 = vmatpush1.msra.mxu0 0.0
        %3117 = vmatprep.subr.mxu0 0.0
        %3118 = vmatpush1.msra.mxu0 0.0
        %3119 = vmatprep.subr.mxu0 0.0
        %3120 = vmatpush1.msra.mxu0 0.0
        %3121 = vmatprep.mubr.f32.mxu0 0.0
        %3122 = vmatmul.mubr.f32.gmra.mrb[0].mxu0 %v2906
        %v3123 = vpop.f32.mrb[0].mxu0
        %v3124 = vadd.f32 %v2903, %v3123
        %v3125 = vpop.f32.mrb[0].mxu0
        %3126 = vdwg.mxu0
        %v3127 = vmax.f32 %v2978, 0.0
        %v3128 = vmax.f32 %v3051, 0.0
        %v3129 = vmax.f32 %v3124, 0.0
        %3133 = vrot.lane.b32.xlu0 %v3127, 1
        %v3134 = vpop.permute.xlu0 %3133
        %3135 = vrot.lane.b32.xlu0 %v3128, 1
        %v3136 = vpop.permute.xlu0 %3135
        %3137 = vrot.lane.b32.xlu0 %v3129, 1
        %v3138 = vpop.permute.xlu0 %3137
        %3142 = vst.msk [vmem:[%s2135] sm:$0xf] %vm2136, %v3134
        %3143 = vst.msk [vmem:[%s2135 + $0x4] sm:$0xf] %vm2136, %v3136
        %3144 = vst.msk [vmem:[%s2135 + $0x8] sm:$0xf] %vm2136, %v3138
        %v3145 = vld [vmem:[#allocation3] sm:$0xf]
        %v3146 = vld [vmem:[#allocation3 + $0x4] sm:$0xf]
        %v3147 = vld [vmem:[#allocation3 + $0x8] sm:$0xf]
        %3148 = vst.msk [vmem:[#allocation4] sm:$0xf] %vm2371, %v3145
        %3149 = vst.msk [vmem:[#allocation4 + $0x28] sm:$0xf] %vm2371, %v3146
        %3150 = vst.msk [vmem:[#allocation4 + $0x50] sm:$0xf] %vm2371, %v3147
        %v3151 = vld [vmem:[#allocation3] sm:$0xf]
        %v3152 = vld [vmem:[#allocation3 + $0x4] sm:$0xf]
        %v3153 = vld [vmem:[#allocation3 + $0x8] sm:$0xf]
        %3157 = vrot.lane.b32.xlu0 %v3151, 127
        %v3158 = vpop.permute.xlu0 %3157
        %3159 = vrot.lane.b32.xlu0 %v3152, 127
        %v3160 = vpop.permute.xlu0 %3159
        %3161 = vrot.lane.b32.xlu0 %v3153, 127
        %v3162 = vpop.permute.xlu0 %3161
        %3166 = vst.msk [vmem:[#allocation4 + $0x4] sm:$0xf] %vm2371, %v3158
        %3167 = vst.msk [vmem:[#allocation4 + $0x2c] sm:$0xf] %vm2371, %v3160
        %3168 = vst.msk [vmem:[#allocation4 + $0x54] sm:$0xf] %vm2371, %v3162
        %v3169 = vld [vmem:[#allocation3] sm:$0xf]
        %v3170 = vld [vmem:[#allocation3 + $0x4] sm:$0xf]
        %v3171 = vld [vmem:[#allocation3 + $0x8] sm:$0xf]
        %3175 = vrot.lane.b32.xlu0 %v3169, 126
        %v3176 = vpop.permute.xlu0 %3175
        %3177 = vrot.lane.b32.xlu0 %v3170, 126
        %v3178 = vpop.permute.xlu0 %3177
        %3179 = vrot.lane.b32.xlu0 %v3171, 126
        %v3180 = vpop.permute.xlu0 %3179
        %3184 = vst.msk [vmem:[#allocation4 + $0x8] sm:$0xf] %vm2371, %v3176
        %3185 = vst.msk [vmem:[#allocation4 + $0x30] sm:$0xf] %vm2371, %v3178
        %3186 = vst.msk [vmem:[#allocation4 + $0x58] sm:$0xf] %vm2371, %v3180
        %v3187 = vld [vmem:[%s2135] sm:$0xf]
        %v3188 = vld [vmem:[%s2135 + $0x4] sm:$0xf]
        %v3189 = vld [vmem:[%s2135 + $0x8] sm:$0xf]
        %3190 = vst.msk [vmem:[#allocation4 + $0xc] sm:$0xf] %vm2371, %v3187
        %3191 = vst.msk [vmem:[#allocation4 + $0x34] sm:$0xf] %vm2371, %v3188
        %3192 = vst.msk [vmem:[#allocation4 + $0x5c] sm:$0xf] %vm2371, %v3189
        %v3193 = vld [vmem:[%s2135] sm:$0xf]
        %v3194 = vld [vmem:[%s2135 + $0x4] sm:$0xf]
        %v3195 = vld [vmem:[%s2135 + $0x8] sm:$0xf]
        %3199 = vrot.lane.b32.xlu0 %v3193, 127
        %v3200 = vpop.permute.xlu0 %3199
        %3201 = vrot.lane.b32.xlu0 %v3194, 127
        %v3202 = vpop.permute.xlu0 %3201
        %3203 = vrot.lane.b32.xlu0 %v3195, 127
        %v3204 = vpop.permute.xlu0 %3203
        %3208 = vst.msk [vmem:[#allocation4 + $0x10] sm:$0xf] %vm2371, %v3200
        %3209 = vst.msk [vmem:[#allocation4 + $0x38] sm:$0xf] %vm2371, %v3202
        %3210 = vst.msk [vmem:[#allocation4 + $0x60] sm:$0xf] %vm2371, %v3204
        %v3211 = vld [vmem:[%s2135] sm:$0xf]
        %v3212 = vld [vmem:[%s2135 + $0x4] sm:$0xf]
        %v3213 = vld [vmem:[%s2135 + $0x8] sm:$0xf]
        %3217 = vrot.lane.b32.xlu0 %v3211, 126
        %v3218 = vpop.permute.xlu0 %3217
        %3219 = vrot.lane.b32.xlu0 %v3212, 126
        %v3220 = vpop.permute.xlu0 %3219
        %3221 = vrot.lane.b32.xlu0 %v3213, 126
        %v3222 = vpop.permute.xlu0 %3221
        %3226 = vst.msk [vmem:[#allocation4 + $0x14] sm:$0xf] %vm2371, %v3218
        %3227 = vst.msk [vmem:[#allocation4 + $0x3c] sm:$0xf] %vm2371, %v3220
        %3228 = vst.msk [vmem:[#allocation4 + $0x64] sm:$0xf] %vm2371, %v3222
        %v3229 = vld [vmem:[%s2251] sm:$0xf]
        %v3230 = vld [vmem:[%s2251 + $0x4] sm:$0xf]
        %v3231 = vld [vmem:[%s2251 + $0x8] sm:$0xf]
        %3232 = vst.msk [vmem:[#allocation4 + $0x18] sm:$0xf] %vm2371, %v3229
        %3233 = vst.msk [vmem:[#allocation4 + $0x40] sm:$0xf] %vm2371, %v3230
        %3234 = vst.msk [vmem:[#allocation4 + $0x68] sm:$0xf] %vm2371, %v3231
        %v3235 = vld [vmem:[%s2251] sm:$0xf]
        %v3236 = vld [vmem:[%s2251 + $0x4] sm:$0xf]
        %v3237 = vld [vmem:[%s2251 + $0x8] sm:$0xf]
        %3241 = vrot.lane.b32.xlu0 %v3235, 127
        %v3242 = vpop.permute.xlu0 %3241
        %3243 = vrot.lane.b32.xlu0 %v3236, 127
        %v3244 = vpop.permute.xlu0 %3243
        %3245 = vrot.lane.b32.xlu0 %v3237, 127
        %v3246 = vpop.permute.xlu0 %3245
        %3250 = vst.msk [vmem:[#allocation4 + $0x1c] sm:$0xf] %vm2371, %v3242
        %3251 = vst.msk [vmem:[#allocation4 + $0x44] sm:$0xf] %vm2371, %v3244
        %3252 = vst.msk [vmem:[#allocation4 + $0x6c] sm:$0xf] %vm2371, %v3246
        %v3253 = vld [vmem:[%s2251] sm:$0xf]
        %v3254 = vld [vmem:[%s2251 + $0x4] sm:$0xf]
        %v3255 = vld [vmem:[%s2251 + $0x8] sm:$0xf]
        %3259 = vrot.lane.b32.xlu0 %v3253, 126
        %v3260 = vpop.permute.xlu0 %3259
        %3261 = vrot.lane.b32.xlu0 %v3254, 126
        %v3262 = vpop.permute.xlu0 %3261
        %3263 = vrot.lane.b32.xlu0 %v3255, 126
        %v3264 = vpop.permute.xlu0 %3263
        %3268 = vst.msk [vmem:[#allocation4 + $0x20] sm:$0xf] %vm2371, %v3260
        %3269 = vst.msk [vmem:[#allocation4 + $0x48] sm:$0xf] %vm2371, %v3262
        %3270 = vst.msk [vmem:[#allocation4 + $0x70] sm:$0xf] %vm2371, %v3264
        %v3271 = vld [vmem:[#allocation17] sm:$0xf]
        %v3272 = vld [vmem:[#allocation4] sm:$0xff]
        %v3273 = vld [vmem:[#allocation4 + $0x8] sm:$0xff]
        %v3274 = vld [vmem:[#allocation4 + $0x10] sm:$0xff]
        %v3275 = vld [vmem:[#allocation4 + $0x18] sm:$0xff]
        %v3276 = vld [vmem:[#allocation4 + $0x20] sm:$0xf]
        %v3277 = vld [vmem:[#allocation4 + $0x28] sm:$0xff]
        %v3278 = vld [vmem:[#allocation4 + $0x30] sm:$0xff]
        %v3279 = vld [vmem:[#allocation4 + $0x38] sm:$0xff]
        %v3280 = vld [vmem:[#allocation4 + $0x40] sm:$0xff]
        %v3281 = vld [vmem:[#allocation4 + $0x48] sm:$0xf]
        %v3282 = vld [vmem:[#allocation4 + $0x50] sm:$0xff]
        %v3283 = vld [vmem:[#allocation4 + $0x58] sm:$0xff]
        %v3284 = vld [vmem:[#allocation4 + $0x60] sm:$0xff]
        %v3285 = vld [vmem:[#allocation4 + $0x68] sm:$0xff]
        %v3286 = vld [vmem:[#allocation4 + $0x70] sm:$0xf]
        %v3287 = vld [vmem:[#allocation19] sm:$0xf]
        %3289 = vset.pattern.permute.xlu0 0
        %3290 = vperm.xlu0 %3289, %v3287
        %v3291 = vpop.permute.xlu0 %3290
        %v3294 = vsel %vm1060, %v3271, 0
        %v3297 = vsel %vm1064, %v3276, 0
        %3299 = vmatprep.subr.mxu0 0.0
        %3300 = vmatpush1.msra.mxu0 %v3272
        %3301 = vmatprep.subr.mxu0 0.0
        %3302 = vmatpush1.msra.mxu0 %v3273
        %3303 = vmatprep.subr.mxu0 0.0
        %3304 = vmatpush1.msra.mxu0 %v3274
        %3305 = vmatprep.subr.mxu0 0.0
        %3306 = vmatpush1.msra.mxu0 %v3275
        %3307 = vmatprep.subr.mxu0 0.0
        %3308 = vmatpush1.msra.mxu0 %v3297
        %3309 = vmatprep.subr.mxu0 0.0
        %3310 = vmatpush1.msra.mxu0 0.0
        %3311 = vmatprep.subr.mxu0 0.0
        %3312 = vmatpush1.msra.mxu0 0.0
        %3313 = vmatprep.subr.mxu0 0.0
        %3314 = vmatpush1.msra.mxu0 0.0
        %3315 = vmatprep.subr.mxu0 0.0
        %3316 = vmatpush1.msra.mxu0 0.0
        %3317 = vmatprep.subr.mxu0 0.0
        %3318 = vmatpush1.msra.mxu0 0.0
        %3319 = vmatprep.subr.mxu0 0.0
        %3320 = vmatpush1.msra.mxu0 0.0
        %3321 = vmatprep.subr.mxu0 0.0
        %3322 = vmatpush1.msra.mxu0 0.0
        %3323 = vmatprep.subr.mxu0 0.0
        %3324 = vmatpush1.msra.mxu0 0.0
        %3325 = vmatprep.subr.mxu0 0.0
        %3326 = vmatpush1.msra.mxu0 0.0
        %3327 = vmatprep.subr.mxu0 0.0
        %3328 = vmatpush1.msra.mxu0 0.0
        %3329 = vmatprep.subr.mxu0 0.0
        %3330 = vmatpush1.msra.mxu0 0.0
        %3331 = vmatprep.subr.mxu0 0.0
        %3332 = vmatpush1.msra.mxu0 0.0
        %3333 = vmatprep.subr.mxu0 0.0
        %3334 = vmatpush1.msra.mxu0 0.0
        %3335 = vmatprep.subr.mxu0 0.0
        %3336 = vmatpush1.msra.mxu0 0.0
        %3337 = vmatprep.subr.mxu0 0.0
        %3338 = vmatpush1.msra.mxu0 0.0
        %3339 = vmatprep.subr.mxu0 0.0
        %3340 = vmatpush1.msra.mxu0 0.0
        %3341 = vmatprep.subr.mxu0 0.0
        %3342 = vmatpush1.msra.mxu0 0.0
        %3343 = vmatprep.subr.mxu0 0.0
        %3344 = vmatpush1.msra.mxu0 0.0
        %3345 = vmatprep.subr.mxu0 0.0
        %3346 = vmatpush1.msra.mxu0 0.0
        %3347 = vmatprep.subr.mxu0 0.0
        %3348 = vmatpush1.msra.mxu0 0.0
        %3349 = vmatprep.subr.mxu0 0.0
        %3350 = vmatpush1.msra.mxu0 0.0
        %3351 = vmatprep.subr.mxu0 0.0
        %3352 = vmatpush1.msra.mxu0 0.0
        %3353 = vmatprep.subr.mxu0 0.0
        %3354 = vmatpush1.msra.mxu0 0.0
        %3355 = vmatprep.subr.mxu0 0.0
        %3356 = vmatpush1.msra.mxu0 0.0
        %3357 = vmatprep.subr.mxu0 0.0
        %3358 = vmatpush1.msra.mxu0 0.0
        %3359 = vmatprep.subr.mxu0 0.0
        %3360 = vmatpush1.msra.mxu0 0.0
        %3361 = vmatprep.subr.mxu0 0.0
        %3362 = vmatpush1.msra.mxu0 0.0
        %3363 = vmatprep.mubr.f32.mxu0 0.0
        %3364 = vmatmul.mubr.f32.gmra.mrb[0].mxu0 %v3294
        %v3365 = vpop.f32.mrb[0].mxu0
        %v3366 = vadd.f32 %v3291, %v3365
        %v3367 = vpop.f32.mrb[0].mxu0
        %3368 = vdwg.mxu0
        %v3370 = vsel %vm1064, %v3281, 0
        %3372 = vmatprep.subr.mxu0 0.0
        %3373 = vmatpush1.msra.mxu0 %v3277
        %3374 = vmatprep.subr.mxu0 0.0
        %3375 = vmatpush1.msra.mxu0 %v3278
        %3376 = vmatprep.subr.mxu0 0.0
        %3377 = vmatpush1.msra.mxu0 %v3279
        %3378 = vmatprep.subr.mxu0 0.0
        %3379 = vmatpush1.msra.mxu0 %v3280
        %3380 = vmatprep.subr.mxu0 0.0
        %3381 = vmatpush1.msra.mxu0 %v3370
        %3382 = vmatprep.subr.mxu0 0.0
        %3383 = vmatpush1.msra.mxu0 0.0
        %3384 = vmatprep.subr.mxu0 0.0
        %3385 = vmatpush1.msra.mxu0 0.0
        %3386 = vmatprep.subr.mxu0 0.0
        %3387 = vmatpush1.msra.mxu0 0.0
        %3388 = vmatprep.subr.mxu0 0.0
        %3389 = vmatpush1.msra.mxu0 0.0
        %3390 = vmatprep.subr.mxu0 0.0
        %3391 = vmatpush1.msra.mxu0 0.0
        %3392 = vmatprep.subr.mxu0 0.0
        %3393 = vmatpush1.msra.mxu0 0.0
        %3394 = vmatprep.subr.mxu0 0.0
        %3395 = vmatpush1.msra.mxu0 0.0
        %3396 = vmatprep.subr.mxu0 0.0
        %3397 = vmatpush1.msra.mxu0 0.0
        %3398 = vmatprep.subr.mxu0 0.0
        %3399 = vmatpush1.msra.mxu0 0.0
        %3400 = vmatprep.subr.mxu0 0.0
        %3401 = vmatpush1.msra.mxu0 0.0
        %3402 = vmatprep.subr.mxu0 0.0
        %3403 = vmatpush1.msra.mxu0 0.0
        %3404 = vmatprep.subr.mxu0 0.0
        %3405 = vmatpush1.msra.mxu0 0.0
        %3406 = vmatprep.subr.mxu0 0.0
        %3407 = vmatpush1.msra.mxu0 0.0
        %3408 = vmatprep.subr.mxu0 0.0
        %3409 = vmatpush1.msra.mxu0 0.0
        %3410 = vmatprep.subr.mxu0 0.0
        %3411 = vmatpush1.msra.mxu0 0.0
        %3412 = vmatprep.subr.mxu0 0.0
        %3413 = vmatpush1.msra.mxu0 0.0
        %3414 = vmatprep.subr.mxu0 0.0
        %3415 = vmatpush1.msra.mxu0 0.0
        %3416 = vmatprep.subr.mxu0 0.0
        %3417 = vmatpush1.msra.mxu0 0.0
        %3418 = vmatprep.subr.mxu0 0.0
        %3419 = vmatpush1.msra.mxu0 0.0
        %3420 = vmatprep.subr.mxu0 0.0
        %3421 = vmatpush1.msra.mxu0 0.0
        %3422 = vmatprep.subr.mxu0 0.0
        %3423 = vmatpush1.msra.mxu0 0.0
        %3424 = vmatprep.subr.mxu0 0.0
        %3425 = vmatpush1.msra.mxu0 0.0
        %3426 = vmatprep.subr.mxu0 0.0
        %3427 = vmatpush1.msra.mxu0 0.0
        %3428 = vmatprep.subr.mxu0 0.0
        %3429 = vmatpush1.msra.mxu0 0.0
        %3430 = vmatprep.subr.mxu0 0.0
        %3431 = vmatpush1.msra.mxu0 0.0
        %3432 = vmatprep.subr.mxu0 0.0
        %3433 = vmatpush1.msra.mxu0 0.0
        %3434 = vmatprep.subr.mxu0 0.0
        %3435 = vmatpush1.msra.mxu0 0.0
        %3436 = vmatprep.mubr.f32.mxu0 0.0
        %3437 = vmatmul.mubr.f32.gmra.mrb[0].mxu0 %v3294
        %v3438 = vpop.f32.mrb[0].mxu0
        %v3439 = vadd.f32 %v3291, %v3438
        %v3440 = vpop.f32.mrb[0].mxu0
        %3441 = vdwg.mxu0
        %v3443 = vsel %vm1064, %v3286, 0
        %3445 = vmatprep.subr.mxu0 0.0
        %3446 = vmatpush1.msra.mxu0 %v3282
        %3447 = vmatprep.subr.mxu0 0.0
        %3448 = vmatpush1.msra.mxu0 %v3283
        %3449 = vmatprep.subr.mxu0 0.0
        %3450 = vmatpush1.msra.mxu0 %v3284
        %3451 = vmatprep.subr.mxu0 0.0
        %3452 = vmatpush1.msra.mxu0 %v3285
        %3453 = vmatprep.subr.mxu0 0.0
        %3454 = vmatpush1.msra.mxu0 %v3443
        %3455 = vmatprep.subr.mxu0 0.0
        %3456 = vmatpush1.msra.mxu0 0.0
        %3457 = vmatprep.subr.mxu0 0.0
        %3458 = vmatpush1.msra.mxu0 0.0
        %3459 = vmatprep.subr.mxu0 0.0
        %3460 = vmatpush1.msra.mxu0 0.0
        %3461 = vmatprep.subr.mxu0 0.0
        %3462 = vmatpush1.msra.mxu0 0.0
        %3463 = vmatprep.subr.mxu0 0.0
        %3464 = vmatpush1.msra.mxu0 0.0
        %3465 = vmatprep.subr.mxu0 0.0
        %3466 = vmatpush1.msra.mxu0 0.0
        %3467 = vmatprep.subr.mxu0 0.0
        %3468 = vmatpush1.msra.mxu0 0.0
        %3469 = vmatprep.subr.mxu0 0.0
        %3470 = vmatpush1.msra.mxu0 0.0
        %3471 = vmatprep.subr.mxu0 0.0
        %3472 = vmatpush1.msra.mxu0 0.0
        %3473 = vmatprep.subr.mxu0 0.0
        %3474 = vmatpush1.msra.mxu0 0.0
        %3475 = vmatprep.subr.mxu0 0.0
        %3476 = vmatpush1.msra.mxu0 0.0
        %3477 = vmatprep.subr.mxu0 0.0
        %3478 = vmatpush1.msra.mxu0 0.0
        %3479 = vmatprep.subr.mxu0 0.0
        %3480 = vmatpush1.msra.mxu0 0.0
        %3481 = vmatprep.subr.mxu0 0.0
        %3482 = vmatpush1.msra.mxu0 0.0
        %3483 = vmatprep.subr.mxu0 0.0
        %3484 = vmatpush1.msra.mxu0 0.0
        %3485 = vmatprep.subr.mxu0 0.0
        %3486 = vmatpush1.msra.mxu0 0.0
        %3487 = vmatprep.subr.mxu0 0.0
        %3488 = vmatpush1.msra.mxu0 0.0
        %3489 = vmatprep.subr.mxu0 0.0
        %3490 = vmatpush1.msra.mxu0 0.0
        %3491 = vmatprep.subr.mxu0 0.0
        %3492 = vmatpush1.msra.mxu0 0.0
        %3493 = vmatprep.subr.mxu0 0.0
        %3494 = vmatpush1.msra.mxu0 0.0
        %3495 = vmatprep.subr.mxu0 0.0
        %3496 = vmatpush1.msra.mxu0 0.0
        %3497 = vmatprep.subr.mxu0 0.0
        %3498 = vmatpush1.msra.mxu0 0.0
        %3499 = vmatprep.subr.mxu0 0.0
        %3500 = vmatpush1.msra.mxu0 0.0
        %3501 = vmatprep.subr.mxu0 0.0
        %3502 = vmatpush1.msra.mxu0 0.0
        %3503 = vmatprep.subr.mxu0 0.0
        %3504 = vmatpush1.msra.mxu0 0.0
        %3505 = vmatprep.subr.mxu0 0.0
        %3506 = vmatpush1.msra.mxu0 0.0
        %3507 = vmatprep.subr.mxu0 0.0
        %3508 = vmatpush1.msra.mxu0 0.0
        %3509 = vmatprep.mubr.f32.mxu0 0.0
        %3510 = vmatmul.mubr.f32.gmra.mrb[0].mxu0 %v3294
        %v3511 = vpop.f32.mrb[0].mxu0
        %v3512 = vadd.f32 %v3291, %v3511
        %v3513 = vpop.f32.mrb[0].mxu0
        %3514 = vdwg.mxu0
        %3518 = vrot.lane.b32.xlu0 %v3366, 1
        %v3519 = vpop.permute.xlu0 %3518
        %3520 = vrot.lane.b32.xlu0 %v3439, 1
        %v3521 = vpop.permute.xlu0 %3520
        %3522 = vrot.lane.b32.xlu0 %v3512, 1
        %v3523 = vpop.permute.xlu0 %3522
        %3527 = vst.msk [vmem:[%s2135] sm:$0xf] %vm2136, %v3519
        %3528 = vst.msk [vmem:[%s2135 + $0x4] sm:$0xf] %vm2136, %v3521
        %3529 = vst.msk [vmem:[%s2135 + $0x8] sm:$0xf] %vm2136, %v3523
        %v3530 = vld [vmem:[%s2135] sm:$0xf]
        %v3531 = vld [vmem:[#allocation22] sm:$0x7]
        %3533 = vrot.lane.b32.xlu0 %v3530, 127
        %v3534 = vpop.permute.xlu0 %3533
        %vm3535 = vcmask 23552
        %v3536 = vsel %vm3535, %v3534, 0
        %vm3538 = vcmask 1042432
        %v3540 = vsel %vm3538, %v3531, 0
        %3542 = vmatprep.subr.mxu0 0.0
        %3543 = vmatpush1.msra.mxu0 %v3540
        %3544 = vmatprep.subr.mxu0 0.0
        %3545 = vmatpush1.msra.mxu0 0.0
        %3546 = vmatprep.subr.mxu0 0.0
        %3547 = vmatpush1.msra.mxu0 0.0
        %3548 = vmatprep.subr.mxu0 0.0
        %3549 = vmatpush1.msra.mxu0 0.0
        %3550 = vmatprep.subr.mxu0 0.0
        %3551 = vmatpush1.msra.mxu0 0.0
        %3552 = vmatprep.subr.mxu0 0.0
        %3553 = vmatpush1.msra.mxu0 0.0
        %3554 = vmatprep.subr.mxu0 0.0
        %3555 = vmatpush1.msra.mxu0 0.0
        %3556 = vmatprep.subr.mxu0 0.0
        %3557 = vmatpush1.msra.mxu0 0.0
        %3558 = vmatprep.subr.mxu0 0.0
        %3559 = vmatpush1.msra.mxu0 0.0
        %3560 = vmatprep.subr.mxu0 0.0
        %3561 = vmatpush1.msra.mxu0 0.0
        %3562 = vmatprep.subr.mxu0 0.0
        %3563 = vmatpush1.msra.mxu0 0.0
        %3564 = vmatprep.subr.mxu0 0.0
        %3565 = vmatpush1.msra.mxu0 0.0
        %3566 = vmatprep.subr.mxu0 0.0
        %3567 = vmatpush1.msra.mxu0 0.0
        %3568 = vmatprep.subr.mxu0 0.0
        %3569 = vmatpush1.msra.mxu0 0.0
        %3570 = vmatprep.subr.mxu0 0.0
        %3571 = vmatpush1.msra.mxu0 0.0
        %3572 = vmatprep.subr.mxu0 0.0
        %3573 = vmatpush1.msra.mxu0 0.0
        %3574 = vmatprep.subr.mxu0 0.0
        %3575 = vmatpush1.msra.mxu0 0.0
        %3576 = vmatprep.subr.mxu0 0.0
        %3577 = vmatpush1.msra.mxu0 0.0
        %3578 = vmatprep.subr.mxu0 0.0
        %3579 = vmatpush1.msra.mxu0 0.0
        %3580 = vmatprep.subr.mxu0 0.0
        %3581 = vmatpush1.msra.mxu0 0.0
        %3582 = vmatprep.subr.mxu0 0.0
        %3583 = vmatpush1.msra.mxu0 0.0
        %3584 = vmatprep.subr.mxu0 0.0
        %3585 = vmatpush1.msra.mxu0 0.0
        %3586 = vmatprep.subr.mxu0 0.0
        %3587 = vmatpush1.msra.mxu0 0.0
        %3588 = vmatprep.subr.mxu0 0.0
        %3589 = vmatpush1.msra.mxu0 0.0
        %3590 = vmatprep.subr.mxu0 0.0
        %3591 = vmatpush1.msra.mxu0 0.0
        %3592 = vmatprep.subr.mxu0 0.0
        %3593 = vmatpush1.msra.mxu0 0.0
        %3594 = vmatprep.subr.mxu0 0.0
        %3595 = vmatpush1.msra.mxu0 0.0
        %3596 = vmatprep.subr.mxu0 0.0
        %3597 = vmatpush1.msra.mxu0 0.0
        %3598 = vmatprep.subr.mxu0 0.0
        %3599 = vmatpush1.msra.mxu0 0.0
        %3600 = vmatprep.subr.mxu0 0.0
        %3601 = vmatpush1.msra.mxu0 0.0
        %3602 = vmatprep.subr.mxu0 0.0
        %3603 = vmatpush1.msra.mxu0 0.0
        %3604 = vmatprep.subr.mxu0 0.0
        %3605 = vmatpush1.msra.mxu0 0.0
        %3606 = vmatprep.mubr.f32.mxu0 0.0
        %3607 = vmatmul.mubr.f32.gmra.mrb[0].mxu0 %v3536
        %v3608 = vpop.f32.mrb[0].mxu0
        %v3609 = vadd.f32 0.0, %v3608
        %v3610 = vpop.f32.mrb[0].mxu0
        %3611 = vdwg.mxu0
        %v3614 = vunpack.c.l.s4 1966171168
        %v3615 = vunpack.c.0.s8 %v3614
        %v3616 = vlaneseq
        %v3617 = vshrl.u32 %v3616, 7
        %v3618 = vsub.s32 %v3615, %v3617
        %v3619 = vrot.slane %v3609, %v3618
        %v3620 = vcombine.high %v3619, %v3619
        %v3622 = vunpack.c.l.s4 1966171168
        %v3623 = vunpack.c.0.s8 %v3622
        %v3624 = vlaneseq
        %v3625 = vshrl.u32 %v3624, 7
        %v3626 = vsub.s32 %v3623, %v3625
        %v3627 = vrot.slane %v3619, %v3626
        %v3629 = vunpack.c.l.s4 1966171168
        %v3630 = vunpack.c.0.s8 %v3629
        %v3631 = vlaneseq
        %v3632 = vshrl.u32 %v3631, 7
        %v3633 = vsub.s32 %v3630, %v3632
        %v3634 = vrot.slane %v3620, %v3633
        %v3635 = vcombine.high %v3627, %v3627
        %v3636 = vcombine.high %v3634, %v3634
        %vm3641 = vcmask 253952
        %3642 = vst.msk [vmem:[%s531] sm:$0x1] %vm3641, %v3627
        %3643 = vst.msk [vmem:[%s531 + $0x4] sm:$0x1] %vm3641, %v3634
        %3644 = vst.msk [vmem:[%s531 + $0x8] sm:$0x1] %vm3641, %v3635
        %3645 = vst.msk [vmem:[%s531 + $0xc] sm:$0x1] %vm3641, %v3636
        %v3646 = vld [vmem:[%s2251] sm:$0xf]
        %v3647 = vld [vmem:[#allocation22] sm:$0x7]
        %3649 = vrot.lane.b32.xlu0 %v3646, 127
        %v3650 = vpop.permute.xlu0 %3649
        %v3651 = vsel %vm3535, %v3650, 0
        %v3654 = vsel %vm3538, %v3647, 0
        %3656 = vmatprep.subr.mxu0 0.0
        %3657 = vmatpush1.msra.mxu0 %v3654
        %3658 = vmatprep.subr.mxu0 0.0
        %3659 = vmatpush1.msra.mxu0 0.0
        %3660 = vmatprep.subr.mxu0 0.0
        %3661 = vmatpush1.msra.mxu0 0.0
        %3662 = vmatprep.subr.mxu0 0.0
        %3663 = vmatpush1.msra.mxu0 0.0
        %3664 = vmatprep.subr.mxu0 0.0
        %3665 = vmatpush1.msra.mxu0 0.0
        %3666 = vmatprep.subr.mxu0 0.0
        %3667 = vmatpush1.msra.mxu0 0.0
        %3668 = vmatprep.subr.mxu0 0.0
        %3669 = vmatpush1.msra.mxu0 0.0
        %3670 = vmatprep.subr.mxu0 0.0
        %3671 = vmatpush1.msra.mxu0 0.0
        %3672 = vmatprep.subr.mxu0 0.0
        %3673 = vmatpush1.msra.mxu0 0.0
        %3674 = vmatprep.subr.mxu0 0.0
        %3675 = vmatpush1.msra.mxu0 0.0
        %3676 = vmatprep.subr.mxu0 0.0
        %3677 = vmatpush1.msra.mxu0 0.0
        %3678 = vmatprep.subr.mxu0 0.0
        %3679 = vmatpush1.msra.mxu0 0.0
        %3680 = vmatprep.subr.mxu0 0.0
        %3681 = vmatpush1.msra.mxu0 0.0
        %3682 = vmatprep.subr.mxu0 0.0
        %3683 = vmatpush1.msra.mxu0 0.0
        %3684 = vmatprep.subr.mxu0 0.0
        %3685 = vmatpush1.msra.mxu0 0.0
        %3686 = vmatprep.subr.mxu0 0.0
        %3687 = vmatpush1.msra.mxu0 0.0
        %3688 = vmatprep.subr.mxu0 0.0
        %3689 = vmatpush1.msra.mxu0 0.0
        %3690 = vmatprep.subr.mxu0 0.0
        %3691 = vmatpush1.msra.mxu0 0.0
        %3692 = vmatprep.subr.mxu0 0.0
        %3693 = vmatpush1.msra.mxu0 0.0
        %3694 = vmatprep.subr.mxu0 0.0
        %3695 = vmatpush1.msra.mxu0 0.0
        %3696 = vmatprep.subr.mxu0 0.0
        %3697 = vmatpush1.msra.mxu0 0.0
        %3698 = vmatprep.subr.mxu0 0.0
        %3699 = vmatpush1.msra.mxu0 0.0
        %3700 = vmatprep.subr.mxu0 0.0
        %3701 = vmatpush1.msra.mxu0 0.0
        %3702 = vmatprep.subr.mxu0 0.0
        %3703 = vmatpush1.msra.mxu0 0.0
        %3704 = vmatprep.subr.mxu0 0.0
        %3705 = vmatpush1.msra.mxu0 0.0
        %3706 = vmatprep.subr.mxu0 0.0
        %3707 = vmatpush1.msra.mxu0 0.0
        %3708 = vmatprep.subr.mxu0 0.0
        %3709 = vmatpush1.msra.mxu0 0.0
        %3710 = vmatprep.subr.mxu0 0.0
        %3711 = vmatpush1.msra.mxu0 0.0
        %3712 = vmatprep.subr.mxu0 0.0
        %3713 = vmatpush1.msra.mxu0 0.0
        %3714 = vmatprep.subr.mxu0 0.0
        %3715 = vmatpush1.msra.mxu0 0.0
        %3716 = vmatprep.subr.mxu0 0.0
        %3717 = vmatpush1.msra.mxu0 0.0
        %3718 = vmatprep.subr.mxu0 0.0
        %3719 = vmatpush1.msra.mxu0 0.0
        %3720 = vmatprep.mubr.f32.mxu0 0.0
        %3721 = vmatmul.mubr.f32.gmra.mrb[0].mxu0 %v3651
        %v3722 = vpop.f32.mrb[0].mxu0
        %v3723 = vadd.f32 0.0, %v3722
        %v3724 = vpop.f32.mrb[0].mxu0
        %3725 = vdwg.mxu0
        %v3728 = vunpack.c.l.s4 1966171168
        %v3729 = vunpack.c.0.s8 %v3728
        %v3730 = vlaneseq
        %v3731 = vshrl.u32 %v3730, 7
        %v3732 = vsub.s32 %v3729, %v3731
        %v3733 = vrot.slane %v3723, %v3732
        %v3734 = vcombine.high %v3733, %v3733
        %v3736 = vunpack.c.l.s4 1966171168
        %v3737 = vunpack.c.0.s8 %v3736
        %v3738 = vlaneseq
        %v3739 = vshrl.u32 %v3738, 7
        %v3740 = vsub.s32 %v3737, %v3739
        %v3741 = vrot.slane %v3733, %v3740
        %v3743 = vunpack.c.l.s4 1966171168
        %v3744 = vunpack.c.0.s8 %v3743
        %v3745 = vlaneseq
        %v3746 = vshrl.u32 %v3745, 7
        %v3747 = vsub.s32 %v3744, %v3746
        %v3748 = vrot.slane %v3734, %v3747
        %v3749 = vcombine.high %v3741, %v3741
        %v3750 = vcombine.high %v3748, %v3748
        %3755 = vst.msk [vmem:[%s531 + $0x1] sm:$0x1] %vm3641, %v3741
        %3756 = vst.msk [vmem:[%s531 + $0x5] sm:$0x1] %vm3641, %v3748
        %3757 = vst.msk [vmem:[%s531 + $0x9] sm:$0x1] %vm3641, %v3749
        %3758 = vst.msk [vmem:[%s531 + $0xd] sm:$0x1] %vm3641, %v3750
        %v3759 = vld [vmem:[%s2366] sm:$0xf]
        %v3760 = vld [vmem:[#allocation22] sm:$0x7]
        %3762 = vrot.lane.b32.xlu0 %v3759, 127
        %v3763 = vpop.permute.xlu0 %3762
        %v3764 = vsel %vm3535, %v3763, 0
        %v3767 = vsel %vm3538, %v3760, 0
        %3769 = vmatprep.subr.mxu0 0.0
        %3770 = vmatpush1.msra.mxu0 %v3767
        %3771 = vmatprep.subr.mxu0 0.0
        %3772 = vmatpush1.msra.mxu0 0.0
        %3773 = vmatprep.subr.mxu0 0.0
        %3774 = vmatpush1.msra.mxu0 0.0
        %3775 = vmatprep.subr.mxu0 0.0
        %3776 = vmatpush1.msra.mxu0 0.0
        %3777 = vmatprep.subr.mxu0 0.0
        %3778 = vmatpush1.msra.mxu0 0.0
        %3779 = vmatprep.subr.mxu0 0.0
        %3780 = vmatpush1.msra.mxu0 0.0
        %3781 = vmatprep.subr.mxu0 0.0
        %3782 = vmatpush1.msra.mxu0 0.0
        %3783 = vmatprep.subr.mxu0 0.0
        %3784 = vmatpush1.msra.mxu0 0.0
        %3785 = vmatprep.subr.mxu0 0.0
        %3786 = vmatpush1.msra.mxu0 0.0
        %3787 = vmatprep.subr.mxu0 0.0
        %3788 = vmatpush1.msra.mxu0 0.0
        %3789 = vmatprep.subr.mxu0 0.0
        %3790 = vmatpush1.msra.mxu0 0.0
        %3791 = vmatprep.subr.mxu0 0.0
        %3792 = vmatpush1.msra.mxu0 0.0
        %3793 = vmatprep.subr.mxu0 0.0
        %3794 = vmatpush1.msra.mxu0 0.0
        %3795 = vmatprep.subr.mxu0 0.0
        %3796 = vmatpush1.msra.mxu0 0.0
        %3797 = vmatprep.subr.mxu0 0.0
        %3798 = vmatpush1.msra.mxu0 0.0
        %3799 = vmatprep.subr.mxu0 0.0
        %3800 = vmatpush1.msra.mxu0 0.0
        %3801 = vmatprep.subr.mxu0 0.0
        %3802 = vmatpush1.msra.mxu0 0.0
        %3803 = vmatprep.subr.mxu0 0.0
        %3804 = vmatpush1.msra.mxu0 0.0
        %3805 = vmatprep.subr.mxu0 0.0
        %3806 = vmatpush1.msra.mxu0 0.0
        %3807 = vmatprep.subr.mxu0 0.0
        %3808 = vmatpush1.msra.mxu0 0.0
        %3809 = vmatprep.subr.mxu0 0.0
        %3810 = vmatpush1.msra.mxu0 0.0
        %3811 = vmatprep.subr.mxu0 0.0
        %3812 = vmatpush1.msra.mxu0 0.0
        %3813 = vmatprep.subr.mxu0 0.0
        %3814 = vmatpush1.msra.mxu0 0.0
        %3815 = vmatprep.subr.mxu0 0.0
        %3816 = vmatpush1.msra.mxu0 0.0
        %3817 = vmatprep.subr.mxu0 0.0
        %3818 = vmatpush1.msra.mxu0 0.0
        %3819 = vmatprep.subr.mxu0 0.0
        %3820 = vmatpush1.msra.mxu0 0.0
        %3821 = vmatprep.subr.mxu0 0.0
        %3822 = vmatpush1.msra.mxu0 0.0
        %3823 = vmatprep.subr.mxu0 0.0
        %3824 = vmatpush1.msra.mxu0 0.0
        %3825 = vmatprep.subr.mxu0 0.0
        %3826 = vmatpush1.msra.mxu0 0.0
        %3827 = vmatprep.subr.mxu0 0.0
        %3828 = vmatpush1.msra.mxu0 0.0
        %3829 = vmatprep.subr.mxu0 0.0
        %3830 = vmatpush1.msra.mxu0 0.0
        %3831 = vmatprep.subr.mxu0 0.0
        %3832 = vmatpush1.msra.mxu0 0.0
        %3833 = vmatprep.mubr.f32.mxu0 0.0
        %3834 = vmatmul.mubr.f32.gmra.mrb[0].mxu0 %v3764
        %v3835 = vpop.f32.mrb[0].mxu0
        %v3836 = vadd.f32 0.0, %v3835
        %v3837 = vpop.f32.mrb[0].mxu0
        %3838 = vdwg.mxu0
        %v3841 = vunpack.c.l.s4 1966171168
        %v3842 = vunpack.c.0.s8 %v3841
        %v3843 = vlaneseq
        %v3844 = vshrl.u32 %v3843, 7
        %v3845 = vsub.s32 %v3842, %v3844
        %v3846 = vrot.slane %v3836, %v3845
        %v3847 = vcombine.high %v3846, %v3846
        %v3849 = vunpack.c.l.s4 1966171168
        %v3850 = vunpack.c.0.s8 %v3849
        %v3851 = vlaneseq
        %v3852 = vshrl.u32 %v3851, 7
        %v3853 = vsub.s32 %v3850, %v3852
        %v3854 = vrot.slane %v3846, %v3853
        %v3856 = vunpack.c.l.s4 1966171168
        %v3857 = vunpack.c.0.s8 %v3856
        %v3858 = vlaneseq
        %v3859 = vshrl.u32 %v3858, 7
        %v3860 = vsub.s32 %v3857, %v3859
        %v3861 = vrot.slane %v3847, %v3860
        %v3862 = vcombine.high %v3854, %v3854
        %v3863 = vcombine.high %v3861, %v3861
        %3868 = vst.msk [vmem:[%s531 + $0x2] sm:$0x1] %vm3641, %v3854
        %3869 = vst.msk [vmem:[%s531 + $0x6] sm:$0x1] %vm3641, %v3861
        %3870 = vst.msk [vmem:[%s531 + $0xa] sm:$0x1] %vm3641, %v3862
        %3871 = vst.msk [vmem:[%s531 + $0xe] sm:$0x1] %vm3641, %v3863
        %s3872 = sand.u32 %s277, 1
        %s3873 = scalar_lea.sflag [#allocation7], %s3872
        %s3874 = sand.u32 %s277, 1
        %s3875 = smul.addr %s3874, 16
        %s3876 = scalar_lea.vmem [#allocation23], %s3875
        // Predicated region
        $region109: #{esa_forward.4} parent=63 // pred_check
          %p3877 = pneg %p287
        $region110: #{esa_forward.4} parent=63 // pred_check_branch
          %3879 = sbr.rel (%p3877) target = $region112
        $region111: #{esa_forward.4} parent=63 // pred_region
          %s3881 = ssub.s32 256, 256
          %3882 = vsyncadd %s3873, %s3881
          %s3883 = smul.addr %s33, 4
          %s3884 = smul.addr %s3883, 64
          %s3885 = scalar_lea.hbm %s11, %s3884
          %s3886 = sshll.u32 %s3876, 4
          %s3887 = int_to_ptr.vmem [resolvable:$true] %s3886
          %3892 = dma.vmem_to_hbm [thread:$0]  %s3887, 256, %s3885, %s3873, 64, 64, 4
        $region112: #{esa_forward.4} parent=63 // pred_fallthru
          _
      $region64: #{esa_forward.4} parent=5 // pred_fallthru
        _
      %p3893 = scmp.le.s32.totalorder 2, %s28
      // Predicated region
      $region113: #{esa_forward.4} parent=5 // pred_check
        %p3894 = pneg %p3893
      $region114: #{esa_forward.4} parent=5 // pred_check_branch
        %3896 = sbr.rel (%p3894) target = $region116
      $region115: #{esa_forward.4} parent=5 // pred_region
        %s3897 = ssub.s32 %s28, 2
        // Predicated region
        $region117: #{esa_forward.4} parent=115 // pred_check
          %p3898 = pneg %p293
        $region118: #{esa_forward.4} parent=115 // pred_check_branch
          %3900 = sbr.rel (%p3898) target = $region120
        $region119: #{esa_forward.4} parent=115 // pred_region
          %s3901 = sand.u32 %s278, 1
          %s3902 = scalar_lea.sflag [#allocation7], %s3901
          %s3903 = sand.u32 %s278, 1
          %s3904 = smul.addr %s3903, 16
          %s3905 = scalar_lea.vmem [#allocation23], %s3904
          %3906 = dma.done %s3902, 256
        $region120: #{esa_forward.4} parent=115 // pred_fallthru
          _
      $region116: #{esa_forward.4} parent=5 // pred_fallthru
        _
    $region6: #{esa_forward.4} parent=1 // loop_footer
      %s32 = sadd.s32 1, %s28
    $region7: #{esa_forward.4} parent=1 // loop_footer_branch
      %27 = sbr.rel target = $region3
    $region8: #{esa_forward.4} parent=1 // loop_exit
      _
    %3907 = vsyncpa [#allocation6], 1
    %s3908 = scalar_lea.sflag [#allocation6], 1
    %3909 = vsyncpa %s3908, 1
    %3910 = vsyncpa [#allocation9], 1
    %3911 = vsyncpa [#allocation12], 1
    %3912 = vsyncpa [#allocation15], 1
    %3913 = vsyncpa [#allocation18], 1
    %3914 = vsyncpa [#allocation21], 1
    %3915 = vsyncpa [#allocation7], 1
    %s3916 = scalar_lea.sflag [#allocation7], 1
    %3917 = vsyncpa %s3916, 1

</llo_original>
